<compile_context>
chip_gen: v7x
topology: tpu7x:2x2x1
jax: 0.10.0
libtpu: 0.0.40
codegen_flags: <defaults>
</compile_context>

<pallas_src>
import math

import jax
import jax.numpy as jnp
from jax.experimental import pallas as pl
from jax.experimental.pallas import tpu as pltpu

B = 8                    # batch
N_FEATURES = 256         # n_features
N_LANDCOVER = 4
M_ENV = min(300, N_FEATURES - N_LANDCOVER)   # 252
SPLIT = N_FEATURES // 3                      # 85
C_CNN = 32
CD_CHUNK = 8                                 # channels per w_cd DMA chunk
N_CD_CHUNKS = C_CNN // CD_CHUNK              # 4
BN_EPS = 1e-5
SELU_ALPHA = 1.6732632423543772
SELU_SCALE = 1.0507009873554805


def _selu(v):
    neg = SELU_ALPHA * (jnp.exp(jnp.minimum(v, 0.0)) - 1.0)
    return SELU_SCALE * jnp.where(v > 0, v, neg)


def _gelu(v):
    # tanh-approx gelu -> EUP slot (otherwise idle); slight numerics delta vs
    # PyTorch's exact-erf F.gelu, well inside the 3e-2 test tolerance.
    return jax.nn.gelu(v, approximate=True)


def full_entropy_kernel(
    x_ref, xl_ref, xr_ref,
    w_l1_ref, b_l1_ref,
    w_f2_ref, b_f2_ref,
    w_pmd_ref, b_pmd_ref,
    conv_c_ref,
    w_cd_hbm, b_cd_ref,
    w_i1_hbm, b_i1_ref,
    w_i2_hbm, b_i2_ref,
    s_i2_ref, t_i2_ref,
    k_ref, alpha_ref,
    w_se_ref, w_sf_ref, b_s_ref,
    w_o_ref, b_o_ref,
    o_ref,
    w_cd_v, w_i1_v, w_i2_v, dma_sems,
):
    f32, bf16 = jnp.float32, jnp.bfloat16

    # ---- Kick off the big weight DMAs; overlap with FFN/PMFFNN + conv work ----
    cd_copies = []
    for kc in range(N_CD_CHUNKS):
        c0 = kc * CD_CHUNK
        cp = pltpu.make_async_copy(
            w_cd_hbm.at[c0:c0 + CD_CHUNK],
            w_cd_v.at[c0:c0 + CD_CHUNK],
            dma_sems.at[kc])
        cp.start()
        cd_copies.append(cp)
    cp_i1 = pltpu.make_async_copy(w_i1_hbm, w_i1_v, dma_sems.at[N_CD_CHUNKS])
    cp_i2 = pltpu.make_async_copy(w_i2_hbm, w_i2_v, dma_sems.at[N_CD_CHUNKS + 1])
    cp_i1.start()
    cp_i2.start()

    x = x_ref[...]                               # (B, F) f32
    x_bf = x.astype(bf16)

    # ---- FFN + PMFFNN first layers: ONE fused (256, 448) GEMM ------------------
    h1 = jnp.dot(x_bf, w_l1_ref[...], preferred_element_type=f32) + b_l1_ref[...]
    hf = _gelu(h1[:, :256])                      # ffn branch1 (BN1 folded into w_f2)
    hp = _selu(h1[:, 256:])                      # pm branches 1-3 (BNs folded into w_pmd)

    h2 = jnp.dot(hf.astype(bf16), w_f2_ref[...], preferred_element_type=f32) + b_f2_ref[...]
    ffn_out = _gelu(h2)                          # ffn_bn2 folded into w_i1 / w_sf   (B,128)

    hp2 = jnp.dot(hp.astype(bf16), w_pmd_ref[...], preferred_element_type=f32) + b_pmd_ref[...]
    pm_out = _selu(hp2)                          # pm_bn4 folded into w_i1           (B,128)

    # ---- CNN branch: per-channel conv(k=3,pad=1) -> SELU -> MXU accumulate -----
    xl = xl_ref[...]                             # x[:, i-1]
    xr = xr_ref[...]                             # x[:, i+1]
    acc = jnp.zeros((x.shape[0], 128), f32)
    for c in range(C_CNN):
        if c % CD_CHUNK == 0:                    # chunk of w_cd now needed
            cd_copies[c // CD_CHUNK].wait()
        conv_c = (conv_c_ref[0, c] * xl + conv_c_ref[1, c] * x
                  + conv_c_ref[2, c] * xr + conv_c_ref[3, c])            # (B, F)
        act_c = _selu(conv_c).astype(bf16)       # cnn_bn folded into w_cd
        acc = acc + jnp.dot(act_c, w_cd_v[c], preferred_element_type=f32)
    cnn_out = _selu(acc + b_cd_ref[...])         # cnn_bn2 folded into w_i1          (B,128)

    # ---- Integrated trunk -------------------------------------------------------
    cat = jnp.concatenate([ffn_out, cnn_out, pm_out], axis=-1)           # (B, 384)
    cp_i1.wait()
    t1 = jnp.dot(cat.astype(bf16), w_i1_v[...], preferred_element_type=f32) + b_i1_ref[...]
    g1 = _gelu(t1)                               # int_bn1 folded into w_i2          (B,512)
    cp_i2.wait()
    t2 = jnp.dot(g1.astype(bf16), w_i2_v[...], preferred_element_type=f32) + b_i2_ref[...]
    integ = _gelu(t2) * s_i2_ref[...] + t_i2_ref[...]                    # (B, 256)

    # ---- EntropyLayer (lane-masked softmax over first 4 features) --------------
    lane = jax.lax.broadcasted_iota(jnp.int32, integ.shape, 1)
    z = jnp.where(lane < N_LANDCOVER, integ, -1e30)
    m = jnp.max(z, axis=-1, keepdims=True)
    e = jnp.exp(z - m)                           # exactly 0 on masked-out lanes
    p = e / jnp.sum(e, axis=-1, keepdims=True)
    ent = -(k_ref[...] * jnp.sum(p * jnp.log(p + 1e-10), axis=-1, keepdims=True))
    env = jnp.sum(integ * alpha_ref[...], axis=-1, keepdims=True)        # alpha_full
    entropy_out = ent + env                                              # (B, 1)

    # ---- Sigmoid heads (3 fused) + output ---------------------------------------
    # combined = [entropy_out | ffn_out] decomposed: matmul + rank-1 update.
    pre = (jnp.dot(ffn_out.astype(bf16), w_sf_ref[...], preferred_element_type=f32)
           + entropy_out * w_se_ref[...] + b_s_ref[...])                 # (B, 384)
    sig = jax.nn.sigmoid(pre)
    # output_layer has N=1 -> lane-reduce instead of a skinny matmul.
    o_ref[...] = jnp.sum(sig * w_o_ref[...], axis=-1, keepdims=True) + b_o_ref[...]


def _bn_fold(bn):
    s = bn["gamma"] / jnp.sqrt(bn["var"] + BN_EPS)
    t = bn["beta"] - bn["mean"] * s
    return s, t


def full_entropy_pallas(x, p):
    f32, bf16 = jnp.float32, jnp.bfloat16
    batch = x.shape[0]
    row = lambda v: v.reshape(1, -1).astype(f32)

    # Shifted copies of x for the Conv1d(k=3, pad=1) taps (halo prep only).
    xl = jnp.pad(x, ((0, 0), (1, 0)))[:, :N_FEATURES]     # x[:, i-1]
    xr = jnp.pad(x, ((0, 0), (0, 1)))[:, 1:]              # x[:, i+1]

    s_f1, t_f1 = _bn_fold(p["ffn_bn1"]); s_f2, t_f2 = _bn_fold(p["ffn_bn2"])
    s_c1, t_c1 = _bn_fold(p["cnn_bn"]);  s_c2, t_c2 = _bn_fold(p["cnn_bn2"])
    s_p1, t_p1 = _bn_fold(p["pm_bn1"]);  s_p2, t_p2 = _bn_fold(p["pm_bn2"])
    s_p3, t_p3 = _bn_fold(p["pm_bn3"]);  s_p4, t_p4 = _bn_fold(p["pm_bn4"])
    s_i1, t_i1 = _bn_fold(p["int_bn1"]); s_i2, t_i2 = _bn_fold(p["int_bn2"])

    # --- Fused first layer: [ffn1 | pm1 | pm2 | pm3] block-placed (256, 448) ---
    w_l1 = jnp.zeros((N_FEATURES, 448), f32)
    w_l1 = w_l1.at[:, :256].set(p["ffn1_w"])
    w_l1 = w_l1.at[:SPLIT, 256:320].set(p["pm1_w"])
    w_l1 = w_l1.at[SPLIT:2 * SPLIT, 320:384].set(p["pm2_w"])
    w_l1 = w_l1.at[2 * SPLIT:, 384:448].set(p["pm3_w"])
    b_l1 = jnp.concatenate([p["ffn1_b"], p["pm1_b"], p["pm2_b"], p["pm3_b"]])

    # --- BN folds into the consuming linear layers (exact, eval-mode) ----------
    w_f2f = s_f1[:, None] * p["ffn2_w"]
    b_f2f = p["ffn2_b"] + t_f1 @ p["ffn2_w"]

    s_pm = jnp.concatenate([s_p1, s_p2, s_p3])
    t_pm = jnp.concatenate([t_p1, t_p2, t_p3])
    w_pmdf = s_pm[:, None] * p["pm_dense_w"]
    b_pmdf = p["pm_dense_b"] + t_pm @ p["pm_dense_w"]

    w_cd = p["cnn_dense_w"].reshape(C_CNN, N_FEATURES, 128)   # flat c*F+i -> [c,i,o]
    w_cdf = s_c1[:, None, None] * w_cd
    b_cdf = p["cnn_dense_b"] + jnp.einsum("c,cfo->o", t_c1, w_cd)

    scale_cat = jnp.concatenate([s_f2, s_c2, s_p4])           # (384,)
    shift_cat = jnp.concatenate([t_f2, t_c2, t_p4])
    w_i1f = scale_cat[:, None] * p["int1_w"]
    b_i1f = p["int1_b"] + shift_cat @ p["int1_w"]

    w_i2f = s_i1[:, None] * p["int2_w"]
    b_i2f = p["int2_b"] + t_i1 @ p["int2_w"]

    # --- Conv taps/bias as a single SMEM scalar table (4, C) --------------------
    conv_c = jnp.stack([p["conv_w"][:, 0, 0], p["conv_w"][:, 0, 1],
                        p["conv_w"][:, 0, 2], p["conv_b"]]).astype(f32)   # (4, 32)

    # --- Sigmoid heads fused; row 0 of each (129,128) weight hits entropy_out ---
    w_se = jnp.concatenate([p["sig1_w"][0:1], p["sig2_w"][0:1], p["sig3_w"][0:1]], axis=1)
    w_sf = jnp.concatenate([p["sig1_w"][1:], p["sig2_w"][1:], p["sig3_w"][1:]], axis=1)
    b_s = jnp.concatenate([p["sig1_b"], p["sig2_b"], p["sig3_b"]])
    w_sff = s_f2[:, None] * w_sf                               # ffn_bn2 fold
    b_sf = b_s + t_f2 @ w_sf

    alpha_full = jnp.concatenate([jnp.zeros((N_LANDCOVER,), f32), p["alpha"]])

    vmem = pl.BlockSpec(memory_space=pltpu.MemorySpace.VMEM)
    smem = pl.BlockSpec(memory_space=pltpu.MemorySpace.SMEM)
    hbm = pl.BlockSpec(memory_space=pl.ANY)                    # manual DMA targets

    args_specs = [
        (x.astype(f32), vmem), (xl.astype(f32), vmem), (xr.astype(f32), vmem),
        (w_l1.astype(bf16), vmem), (row(b_l1), vmem),
        (w_f2f.astype(bf16), vmem), (row(b_f2f), vmem),
        (w_pmdf.astype(bf16), vmem), (row(b_pmdf), vmem),
        (conv_c, smem),
        (w_cdf.astype(bf16), hbm), (row(b_cdf), vmem),
        (w_i1f.astype(bf16), hbm), (row(b_i1f), vmem),
        (w_i2f.astype(bf16), hbm), (row(b_i2f), vmem),
        (row(s_i2), vmem), (row(t_i2), vmem),
        (p["k"].reshape(1, 1).astype(f32), vmem), (row(alpha_full), vmem),
        (row(w_se), vmem), (w_sff.astype(bf16), vmem), (row(b_sf), vmem),
        (row(p["out_w"][:, 0]), vmem), (p["out_b"].reshape(1, 1).astype(f32), vmem),
    ]
    args = [a for a, _ in args_specs]
    in_specs = [s for _, s in args_specs]

    flops = 2 * batch * (N_FEATURES * 448 + 256 * 128 + 192 * 128
                         + C_CNN * N_FEATURES * 128
                         + 384 * 512 + 512 * 256 + 128 * 384 + 384) \
            + 6 * batch * C_CNN * N_FEATURES
    transcendentals = batch * (448 + 128 + 128 + C_CNN * N_FEATURES + 128
                               + 512 + 256 + 256 + 384 + 384)
    bytes_accessed = int(sum(int(a.size) * a.dtype.itemsize for a in args) + batch * 4)

    return pl.pallas_call(
        full_entropy_kernel,
        out_shape=jax.ShapeDtypeStruct((batch, 1), jnp.float32),
        in_specs=in_specs,
        out_specs=pl.BlockSpec(memory_space=pltpu.MemorySpace.VMEM),
        scratch_shapes=[
            pltpu.VMEM((C_CNN, N_FEATURES, 128), bf16),   # w_cd landing buffer
            pltpu.VMEM((384, 512), bf16),                 # int1_w landing buffer
            pltpu.VMEM((512, 256), bf16),                 # int2_w landing buffer
            pltpu.SemaphoreType.DMA((N_CD_CHUNKS + 2,)),
        ],
        cost_estimate=pl.CostEstimate(flops=int(flops),
                                      transcendentals=int(transcendentals),
                                      bytes_accessed=bytes_accessed),
    )(*args)


def init_params(key):
    f32 = jnp.float32
    keys = iter(jax.random.split(key, 64))

    def lin(kin, kout):
        kw, kb = jax.random.split(next(keys))
        w = jax.random.normal(kw, (kin, kout), f32) / math.sqrt(kin)
        b = 0.02 * jax.random.normal(kb, (kout,), f32)
        return w, b

    def bn(n):
        kg, kb, km, kv = jax.random.split(next(keys), 4)
        return {
            "gamma": 1.0 + 0.1 * jax.random.normal(kg, (n,), f32),
            "beta": 0.1 * jax.random.normal(kb, (n,), f32),
            "mean": 0.2 * jax.random.normal(km, (n,), f32),
            "var": jax.random.uniform(kv, (n,), f32, minval=0.5, maxval=1.5),
        }

    p = {}
    p["ffn1_w"], p["ffn1_b"] = lin(N_FEATURES, 256); p["ffn_bn1"] = bn(256)
    p["ffn2_w"], p["ffn2_b"] = lin(256, 128);        p["ffn_bn2"] = bn(128)
    p["conv_w"] = jax.random.normal(next(keys), (C_CNN, 1, 3), f32) / math.sqrt(3.0)
    p["conv_b"] = 0.02 * jax.random.normal(next(keys), (C_CNN,), f32)
    p["cnn_bn"] = bn(C_CNN)
    p["cnn_dense_w"], p["cnn_dense_b"] = lin(C_CNN * N_FEATURES, 128)
    p["cnn_bn2"] = bn(128)
    p["pm1_w"], p["pm1_b"] = lin(SPLIT, 64);                      p["pm_bn1"] = bn(64)
    p["pm2_w"], p["pm2_b"] = lin(SPLIT, 64);                      p["pm_bn2"] = bn(64)
    p["pm3_w"], p["pm3_b"] = lin(N_FEATURES - 2 * SPLIT, 64);     p["pm_bn3"] = bn(64)
    p["pm_dense_w"], p["pm_dense_b"] = lin(192, 128);             p["pm_bn4"] = bn(128)
    p["int1_w"], p["int1_b"] = lin(384, 512);                     p["int_bn1"] = bn(512)
    p["int2_w"], p["int2_b"] = lin(512, 256);                     p["int_bn2"] = bn(256)
    p["k"] = jnp.ones((1,), f32)
    p["alpha"] = 0.05 * jax.random.normal(next(keys), (M_ENV,), f32)
    p["sig1_w"], p["sig1_b"] = lin(129, 128)
    p["sig2_w"], p["sig2_b"] = lin(129, 128)
    p["sig3_w"], p["sig3_b"] = lin(129, 128)
    p["out_w"], p["out_b"] = lin(384, 1)
    return p


def full_entropy_ref(x, p):
    """Pure-JAX f32 reference mirroring the PyTorch forward (eval mode)."""
    def bn(v, d):
        return (v - d["mean"]) / jnp.sqrt(d["var"] + BN_EPS) * d["gamma"] + d["beta"]

    gelu = lambda v: jax.nn.gelu(v, approximate=False)   # PyTorch F.gelu default (exact erf)

    ffn = bn(gelu(x @ p["ffn1_w"] + p["ffn1_b"]), p["ffn_bn1"])
    ffn_out = bn(gelu(ffn @ p["ffn2_w"] + p["ffn2_b"]), p["ffn_bn2"])

    conv = jax.lax.conv_general_dilated(
        x[:, None, :], p["conv_w"], window_strides=(1,), padding=[(1, 1)],
        dimension_numbers=("NCH", "OIH", "NCH")) + p["conv_b"][None, :, None]
    d = p["cnn_bn"]
    cnn = jax.nn.selu(conv)
    cnn = ((cnn - d["mean"][None, :, None]) / jnp.sqrt(d["var"] + BN_EPS)[None, :, None]
           * d["gamma"][None, :, None] + d["beta"][None, :, None])
    cnn = cnn.reshape(cnn.shape[0], -1)
    cnn_out = bn(jax.nn.selu(cnn @ p["cnn_dense_w"] + p["cnn_dense_b"]), p["cnn_bn2"])

    b1 = bn(jax.nn.selu(x[:, :SPLIT] @ p["pm1_w"] + p["pm1_b"]), p["pm_bn1"])
    b2 = bn(jax.nn.selu(x[:, SPLIT:2 * SPLIT] @ p["pm2_w"] + p["pm2_b"]), p["pm_bn2"])
    b3 = bn(jax.nn.selu(x[:, 2 * SPLIT:] @ p["pm3_w"] + p["pm3_b"]), p["pm_bn3"])
    pm = jnp.concatenate([b1, b2, b3], axis=1)
    pm_out = bn(jax.nn.selu(pm @ p["pm_dense_w"] + p["pm_dense_b"]), p["pm_bn4"])

    cat = jnp.concatenate([ffn_out, cnn_out, pm_out], axis=1)
    integ = bn(gelu(cat @ p["int1_w"] + p["int1_b"]), p["int_bn1"])
    integ = bn(gelu(integ @ p["int2_w"] + p["int2_b"]), p["int_bn2"])

    pi = jax.nn.softmax(integ[:, :N_LANDCOVER], axis=-1)
    fj = integ[:, N_LANDCOVER:]
    ent = -p["k"][0] * jnp.sum(pi * jnp.log(pi + 1e-10), axis=-1)
    env = jnp.sum(p["alpha"][: fj.shape[1]] * fj, axis=-1)
    entropy_out = (ent + env)[:, None]

    comb = jnp.concatenate([entropy_out, ffn_out], axis=1)
    s1 = jax.nn.sigmoid(comb @ p["sig1_w"] + p["sig1_b"])
    s2 = jax.nn.sigmoid(comb @ p["sig2_w"] + p["sig2_b"])
    s3 = jax.nn.sigmoid(comb @ p["sig3_w"] + p["sig3_b"])
    sc = jnp.concatenate([s1, s2, s3], axis=1)
    return sc @ p["out_w"] + p["out_b"]


if __name__ == "__main__":
    key = jax.random.PRNGKey(0)
    kx, kp = jax.random.split(key)
    x = jax.random.normal(kx, (B, N_FEATURES), jnp.float32)
    params = init_params(kp)

    out = full_entropy_pallas(x, params)
    out = jax.block_until_ready(out)

    ref = full_entropy_ref(x, params)
    assert out.shape == (B, 1)
    err = float(jnp.max(jnp.abs(out - ref)))
    assert jnp.allclose(out, ref, rtol=3e-2, atol=3e-2), f"mismatch vs reference, max |err|={err}"

    print("KERNEL_OK")
</pallas_src>

<mosaic_0001>
module attributes {stable_mosaic.version = 11 : i64} {
  func.func @full_entropy_kernel(%arg0: memref<8x256xf32, #tpu.memory_space<vmem>>, %arg1: memref<8x256xf32, #tpu.memory_space<vmem>>, %arg2: memref<8x256xf32, #tpu.memory_space<vmem>>, %arg3: memref<256x448xbf16, #tpu.memory_space<vmem>>, %arg4: memref<1x448xf32, #tpu.memory_space<vmem>>, %arg5: memref<256x128xbf16, #tpu.memory_space<vmem>>, %arg6: memref<1x128xf32, #tpu.memory_space<vmem>>, %arg7: memref<192x128xbf16, #tpu.memory_space<vmem>>, %arg8: memref<1x128xf32, #tpu.memory_space<vmem>>, %arg9: memref<4x32xf32, #tpu.memory_space<smem>>, %arg10: memref<32x256x128xbf16, #tpu.memory_space<any>>, %arg11: memref<1x128xf32, #tpu.memory_space<vmem>>, %arg12: memref<384x512xbf16, #tpu.memory_space<any>>, %arg13: memref<1x512xf32, #tpu.memory_space<vmem>>, %arg14: memref<512x256xbf16, #tpu.memory_space<any>>, %arg15: memref<1x256xf32, #tpu.memory_space<vmem>>, %arg16: memref<1x256xf32, #tpu.memory_space<vmem>>, %arg17: memref<1x256xf32, #tpu.memory_space<vmem>>, %arg18: memref<1x1xf32, #tpu.memory_space<vmem>>, %arg19: memref<1x256xf32, #tpu.memory_space<vmem>>, %arg20: memref<1x384xf32, #tpu.memory_space<vmem>>, %arg21: memref<128x384xbf16, #tpu.memory_space<vmem>>, %arg22: memref<1x384xf32, #tpu.memory_space<vmem>>, %arg23: memref<1x384xf32, #tpu.memory_space<vmem>>, %arg24: memref<1x1xf32, #tpu.memory_space<vmem>>, %arg25: memref<8x1xf32, #tpu.memory_space<vmem>>, %arg26: memref<32x256x128xbf16, #tpu.memory_space<vmem>>, %arg27: memref<384x512xbf16, #tpu.memory_space<vmem>>, %arg28: memref<512x256xbf16, #tpu.memory_space<vmem>>, %arg29: memref<6x!tpu.dma_semaphore, #tpu.memory_space<semaphore_mem>>) attributes {dimension_semantics = [], scalar_prefetch = 0 : i64, scratch_operands = 4 : i64, tpu.core_type = #tpu.core_type<tc>} {
    %c0_i32 = arith.constant 0 : i32
    %c0_i32_0 = arith.constant 0 : i32
    %c0_i32_1 = arith.constant 0 : i32
    %c0_i32_2 = arith.constant 0 : i32
    %0 = tpu.memref_slice %arg10[%c0_i32_0, %c0_i32_1, %c0_i32_2] : memref<32x256x128xbf16, #tpu.memory_space<any>> -> memref<8x256x128xbf16, #tpu.memory_space<any>>
    %c0_i32_3 = arith.constant 0 : i32
    %c0_i32_4 = arith.constant 0 : i32
    %c0_i32_5 = arith.constant 0 : i32
    %1 = tpu.memref_slice %arg26[%c0_i32_3, %c0_i32_4, %c0_i32_5] : memref<32x256x128xbf16, #tpu.memory_space<vmem>> -> memref<8x256x128xbf16, #tpu.memory_space<vmem>>
    %2 = tpu.memref_slice %arg29[%c0_i32] : memref<6x!tpu.dma_semaphore, #tpu.memory_space<semaphore_mem>> -> memref<1x!tpu.dma_semaphore, #tpu.memory_space<semaphore_mem>>
    %3 = tpu.memref_squeeze %2 : memref<1x!tpu.dma_semaphore, #tpu.memory_space<semaphore_mem>> -> memref<!tpu.dma_semaphore, #tpu.memory_space<semaphore_mem>>
    tpu.enqueue_dma source(%0 : memref<8x256x128xbf16, #tpu.memory_space<any>>) target(%1 : memref<8x256x128xbf16, #tpu.memory_space<vmem>>) target_semaphore(%3 : memref<!tpu.dma_semaphore, #tpu.memory_space<semaphore_mem>>)
    %c1_i32 = arith.constant 1 : i32
    %c8_i32 = arith.constant 8 : i32
    %c0_i32_6 = arith.constant 0 : i32
    %c0_i32_7 = arith.constant 0 : i32
    %4 = tpu.memref_slice %arg10[%c8_i32, %c0_i32_6, %c0_i32_7] : memref<32x256x128xbf16, #tpu.memory_space<any>> -> memref<8x256x128xbf16, #tpu.memory_space<any>>
    %c8_i32_8 = arith.constant 8 : i32
    %c0_i32_9 = arith.constant 0 : i32
    %c0_i32_10 = arith.constant 0 : i32
    %5 = tpu.memref_slice %arg26[%c8_i32_8, %c0_i32_9, %c0_i32_10] : memref<32x256x128xbf16, #tpu.memory_space<vmem>> -> memref<8x256x128xbf16, #tpu.memory_space<vmem>>
    %6 = tpu.memref_slice %arg29[%c1_i32] : memref<6x!tpu.dma_semaphore, #tpu.memory_space<semaphore_mem>> -> memref<1x!tpu.dma_semaphore, #tpu.memory_space<semaphore_mem>>
    %7 = tpu.memref_squeeze %6 : memref<1x!tpu.dma_semaphore, #tpu.memory_space<semaphore_mem>> -> memref<!tpu.dma_semaphore, #tpu.memory_space<semaphore_mem>>
    tpu.enqueue_dma source(%4 : memref<8x256x128xbf16, #tpu.memory_space<any>>) target(%5 : memref<8x256x128xbf16, #tpu.memory_space<vmem>>) target_semaphore(%7 : memref<!tpu.dma_semaphore, #tpu.memory_space<semaphore_mem>>)
    %c2_i32 = arith.constant 2 : i32
    %c16_i32 = arith.constant 16 : i32
    %c0_i32_11 = arith.constant 0 : i32
    %c0_i32_12 = arith.constant 0 : i32
    %8 = tpu.memref_slice %arg10[%c16_i32, %c0_i32_11, %c0_i32_12] : memref<32x256x128xbf16, #tpu.memory_space<any>> -> memref<8x256x128xbf16, #tpu.memory_space<any>>
    %c16_i32_13 = arith.constant 16 : i32
    %c0_i32_14 = arith.constant 0 : i32
    %c0_i32_15 = arith.constant 0 : i32
    %9 = tpu.memref_slice %arg26[%c16_i32_13, %c0_i32_14, %c0_i32_15] : memref<32x256x128xbf16, #tpu.memory_space<vmem>> -> memref<8x256x128xbf16, #tpu.memory_space<vmem>>
    %10 = tpu.memref_slice %arg29[%c2_i32] : memref<6x!tpu.dma_semaphore, #tpu.memory_space<semaphore_mem>> -> memref<1x!tpu.dma_semaphore, #tpu.memory_space<semaphore_mem>>
    %11 = tpu.memref_squeeze %10 : memref<1x!tpu.dma_semaphore, #tpu.memory_space<semaphore_mem>> -> memref<!tpu.dma_semaphore, #tpu.memory_space<semaphore_mem>>
    tpu.enqueue_dma source(%8 : memref<8x256x128xbf16, #tpu.memory_space<any>>) target(%9 : memref<8x256x128xbf16, #tpu.memory_space<vmem>>) target_semaphore(%11 : memref<!tpu.dma_semaphore, #tpu.memory_space<semaphore_mem>>)
    %c3_i32 = arith.constant 3 : i32
    %c24_i32 = arith.constant 24 : i32
    %c0_i32_16 = arith.constant 0 : i32
    %c0_i32_17 = arith.constant 0 : i32
    %12 = tpu.memref_slice %arg10[%c24_i32, %c0_i32_16, %c0_i32_17] : memref<32x256x128xbf16, #tpu.memory_space<any>> -> memref<8x256x128xbf16, #tpu.memory_space<any>>
    %c24_i32_18 = arith.constant 24 : i32
    %c0_i32_19 = arith.constant 0 : i32
    %c0_i32_20 = arith.constant 0 : i32
    %13 = tpu.memref_slice %arg26[%c24_i32_18, %c0_i32_19, %c0_i32_20] : memref<32x256x128xbf16, #tpu.memory_space<vmem>> -> memref<8x256x128xbf16, #tpu.memory_space<vmem>>
    %14 = tpu.memref_slice %arg29[%c3_i32] : memref<6x!tpu.dma_semaphore, #tpu.memory_space<semaphore_mem>> -> memref<1x!tpu.dma_semaphore, #tpu.memory_space<semaphore_mem>>
    %15 = tpu.memref_squeeze %14 : memref<1x!tpu.dma_semaphore, #tpu.memory_space<semaphore_mem>> -> memref<!tpu.dma_semaphore, #tpu.memory_space<semaphore_mem>>
    tpu.enqueue_dma source(%12 : memref<8x256x128xbf16, #tpu.memory_space<any>>) target(%13 : memref<8x256x128xbf16, #tpu.memory_space<vmem>>) target_semaphore(%15 : memref<!tpu.dma_semaphore, #tpu.memory_space<semaphore_mem>>)
    %c4_i32 = arith.constant 4 : i32
    %16 = tpu.memref_slice %arg29[%c4_i32] : memref<6x!tpu.dma_semaphore, #tpu.memory_space<semaphore_mem>> -> memref<1x!tpu.dma_semaphore, #tpu.memory_space<semaphore_mem>>
    %17 = tpu.memref_squeeze %16 : memref<1x!tpu.dma_semaphore, #tpu.memory_space<semaphore_mem>> -> memref<!tpu.dma_semaphore, #tpu.memory_space<semaphore_mem>>
    tpu.enqueue_dma source(%arg12 : memref<384x512xbf16, #tpu.memory_space<any>>) target(%arg27 : memref<384x512xbf16, #tpu.memory_space<vmem>>) target_semaphore(%17 : memref<!tpu.dma_semaphore, #tpu.memory_space<semaphore_mem>>)
    %c5_i32 = arith.constant 5 : i32
    %18 = tpu.memref_slice %arg29[%c5_i32] : memref<6x!tpu.dma_semaphore, #tpu.memory_space<semaphore_mem>> -> memref<1x!tpu.dma_semaphore, #tpu.memory_space<semaphore_mem>>
    %19 = tpu.memref_squeeze %18 : memref<1x!tpu.dma_semaphore, #tpu.memory_space<semaphore_mem>> -> memref<!tpu.dma_semaphore, #tpu.memory_space<semaphore_mem>>
    tpu.enqueue_dma source(%arg14 : memref<512x256xbf16, #tpu.memory_space<any>>) target(%arg28 : memref<512x256xbf16, #tpu.memory_space<vmem>>) target_semaphore(%19 : memref<!tpu.dma_semaphore, #tpu.memory_space<semaphore_mem>>)
    %c0 = arith.constant 0 : index
    %c0_21 = arith.constant 0 : index
    %20 = vector.load %arg0[%c0, %c0_21] : memref<8x256xf32, #tpu.memory_space<vmem>>, vector<8x256xf32>
    %21 = arith.truncf %20 : vector<8x256xf32> to vector<8x256xbf16>
    %c0_22 = arith.constant 0 : index
    %c0_23 = arith.constant 0 : index
    %22 = vector.load %arg3[%c0_22, %c0_23] : memref<256x448xbf16, #tpu.memory_space<vmem>>, vector<256x448xbf16>
    %cst = arith.constant dense<0.000000e+00> : vector<8x448xf32>
    %23 = tpu.matmul %21, %22, %cst {dimension_numbers = #tpu.dot_dimension_numbers<[1], [0], [0], [1], [0, 0, 1, 1], [], []>} : vector<8x256xbf16>, vector<256x448xbf16>, vector<8x448xf32> -> vector<8x448xf32>
    %c0_24 = arith.constant 0 : index
    %c0_25 = arith.constant 0 : index
    %24 = vector.load %arg4[%c0_24, %c0_25] : memref<1x448xf32, #tpu.memory_space<vmem>>, vector<1x448xf32>
    %25 = vector.broadcast %24 : vector<1x448xf32> to vector<8x448xf32>
    %26 = arith.addf %23, %25 : vector<8x448xf32>
    %27 = vector.extract_strided_slice %26 {offsets = [0, 0], sizes = [8, 256], strides = [1, 1]} : vector<8x448xf32> to vector<8x256xf32>
    %28 = arith.mulf %27, %27 : vector<8x256xf32>
    %29 = arith.mulf %27, %28 : vector<8x256xf32>
    %cst_26 = arith.constant 4.471500e-02 : f32
    %30 = vector.broadcast %cst_26 : f32 to vector<8x256xf32>
    %31 = arith.mulf %30, %29 : vector<8x256xf32>
    %32 = arith.addf %27, %31 : vector<8x256xf32>
    %cst_27 = arith.constant 0.797884583 : f32
    %33 = vector.broadcast %cst_27 : f32 to vector<8x256xf32>
    %34 = arith.mulf %33, %32 : vector<8x256xf32>
    %35 = math.tanh %34 : vector<8x256xf32>
    %cst_28 = arith.constant 1.000000e+00 : f32
    %36 = vector.broadcast %cst_28 : f32 to vector<8x256xf32>
    %37 = arith.addf %36, %35 : vector<8x256xf32>
    %cst_29 = arith.constant 5.000000e-01 : f32
    %38 = vector.broadcast %cst_29 : f32 to vector<8x256xf32>
    %39 = arith.mulf %38, %37 : vector<8x256xf32>
    %40 = arith.mulf %27, %39 : vector<8x256xf32>
    %41 = vector.extract_strided_slice %26 {offsets = [0, 256], sizes = [8, 192], strides = [1, 1]} : vector<8x448xf32> to vector<8x192xf32>
    %cst_30 = arith.constant 0.000000e+00 : f32
    %42 = vector.broadcast %cst_30 : f32 to vector<8x192xf32>
    %43 = arith.minimumf %41, %42 : vector<8x192xf32>
    %44 = math.exp %43 : vector<8x192xf32>
    %cst_31 = arith.constant 1.000000e+00 : f32
    %45 = vector.broadcast %cst_31 : f32 to vector<8x192xf32>
    %46 = arith.subf %44, %45 : vector<8x192xf32>
    %cst_32 = arith.constant 1.67326319 : f32
    %47 = vector.broadcast %cst_32 : f32 to vector<8x192xf32>
    %48 = arith.mulf %47, %46 : vector<8x192xf32>
    %cst_33 = arith.constant 0.000000e+00 : f32
    %49 = vector.broadcast %cst_33 : f32 to vector<8x192xf32>
    %50 = arith.cmpf ogt, %41, %49 : vector<8x192xf32>
    %51 = arith.select %50, %41, %48 : vector<8x192xi1>, vector<8x192xf32>
    %cst_34 = arith.constant 1.05070102 : f32
    %52 = vector.broadcast %cst_34 : f32 to vector<8x192xf32>
    %53 = arith.mulf %52, %51 : vector<8x192xf32>
    %54 = arith.truncf %40 : vector<8x256xf32> to vector<8x256xbf16>
    %c0_35 = arith.constant 0 : index
    %c0_36 = arith.constant 0 : index
    %55 = vector.load %arg5[%c0_35, %c0_36] : memref<256x128xbf16, #tpu.memory_space<vmem>>, vector<256x128xbf16>
    %cst_37 = arith.constant dense<0.000000e+00> : vector<8x128xf32>
    %56 = tpu.matmul %54, %55, %cst_37 {dimension_numbers = #tpu.dot_dimension_numbers<[1], [0], [0], [1], [0, 0, 1, 1], [], []>} : vector<8x256xbf16>, vector<256x128xbf16>, vector<8x128xf32> -> vector<8x128xf32>
    %c0_38 = arith.constant 0 : index
    %c0_39 = arith.constant 0 : index
    %57 = vector.load %arg6[%c0_38, %c0_39] : memref<1x128xf32, #tpu.memory_space<vmem>>, vector<1x128xf32>
    %58 = vector.broadcast %57 : vector<1x128xf32> to vector<8x128xf32>
    %59 = arith.addf %56, %58 : vector<8x128xf32>
    %60 = arith.mulf %59, %59 : vector<8x128xf32>
    %61 = arith.mulf %59, %60 : vector<8x128xf32>
    %cst_40 = arith.constant 4.471500e-02 : f32
    %62 = vector.broadcast %cst_40 : f32 to vector<8x128xf32>
    %63 = arith.mulf %62, %61 : vector<8x128xf32>
    %64 = arith.addf %59, %63 : vector<8x128xf32>
    %cst_41 = arith.constant 0.797884583 : f32
    %65 = vector.broadcast %cst_41 : f32 to vector<8x128xf32>
    %66 = arith.mulf %65, %64 : vector<8x128xf32>
    %67 = math.tanh %66 : vector<8x128xf32>
    %cst_42 = arith.constant 1.000000e+00 : f32
    %68 = vector.broadcast %cst_42 : f32 to vector<8x128xf32>
    %69 = arith.addf %68, %67 : vector<8x128xf32>
    %cst_43 = arith.constant 5.000000e-01 : f32
    %70 = vector.broadcast %cst_43 : f32 to vector<8x128xf32>
    %71 = arith.mulf %70, %69 : vector<8x128xf32>
    %72 = arith.mulf %59, %71 : vector<8x128xf32>
    %73 = arith.truncf %53 : vector<8x192xf32> to vector<8x192xbf16>
    %c0_44 = arith.constant 0 : index
    %c0_45 = arith.constant 0 : index
    %74 = vector.load %arg7[%c0_44, %c0_45] : memref<192x128xbf16, #tpu.memory_space<vmem>>, vector<192x128xbf16>
    %cst_46 = arith.constant dense<0.000000e+00> : vector<8x128xf32>
    %75 = tpu.matmul %73, %74, %cst_46 {dimension_numbers = #tpu.dot_dimension_numbers<[1], [0], [0], [1], [0, 0, 1, 1], [], []>} : vector<8x192xbf16>, vector<192x128xbf16>, vector<8x128xf32> -> vector<8x128xf32>
    %c0_47 = arith.constant 0 : index
    %c0_48 = arith.constant 0 : index
    %76 = vector.load %arg8[%c0_47, %c0_48] : memref<1x128xf32, #tpu.memory_space<vmem>>, vector<1x128xf32>
    %77 = vector.broadcast %76 : vector<1x128xf32> to vector<8x128xf32>
    %78 = arith.addf %75, %77 : vector<8x128xf32>
    %cst_49 = arith.constant 0.000000e+00 : f32
    %79 = vector.broadcast %cst_49 : f32 to vector<8x128xf32>
    %80 = arith.minimumf %78, %79 : vector<8x128xf32>
    %81 = math.exp %80 : vector<8x128xf32>
    %cst_50 = arith.constant 1.000000e+00 : f32
    %82 = vector.broadcast %cst_50 : f32 to vector<8x128xf32>
    %83 = arith.subf %81, %82 : vector<8x128xf32>
    %cst_51 = arith.constant 1.67326319 : f32
    %84 = vector.broadcast %cst_51 : f32 to vector<8x128xf32>
    %85 = arith.mulf %84, %83 : vector<8x128xf32>
    %cst_52 = arith.constant 0.000000e+00 : f32
    %86 = vector.broadcast %cst_52 : f32 to vector<8x128xf32>
    %87 = arith.cmpf ogt, %78, %86 : vector<8x128xf32>
    %88 = arith.select %87, %78, %85 : vector<8x128xi1>, vector<8x128xf32>
    %cst_53 = arith.constant 1.05070102 : f32
    %89 = vector.broadcast %cst_53 : f32 to vector<8x128xf32>
    %90 = arith.mulf %89, %88 : vector<8x128xf32>
    %c0_54 = arith.constant 0 : index
    %c0_55 = arith.constant 0 : index
    %91 = vector.load %arg1[%c0_54, %c0_55] : memref<8x256xf32, #tpu.memory_space<vmem>>, vector<8x256xf32>
    %c0_56 = arith.constant 0 : index
    %c0_57 = arith.constant 0 : index
    %92 = vector.load %arg2[%c0_56, %c0_57] : memref<8x256xf32, #tpu.memory_space<vmem>>, vector<8x256xf32>
    %cst_58 = arith.constant 0.000000e+00 : f32
    %93 = vector.broadcast %cst_58 : f32 to vector<8x128xf32>
    %c0_i32_59 = arith.constant 0 : i32
    %c0_i32_60 = arith.constant 0 : i32
    %c0_i32_61 = arith.constant 0 : i32
    %c0_i32_62 = arith.constant 0 : i32
    %94 = tpu.memref_slice %arg10[%c0_i32_60, %c0_i32_61, %c0_i32_62] : memref<32x256x128xbf16, #tpu.memory_space<any>> -> memref<8x256x128xbf16, #tpu.memory_space<any>>
    %c0_i32_63 = arith.constant 0 : i32
    %c0_i32_64 = arith.constant 0 : i32
    %c0_i32_65 = arith.constant 0 : i32
    %95 = tpu.memref_slice %arg26[%c0_i32_63, %c0_i32_64, %c0_i32_65] : memref<32x256x128xbf16, #tpu.memory_space<vmem>> -> memref<8x256x128xbf16, #tpu.memory_space<vmem>>
    %96 = tpu.memref_slice %arg29[%c0_i32_59] : memref<6x!tpu.dma_semaphore, #tpu.memory_space<semaphore_mem>> -> memref<1x!tpu.dma_semaphore, #tpu.memory_space<semaphore_mem>>
    %97 = tpu.memref_squeeze %96 : memref<1x!tpu.dma_semaphore, #tpu.memory_space<semaphore_mem>> -> memref<!tpu.dma_semaphore, #tpu.memory_space<semaphore_mem>>
    tpu.wait_dma2 semaphore(%97 : memref<!tpu.dma_semaphore, #tpu.memory_space<semaphore_mem>>) src(%94 : memref<8x256x128xbf16, #tpu.memory_space<any>>) dst(%95 : memref<8x256x128xbf16, #tpu.memory_space<vmem>>)
    %c0_66 = arith.constant 0 : index
    %c0_67 = arith.constant 0 : index
    %98 = memref.load %arg9[%c0_66, %c0_67] : memref<4x32xf32, #tpu.memory_space<smem>>
    %99 = vector.broadcast %98 : f32 to vector<8x256xf32>
    %100 = arith.mulf %99, %91 : vector<8x256xf32>
    %c1 = arith.constant 1 : index
    %c0_68 = arith.constant 0 : index
    %101 = memref.load %arg9[%c1, %c0_68] : memref<4x32xf32, #tpu.memory_space<smem>>
    %102 = vector.broadcast %101 : f32 to vector<8x256xf32>
    %103 = arith.mulf %102, %20 : vector<8x256xf32>
    %104 = arith.addf %100, %103 : vector<8x256xf32>
    %c2 = arith.constant 2 : index
    %c0_69 = arith.constant 0 : index
    %105 = memref.load %arg9[%c2, %c0_69] : memref<4x32xf32, #tpu.memory_space<smem>>
    %106 = vector.broadcast %105 : f32 to vector<8x256xf32>
    %107 = arith.mulf %106, %92 : vector<8x256xf32>
    %108 = arith.addf %104, %107 : vector<8x256xf32>
    %c3 = arith.constant 3 : index
    %c0_70 = arith.constant 0 : index
    %109 = memref.load %arg9[%c3, %c0_70] : memref<4x32xf32, #tpu.memory_space<smem>>
    %110 = vector.broadcast %109 : f32 to vector<8x256xf32>
    %111 = arith.addf %108, %110 : vector<8x256xf32>
    %cst_71 = arith.constant 0.000000e+00 : f32
    %112 = vector.broadcast %cst_71 : f32 to vector<8x256xf32>
    %113 = arith.minimumf %111, %112 : vector<8x256xf32>
    %114 = math.exp %113 : vector<8x256xf32>
    %cst_72 = arith.constant 1.000000e+00 : f32
    %115 = vector.broadcast %cst_72 : f32 to vector<8x256xf32>
    %116 = arith.subf %114, %115 : vector<8x256xf32>
    %cst_73 = arith.constant 1.67326319 : f32
    %117 = vector.broadcast %cst_73 : f32 to vector<8x256xf32>
    %118 = arith.mulf %117, %116 : vector<8x256xf32>
    %cst_74 = arith.constant 0.000000e+00 : f32
    %119 = vector.broadcast %cst_74 : f32 to vector<8x256xf32>
    %120 = arith.cmpf ogt, %111, %119 : vector<8x256xf32>
    %121 = arith.select %120, %111, %118 : vector<8x256xi1>, vector<8x256xf32>
    %cst_75 = arith.constant 1.05070102 : f32
    %122 = vector.broadcast %cst_75 : f32 to vector<8x256xf32>
    %123 = arith.mulf %122, %121 : vector<8x256xf32>
    %124 = arith.truncf %123 : vector<8x256xf32> to vector<8x256xbf16>
    %c0_76 = arith.constant 0 : index
    %c0_77 = arith.constant 0 : index
    %c0_78 = arith.constant 0 : index
    %125 = vector.load %arg26[%c0_76, %c0_77, %c0_78] : memref<32x256x128xbf16, #tpu.memory_space<vmem>>, vector<1x256x128xbf16>
    %126 = vector.shape_cast %125 : vector<1x256x128xbf16> to vector<256x128xbf16>
    %cst_79 = arith.constant dense<0.000000e+00> : vector<8x128xf32>
    %127 = tpu.matmul %124, %126, %cst_79 {dimension_numbers = #tpu.dot_dimension_numbers<[1], [0], [0], [1], [0, 0, 1, 1], [], []>} : vector<8x256xbf16>, vector<256x128xbf16>, vector<8x128xf32> -> vector<8x128xf32>
    %128 = arith.addf %93, %127 : vector<8x128xf32>
    %c0_80 = arith.constant 0 : index
    %c1_81 = arith.constant 1 : index
    %129 = memref.load %arg9[%c0_80, %c1_81] : memref<4x32xf32, #tpu.memory_space<smem>>
    %130 = vector.broadcast %129 : f32 to vector<8x256xf32>
    %131 = arith.mulf %130, %91 : vector<8x256xf32>
    %c1_82 = arith.constant 1 : index
    %c1_83 = arith.constant 1 : index
    %132 = memref.load %arg9[%c1_82, %c1_83] : memref<4x32xf32, #tpu.memory_space<smem>>
    %133 = vector.broadcast %132 : f32 to vector<8x256xf32>
    %134 = arith.mulf %133, %20 : vector<8x256xf32>
    %135 = arith.addf %131, %134 : vector<8x256xf32>
    %c2_84 = arith.constant 2 : index
    %c1_85 = arith.constant 1 : index
    %136 = memref.load %arg9[%c2_84, %c1_85] : memref<4x32xf32, #tpu.memory_space<smem>>
    %137 = vector.broadcast %136 : f32 to vector<8x256xf32>
    %138 = arith.mulf %137, %92 : vector<8x256xf32>
    %139 = arith.addf %135, %138 : vector<8x256xf32>
    %c3_86 = arith.constant 3 : index
    %c1_87 = arith.constant 1 : index
    %140 = memref.load %arg9[%c3_86, %c1_87] : memref<4x32xf32, #tpu.memory_space<smem>>
    %141 = vector.broadcast %140 : f32 to vector<8x256xf32>
    %142 = arith.addf %139, %141 : vector<8x256xf32>
    %cst_88 = arith.constant 0.000000e+00 : f32
    %143 = vector.broadcast %cst_88 : f32 to vector<8x256xf32>
    %144 = arith.minimumf %142, %143 : vector<8x256xf32>
    %145 = math.exp %144 : vector<8x256xf32>
    %cst_89 = arith.constant 1.000000e+00 : f32
    %146 = vector.broadcast %cst_89 : f32 to vector<8x256xf32>
    %147 = arith.subf %145, %146 : vector<8x256xf32>
    %cst_90 = arith.constant 1.67326319 : f32
    %148 = vector.broadcast %cst_90 : f32 to vector<8x256xf32>
    %149 = arith.mulf %148, %147 : vector<8x256xf32>
    %cst_91 = arith.constant 0.000000e+00 : f32
    %150 = vector.broadcast %cst_91 : f32 to vector<8x256xf32>
    %151 = arith.cmpf ogt, %142, %150 : vector<8x256xf32>
    %152 = arith.select %151, %142, %149 : vector<8x256xi1>, vector<8x256xf32>
    %cst_92 = arith.constant 1.05070102 : f32
    %153 = vector.broadcast %cst_92 : f32 to vector<8x256xf32>
    %154 = arith.mulf %153, %152 : vector<8x256xf32>
    %155 = arith.truncf %154 : vector<8x256xf32> to vector<8x256xbf16>
    %c1_93 = arith.constant 1 : index
    %c0_94 = arith.constant 0 : index
    %c0_95 = arith.constant 0 : index
    %156 = vector.load %arg26[%c1_93, %c0_94, %c0_95] : memref<32x256x128xbf16, #tpu.memory_space<vmem>>, vector<1x256x128xbf16>
    %157 = vector.shape_cast %156 : vector<1x256x128xbf16> to vector<256x128xbf16>
    %cst_96 = arith.constant dense<0.000000e+00> : vector<8x128xf32>
    %158 = tpu.matmul %155, %157, %cst_96 {dimension_numbers = #tpu.dot_dimension_numbers<[1], [0], [0], [1], [0, 0, 1, 1], [], []>} : vector<8x256xbf16>, vector<256x128xbf16>, vector<8x128xf32> -> vector<8x128xf32>
    %159 = arith.addf %128, %158 : vector<8x128xf32>
    %c0_97 = arith.constant 0 : index
    %c2_98 = arith.constant 2 : index
    %160 = memref.load %arg9[%c0_97, %c2_98] : memref<4x32xf32, #tpu.memory_space<smem>>
    %161 = vector.broadcast %160 : f32 to vector<8x256xf32>
    %162 = arith.mulf %161, %91 : vector<8x256xf32>
    %c1_99 = arith.constant 1 : index
    %c2_100 = arith.constant 2 : index
    %163 = memref.load %arg9[%c1_99, %c2_100] : memref<4x32xf32, #tpu.memory_space<smem>>
    %164 = vector.broadcast %163 : f32 to vector<8x256xf32>
    %165 = arith.mulf %164, %20 : vector<8x256xf32>
    %166 = arith.addf %162, %165 : vector<8x256xf32>
    %c2_101 = arith.constant 2 : index
    %c2_102 = arith.constant 2 : index
    %167 = memref.load %arg9[%c2_101, %c2_102] : memref<4x32xf32, #tpu.memory_space<smem>>
    %168 = vector.broadcast %167 : f32 to vector<8x256xf32>
    %169 = arith.mulf %168, %92 : vector<8x256xf32>
    %170 = arith.addf %166, %169 : vector<8x256xf32>
    %c3_103 = arith.constant 3 : index
    %c2_104 = arith.constant 2 : index
    %171 = memref.load %arg9[%c3_103, %c2_104] : memref<4x32xf32, #tpu.memory_space<smem>>
    %172 = vector.broadcast %171 : f32 to vector<8x256xf32>
    %173 = arith.addf %170, %172 : vector<8x256xf32>
    %cst_105 = arith.constant 0.000000e+00 : f32
    %174 = vector.broadcast %cst_105 : f32 to vector<8x256xf32>
    %175 = arith.minimumf %173, %174 : vector<8x256xf32>
    %176 = math.exp %175 : vector<8x256xf32>
    %cst_106 = arith.constant 1.000000e+00 : f32
    %177 = vector.broadcast %cst_106 : f32 to vector<8x256xf32>
    %178 = arith.subf %176, %177 : vector<8x256xf32>
    %cst_107 = arith.constant 1.67326319 : f32
    %179 = vector.broadcast %cst_107 : f32 to vector<8x256xf32>
    %180 = arith.mulf %179, %178 : vector<8x256xf32>
    %cst_108 = arith.constant 0.000000e+00 : f32
    %181 = vector.broadcast %cst_108 : f32 to vector<8x256xf32>
    %182 = arith.cmpf ogt, %173, %181 : vector<8x256xf32>
    %183 = arith.select %182, %173, %180 : vector<8x256xi1>, vector<8x256xf32>
    %cst_109 = arith.constant 1.05070102 : f32
    %184 = vector.broadcast %cst_109 : f32 to vector<8x256xf32>
    %185 = arith.mulf %184, %183 : vector<8x256xf32>
    %186 = arith.truncf %185 : vector<8x256xf32> to vector<8x256xbf16>
    %c2_110 = arith.constant 2 : index
    %c0_111 = arith.constant 0 : index
    %c0_112 = arith.constant 0 : index
    %187 = vector.load %arg26[%c2_110, %c0_111, %c0_112] : memref<32x256x128xbf16, #tpu.memory_space<vmem>>, vector<1x256x128xbf16>
    %188 = vector.shape_cast %187 : vector<1x256x128xbf16> to vector<256x128xbf16>
    %cst_113 = arith.constant dense<0.000000e+00> : vector<8x128xf32>
    %189 = tpu.matmul %186, %188, %cst_113 {dimension_numbers = #tpu.dot_dimension_numbers<[1], [0], [0], [1], [0, 0, 1, 1], [], []>} : vector<8x256xbf16>, vector<256x128xbf16>, vector<8x128xf32> -> vector<8x128xf32>
    %190 = arith.addf %159, %189 : vector<8x128xf32>
    %c0_114 = arith.constant 0 : index
    %c3_115 = arith.constant 3 : index
    %191 = memref.load %arg9[%c0_114, %c3_115] : memref<4x32xf32, #tpu.memory_space<smem>>
    %192 = vector.broadcast %191 : f32 to vector<8x256xf32>
    %193 = arith.mulf %192, %91 : vector<8x256xf32>
    %c1_116 = arith.constant 1 : index
    %c3_117 = arith.constant 3 : index
    %194 = memref.load %arg9[%c1_116, %c3_117] : memref<4x32xf32, #tpu.memory_space<smem>>
    %195 = vector.broadcast %194 : f32 to vector<8x256xf32>
    %196 = arith.mulf %195, %20 : vector<8x256xf32>
    %197 = arith.addf %193, %196 : vector<8x256xf32>
    %c2_118 = arith.constant 2 : index
    %c3_119 = arith.constant 3 : index
    %198 = memref.load %arg9[%c2_118, %c3_119] : memref<4x32xf32, #tpu.memory_space<smem>>
    %199 = vector.broadcast %198 : f32 to vector<8x256xf32>
    %200 = arith.mulf %199, %92 : vector<8x256xf32>
    %201 = arith.addf %197, %200 : vector<8x256xf32>
    %c3_120 = arith.constant 3 : index
    %c3_121 = arith.constant 3 : index
    %202 = memref.load %arg9[%c3_120, %c3_121] : memref<4x32xf32, #tpu.memory_space<smem>>
    %203 = vector.broadcast %202 : f32 to vector<8x256xf32>
    %204 = arith.addf %201, %203 : vector<8x256xf32>
    %cst_122 = arith.constant 0.000000e+00 : f32
    %205 = vector.broadcast %cst_122 : f32 to vector<8x256xf32>
    %206 = arith.minimumf %204, %205 : vector<8x256xf32>
    %207 = math.exp %206 : vector<8x256xf32>
    %cst_123 = arith.constant 1.000000e+00 : f32
    %208 = vector.broadcast %cst_123 : f32 to vector<8x256xf32>
    %209 = arith.subf %207, %208 : vector<8x256xf32>
    %cst_124 = arith.constant 1.67326319 : f32
    %210 = vector.broadcast %cst_124 : f32 to vector<8x256xf32>
    %211 = arith.mulf %210, %209 : vector<8x256xf32>
    %cst_125 = arith.constant 0.000000e+00 : f32
    %212 = vector.broadcast %cst_125 : f32 to vector<8x256xf32>
    %213 = arith.cmpf ogt, %204, %212 : vector<8x256xf32>
    %214 = arith.select %213, %204, %211 : vector<8x256xi1>, vector<8x256xf32>
    %cst_126 = arith.constant 1.05070102 : f32
    %215 = vector.broadcast %cst_126 : f32 to vector<8x256xf32>
    %216 = arith.mulf %215, %214 : vector<8x256xf32>
    %217 = arith.truncf %216 : vector<8x256xf32> to vector<8x256xbf16>
    %c3_127 = arith.constant 3 : index
    %c0_128 = arith.constant 0 : index
    %c0_129 = arith.constant 0 : index
    %218 = vector.load %arg26[%c3_127, %c0_128, %c0_129] : memref<32x256x128xbf16, #tpu.memory_space<vmem>>, vector<1x256x128xbf16>
    %219 = vector.shape_cast %218 : vector<1x256x128xbf16> to vector<256x128xbf16>
    %cst_130 = arith.constant dense<0.000000e+00> : vector<8x128xf32>
    %220 = tpu.matmul %217, %219, %cst_130 {dimension_numbers = #tpu.dot_dimension_numbers<[1], [0], [0], [1], [0, 0, 1, 1], [], []>} : vector<8x256xbf16>, vector<256x128xbf16>, vector<8x128xf32> -> vector<8x128xf32>
    %221 = arith.addf %190, %220 : vector<8x128xf32>
    %c0_131 = arith.constant 0 : index
    %c4 = arith.constant 4 : index
    %222 = memref.load %arg9[%c0_131, %c4] : memref<4x32xf32, #tpu.memory_space<smem>>
    %223 = vector.broadcast %222 : f32 to vector<8x256xf32>
    %224 = arith.mulf %223, %91 : vector<8x256xf32>
    %c1_132 = arith.constant 1 : index
    %c4_133 = arith.constant 4 : index
    %225 = memref.load %arg9[%c1_132, %c4_133] : memref<4x32xf32, #tpu.memory_space<smem>>
    %226 = vector.broadcast %225 : f32 to vector<8x256xf32>
    %227 = arith.mulf %226, %20 : vector<8x256xf32>
    %228 = arith.addf %224, %227 : vector<8x256xf32>
    %c2_134 = arith.constant 2 : index
    %c4_135 = arith.constant 4 : index
    %229 = memref.load %arg9[%c2_134, %c4_135] : memref<4x32xf32, #tpu.memory_space<smem>>
    %230 = vector.broadcast %229 : f32 to vector<8x256xf32>
    %231 = arith.mulf %230, %92 : vector<8x256xf32>
    %232 = arith.addf %228, %231 : vector<8x256xf32>
    %c3_136 = arith.constant 3 : index
    %c4_137 = arith.constant 4 : index
    %233 = memref.load %arg9[%c3_136, %c4_137] : memref<4x32xf32, #tpu.memory_space<smem>>
    %234 = vector.broadcast %233 : f32 to vector<8x256xf32>
    %235 = arith.addf %232, %234 : vector<8x256xf32>
    %cst_138 = arith.constant 0.000000e+00 : f32
    %236 = vector.broadcast %cst_138 : f32 to vector<8x256xf32>
    %237 = arith.minimumf %235, %236 : vector<8x256xf32>
    %238 = math.exp %237 : vector<8x256xf32>
    %cst_139 = arith.constant 1.000000e+00 : f32
    %239 = vector.broadcast %cst_139 : f32 to vector<8x256xf32>
    %240 = arith.subf %238, %239 : vector<8x256xf32>
    %cst_140 = arith.constant 1.67326319 : f32
    %241 = vector.broadcast %cst_140 : f32 to vector<8x256xf32>
    %242 = arith.mulf %241, %240 : vector<8x256xf32>
    %cst_141 = arith.constant 0.000000e+00 : f32
    %243 = vector.broadcast %cst_141 : f32 to vector<8x256xf32>
    %244 = arith.cmpf ogt, %235, %243 : vector<8x256xf32>
    %245 = arith.select %244, %235, %242 : vector<8x256xi1>, vector<8x256xf32>
    %cst_142 = arith.constant 1.05070102 : f32
    %246 = vector.broadcast %cst_142 : f32 to vector<8x256xf32>
    %247 = arith.mulf %246, %245 : vector<8x256xf32>
    %248 = arith.truncf %247 : vector<8x256xf32> to vector<8x256xbf16>
    %c4_143 = arith.constant 4 : index
    %c0_144 = arith.constant 0 : index
    %c0_145 = arith.constant 0 : index
    %249 = vector.load %arg26[%c4_143, %c0_144, %c0_145] : memref<32x256x128xbf16, #tpu.memory_space<vmem>>, vector<1x256x128xbf16>
    %250 = vector.shape_cast %249 : vector<1x256x128xbf16> to vector<256x128xbf16>
    %cst_146 = arith.constant dense<0.000000e+00> : vector<8x128xf32>
    %251 = tpu.matmul %248, %250, %cst_146 {dimension_numbers = #tpu.dot_dimension_numbers<[1], [0], [0], [1], [0, 0, 1, 1], [], []>} : vector<8x256xbf16>, vector<256x128xbf16>, vector<8x128xf32> -> vector<8x128xf32>
    %252 = arith.addf %221, %251 : vector<8x128xf32>
    %c0_147 = arith.constant 0 : index
    %c5 = arith.constant 5 : index
    %253 = memref.load %arg9[%c0_147, %c5] : memref<4x32xf32, #tpu.memory_space<smem>>
    %254 = vector.broadcast %253 : f32 to vector<8x256xf32>
    %255 = arith.mulf %254, %91 : vector<8x256xf32>
    %c1_148 = arith.constant 1 : index
    %c5_149 = arith.constant 5 : index
    %256 = memref.load %arg9[%c1_148, %c5_149] : memref<4x32xf32, #tpu.memory_space<smem>>
    %257 = vector.broadcast %256 : f32 to vector<8x256xf32>
    %258 = arith.mulf %257, %20 : vector<8x256xf32>
    %259 = arith.addf %255, %258 : vector<8x256xf32>
    %c2_150 = arith.constant 2 : index
    %c5_151 = arith.constant 5 : index
    %260 = memref.load %arg9[%c2_150, %c5_151] : memref<4x32xf32, #tpu.memory_space<smem>>
    %261 = vector.broadcast %260 : f32 to vector<8x256xf32>
    %262 = arith.mulf %261, %92 : vector<8x256xf32>
    %263 = arith.addf %259, %262 : vector<8x256xf32>
    %c3_152 = arith.constant 3 : index
    %c5_153 = arith.constant 5 : index
    %264 = memref.load %arg9[%c3_152, %c5_153] : memref<4x32xf32, #tpu.memory_space<smem>>
    %265 = vector.broadcast %264 : f32 to vector<8x256xf32>
    %266 = arith.addf %263, %265 : vector<8x256xf32>
    %cst_154 = arith.constant 0.000000e+00 : f32
    %267 = vector.broadcast %cst_154 : f32 to vector<8x256xf32>
    %268 = arith.minimumf %266, %267 : vector<8x256xf32>
    %269 = math.exp %268 : vector<8x256xf32>
    %cst_155 = arith.constant 1.000000e+00 : f32
    %270 = vector.broadcast %cst_155 : f32 to vector<8x256xf32>
    %271 = arith.subf %269, %270 : vector<8x256xf32>
    %cst_156 = arith.constant 1.67326319 : f32
    %272 = vector.broadcast %cst_156 : f32 to vector<8x256xf32>
    %273 = arith.mulf %272, %271 : vector<8x256xf32>
    %cst_157 = arith.constant 0.000000e+00 : f32
    %274 = vector.broadcast %cst_157 : f32 to vector<8x256xf32>
    %275 = arith.cmpf ogt, %266, %274 : vector<8x256xf32>
    %276 = arith.select %275, %266, %273 : vector<8x256xi1>, vector<8x256xf32>
    %cst_158 = arith.constant 1.05070102 : f32
    %277 = vector.broadcast %cst_158 : f32 to vector<8x256xf32>
    %278 = arith.mulf %277, %276 : vector<8x256xf32>
    %279 = arith.truncf %278 : vector<8x256xf32> to vector<8x256xbf16>
    %c5_159 = arith.constant 5 : index
    %c0_160 = arith.constant 0 : index
    %c0_161 = arith.constant 0 : index
    %280 = vector.load %arg26[%c5_159, %c0_160, %c0_161] : memref<32x256x128xbf16, #tpu.memory_space<vmem>>, vector<1x256x128xbf16>
    %281 = vector.shape_cast %280 : vector<1x256x128xbf16> to vector<256x128xbf16>
    %cst_162 = arith.constant dense<0.000000e+00> : vector<8x128xf32>
    %282 = tpu.matmul %279, %281, %cst_162 {dimension_numbers = #tpu.dot_dimension_numbers<[1], [0], [0], [1], [0, 0, 1, 1], [], []>} : vector<8x256xbf16>, vector<256x128xbf16>, vector<8x128xf32> -> vector<8x128xf32>
    %283 = arith.addf %252, %282 : vector<8x128xf32>
    %c0_163 = arith.constant 0 : index
    %c6 = arith.constant 6 : index
    %284 = memref.load %arg9[%c0_163, %c6] : memref<4x32xf32, #tpu.memory_space<smem>>
    %285 = vector.broadcast %284 : f32 to vector<8x256xf32>
    %286 = arith.mulf %285, %91 : vector<8x256xf32>
    %c1_164 = arith.constant 1 : index
    %c6_165 = arith.constant 6 : index
    %287 = memref.load %arg9[%c1_164, %c6_165] : memref<4x32xf32, #tpu.memory_space<smem>>
    %288 = vector.broadcast %287 : f32 to vector<8x256xf32>
    %289 = arith.mulf %288, %20 : vector<8x256xf32>
    %290 = arith.addf %286, %289 : vector<8x256xf32>
    %c2_166 = arith.constant 2 : index
    %c6_167 = arith.constant 6 : index
    %291 = memref.load %arg9[%c2_166, %c6_167] : memref<4x32xf32, #tpu.memory_space<smem>>
    %292 = vector.broadcast %291 : f32 to vector<8x256xf32>
    %293 = arith.mulf %292, %92 : vector<8x256xf32>
    %294 = arith.addf %290, %293 : vector<8x256xf32>
    %c3_168 = arith.constant 3 : index
    %c6_169 = arith.constant 6 : index
    %295 = memref.load %arg9[%c3_168, %c6_169] : memref<4x32xf32, #tpu.memory_space<smem>>
    %296 = vector.broadcast %295 : f32 to vector<8x256xf32>
    %297 = arith.addf %294, %296 : vector<8x256xf32>
    %cst_170 = arith.constant 0.000000e+00 : f32
    %298 = vector.broadcast %cst_170 : f32 to vector<8x256xf32>
    %299 = arith.minimumf %297, %298 : vector<8x256xf32>
    %300 = math.exp %299 : vector<8x256xf32>
    %cst_171 = arith.constant 1.000000e+00 : f32
    %301 = vector.broadcast %cst_171 : f32 to vector<8x256xf32>
    %302 = arith.subf %300, %301 : vector<8x256xf32>
    %cst_172 = arith.constant 1.67326319 : f32
    %303 = vector.broadcast %cst_172 : f32 to vector<8x256xf32>
    %304 = arith.mulf %303, %302 : vector<8x256xf32>
    %cst_173 = arith.constant 0.000000e+00 : f32
    %305 = vector.broadcast %cst_173 : f32 to vector<8x256xf32>
    %306 = arith.cmpf ogt, %297, %305 : vector<8x256xf32>
    %307 = arith.select %306, %297, %304 : vector<8x256xi1>, vector<8x256xf32>
    %cst_174 = arith.constant 1.05070102 : f32
    %308 = vector.broadcast %cst_174 : f32 to vector<8x256xf32>
    %309 = arith.mulf %308, %307 : vector<8x256xf32>
    %310 = arith.truncf %309 : vector<8x256xf32> to vector<8x256xbf16>
    %c6_175 = arith.constant 6 : index
    %c0_176 = arith.constant 0 : index
    %c0_177 = arith.constant 0 : index
    %311 = vector.load %arg26[%c6_175, %c0_176, %c0_177] : memref<32x256x128xbf16, #tpu.memory_space<vmem>>, vector<1x256x128xbf16>
    %312 = vector.shape_cast %311 : vector<1x256x128xbf16> to vector<256x128xbf16>
    %cst_178 = arith.constant dense<0.000000e+00> : vector<8x128xf32>
    %313 = tpu.matmul %310, %312, %cst_178 {dimension_numbers = #tpu.dot_dimension_numbers<[1], [0], [0], [1], [0, 0, 1, 1], [], []>} : vector<8x256xbf16>, vector<256x128xbf16>, vector<8x128xf32> -> vector<8x128xf32>
    %314 = arith.addf %283, %313 : vector<8x128xf32>
    %c0_179 = arith.constant 0 : index
    %c7 = arith.constant 7 : index
    %315 = memref.load %arg9[%c0_179, %c7] : memref<4x32xf32, #tpu.memory_space<smem>>
    %316 = vector.broadcast %315 : f32 to vector<8x256xf32>
    %317 = arith.mulf %316, %91 : vector<8x256xf32>
    %c1_180 = arith.constant 1 : index
    %c7_181 = arith.constant 7 : index
    %318 = memref.load %arg9[%c1_180, %c7_181] : memref<4x32xf32, #tpu.memory_space<smem>>
    %319 = vector.broadcast %318 : f32 to vector<8x256xf32>
    %320 = arith.mulf %319, %20 : vector<8x256xf32>
    %321 = arith.addf %317, %320 : vector<8x256xf32>
    %c2_182 = arith.constant 2 : index
    %c7_183 = arith.constant 7 : index
    %322 = memref.load %arg9[%c2_182, %c7_183] : memref<4x32xf32, #tpu.memory_space<smem>>
    %323 = vector.broadcast %322 : f32 to vector<8x256xf32>
    %324 = arith.mulf %323, %92 : vector<8x256xf32>
    %325 = arith.addf %321, %324 : vector<8x256xf32>
    %c3_184 = arith.constant 3 : index
    %c7_185 = arith.constant 7 : index
    %326 = memref.load %arg9[%c3_184, %c7_185] : memref<4x32xf32, #tpu.memory_space<smem>>
    %327 = vector.broadcast %326 : f32 to vector<8x256xf32>
    %328 = arith.addf %325, %327 : vector<8x256xf32>
    %cst_186 = arith.constant 0.000000e+00 : f32
    %329 = vector.broadcast %cst_186 : f32 to vector<8x256xf32>
    %330 = arith.minimumf %328, %329 : vector<8x256xf32>
    %331 = math.exp %330 : vector<8x256xf32>
    %cst_187 = arith.constant 1.000000e+00 : f32
    %332 = vector.broadcast %cst_187 : f32 to vector<8x256xf32>
    %333 = arith.subf %331, %332 : vector<8x256xf32>
    %cst_188 = arith.constant 1.67326319 : f32
    %334 = vector.broadcast %cst_188 : f32 to vector<8x256xf32>
    %335 = arith.mulf %334, %333 : vector<8x256xf32>
    %cst_189 = arith.constant 0.000000e+00 : f32
    %336 = vector.broadcast %cst_189 : f32 to vector<8x256xf32>
    %337 = arith.cmpf ogt, %328, %336 : vector<8x256xf32>
    %338 = arith.select %337, %328, %335 : vector<8x256xi1>, vector<8x256xf32>
    %cst_190 = arith.constant 1.05070102 : f32
    %339 = vector.broadcast %cst_190 : f32 to vector<8x256xf32>
    %340 = arith.mulf %339, %338 : vector<8x256xf32>
    %341 = arith.truncf %340 : vector<8x256xf32> to vector<8x256xbf16>
    %c7_191 = arith.constant 7 : index
    %c0_192 = arith.constant 0 : index
    %c0_193 = arith.constant 0 : index
    %342 = vector.load %arg26[%c7_191, %c0_192, %c0_193] : memref<32x256x128xbf16, #tpu.memory_space<vmem>>, vector<1x256x128xbf16>
    %343 = vector.shape_cast %342 : vector<1x256x128xbf16> to vector<256x128xbf16>
    %cst_194 = arith.constant dense<0.000000e+00> : vector<8x128xf32>
    %344 = tpu.matmul %341, %343, %cst_194 {dimension_numbers = #tpu.dot_dimension_numbers<[1], [0], [0], [1], [0, 0, 1, 1], [], []>} : vector<8x256xbf16>, vector<256x128xbf16>, vector<8x128xf32> -> vector<8x128xf32>
    %345 = arith.addf %314, %344 : vector<8x128xf32>
    %c1_i32_195 = arith.constant 1 : i32
    %c8_i32_196 = arith.constant 8 : i32
    %c0_i32_197 = arith.constant 0 : i32
    %c0_i32_198 = arith.constant 0 : i32
    %346 = tpu.memref_slice %arg10[%c8_i32_196, %c0_i32_197, %c0_i32_198] : memref<32x256x128xbf16, #tpu.memory_space<any>> -> memref<8x256x128xbf16, #tpu.memory_space<any>>
    %c8_i32_199 = arith.constant 8 : i32
    %c0_i32_200 = arith.constant 0 : i32
    %c0_i32_201 = arith.constant 0 : i32
    %347 = tpu.memref_slice %arg26[%c8_i32_199, %c0_i32_200, %c0_i32_201] : memref<32x256x128xbf16, #tpu.memory_space<vmem>> -> memref<8x256x128xbf16, #tpu.memory_space<vmem>>
    %348 = tpu.memref_slice %arg29[%c1_i32_195] : memref<6x!tpu.dma_semaphore, #tpu.memory_space<semaphore_mem>> -> memref<1x!tpu.dma_semaphore, #tpu.memory_space<semaphore_mem>>
    %349 = tpu.memref_squeeze %348 : memref<1x!tpu.dma_semaphore, #tpu.memory_space<semaphore_mem>> -> memref<!tpu.dma_semaphore, #tpu.memory_space<semaphore_mem>>
    tpu.wait_dma2 semaphore(%349 : memref<!tpu.dma_semaphore, #tpu.memory_space<semaphore_mem>>) src(%346 : memref<8x256x128xbf16, #tpu.memory_space<any>>) dst(%347 : memref<8x256x128xbf16, #tpu.memory_space<vmem>>)
    %c0_202 = arith.constant 0 : index
    %c8 = arith.constant 8 : index
    %350 = memref.load %arg9[%c0_202, %c8] : memref<4x32xf32, #tpu.memory_space<smem>>
    %351 = vector.broadcast %350 : f32 to vector<8x256xf32>
    %352 = arith.mulf %351, %91 : vector<8x256xf32>
    %c1_203 = arith.constant 1 : index
    %c8_204 = arith.constant 8 : index
    %353 = memref.load %arg9[%c1_203, %c8_204] : memref<4x32xf32, #tpu.memory_space<smem>>
    %354 = vector.broadcast %353 : f32 to vector<8x256xf32>
    %355 = arith.mulf %354, %20 : vector<8x256xf32>
    %356 = arith.addf %352, %355 : vector<8x256xf32>
    %c2_205 = arith.constant 2 : index
    %c8_206 = arith.constant 8 : index
    %357 = memref.load %arg9[%c2_205, %c8_206] : memref<4x32xf32, #tpu.memory_space<smem>>
    %358 = vector.broadcast %357 : f32 to vector<8x256xf32>
    %359 = arith.mulf %358, %92 : vector<8x256xf32>
    %360 = arith.addf %356, %359 : vector<8x256xf32>
    %c3_207 = arith.constant 3 : index
    %c8_208 = arith.constant 8 : index
    %361 = memref.load %arg9[%c3_207, %c8_208] : memref<4x32xf32, #tpu.memory_space<smem>>
    %362 = vector.broadcast %361 : f32 to vector<8x256xf32>
    %363 = arith.addf %360, %362 : vector<8x256xf32>
    %cst_209 = arith.constant 0.000000e+00 : f32
    %364 = vector.broadcast %cst_209 : f32 to vector<8x256xf32>
    %365 = arith.minimumf %363, %364 : vector<8x256xf32>
    %366 = math.exp %365 : vector<8x256xf32>
    %cst_210 = arith.constant 1.000000e+00 : f32
    %367 = vector.broadcast %cst_210 : f32 to vector<8x256xf32>
    %368 = arith.subf %366, %367 : vector<8x256xf32>
    %cst_211 = arith.constant 1.67326319 : f32
    %369 = vector.broadcast %cst_211 : f32 to vector<8x256xf32>
    %370 = arith.mulf %369, %368 : vector<8x256xf32>
    %cst_212 = arith.constant 0.000000e+00 : f32
    %371 = vector.broadcast %cst_212 : f32 to vector<8x256xf32>
    %372 = arith.cmpf ogt, %363, %371 : vector<8x256xf32>
    %373 = arith.select %372, %363, %370 : vector<8x256xi1>, vector<8x256xf32>
    %cst_213 = arith.constant 1.05070102 : f32
    %374 = vector.broadcast %cst_213 : f32 to vector<8x256xf32>
    %375 = arith.mulf %374, %373 : vector<8x256xf32>
    %376 = arith.truncf %375 : vector<8x256xf32> to vector<8x256xbf16>
    %c8_214 = arith.constant 8 : index
    %c0_215 = arith.constant 0 : index
    %c0_216 = arith.constant 0 : index
    %377 = vector.load %arg26[%c8_214, %c0_215, %c0_216] : memref<32x256x128xbf16, #tpu.memory_space<vmem>>, vector<1x256x128xbf16>
    %378 = vector.shape_cast %377 : vector<1x256x128xbf16> to vector<256x128xbf16>
    %cst_217 = arith.constant dense<0.000000e+00> : vector<8x128xf32>
    %379 = tpu.matmul %376, %378, %cst_217 {dimension_numbers = #tpu.dot_dimension_numbers<[1], [0], [0], [1], [0, 0, 1, 1], [], []>} : vector<8x256xbf16>, vector<256x128xbf16>, vector<8x128xf32> -> vector<8x128xf32>
    %380 = arith.addf %345, %379 : vector<8x128xf32>
    %c0_218 = arith.constant 0 : index
    %c9 = arith.constant 9 : index
    %381 = memref.load %arg9[%c0_218, %c9] : memref<4x32xf32, #tpu.memory_space<smem>>
    %382 = vector.broadcast %381 : f32 to vector<8x256xf32>
    %383 = arith.mulf %382, %91 : vector<8x256xf32>
    %c1_219 = arith.constant 1 : index
    %c9_220 = arith.constant 9 : index
    %384 = memref.load %arg9[%c1_219, %c9_220] : memref<4x32xf32, #tpu.memory_space<smem>>
    %385 = vector.broadcast %384 : f32 to vector<8x256xf32>
    %386 = arith.mulf %385, %20 : vector<8x256xf32>
    %387 = arith.addf %383, %386 : vector<8x256xf32>
    %c2_221 = arith.constant 2 : index
    %c9_222 = arith.constant 9 : index
    %388 = memref.load %arg9[%c2_221, %c9_222] : memref<4x32xf32, #tpu.memory_space<smem>>
    %389 = vector.broadcast %388 : f32 to vector<8x256xf32>
    %390 = arith.mulf %389, %92 : vector<8x256xf32>
    %391 = arith.addf %387, %390 : vector<8x256xf32>
    %c3_223 = arith.constant 3 : index
    %c9_224 = arith.constant 9 : index
    %392 = memref.load %arg9[%c3_223, %c9_224] : memref<4x32xf32, #tpu.memory_space<smem>>
    %393 = vector.broadcast %392 : f32 to vector<8x256xf32>
    %394 = arith.addf %391, %393 : vector<8x256xf32>
    %cst_225 = arith.constant 0.000000e+00 : f32
    %395 = vector.broadcast %cst_225 : f32 to vector<8x256xf32>
    %396 = arith.minimumf %394, %395 : vector<8x256xf32>
    %397 = math.exp %396 : vector<8x256xf32>
    %cst_226 = arith.constant 1.000000e+00 : f32
    %398 = vector.broadcast %cst_226 : f32 to vector<8x256xf32>
    %399 = arith.subf %397, %398 : vector<8x256xf32>
    %cst_227 = arith.constant 1.67326319 : f32
    %400 = vector.broadcast %cst_227 : f32 to vector<8x256xf32>
    %401 = arith.mulf %400, %399 : vector<8x256xf32>
    %cst_228 = arith.constant 0.000000e+00 : f32
    %402 = vector.broadcast %cst_228 : f32 to vector<8x256xf32>
    %403 = arith.cmpf ogt, %394, %402 : vector<8x256xf32>
    %404 = arith.select %403, %394, %401 : vector<8x256xi1>, vector<8x256xf32>
    %cst_229 = arith.constant 1.05070102 : f32
    %405 = vector.broadcast %cst_229 : f32 to vector<8x256xf32>
    %406 = arith.mulf %405, %404 : vector<8x256xf32>
    %407 = arith.truncf %406 : vector<8x256xf32> to vector<8x256xbf16>
    %c9_230 = arith.constant 9 : index
    %c0_231 = arith.constant 0 : index
    %c0_232 = arith.constant 0 : index
    %408 = vector.load %arg26[%c9_230, %c0_231, %c0_232] : memref<32x256x128xbf16, #tpu.memory_space<vmem>>, vector<1x256x128xbf16>
    %409 = vector.shape_cast %408 : vector<1x256x128xbf16> to vector<256x128xbf16>
    %cst_233 = arith.constant dense<0.000000e+00> : vector<8x128xf32>
    %410 = tpu.matmul %407, %409, %cst_233 {dimension_numbers = #tpu.dot_dimension_numbers<[1], [0], [0], [1], [0, 0, 1, 1], [], []>} : vector<8x256xbf16>, vector<256x128xbf16>, vector<8x128xf32> -> vector<8x128xf32>
    %411 = arith.addf %380, %410 : vector<8x128xf32>
    %c0_234 = arith.constant 0 : index
    %c10 = arith.constant 10 : index
    %412 = memref.load %arg9[%c0_234, %c10] : memref<4x32xf32, #tpu.memory_space<smem>>
    %413 = vector.broadcast %412 : f32 to vector<8x256xf32>
    %414 = arith.mulf %413, %91 : vector<8x256xf32>
    %c1_235 = arith.constant 1 : index
    %c10_236 = arith.constant 10 : index
    %415 = memref.load %arg9[%c1_235, %c10_236] : memref<4x32xf32, #tpu.memory_space<smem>>
    %416 = vector.broadcast %415 : f32 to vector<8x256xf32>
    %417 = arith.mulf %416, %20 : vector<8x256xf32>
    %418 = arith.addf %414, %417 : vector<8x256xf32>
    %c2_237 = arith.constant 2 : index
    %c10_238 = arith.constant 10 : index
    %419 = memref.load %arg9[%c2_237, %c10_238] : memref<4x32xf32, #tpu.memory_space<smem>>
    %420 = vector.broadcast %419 : f32 to vector<8x256xf32>
    %421 = arith.mulf %420, %92 : vector<8x256xf32>
    %422 = arith.addf %418, %421 : vector<8x256xf32>
    %c3_239 = arith.constant 3 : index
    %c10_240 = arith.constant 10 : index
    %423 = memref.load %arg9[%c3_239, %c10_240] : memref<4x32xf32, #tpu.memory_space<smem>>
    %424 = vector.broadcast %423 : f32 to vector<8x256xf32>
    %425 = arith.addf %422, %424 : vector<8x256xf32>
    %cst_241 = arith.constant 0.000000e+00 : f32
    %426 = vector.broadcast %cst_241 : f32 to vector<8x256xf32>
    %427 = arith.minimumf %425, %426 : vector<8x256xf32>
    %428 = math.exp %427 : vector<8x256xf32>
    %cst_242 = arith.constant 1.000000e+00 : f32
    %429 = vector.broadcast %cst_242 : f32 to vector<8x256xf32>
    %430 = arith.subf %428, %429 : vector<8x256xf32>
    %cst_243 = arith.constant 1.67326319 : f32
    %431 = vector.broadcast %cst_243 : f32 to vector<8x256xf32>
    %432 = arith.mulf %431, %430 : vector<8x256xf32>
    %cst_244 = arith.constant 0.000000e+00 : f32
    %433 = vector.broadcast %cst_244 : f32 to vector<8x256xf32>
    %434 = arith.cmpf ogt, %425, %433 : vector<8x256xf32>
    %435 = arith.select %434, %425, %432 : vector<8x256xi1>, vector<8x256xf32>
    %cst_245 = arith.constant 1.05070102 : f32
    %436 = vector.broadcast %cst_245 : f32 to vector<8x256xf32>
    %437 = arith.mulf %436, %435 : vector<8x256xf32>
    %438 = arith.truncf %437 : vector<8x256xf32> to vector<8x256xbf16>
    %c10_246 = arith.constant 10 : index
    %c0_247 = arith.constant 0 : index
    %c0_248 = arith.constant 0 : index
    %439 = vector.load %arg26[%c10_246, %c0_247, %c0_248] : memref<32x256x128xbf16, #tpu.memory_space<vmem>>, vector<1x256x128xbf16>
    %440 = vector.shape_cast %439 : vector<1x256x128xbf16> to vector<256x128xbf16>
    %cst_249 = arith.constant dense<0.000000e+00> : vector<8x128xf32>
    %441 = tpu.matmul %438, %440, %cst_249 {dimension_numbers = #tpu.dot_dimension_numbers<[1], [0], [0], [1], [0, 0, 1, 1], [], []>} : vector<8x256xbf16>, vector<256x128xbf16>, vector<8x128xf32> -> vector<8x128xf32>
    %442 = arith.addf %411, %441 : vector<8x128xf32>
    %c0_250 = arith.constant 0 : index
    %c11 = arith.constant 11 : index
    %443 = memref.load %arg9[%c0_250, %c11] : memref<4x32xf32, #tpu.memory_space<smem>>
    %444 = vector.broadcast %443 : f32 to vector<8x256xf32>
    %445 = arith.mulf %444, %91 : vector<8x256xf32>
    %c1_251 = arith.constant 1 : index
    %c11_252 = arith.constant 11 : index
    %446 = memref.load %arg9[%c1_251, %c11_252] : memref<4x32xf32, #tpu.memory_space<smem>>
    %447 = vector.broadcast %446 : f32 to vector<8x256xf32>
    %448 = arith.mulf %447, %20 : vector<8x256xf32>
    %449 = arith.addf %445, %448 : vector<8x256xf32>
    %c2_253 = arith.constant 2 : index
    %c11_254 = arith.constant 11 : index
    %450 = memref.load %arg9[%c2_253, %c11_254] : memref<4x32xf32, #tpu.memory_space<smem>>
    %451 = vector.broadcast %450 : f32 to vector<8x256xf32>
    %452 = arith.mulf %451, %92 : vector<8x256xf32>
    %453 = arith.addf %449, %452 : vector<8x256xf32>
    %c3_255 = arith.constant 3 : index
    %c11_256 = arith.constant 11 : index
    %454 = memref.load %arg9[%c3_255, %c11_256] : memref<4x32xf32, #tpu.memory_space<smem>>
    %455 = vector.broadcast %454 : f32 to vector<8x256xf32>
    %456 = arith.addf %453, %455 : vector<8x256xf32>
    %cst_257 = arith.constant 0.000000e+00 : f32
    %457 = vector.broadcast %cst_257 : f32 to vector<8x256xf32>
    %458 = arith.minimumf %456, %457 : vector<8x256xf32>
    %459 = math.exp %458 : vector<8x256xf32>
    %cst_258 = arith.constant 1.000000e+00 : f32
    %460 = vector.broadcast %cst_258 : f32 to vector<8x256xf32>
    %461 = arith.subf %459, %460 : vector<8x256xf32>
    %cst_259 = arith.constant 1.67326319 : f32
    %462 = vector.broadcast %cst_259 : f32 to vector<8x256xf32>
    %463 = arith.mulf %462, %461 : vector<8x256xf32>
    %cst_260 = arith.constant 0.000000e+00 : f32
    %464 = vector.broadcast %cst_260 : f32 to vector<8x256xf32>
    %465 = arith.cmpf ogt, %456, %464 : vector<8x256xf32>
    %466 = arith.select %465, %456, %463 : vector<8x256xi1>, vector<8x256xf32>
    %cst_261 = arith.constant 1.05070102 : f32
    %467 = vector.broadcast %cst_261 : f32 to vector<8x256xf32>
    %468 = arith.mulf %467, %466 : vector<8x256xf32>
    %469 = arith.truncf %468 : vector<8x256xf32> to vector<8x256xbf16>
    %c11_262 = arith.constant 11 : index
    %c0_263 = arith.constant 0 : index
    %c0_264 = arith.constant 0 : index
    %470 = vector.load %arg26[%c11_262, %c0_263, %c0_264] : memref<32x256x128xbf16, #tpu.memory_space<vmem>>, vector<1x256x128xbf16>
    %471 = vector.shape_cast %470 : vector<1x256x128xbf16> to vector<256x128xbf16>
    %cst_265 = arith.constant dense<0.000000e+00> : vector<8x128xf32>
    %472 = tpu.matmul %469, %471, %cst_265 {dimension_numbers = #tpu.dot_dimension_numbers<[1], [0], [0], [1], [0, 0, 1, 1], [], []>} : vector<8x256xbf16>, vector<256x128xbf16>, vector<8x128xf32> -> vector<8x128xf32>
    %473 = arith.addf %442, %472 : vector<8x128xf32>
    %c0_266 = arith.constant 0 : index
    %c12 = arith.constant 12 : index
    %474 = memref.load %arg9[%c0_266, %c12] : memref<4x32xf32, #tpu.memory_space<smem>>
    %475 = vector.broadcast %474 : f32 to vector<8x256xf32>
    %476 = arith.mulf %475, %91 : vector<8x256xf32>
    %c1_267 = arith.constant 1 : index
    %c12_268 = arith.constant 12 : index
    %477 = memref.load %arg9[%c1_267, %c12_268] : memref<4x32xf32, #tpu.memory_space<smem>>
    %478 = vector.broadcast %477 : f32 to vector<8x256xf32>
    %479 = arith.mulf %478, %20 : vector<8x256xf32>
    %480 = arith.addf %476, %479 : vector<8x256xf32>
    %c2_269 = arith.constant 2 : index
    %c12_270 = arith.constant 12 : index
    %481 = memref.load %arg9[%c2_269, %c12_270] : memref<4x32xf32, #tpu.memory_space<smem>>
    %482 = vector.broadcast %481 : f32 to vector<8x256xf32>
    %483 = arith.mulf %482, %92 : vector<8x256xf32>
    %484 = arith.addf %480, %483 : vector<8x256xf32>
    %c3_271 = arith.constant 3 : index
    %c12_272 = arith.constant 12 : index
    %485 = memref.load %arg9[%c3_271, %c12_272] : memref<4x32xf32, #tpu.memory_space<smem>>
    %486 = vector.broadcast %485 : f32 to vector<8x256xf32>
    %487 = arith.addf %484, %486 : vector<8x256xf32>
    %cst_273 = arith.constant 0.000000e+00 : f32
    %488 = vector.broadcast %cst_273 : f32 to vector<8x256xf32>
    %489 = arith.minimumf %487, %488 : vector<8x256xf32>
    %490 = math.exp %489 : vector<8x256xf32>
    %cst_274 = arith.constant 1.000000e+00 : f32
    %491 = vector.broadcast %cst_274 : f32 to vector<8x256xf32>
    %492 = arith.subf %490, %491 : vector<8x256xf32>
    %cst_275 = arith.constant 1.67326319 : f32
    %493 = vector.broadcast %cst_275 : f32 to vector<8x256xf32>
    %494 = arith.mulf %493, %492 : vector<8x256xf32>
    %cst_276 = arith.constant 0.000000e+00 : f32
    %495 = vector.broadcast %cst_276 : f32 to vector<8x256xf32>
    %496 = arith.cmpf ogt, %487, %495 : vector<8x256xf32>
    %497 = arith.select %496, %487, %494 : vector<8x256xi1>, vector<8x256xf32>
    %cst_277 = arith.constant 1.05070102 : f32
    %498 = vector.broadcast %cst_277 : f32 to vector<8x256xf32>
    %499 = arith.mulf %498, %497 : vector<8x256xf32>
    %500 = arith.truncf %499 : vector<8x256xf32> to vector<8x256xbf16>
    %c12_278 = arith.constant 12 : index
    %c0_279 = arith.constant 0 : index
    %c0_280 = arith.constant 0 : index
    %501 = vector.load %arg26[%c12_278, %c0_279, %c0_280] : memref<32x256x128xbf16, #tpu.memory_space<vmem>>, vector<1x256x128xbf16>
    %502 = vector.shape_cast %501 : vector<1x256x128xbf16> to vector<256x128xbf16>
    %cst_281 = arith.constant dense<0.000000e+00> : vector<8x128xf32>
    %503 = tpu.matmul %500, %502, %cst_281 {dimension_numbers = #tpu.dot_dimension_numbers<[1], [0], [0], [1], [0, 0, 1, 1], [], []>} : vector<8x256xbf16>, vector<256x128xbf16>, vector<8x128xf32> -> vector<8x128xf32>
    %504 = arith.addf %473, %503 : vector<8x128xf32>
    %c0_282 = arith.constant 0 : index
    %c13 = arith.constant 13 : index
    %505 = memref.load %arg9[%c0_282, %c13] : memref<4x32xf32, #tpu.memory_space<smem>>
    %506 = vector.broadcast %505 : f32 to vector<8x256xf32>
    %507 = arith.mulf %506, %91 : vector<8x256xf32>
    %c1_283 = arith.constant 1 : index
    %c13_284 = arith.constant 13 : index
    %508 = memref.load %arg9[%c1_283, %c13_284] : memref<4x32xf32, #tpu.memory_space<smem>>
    %509 = vector.broadcast %508 : f32 to vector<8x256xf32>
    %510 = arith.mulf %509, %20 : vector<8x256xf32>
    %511 = arith.addf %507, %510 : vector<8x256xf32>
    %c2_285 = arith.constant 2 : index
    %c13_286 = arith.constant 13 : index
    %512 = memref.load %arg9[%c2_285, %c13_286] : memref<4x32xf32, #tpu.memory_space<smem>>
    %513 = vector.broadcast %512 : f32 to vector<8x256xf32>
    %514 = arith.mulf %513, %92 : vector<8x256xf32>
    %515 = arith.addf %511, %514 : vector<8x256xf32>
    %c3_287 = arith.constant 3 : index
    %c13_288 = arith.constant 13 : index
    %516 = memref.load %arg9[%c3_287, %c13_288] : memref<4x32xf32, #tpu.memory_space<smem>>
    %517 = vector.broadcast %516 : f32 to vector<8x256xf32>
    %518 = arith.addf %515, %517 : vector<8x256xf32>
    %cst_289 = arith.constant 0.000000e+00 : f32
    %519 = vector.broadcast %cst_289 : f32 to vector<8x256xf32>
    %520 = arith.minimumf %518, %519 : vector<8x256xf32>
    %521 = math.exp %520 : vector<8x256xf32>
    %cst_290 = arith.constant 1.000000e+00 : f32
    %522 = vector.broadcast %cst_290 : f32 to vector<8x256xf32>
    %523 = arith.subf %521, %522 : vector<8x256xf32>
    %cst_291 = arith.constant 1.67326319 : f32
    %524 = vector.broadcast %cst_291 : f32 to vector<8x256xf32>
    %525 = arith.mulf %524, %523 : vector<8x256xf32>
    %cst_292 = arith.constant 0.000000e+00 : f32
    %526 = vector.broadcast %cst_292 : f32 to vector<8x256xf32>
    %527 = arith.cmpf ogt, %518, %526 : vector<8x256xf32>
    %528 = arith.select %527, %518, %525 : vector<8x256xi1>, vector<8x256xf32>
    %cst_293 = arith.constant 1.05070102 : f32
    %529 = vector.broadcast %cst_293 : f32 to vector<8x256xf32>
    %530 = arith.mulf %529, %528 : vector<8x256xf32>
    %531 = arith.truncf %530 : vector<8x256xf32> to vector<8x256xbf16>
    %c13_294 = arith.constant 13 : index
    %c0_295 = arith.constant 0 : index
    %c0_296 = arith.constant 0 : index
    %532 = vector.load %arg26[%c13_294, %c0_295, %c0_296] : memref<32x256x128xbf16, #tpu.memory_space<vmem>>, vector<1x256x128xbf16>
    %533 = vector.shape_cast %532 : vector<1x256x128xbf16> to vector<256x128xbf16>
    %cst_297 = arith.constant dense<0.000000e+00> : vector<8x128xf32>
    %534 = tpu.matmul %531, %533, %cst_297 {dimension_numbers = #tpu.dot_dimension_numbers<[1], [0], [0], [1], [0, 0, 1, 1], [], []>} : vector<8x256xbf16>, vector<256x128xbf16>, vector<8x128xf32> -> vector<8x128xf32>
    %535 = arith.addf %504, %534 : vector<8x128xf32>
    %c0_298 = arith.constant 0 : index
    %c14 = arith.constant 14 : index
    %536 = memref.load %arg9[%c0_298, %c14] : memref<4x32xf32, #tpu.memory_space<smem>>
    %537 = vector.broadcast %536 : f32 to vector<8x256xf32>
    %538 = arith.mulf %537, %91 : vector<8x256xf32>
    %c1_299 = arith.constant 1 : index
    %c14_300 = arith.constant 14 : index
    %539 = memref.load %arg9[%c1_299, %c14_300] : memref<4x32xf32, #tpu.memory_space<smem>>
    %540 = vector.broadcast %539 : f32 to vector<8x256xf32>
    %541 = arith.mulf %540, %20 : vector<8x256xf32>
    %542 = arith.addf %538, %541 : vector<8x256xf32>
    %c2_301 = arith.constant 2 : index
    %c14_302 = arith.constant 14 : index
    %543 = memref.load %arg9[%c2_301, %c14_302] : memref<4x32xf32, #tpu.memory_space<smem>>
    %544 = vector.broadcast %543 : f32 to vector<8x256xf32>
    %545 = arith.mulf %544, %92 : vector<8x256xf32>
    %546 = arith.addf %542, %545 : vector<8x256xf32>
    %c3_303 = arith.constant 3 : index
    %c14_304 = arith.constant 14 : index
    %547 = memref.load %arg9[%c3_303, %c14_304] : memref<4x32xf32, #tpu.memory_space<smem>>
    %548 = vector.broadcast %547 : f32 to vector<8x256xf32>
    %549 = arith.addf %546, %548 : vector<8x256xf32>
    %cst_305 = arith.constant 0.000000e+00 : f32
    %550 = vector.broadcast %cst_305 : f32 to vector<8x256xf32>
    %551 = arith.minimumf %549, %550 : vector<8x256xf32>
    %552 = math.exp %551 : vector<8x256xf32>
    %cst_306 = arith.constant 1.000000e+00 : f32
    %553 = vector.broadcast %cst_306 : f32 to vector<8x256xf32>
    %554 = arith.subf %552, %553 : vector<8x256xf32>
    %cst_307 = arith.constant 1.67326319 : f32
    %555 = vector.broadcast %cst_307 : f32 to vector<8x256xf32>
    %556 = arith.mulf %555, %554 : vector<8x256xf32>
    %cst_308 = arith.constant 0.000000e+00 : f32
    %557 = vector.broadcast %cst_308 : f32 to vector<8x256xf32>
    %558 = arith.cmpf ogt, %549, %557 : vector<8x256xf32>
    %559 = arith.select %558, %549, %556 : vector<8x256xi1>, vector<8x256xf32>
    %cst_309 = arith.constant 1.05070102 : f32
    %560 = vector.broadcast %cst_309 : f32 to vector<8x256xf32>
    %561 = arith.mulf %560, %559 : vector<8x256xf32>
    %562 = arith.truncf %561 : vector<8x256xf32> to vector<8x256xbf16>
    %c14_310 = arith.constant 14 : index
    %c0_311 = arith.constant 0 : index
    %c0_312 = arith.constant 0 : index
    %563 = vector.load %arg26[%c14_310, %c0_311, %c0_312] : memref<32x256x128xbf16, #tpu.memory_space<vmem>>, vector<1x256x128xbf16>
    %564 = vector.shape_cast %563 : vector<1x256x128xbf16> to vector<256x128xbf16>
    %cst_313 = arith.constant dense<0.000000e+00> : vector<8x128xf32>
    %565 = tpu.matmul %562, %564, %cst_313 {dimension_numbers = #tpu.dot_dimension_numbers<[1], [0], [0], [1], [0, 0, 1, 1], [], []>} : vector<8x256xbf16>, vector<256x128xbf16>, vector<8x128xf32> -> vector<8x128xf32>
    %566 = arith.addf %535, %565 : vector<8x128xf32>
    %c0_314 = arith.constant 0 : index
    %c15 = arith.constant 15 : index
    %567 = memref.load %arg9[%c0_314, %c15] : memref<4x32xf32, #tpu.memory_space<smem>>
    %568 = vector.broadcast %567 : f32 to vector<8x256xf32>
    %569 = arith.mulf %568, %91 : vector<8x256xf32>
    %c1_315 = arith.constant 1 : index
    %c15_316 = arith.constant 15 : index
    %570 = memref.load %arg9[%c1_315, %c15_316] : memref<4x32xf32, #tpu.memory_space<smem>>
    %571 = vector.broadcast %570 : f32 to vector<8x256xf32>
    %572 = arith.mulf %571, %20 : vector<8x256xf32>
    %573 = arith.addf %569, %572 : vector<8x256xf32>
    %c2_317 = arith.constant 2 : index
    %c15_318 = arith.constant 15 : index
    %574 = memref.load %arg9[%c2_317, %c15_318] : memref<4x32xf32, #tpu.memory_space<smem>>
    %575 = vector.broadcast %574 : f32 to vector<8x256xf32>
    %576 = arith.mulf %575, %92 : vector<8x256xf32>
    %577 = arith.addf %573, %576 : vector<8x256xf32>
    %c3_319 = arith.constant 3 : index
    %c15_320 = arith.constant 15 : index
    %578 = memref.load %arg9[%c3_319, %c15_320] : memref<4x32xf32, #tpu.memory_space<smem>>
    %579 = vector.broadcast %578 : f32 to vector<8x256xf32>
    %580 = arith.addf %577, %579 : vector<8x256xf32>
    %cst_321 = arith.constant 0.000000e+00 : f32
    %581 = vector.broadcast %cst_321 : f32 to vector<8x256xf32>
    %582 = arith.minimumf %580, %581 : vector<8x256xf32>
    %583 = math.exp %582 : vector<8x256xf32>
    %cst_322 = arith.constant 1.000000e+00 : f32
    %584 = vector.broadcast %cst_322 : f32 to vector<8x256xf32>
    %585 = arith.subf %583, %584 : vector<8x256xf32>
    %cst_323 = arith.constant 1.67326319 : f32
    %586 = vector.broadcast %cst_323 : f32 to vector<8x256xf32>
    %587 = arith.mulf %586, %585 : vector<8x256xf32>
    %cst_324 = arith.constant 0.000000e+00 : f32
    %588 = vector.broadcast %cst_324 : f32 to vector<8x256xf32>
    %589 = arith.cmpf ogt, %580, %588 : vector<8x256xf32>
    %590 = arith.select %589, %580, %587 : vector<8x256xi1>, vector<8x256xf32>
    %cst_325 = arith.constant 1.05070102 : f32
    %591 = vector.broadcast %cst_325 : f32 to vector<8x256xf32>
    %592 = arith.mulf %591, %590 : vector<8x256xf32>
    %593 = arith.truncf %592 : vector<8x256xf32> to vector<8x256xbf16>
    %c15_326 = arith.constant 15 : index
    %c0_327 = arith.constant 0 : index
    %c0_328 = arith.constant 0 : index
    %594 = vector.load %arg26[%c15_326, %c0_327, %c0_328] : memref<32x256x128xbf16, #tpu.memory_space<vmem>>, vector<1x256x128xbf16>
    %595 = vector.shape_cast %594 : vector<1x256x128xbf16> to vector<256x128xbf16>
    %cst_329 = arith.constant dense<0.000000e+00> : vector<8x128xf32>
    %596 = tpu.matmul %593, %595, %cst_329 {dimension_numbers = #tpu.dot_dimension_numbers<[1], [0], [0], [1], [0, 0, 1, 1], [], []>} : vector<8x256xbf16>, vector<256x128xbf16>, vector<8x128xf32> -> vector<8x128xf32>
    %597 = arith.addf %566, %596 : vector<8x128xf32>
    %c2_i32_330 = arith.constant 2 : i32
    %c16_i32_331 = arith.constant 16 : i32
    %c0_i32_332 = arith.constant 0 : i32
    %c0_i32_333 = arith.constant 0 : i32
    %598 = tpu.memref_slice %arg10[%c16_i32_331, %c0_i32_332, %c0_i32_333] : memref<32x256x128xbf16, #tpu.memory_space<any>> -> memref<8x256x128xbf16, #tpu.memory_space<any>>
    %c16_i32_334 = arith.constant 16 : i32
    %c0_i32_335 = arith.constant 0 : i32
    %c0_i32_336 = arith.constant 0 : i32
    %599 = tpu.memref_slice %arg26[%c16_i32_334, %c0_i32_335, %c0_i32_336] : memref<32x256x128xbf16, #tpu.memory_space<vmem>> -> memref<8x256x128xbf16, #tpu.memory_space<vmem>>
    %600 = tpu.memref_slice %arg29[%c2_i32_330] : memref<6x!tpu.dma_semaphore, #tpu.memory_space<semaphore_mem>> -> memref<1x!tpu.dma_semaphore, #tpu.memory_space<semaphore_mem>>
    %601 = tpu.memref_squeeze %600 : memref<1x!tpu.dma_semaphore, #tpu.memory_space<semaphore_mem>> -> memref<!tpu.dma_semaphore, #tpu.memory_space<semaphore_mem>>
    tpu.wait_dma2 semaphore(%601 : memref<!tpu.dma_semaphore, #tpu.memory_space<semaphore_mem>>) src(%598 : memref<8x256x128xbf16, #tpu.memory_space<any>>) dst(%599 : memref<8x256x128xbf16, #tpu.memory_space<vmem>>)
    %c0_337 = arith.constant 0 : index
    %c16 = arith.constant 16 : index
    %602 = memref.load %arg9[%c0_337, %c16] : memref<4x32xf32, #tpu.memory_space<smem>>
    %603 = vector.broadcast %602 : f32 to vector<8x256xf32>
    %604 = arith.mulf %603, %91 : vector<8x256xf32>
    %c1_338 = arith.constant 1 : index
    %c16_339 = arith.constant 16 : index
    %605 = memref.load %arg9[%c1_338, %c16_339] : memref<4x32xf32, #tpu.memory_space<smem>>
    %606 = vector.broadcast %605 : f32 to vector<8x256xf32>
    %607 = arith.mulf %606, %20 : vector<8x256xf32>
    %608 = arith.addf %604, %607 : vector<8x256xf32>
    %c2_340 = arith.constant 2 : index
    %c16_341 = arith.constant 16 : index
    %609 = memref.load %arg9[%c2_340, %c16_341] : memref<4x32xf32, #tpu.memory_space<smem>>
    %610 = vector.broadcast %609 : f32 to vector<8x256xf32>
    %611 = arith.mulf %610, %92 : vector<8x256xf32>
    %612 = arith.addf %608, %611 : vector<8x256xf32>
    %c3_342 = arith.constant 3 : index
    %c16_343 = arith.constant 16 : index
    %613 = memref.load %arg9[%c3_342, %c16_343] : memref<4x32xf32, #tpu.memory_space<smem>>
    %614 = vector.broadcast %613 : f32 to vector<8x256xf32>
    %615 = arith.addf %612, %614 : vector<8x256xf32>
    %cst_344 = arith.constant 0.000000e+00 : f32
    %616 = vector.broadcast %cst_344 : f32 to vector<8x256xf32>
    %617 = arith.minimumf %615, %616 : vector<8x256xf32>
    %618 = math.exp %617 : vector<8x256xf32>
    %cst_345 = arith.constant 1.000000e+00 : f32
    %619 = vector.broadcast %cst_345 : f32 to vector<8x256xf32>
    %620 = arith.subf %618, %619 : vector<8x256xf32>
    %cst_346 = arith.constant 1.67326319 : f32
    %621 = vector.broadcast %cst_346 : f32 to vector<8x256xf32>
    %622 = arith.mulf %621, %620 : vector<8x256xf32>
    %cst_347 = arith.constant 0.000000e+00 : f32
    %623 = vector.broadcast %cst_347 : f32 to vector<8x256xf32>
    %624 = arith.cmpf ogt, %615, %623 : vector<8x256xf32>
    %625 = arith.select %624, %615, %622 : vector<8x256xi1>, vector<8x256xf32>
    %cst_348 = arith.constant 1.05070102 : f32
    %626 = vector.broadcast %cst_348 : f32 to vector<8x256xf32>
    %627 = arith.mulf %626, %625 : vector<8x256xf32>
    %628 = arith.truncf %627 : vector<8x256xf32> to vector<8x256xbf16>
    %c16_349 = arith.constant 16 : index
    %c0_350 = arith.constant 0 : index
    %c0_351 = arith.constant 0 : index
    %629 = vector.load %arg26[%c16_349, %c0_350, %c0_351] : memref<32x256x128xbf16, #tpu.memory_space<vmem>>, vector<1x256x128xbf16>
    %630 = vector.shape_cast %629 : vector<1x256x128xbf16> to vector<256x128xbf16>
    %cst_352 = arith.constant dense<0.000000e+00> : vector<8x128xf32>
    %631 = tpu.matmul %628, %630, %cst_352 {dimension_numbers = #tpu.dot_dimension_numbers<[1], [0], [0], [1], [0, 0, 1, 1], [], []>} : vector<8x256xbf16>, vector<256x128xbf16>, vector<8x128xf32> -> vector<8x128xf32>
    %632 = arith.addf %597, %631 : vector<8x128xf32>
    %c0_353 = arith.constant 0 : index
    %c17 = arith.constant 17 : index
    %633 = memref.load %arg9[%c0_353, %c17] : memref<4x32xf32, #tpu.memory_space<smem>>
    %634 = vector.broadcast %633 : f32 to vector<8x256xf32>
    %635 = arith.mulf %634, %91 : vector<8x256xf32>
    %c1_354 = arith.constant 1 : index
    %c17_355 = arith.constant 17 : index
    %636 = memref.load %arg9[%c1_354, %c17_355] : memref<4x32xf32, #tpu.memory_space<smem>>
    %637 = vector.broadcast %636 : f32 to vector<8x256xf32>
    %638 = arith.mulf %637, %20 : vector<8x256xf32>
    %639 = arith.addf %635, %638 : vector<8x256xf32>
    %c2_356 = arith.constant 2 : index
    %c17_357 = arith.constant 17 : index
    %640 = memref.load %arg9[%c2_356, %c17_357] : memref<4x32xf32, #tpu.memory_space<smem>>
    %641 = vector.broadcast %640 : f32 to vector<8x256xf32>
    %642 = arith.mulf %641, %92 : vector<8x256xf32>
    %643 = arith.addf %639, %642 : vector<8x256xf32>
    %c3_358 = arith.constant 3 : index
    %c17_359 = arith.constant 17 : index
    %644 = memref.load %arg9[%c3_358, %c17_359] : memref<4x32xf32, #tpu.memory_space<smem>>
    %645 = vector.broadcast %644 : f32 to vector<8x256xf32>
    %646 = arith.addf %643, %645 : vector<8x256xf32>
    %cst_360 = arith.constant 0.000000e+00 : f32
    %647 = vector.broadcast %cst_360 : f32 to vector<8x256xf32>
    %648 = arith.minimumf %646, %647 : vector<8x256xf32>
    %649 = math.exp %648 : vector<8x256xf32>
    %cst_361 = arith.constant 1.000000e+00 : f32
    %650 = vector.broadcast %cst_361 : f32 to vector<8x256xf32>
    %651 = arith.subf %649, %650 : vector<8x256xf32>
    %cst_362 = arith.constant 1.67326319 : f32
    %652 = vector.broadcast %cst_362 : f32 to vector<8x256xf32>
    %653 = arith.mulf %652, %651 : vector<8x256xf32>
    %cst_363 = arith.constant 0.000000e+00 : f32
    %654 = vector.broadcast %cst_363 : f32 to vector<8x256xf32>
    %655 = arith.cmpf ogt, %646, %654 : vector<8x256xf32>
    %656 = arith.select %655, %646, %653 : vector<8x256xi1>, vector<8x256xf32>
    %cst_364 = arith.constant 1.05070102 : f32
    %657 = vector.broadcast %cst_364 : f32 to vector<8x256xf32>
    %658 = arith.mulf %657, %656 : vector<8x256xf32>
    %659 = arith.truncf %658 : vector<8x256xf32> to vector<8x256xbf16>
    %c17_365 = arith.constant 17 : index
    %c0_366 = arith.constant 0 : index
    %c0_367 = arith.constant 0 : index
    %660 = vector.load %arg26[%c17_365, %c0_366, %c0_367] : memref<32x256x128xbf16, #tpu.memory_space<vmem>>, vector<1x256x128xbf16>
    %661 = vector.shape_cast %660 : vector<1x256x128xbf16> to vector<256x128xbf16>
    %cst_368 = arith.constant dense<0.000000e+00> : vector<8x128xf32>
    %662 = tpu.matmul %659, %661, %cst_368 {dimension_numbers = #tpu.dot_dimension_numbers<[1], [0], [0], [1], [0, 0, 1, 1], [], []>} : vector<8x256xbf16>, vector<256x128xbf16>, vector<8x128xf32> -> vector<8x128xf32>
    %663 = arith.addf %632, %662 : vector<8x128xf32>
    %c0_369 = arith.constant 0 : index
    %c18 = arith.constant 18 : index
    %664 = memref.load %arg9[%c0_369, %c18] : memref<4x32xf32, #tpu.memory_space<smem>>
    %665 = vector.broadcast %664 : f32 to vector<8x256xf32>
    %666 = arith.mulf %665, %91 : vector<8x256xf32>
    %c1_370 = arith.constant 1 : index
    %c18_371 = arith.constant 18 : index
    %667 = memref.load %arg9[%c1_370, %c18_371] : memref<4x32xf32, #tpu.memory_space<smem>>
    %668 = vector.broadcast %667 : f32 to vector<8x256xf32>
    %669 = arith.mulf %668, %20 : vector<8x256xf32>
    %670 = arith.addf %666, %669 : vector<8x256xf32>
    %c2_372 = arith.constant 2 : index
    %c18_373 = arith.constant 18 : index
    %671 = memref.load %arg9[%c2_372, %c18_373] : memref<4x32xf32, #tpu.memory_space<smem>>
    %672 = vector.broadcast %671 : f32 to vector<8x256xf32>
    %673 = arith.mulf %672, %92 : vector<8x256xf32>
    %674 = arith.addf %670, %673 : vector<8x256xf32>
    %c3_374 = arith.constant 3 : index
    %c18_375 = arith.constant 18 : index
    %675 = memref.load %arg9[%c3_374, %c18_375] : memref<4x32xf32, #tpu.memory_space<smem>>
    %676 = vector.broadcast %675 : f32 to vector<8x256xf32>
    %677 = arith.addf %674, %676 : vector<8x256xf32>
    %cst_376 = arith.constant 0.000000e+00 : f32
    %678 = vector.broadcast %cst_376 : f32 to vector<8x256xf32>
    %679 = arith.minimumf %677, %678 : vector<8x256xf32>
    %680 = math.exp %679 : vector<8x256xf32>
    %cst_377 = arith.constant 1.000000e+00 : f32
    %681 = vector.broadcast %cst_377 : f32 to vector<8x256xf32>
    %682 = arith.subf %680, %681 : vector<8x256xf32>
    %cst_378 = arith.constant 1.67326319 : f32
    %683 = vector.broadcast %cst_378 : f32 to vector<8x256xf32>
    %684 = arith.mulf %683, %682 : vector<8x256xf32>
    %cst_379 = arith.constant 0.000000e+00 : f32
    %685 = vector.broadcast %cst_379 : f32 to vector<8x256xf32>
    %686 = arith.cmpf ogt, %677, %685 : vector<8x256xf32>
    %687 = arith.select %686, %677, %684 : vector<8x256xi1>, vector<8x256xf32>
    %cst_380 = arith.constant 1.05070102 : f32
    %688 = vector.broadcast %cst_380 : f32 to vector<8x256xf32>
    %689 = arith.mulf %688, %687 : vector<8x256xf32>
    %690 = arith.truncf %689 : vector<8x256xf32> to vector<8x256xbf16>
    %c18_381 = arith.constant 18 : index
    %c0_382 = arith.constant 0 : index
    %c0_383 = arith.constant 0 : index
    %691 = vector.load %arg26[%c18_381, %c0_382, %c0_383] : memref<32x256x128xbf16, #tpu.memory_space<vmem>>, vector<1x256x128xbf16>
    %692 = vector.shape_cast %691 : vector<1x256x128xbf16> to vector<256x128xbf16>
    %cst_384 = arith.constant dense<0.000000e+00> : vector<8x128xf32>
    %693 = tpu.matmul %690, %692, %cst_384 {dimension_numbers = #tpu.dot_dimension_numbers<[1], [0], [0], [1], [0, 0, 1, 1], [], []>} : vector<8x256xbf16>, vector<256x128xbf16>, vector<8x128xf32> -> vector<8x128xf32>
    %694 = arith.addf %663, %693 : vector<8x128xf32>
    %c0_385 = arith.constant 0 : index
    %c19 = arith.constant 19 : index
    %695 = memref.load %arg9[%c0_385, %c19] : memref<4x32xf32, #tpu.memory_space<smem>>
    %696 = vector.broadcast %695 : f32 to vector<8x256xf32>
    %697 = arith.mulf %696, %91 : vector<8x256xf32>
    %c1_386 = arith.constant 1 : index
    %c19_387 = arith.constant 19 : index
    %698 = memref.load %arg9[%c1_386, %c19_387] : memref<4x32xf32, #tpu.memory_space<smem>>
    %699 = vector.broadcast %698 : f32 to vector<8x256xf32>
    %700 = arith.mulf %699, %20 : vector<8x256xf32>
    %701 = arith.addf %697, %700 : vector<8x256xf32>
    %c2_388 = arith.constant 2 : index
    %c19_389 = arith.constant 19 : index
    %702 = memref.load %arg9[%c2_388, %c19_389] : memref<4x32xf32, #tpu.memory_space<smem>>
    %703 = vector.broadcast %702 : f32 to vector<8x256xf32>
    %704 = arith.mulf %703, %92 : vector<8x256xf32>
    %705 = arith.addf %701, %704 : vector<8x256xf32>
    %c3_390 = arith.constant 3 : index
    %c19_391 = arith.constant 19 : index
    %706 = memref.load %arg9[%c3_390, %c19_391] : memref<4x32xf32, #tpu.memory_space<smem>>
    %707 = vector.broadcast %706 : f32 to vector<8x256xf32>
    %708 = arith.addf %705, %707 : vector<8x256xf32>
    %cst_392 = arith.constant 0.000000e+00 : f32
    %709 = vector.broadcast %cst_392 : f32 to vector<8x256xf32>
    %710 = arith.minimumf %708, %709 : vector<8x256xf32>
    %711 = math.exp %710 : vector<8x256xf32>
    %cst_393 = arith.constant 1.000000e+00 : f32
    %712 = vector.broadcast %cst_393 : f32 to vector<8x256xf32>
    %713 = arith.subf %711, %712 : vector<8x256xf32>
    %cst_394 = arith.constant 1.67326319 : f32
    %714 = vector.broadcast %cst_394 : f32 to vector<8x256xf32>
    %715 = arith.mulf %714, %713 : vector<8x256xf32>
    %cst_395 = arith.constant 0.000000e+00 : f32
    %716 = vector.broadcast %cst_395 : f32 to vector<8x256xf32>
    %717 = arith.cmpf ogt, %708, %716 : vector<8x256xf32>
    %718 = arith.select %717, %708, %715 : vector<8x256xi1>, vector<8x256xf32>
    %cst_396 = arith.constant 1.05070102 : f32
    %719 = vector.broadcast %cst_396 : f32 to vector<8x256xf32>
    %720 = arith.mulf %719, %718 : vector<8x256xf32>
    %721 = arith.truncf %720 : vector<8x256xf32> to vector<8x256xbf16>
    %c19_397 = arith.constant 19 : index
    %c0_398 = arith.constant 0 : index
    %c0_399 = arith.constant 0 : index
    %722 = vector.load %arg26[%c19_397, %c0_398, %c0_399] : memref<32x256x128xbf16, #tpu.memory_space<vmem>>, vector<1x256x128xbf16>
    %723 = vector.shape_cast %722 : vector<1x256x128xbf16> to vector<256x128xbf16>
    %cst_400 = arith.constant dense<0.000000e+00> : vector<8x128xf32>
    %724 = tpu.matmul %721, %723, %cst_400 {dimension_numbers = #tpu.dot_dimension_numbers<[1], [0], [0], [1], [0, 0, 1, 1], [], []>} : vector<8x256xbf16>, vector<256x128xbf16>, vector<8x128xf32> -> vector<8x128xf32>
    %725 = arith.addf %694, %724 : vector<8x128xf32>
    %c0_401 = arith.constant 0 : index
    %c20 = arith.constant 20 : index
    %726 = memref.load %arg9[%c0_401, %c20] : memref<4x32xf32, #tpu.memory_space<smem>>
    %727 = vector.broadcast %726 : f32 to vector<8x256xf32>
    %728 = arith.mulf %727, %91 : vector<8x256xf32>
    %c1_402 = arith.constant 1 : index
    %c20_403 = arith.constant 20 : index
    %729 = memref.load %arg9[%c1_402, %c20_403] : memref<4x32xf32, #tpu.memory_space<smem>>
    %730 = vector.broadcast %729 : f32 to vector<8x256xf32>
    %731 = arith.mulf %730, %20 : vector<8x256xf32>
    %732 = arith.addf %728, %731 : vector<8x256xf32>
    %c2_404 = arith.constant 2 : index
    %c20_405 = arith.constant 20 : index
    %733 = memref.load %arg9[%c2_404, %c20_405] : memref<4x32xf32, #tpu.memory_space<smem>>
    %734 = vector.broadcast %733 : f32 to vector<8x256xf32>
    %735 = arith.mulf %734, %92 : vector<8x256xf32>
    %736 = arith.addf %732, %735 : vector<8x256xf32>
    %c3_406 = arith.constant 3 : index
    %c20_407 = arith.constant 20 : index
    %737 = memref.load %arg9[%c3_406, %c20_407] : memref<4x32xf32, #tpu.memory_space<smem>>
    %738 = vector.broadcast %737 : f32 to vector<8x256xf32>
    %739 = arith.addf %736, %738 : vector<8x256xf32>
    %cst_408 = arith.constant 0.000000e+00 : f32
    %740 = vector.broadcast %cst_408 : f32 to vector<8x256xf32>
    %741 = arith.minimumf %739, %740 : vector<8x256xf32>
    %742 = math.exp %741 : vector<8x256xf32>
    %cst_409 = arith.constant 1.000000e+00 : f32
    %743 = vector.broadcast %cst_409 : f32 to vector<8x256xf32>
    %744 = arith.subf %742, %743 : vector<8x256xf32>
    %cst_410 = arith.constant 1.67326319 : f32
    %745 = vector.broadcast %cst_410 : f32 to vector<8x256xf32>
    %746 = arith.mulf %745, %744 : vector<8x256xf32>
    %cst_411 = arith.constant 0.000000e+00 : f32
    %747 = vector.broadcast %cst_411 : f32 to vector<8x256xf32>
    %748 = arith.cmpf ogt, %739, %747 : vector<8x256xf32>
    %749 = arith.select %748, %739, %746 : vector<8x256xi1>, vector<8x256xf32>
    %cst_412 = arith.constant 1.05070102 : f32
    %750 = vector.broadcast %cst_412 : f32 to vector<8x256xf32>
    %751 = arith.mulf %750, %749 : vector<8x256xf32>
    %752 = arith.truncf %751 : vector<8x256xf32> to vector<8x256xbf16>
    %c20_413 = arith.constant 20 : index
    %c0_414 = arith.constant 0 : index
    %c0_415 = arith.constant 0 : index
    %753 = vector.load %arg26[%c20_413, %c0_414, %c0_415] : memref<32x256x128xbf16, #tpu.memory_space<vmem>>, vector<1x256x128xbf16>
    %754 = vector.shape_cast %753 : vector<1x256x128xbf16> to vector<256x128xbf16>
    %cst_416 = arith.constant dense<0.000000e+00> : vector<8x128xf32>
    %755 = tpu.matmul %752, %754, %cst_416 {dimension_numbers = #tpu.dot_dimension_numbers<[1], [0], [0], [1], [0, 0, 1, 1], [], []>} : vector<8x256xbf16>, vector<256x128xbf16>, vector<8x128xf32> -> vector<8x128xf32>
    %756 = arith.addf %725, %755 : vector<8x128xf32>
    %c0_417 = arith.constant 0 : index
    %c21 = arith.constant 21 : index
    %757 = memref.load %arg9[%c0_417, %c21] : memref<4x32xf32, #tpu.memory_space<smem>>
    %758 = vector.broadcast %757 : f32 to vector<8x256xf32>
    %759 = arith.mulf %758, %91 : vector<8x256xf32>
    %c1_418 = arith.constant 1 : index
    %c21_419 = arith.constant 21 : index
    %760 = memref.load %arg9[%c1_418, %c21_419] : memref<4x32xf32, #tpu.memory_space<smem>>
    %761 = vector.broadcast %760 : f32 to vector<8x256xf32>
    %762 = arith.mulf %761, %20 : vector<8x256xf32>
    %763 = arith.addf %759, %762 : vector<8x256xf32>
    %c2_420 = arith.constant 2 : index
    %c21_421 = arith.constant 21 : index
    %764 = memref.load %arg9[%c2_420, %c21_421] : memref<4x32xf32, #tpu.memory_space<smem>>
    %765 = vector.broadcast %764 : f32 to vector<8x256xf32>
    %766 = arith.mulf %765, %92 : vector<8x256xf32>
    %767 = arith.addf %763, %766 : vector<8x256xf32>
    %c3_422 = arith.constant 3 : index
    %c21_423 = arith.constant 21 : index
    %768 = memref.load %arg9[%c3_422, %c21_423] : memref<4x32xf32, #tpu.memory_space<smem>>
    %769 = vector.broadcast %768 : f32 to vector<8x256xf32>
    %770 = arith.addf %767, %769 : vector<8x256xf32>
    %cst_424 = arith.constant 0.000000e+00 : f32
    %771 = vector.broadcast %cst_424 : f32 to vector<8x256xf32>
    %772 = arith.minimumf %770, %771 : vector<8x256xf32>
    %773 = math.exp %772 : vector<8x256xf32>
    %cst_425 = arith.constant 1.000000e+00 : f32
    %774 = vector.broadcast %cst_425 : f32 to vector<8x256xf32>
    %775 = arith.subf %773, %774 : vector<8x256xf32>
    %cst_426 = arith.constant 1.67326319 : f32
    %776 = vector.broadcast %cst_426 : f32 to vector<8x256xf32>
    %777 = arith.mulf %776, %775 : vector<8x256xf32>
    %cst_427 = arith.constant 0.000000e+00 : f32
    %778 = vector.broadcast %cst_427 : f32 to vector<8x256xf32>
    %779 = arith.cmpf ogt, %770, %778 : vector<8x256xf32>
    %780 = arith.select %779, %770, %777 : vector<8x256xi1>, vector<8x256xf32>
    %cst_428 = arith.constant 1.05070102 : f32
    %781 = vector.broadcast %cst_428 : f32 to vector<8x256xf32>
    %782 = arith.mulf %781, %780 : vector<8x256xf32>
    %783 = arith.truncf %782 : vector<8x256xf32> to vector<8x256xbf16>
    %c21_429 = arith.constant 21 : index
    %c0_430 = arith.constant 0 : index
    %c0_431 = arith.constant 0 : index
    %784 = vector.load %arg26[%c21_429, %c0_430, %c0_431] : memref<32x256x128xbf16, #tpu.memory_space<vmem>>, vector<1x256x128xbf16>
    %785 = vector.shape_cast %784 : vector<1x256x128xbf16> to vector<256x128xbf16>
    %cst_432 = arith.constant dense<0.000000e+00> : vector<8x128xf32>
    %786 = tpu.matmul %783, %785, %cst_432 {dimension_numbers = #tpu.dot_dimension_numbers<[1], [0], [0], [1], [0, 0, 1, 1], [], []>} : vector<8x256xbf16>, vector<256x128xbf16>, vector<8x128xf32> -> vector<8x128xf32>
    %787 = arith.addf %756, %786 : vector<8x128xf32>
    %c0_433 = arith.constant 0 : index
    %c22 = arith.constant 22 : index
    %788 = memref.load %arg9[%c0_433, %c22] : memref<4x32xf32, #tpu.memory_space<smem>>
    %789 = vector.broadcast %788 : f32 to vector<8x256xf32>
    %790 = arith.mulf %789, %91 : vector<8x256xf32>
    %c1_434 = arith.constant 1 : index
    %c22_435 = arith.constant 22 : index
    %791 = memref.load %arg9[%c1_434, %c22_435] : memref<4x32xf32, #tpu.memory_space<smem>>
    %792 = vector.broadcast %791 : f32 to vector<8x256xf32>
    %793 = arith.mulf %792, %20 : vector<8x256xf32>
    %794 = arith.addf %790, %793 : vector<8x256xf32>
    %c2_436 = arith.constant 2 : index
    %c22_437 = arith.constant 22 : index
    %795 = memref.load %arg9[%c2_436, %c22_437] : memref<4x32xf32, #tpu.memory_space<smem>>
    %796 = vector.broadcast %795 : f32 to vector<8x256xf32>
    %797 = arith.mulf %796, %92 : vector<8x256xf32>
    %798 = arith.addf %794, %797 : vector<8x256xf32>
    %c3_438 = arith.constant 3 : index
    %c22_439 = arith.constant 22 : index
    %799 = memref.load %arg9[%c3_438, %c22_439] : memref<4x32xf32, #tpu.memory_space<smem>>
    %800 = vector.broadcast %799 : f32 to vector<8x256xf32>
    %801 = arith.addf %798, %800 : vector<8x256xf32>
    %cst_440 = arith.constant 0.000000e+00 : f32
    %802 = vector.broadcast %cst_440 : f32 to vector<8x256xf32>
    %803 = arith.minimumf %801, %802 : vector<8x256xf32>
    %804 = math.exp %803 : vector<8x256xf32>
    %cst_441 = arith.constant 1.000000e+00 : f32
    %805 = vector.broadcast %cst_441 : f32 to vector<8x256xf32>
    %806 = arith.subf %804, %805 : vector<8x256xf32>
    %cst_442 = arith.constant 1.67326319 : f32
    %807 = vector.broadcast %cst_442 : f32 to vector<8x256xf32>
    %808 = arith.mulf %807, %806 : vector<8x256xf32>
    %cst_443 = arith.constant 0.000000e+00 : f32
    %809 = vector.broadcast %cst_443 : f32 to vector<8x256xf32>
    %810 = arith.cmpf ogt, %801, %809 : vector<8x256xf32>
    %811 = arith.select %810, %801, %808 : vector<8x256xi1>, vector<8x256xf32>
    %cst_444 = arith.constant 1.05070102 : f32
    %812 = vector.broadcast %cst_444 : f32 to vector<8x256xf32>
    %813 = arith.mulf %812, %811 : vector<8x256xf32>
    %814 = arith.truncf %813 : vector<8x256xf32> to vector<8x256xbf16>
    %c22_445 = arith.constant 22 : index
    %c0_446 = arith.constant 0 : index
    %c0_447 = arith.constant 0 : index
    %815 = vector.load %arg26[%c22_445, %c0_446, %c0_447] : memref<32x256x128xbf16, #tpu.memory_space<vmem>>, vector<1x256x128xbf16>
    %816 = vector.shape_cast %815 : vector<1x256x128xbf16> to vector<256x128xbf16>
    %cst_448 = arith.constant dense<0.000000e+00> : vector<8x128xf32>
    %817 = tpu.matmul %814, %816, %cst_448 {dimension_numbers = #tpu.dot_dimension_numbers<[1], [0], [0], [1], [0, 0, 1, 1], [], []>} : vector<8x256xbf16>, vector<256x128xbf16>, vector<8x128xf32> -> vector<8x128xf32>
    %818 = arith.addf %787, %817 : vector<8x128xf32>
    %c0_449 = arith.constant 0 : index
    %c23 = arith.constant 23 : index
    %819 = memref.load %arg9[%c0_449, %c23] : memref<4x32xf32, #tpu.memory_space<smem>>
    %820 = vector.broadcast %819 : f32 to vector<8x256xf32>
    %821 = arith.mulf %820, %91 : vector<8x256xf32>
    %c1_450 = arith.constant 1 : index
    %c23_451 = arith.constant 23 : index
    %822 = memref.load %arg9[%c1_450, %c23_451] : memref<4x32xf32, #tpu.memory_space<smem>>
    %823 = vector.broadcast %822 : f32 to vector<8x256xf32>
    %824 = arith.mulf %823, %20 : vector<8x256xf32>
    %825 = arith.addf %821, %824 : vector<8x256xf32>
    %c2_452 = arith.constant 2 : index
    %c23_453 = arith.constant 23 : index
    %826 = memref.load %arg9[%c2_452, %c23_453] : memref<4x32xf32, #tpu.memory_space<smem>>
    %827 = vector.broadcast %826 : f32 to vector<8x256xf32>
    %828 = arith.mulf %827, %92 : vector<8x256xf32>
    %829 = arith.addf %825, %828 : vector<8x256xf32>
    %c3_454 = arith.constant 3 : index
    %c23_455 = arith.constant 23 : index
    %830 = memref.load %arg9[%c3_454, %c23_455] : memref<4x32xf32, #tpu.memory_space<smem>>
    %831 = vector.broadcast %830 : f32 to vector<8x256xf32>
    %832 = arith.addf %829, %831 : vector<8x256xf32>
    %cst_456 = arith.constant 0.000000e+00 : f32
    %833 = vector.broadcast %cst_456 : f32 to vector<8x256xf32>
    %834 = arith.minimumf %832, %833 : vector<8x256xf32>
    %835 = math.exp %834 : vector<8x256xf32>
    %cst_457 = arith.constant 1.000000e+00 : f32
    %836 = vector.broadcast %cst_457 : f32 to vector<8x256xf32>
    %837 = arith.subf %835, %836 : vector<8x256xf32>
    %cst_458 = arith.constant 1.67326319 : f32
    %838 = vector.broadcast %cst_458 : f32 to vector<8x256xf32>
    %839 = arith.mulf %838, %837 : vector<8x256xf32>
    %cst_459 = arith.constant 0.000000e+00 : f32
    %840 = vector.broadcast %cst_459 : f32 to vector<8x256xf32>
    %841 = arith.cmpf ogt, %832, %840 : vector<8x256xf32>
    %842 = arith.select %841, %832, %839 : vector<8x256xi1>, vector<8x256xf32>
    %cst_460 = arith.constant 1.05070102 : f32
    %843 = vector.broadcast %cst_460 : f32 to vector<8x256xf32>
    %844 = arith.mulf %843, %842 : vector<8x256xf32>
    %845 = arith.truncf %844 : vector<8x256xf32> to vector<8x256xbf16>
    %c23_461 = arith.constant 23 : index
    %c0_462 = arith.constant 0 : index
    %c0_463 = arith.constant 0 : index
    %846 = vector.load %arg26[%c23_461, %c0_462, %c0_463] : memref<32x256x128xbf16, #tpu.memory_space<vmem>>, vector<1x256x128xbf16>
    %847 = vector.shape_cast %846 : vector<1x256x128xbf16> to vector<256x128xbf16>
    %cst_464 = arith.constant dense<0.000000e+00> : vector<8x128xf32>
    %848 = tpu.matmul %845, %847, %cst_464 {dimension_numbers = #tpu.dot_dimension_numbers<[1], [0], [0], [1], [0, 0, 1, 1], [], []>} : vector<8x256xbf16>, vector<256x128xbf16>, vector<8x128xf32> -> vector<8x128xf32>
    %849 = arith.addf %818, %848 : vector<8x128xf32>
    %c3_i32_465 = arith.constant 3 : i32
    %c24_i32_466 = arith.constant 24 : i32
    %c0_i32_467 = arith.constant 0 : i32
    %c0_i32_468 = arith.constant 0 : i32
    %850 = tpu.memref_slice %arg10[%c24_i32_466, %c0_i32_467, %c0_i32_468] : memref<32x256x128xbf16, #tpu.memory_space<any>> -> memref<8x256x128xbf16, #tpu.memory_space<any>>
    %c24_i32_469 = arith.constant 24 : i32
    %c0_i32_470 = arith.constant 0 : i32
    %c0_i32_471 = arith.constant 0 : i32
    %851 = tpu.memref_slice %arg26[%c24_i32_469, %c0_i32_470, %c0_i32_471] : memref<32x256x128xbf16, #tpu.memory_space<vmem>> -> memref<8x256x128xbf16, #tpu.memory_space<vmem>>
    %852 = tpu.memref_slice %arg29[%c3_i32_465] : memref<6x!tpu.dma_semaphore, #tpu.memory_space<semaphore_mem>> -> memref<1x!tpu.dma_semaphore, #tpu.memory_space<semaphore_mem>>
    %853 = tpu.memref_squeeze %852 : memref<1x!tpu.dma_semaphore, #tpu.memory_space<semaphore_mem>> -> memref<!tpu.dma_semaphore, #tpu.memory_space<semaphore_mem>>
    tpu.wait_dma2 semaphore(%853 : memref<!tpu.dma_semaphore, #tpu.memory_space<semaphore_mem>>) src(%850 : memref<8x256x128xbf16, #tpu.memory_space<any>>) dst(%851 : memref<8x256x128xbf16, #tpu.memory_space<vmem>>)
    %c0_472 = arith.constant 0 : index
    %c24 = arith.constant 24 : index
    %854 = memref.load %arg9[%c0_472, %c24] : memref<4x32xf32, #tpu.memory_space<smem>>
    %855 = vector.broadcast %854 : f32 to vector<8x256xf32>
    %856 = arith.mulf %855, %91 : vector<8x256xf32>
    %c1_473 = arith.constant 1 : index
    %c24_474 = arith.constant 24 : index
    %857 = memref.load %arg9[%c1_473, %c24_474] : memref<4x32xf32, #tpu.memory_space<smem>>
    %858 = vector.broadcast %857 : f32 to vector<8x256xf32>
    %859 = arith.mulf %858, %20 : vector<8x256xf32>
    %860 = arith.addf %856, %859 : vector<8x256xf32>
    %c2_475 = arith.constant 2 : index
    %c24_476 = arith.constant 24 : index
    %861 = memref.load %arg9[%c2_475, %c24_476] : memref<4x32xf32, #tpu.memory_space<smem>>
    %862 = vector.broadcast %861 : f32 to vector<8x256xf32>
    %863 = arith.mulf %862, %92 : vector<8x256xf32>
    %864 = arith.addf %860, %863 : vector<8x256xf32>
    %c3_477 = arith.constant 3 : index
    %c24_478 = arith.constant 24 : index
    %865 = memref.load %arg9[%c3_477, %c24_478] : memref<4x32xf32, #tpu.memory_space<smem>>
    %866 = vector.broadcast %865 : f32 to vector<8x256xf32>
    %867 = arith.addf %864, %866 : vector<8x256xf32>
    %cst_479 = arith.constant 0.000000e+00 : f32
    %868 = vector.broadcast %cst_479 : f32 to vector<8x256xf32>
    %869 = arith.minimumf %867, %868 : vector<8x256xf32>
    %870 = math.exp %869 : vector<8x256xf32>
    %cst_480 = arith.constant 1.000000e+00 : f32
    %871 = vector.broadcast %cst_480 : f32 to vector<8x256xf32>
    %872 = arith.subf %870, %871 : vector<8x256xf32>
    %cst_481 = arith.constant 1.67326319 : f32
    %873 = vector.broadcast %cst_481 : f32 to vector<8x256xf32>
    %874 = arith.mulf %873, %872 : vector<8x256xf32>
    %cst_482 = arith.constant 0.000000e+00 : f32
    %875 = vector.broadcast %cst_482 : f32 to vector<8x256xf32>
    %876 = arith.cmpf ogt, %867, %875 : vector<8x256xf32>
    %877 = arith.select %876, %867, %874 : vector<8x256xi1>, vector<8x256xf32>
    %cst_483 = arith.constant 1.05070102 : f32
    %878 = vector.broadcast %cst_483 : f32 to vector<8x256xf32>
    %879 = arith.mulf %878, %877 : vector<8x256xf32>
    %880 = arith.truncf %879 : vector<8x256xf32> to vector<8x256xbf16>
    %c24_484 = arith.constant 24 : index
    %c0_485 = arith.constant 0 : index
    %c0_486 = arith.constant 0 : index
    %881 = vector.load %arg26[%c24_484, %c0_485, %c0_486] : memref<32x256x128xbf16, #tpu.memory_space<vmem>>, vector<1x256x128xbf16>
    %882 = vector.shape_cast %881 : vector<1x256x128xbf16> to vector<256x128xbf16>
    %cst_487 = arith.constant dense<0.000000e+00> : vector<8x128xf32>
    %883 = tpu.matmul %880, %882, %cst_487 {dimension_numbers = #tpu.dot_dimension_numbers<[1], [0], [0], [1], [0, 0, 1, 1], [], []>} : vector<8x256xbf16>, vector<256x128xbf16>, vector<8x128xf32> -> vector<8x128xf32>
    %884 = arith.addf %849, %883 : vector<8x128xf32>
    %c0_488 = arith.constant 0 : index
    %c25 = arith.constant 25 : index
    %885 = memref.load %arg9[%c0_488, %c25] : memref<4x32xf32, #tpu.memory_space<smem>>
    %886 = vector.broadcast %885 : f32 to vector<8x256xf32>
    %887 = arith.mulf %886, %91 : vector<8x256xf32>
    %c1_489 = arith.constant 1 : index
    %c25_490 = arith.constant 25 : index
    %888 = memref.load %arg9[%c1_489, %c25_490] : memref<4x32xf32, #tpu.memory_space<smem>>
    %889 = vector.broadcast %888 : f32 to vector<8x256xf32>
    %890 = arith.mulf %889, %20 : vector<8x256xf32>
    %891 = arith.addf %887, %890 : vector<8x256xf32>
    %c2_491 = arith.constant 2 : index
    %c25_492 = arith.constant 25 : index
    %892 = memref.load %arg9[%c2_491, %c25_492] : memref<4x32xf32, #tpu.memory_space<smem>>
    %893 = vector.broadcast %892 : f32 to vector<8x256xf32>
    %894 = arith.mulf %893, %92 : vector<8x256xf32>
    %895 = arith.addf %891, %894 : vector<8x256xf32>
    %c3_493 = arith.constant 3 : index
    %c25_494 = arith.constant 25 : index
    %896 = memref.load %arg9[%c3_493, %c25_494] : memref<4x32xf32, #tpu.memory_space<smem>>
    %897 = vector.broadcast %896 : f32 to vector<8x256xf32>
    %898 = arith.addf %895, %897 : vector<8x256xf32>
    %cst_495 = arith.constant 0.000000e+00 : f32
    %899 = vector.broadcast %cst_495 : f32 to vector<8x256xf32>
    %900 = arith.minimumf %898, %899 : vector<8x256xf32>
    %901 = math.exp %900 : vector<8x256xf32>
    %cst_496 = arith.constant 1.000000e+00 : f32
    %902 = vector.broadcast %cst_496 : f32 to vector<8x256xf32>
    %903 = arith.subf %901, %902 : vector<8x256xf32>
    %cst_497 = arith.constant 1.67326319 : f32
    %904 = vector.broadcast %cst_497 : f32 to vector<8x256xf32>
    %905 = arith.mulf %904, %903 : vector<8x256xf32>
    %cst_498 = arith.constant 0.000000e+00 : f32
    %906 = vector.broadcast %cst_498 : f32 to vector<8x256xf32>
    %907 = arith.cmpf ogt, %898, %906 : vector<8x256xf32>
    %908 = arith.select %907, %898, %905 : vector<8x256xi1>, vector<8x256xf32>
    %cst_499 = arith.constant 1.05070102 : f32
    %909 = vector.broadcast %cst_499 : f32 to vector<8x256xf32>
    %910 = arith.mulf %909, %908 : vector<8x256xf32>
    %911 = arith.truncf %910 : vector<8x256xf32> to vector<8x256xbf16>
    %c25_500 = arith.constant 25 : index
    %c0_501 = arith.constant 0 : index
    %c0_502 = arith.constant 0 : index
    %912 = vector.load %arg26[%c25_500, %c0_501, %c0_502] : memref<32x256x128xbf16, #tpu.memory_space<vmem>>, vector<1x256x128xbf16>
    %913 = vector.shape_cast %912 : vector<1x256x128xbf16> to vector<256x128xbf16>
    %cst_503 = arith.constant dense<0.000000e+00> : vector<8x128xf32>
    %914 = tpu.matmul %911, %913, %cst_503 {dimension_numbers = #tpu.dot_dimension_numbers<[1], [0], [0], [1], [0, 0, 1, 1], [], []>} : vector<8x256xbf16>, vector<256x128xbf16>, vector<8x128xf32> -> vector<8x128xf32>
    %915 = arith.addf %884, %914 : vector<8x128xf32>
    %c0_504 = arith.constant 0 : index
    %c26 = arith.constant 26 : index
    %916 = memref.load %arg9[%c0_504, %c26] : memref<4x32xf32, #tpu.memory_space<smem>>
    %917 = vector.broadcast %916 : f32 to vector<8x256xf32>
    %918 = arith.mulf %917, %91 : vector<8x256xf32>
    %c1_505 = arith.constant 1 : index
    %c26_506 = arith.constant 26 : index
    %919 = memref.load %arg9[%c1_505, %c26_506] : memref<4x32xf32, #tpu.memory_space<smem>>
    %920 = vector.broadcast %919 : f32 to vector<8x256xf32>
    %921 = arith.mulf %920, %20 : vector<8x256xf32>
    %922 = arith.addf %918, %921 : vector<8x256xf32>
    %c2_507 = arith.constant 2 : index
    %c26_508 = arith.constant 26 : index
    %923 = memref.load %arg9[%c2_507, %c26_508] : memref<4x32xf32, #tpu.memory_space<smem>>
    %924 = vector.broadcast %923 : f32 to vector<8x256xf32>
    %925 = arith.mulf %924, %92 : vector<8x256xf32>
    %926 = arith.addf %922, %925 : vector<8x256xf32>
    %c3_509 = arith.constant 3 : index
    %c26_510 = arith.constant 26 : index
    %927 = memref.load %arg9[%c3_509, %c26_510] : memref<4x32xf32, #tpu.memory_space<smem>>
    %928 = vector.broadcast %927 : f32 to vector<8x256xf32>
    %929 = arith.addf %926, %928 : vector<8x256xf32>
    %cst_511 = arith.constant 0.000000e+00 : f32
    %930 = vector.broadcast %cst_511 : f32 to vector<8x256xf32>
    %931 = arith.minimumf %929, %930 : vector<8x256xf32>
    %932 = math.exp %931 : vector<8x256xf32>
    %cst_512 = arith.constant 1.000000e+00 : f32
    %933 = vector.broadcast %cst_512 : f32 to vector<8x256xf32>
    %934 = arith.subf %932, %933 : vector<8x256xf32>
    %cst_513 = arith.constant 1.67326319 : f32
    %935 = vector.broadcast %cst_513 : f32 to vector<8x256xf32>
    %936 = arith.mulf %935, %934 : vector<8x256xf32>
    %cst_514 = arith.constant 0.000000e+00 : f32
    %937 = vector.broadcast %cst_514 : f32 to vector<8x256xf32>
    %938 = arith.cmpf ogt, %929, %937 : vector<8x256xf32>
    %939 = arith.select %938, %929, %936 : vector<8x256xi1>, vector<8x256xf32>
    %cst_515 = arith.constant 1.05070102 : f32
    %940 = vector.broadcast %cst_515 : f32 to vector<8x256xf32>
    %941 = arith.mulf %940, %939 : vector<8x256xf32>
    %942 = arith.truncf %941 : vector<8x256xf32> to vector<8x256xbf16>
    %c26_516 = arith.constant 26 : index
    %c0_517 = arith.constant 0 : index
    %c0_518 = arith.constant 0 : index
    %943 = vector.load %arg26[%c26_516, %c0_517, %c0_518] : memref<32x256x128xbf16, #tpu.memory_space<vmem>>, vector<1x256x128xbf16>
    %944 = vector.shape_cast %943 : vector<1x256x128xbf16> to vector<256x128xbf16>
    %cst_519 = arith.constant dense<0.000000e+00> : vector<8x128xf32>
    %945 = tpu.matmul %942, %944, %cst_519 {dimension_numbers = #tpu.dot_dimension_numbers<[1], [0], [0], [1], [0, 0, 1, 1], [], []>} : vector<8x256xbf16>, vector<256x128xbf16>, vector<8x128xf32> -> vector<8x128xf32>
    %946 = arith.addf %915, %945 : vector<8x128xf32>
    %c0_520 = arith.constant 0 : index
    %c27 = arith.constant 27 : index
    %947 = memref.load %arg9[%c0_520, %c27] : memref<4x32xf32, #tpu.memory_space<smem>>
    %948 = vector.broadcast %947 : f32 to vector<8x256xf32>
    %949 = arith.mulf %948, %91 : vector<8x256xf32>
    %c1_521 = arith.constant 1 : index
    %c27_522 = arith.constant 27 : index
    %950 = memref.load %arg9[%c1_521, %c27_522] : memref<4x32xf32, #tpu.memory_space<smem>>
    %951 = vector.broadcast %950 : f32 to vector<8x256xf32>
    %952 = arith.mulf %951, %20 : vector<8x256xf32>
    %953 = arith.addf %949, %952 : vector<8x256xf32>
    %c2_523 = arith.constant 2 : index
    %c27_524 = arith.constant 27 : index
    %954 = memref.load %arg9[%c2_523, %c27_524] : memref<4x32xf32, #tpu.memory_space<smem>>
    %955 = vector.broadcast %954 : f32 to vector<8x256xf32>
    %956 = arith.mulf %955, %92 : vector<8x256xf32>
    %957 = arith.addf %953, %956 : vector<8x256xf32>
    %c3_525 = arith.constant 3 : index
    %c27_526 = arith.constant 27 : index
    %958 = memref.load %arg9[%c3_525, %c27_526] : memref<4x32xf32, #tpu.memory_space<smem>>
    %959 = vector.broadcast %958 : f32 to vector<8x256xf32>
    %960 = arith.addf %957, %959 : vector<8x256xf32>
    %cst_527 = arith.constant 0.000000e+00 : f32
    %961 = vector.broadcast %cst_527 : f32 to vector<8x256xf32>
    %962 = arith.minimumf %960, %961 : vector<8x256xf32>
    %963 = math.exp %962 : vector<8x256xf32>
    %cst_528 = arith.constant 1.000000e+00 : f32
    %964 = vector.broadcast %cst_528 : f32 to vector<8x256xf32>
    %965 = arith.subf %963, %964 : vector<8x256xf32>
    %cst_529 = arith.constant 1.67326319 : f32
    %966 = vector.broadcast %cst_529 : f32 to vector<8x256xf32>
    %967 = arith.mulf %966, %965 : vector<8x256xf32>
    %cst_530 = arith.constant 0.000000e+00 : f32
    %968 = vector.broadcast %cst_530 : f32 to vector<8x256xf32>
    %969 = arith.cmpf ogt, %960, %968 : vector<8x256xf32>
    %970 = arith.select %969, %960, %967 : vector<8x256xi1>, vector<8x256xf32>
    %cst_531 = arith.constant 1.05070102 : f32
    %971 = vector.broadcast %cst_531 : f32 to vector<8x256xf32>
    %972 = arith.mulf %971, %970 : vector<8x256xf32>
    %973 = arith.truncf %972 : vector<8x256xf32> to vector<8x256xbf16>
    %c27_532 = arith.constant 27 : index
    %c0_533 = arith.constant 0 : index
    %c0_534 = arith.constant 0 : index
    %974 = vector.load %arg26[%c27_532, %c0_533, %c0_534] : memref<32x256x128xbf16, #tpu.memory_space<vmem>>, vector<1x256x128xbf16>
    %975 = vector.shape_cast %974 : vector<1x256x128xbf16> to vector<256x128xbf16>
    %cst_535 = arith.constant dense<0.000000e+00> : vector<8x128xf32>
    %976 = tpu.matmul %973, %975, %cst_535 {dimension_numbers = #tpu.dot_dimension_numbers<[1], [0], [0], [1], [0, 0, 1, 1], [], []>} : vector<8x256xbf16>, vector<256x128xbf16>, vector<8x128xf32> -> vector<8x128xf32>
    %977 = arith.addf %946, %976 : vector<8x128xf32>
    %c0_536 = arith.constant 0 : index
    %c28 = arith.constant 28 : index
    %978 = memref.load %arg9[%c0_536, %c28] : memref<4x32xf32, #tpu.memory_space<smem>>
    %979 = vector.broadcast %978 : f32 to vector<8x256xf32>
    %980 = arith.mulf %979, %91 : vector<8x256xf32>
    %c1_537 = arith.constant 1 : index
    %c28_538 = arith.constant 28 : index
    %981 = memref.load %arg9[%c1_537, %c28_538] : memref<4x32xf32, #tpu.memory_space<smem>>
    %982 = vector.broadcast %981 : f32 to vector<8x256xf32>
    %983 = arith.mulf %982, %20 : vector<8x256xf32>
    %984 = arith.addf %980, %983 : vector<8x256xf32>
    %c2_539 = arith.constant 2 : index
    %c28_540 = arith.constant 28 : index
    %985 = memref.load %arg9[%c2_539, %c28_540] : memref<4x32xf32, #tpu.memory_space<smem>>
    %986 = vector.broadcast %985 : f32 to vector<8x256xf32>
    %987 = arith.mulf %986, %92 : vector<8x256xf32>
    %988 = arith.addf %984, %987 : vector<8x256xf32>
    %c3_541 = arith.constant 3 : index
    %c28_542 = arith.constant 28 : index
    %989 = memref.load %arg9[%c3_541, %c28_542] : memref<4x32xf32, #tpu.memory_space<smem>>
    %990 = vector.broadcast %989 : f32 to vector<8x256xf32>
    %991 = arith.addf %988, %990 : vector<8x256xf32>
    %cst_543 = arith.constant 0.000000e+00 : f32
    %992 = vector.broadcast %cst_543 : f32 to vector<8x256xf32>
    %993 = arith.minimumf %991, %992 : vector<8x256xf32>
    %994 = math.exp %993 : vector<8x256xf32>
    %cst_544 = arith.constant 1.000000e+00 : f32
    %995 = vector.broadcast %cst_544 : f32 to vector<8x256xf32>
    %996 = arith.subf %994, %995 : vector<8x256xf32>
    %cst_545 = arith.constant 1.67326319 : f32
    %997 = vector.broadcast %cst_545 : f32 to vector<8x256xf32>
    %998 = arith.mulf %997, %996 : vector<8x256xf32>
    %cst_546 = arith.constant 0.000000e+00 : f32
    %999 = vector.broadcast %cst_546 : f32 to vector<8x256xf32>
    %1000 = arith.cmpf ogt, %991, %999 : vector<8x256xf32>
    %1001 = arith.select %1000, %991, %998 : vector<8x256xi1>, vector<8x256xf32>
    %cst_547 = arith.constant 1.05070102 : f32
    %1002 = vector.broadcast %cst_547 : f32 to vector<8x256xf32>
    %1003 = arith.mulf %1002, %1001 : vector<8x256xf32>
    %1004 = arith.truncf %1003 : vector<8x256xf32> to vector<8x256xbf16>
    %c28_548 = arith.constant 28 : index
    %c0_549 = arith.constant 0 : index
    %c0_550 = arith.constant 0 : index
    %1005 = vector.load %arg26[%c28_548, %c0_549, %c0_550] : memref<32x256x128xbf16, #tpu.memory_space<vmem>>, vector<1x256x128xbf16>
    %1006 = vector.shape_cast %1005 : vector<1x256x128xbf16> to vector<256x128xbf16>
    %cst_551 = arith.constant dense<0.000000e+00> : vector<8x128xf32>
    %1007 = tpu.matmul %1004, %1006, %cst_551 {dimension_numbers = #tpu.dot_dimension_numbers<[1], [0], [0], [1], [0, 0, 1, 1], [], []>} : vector<8x256xbf16>, vector<256x128xbf16>, vector<8x128xf32> -> vector<8x128xf32>
    %1008 = arith.addf %977, %1007 : vector<8x128xf32>
    %c0_552 = arith.constant 0 : index
    %c29 = arith.constant 29 : index
    %1009 = memref.load %arg9[%c0_552, %c29] : memref<4x32xf32, #tpu.memory_space<smem>>
    %1010 = vector.broadcast %1009 : f32 to vector<8x256xf32>
    %1011 = arith.mulf %1010, %91 : vector<8x256xf32>
    %c1_553 = arith.constant 1 : index
    %c29_554 = arith.constant 29 : index
    %1012 = memref.load %arg9[%c1_553, %c29_554] : memref<4x32xf32, #tpu.memory_space<smem>>
    %1013 = vector.broadcast %1012 : f32 to vector<8x256xf32>
    %1014 = arith.mulf %1013, %20 : vector<8x256xf32>
    %1015 = arith.addf %1011, %1014 : vector<8x256xf32>
    %c2_555 = arith.constant 2 : index
    %c29_556 = arith.constant 29 : index
    %1016 = memref.load %arg9[%c2_555, %c29_556] : memref<4x32xf32, #tpu.memory_space<smem>>
    %1017 = vector.broadcast %1016 : f32 to vector<8x256xf32>
    %1018 = arith.mulf %1017, %92 : vector<8x256xf32>
    %1019 = arith.addf %1015, %1018 : vector<8x256xf32>
    %c3_557 = arith.constant 3 : index
    %c29_558 = arith.constant 29 : index
    %1020 = memref.load %arg9[%c3_557, %c29_558] : memref<4x32xf32, #tpu.memory_space<smem>>
    %1021 = vector.broadcast %1020 : f32 to vector<8x256xf32>
    %1022 = arith.addf %1019, %1021 : vector<8x256xf32>
    %cst_559 = arith.constant 0.000000e+00 : f32
    %1023 = vector.broadcast %cst_559 : f32 to vector<8x256xf32>
    %1024 = arith.minimumf %1022, %1023 : vector<8x256xf32>
    %1025 = math.exp %1024 : vector<8x256xf32>
    %cst_560 = arith.constant 1.000000e+00 : f32
    %1026 = vector.broadcast %cst_560 : f32 to vector<8x256xf32>
    %1027 = arith.subf %1025, %1026 : vector<8x256xf32>
    %cst_561 = arith.constant 1.67326319 : f32
    %1028 = vector.broadcast %cst_561 : f32 to vector<8x256xf32>
    %1029 = arith.mulf %1028, %1027 : vector<8x256xf32>
    %cst_562 = arith.constant 0.000000e+00 : f32
    %1030 = vector.broadcast %cst_562 : f32 to vector<8x256xf32>
    %1031 = arith.cmpf ogt, %1022, %1030 : vector<8x256xf32>
    %1032 = arith.select %1031, %1022, %1029 : vector<8x256xi1>, vector<8x256xf32>
    %cst_563 = arith.constant 1.05070102 : f32
    %1033 = vector.broadcast %cst_563 : f32 to vector<8x256xf32>
    %1034 = arith.mulf %1033, %1032 : vector<8x256xf32>
    %1035 = arith.truncf %1034 : vector<8x256xf32> to vector<8x256xbf16>
    %c29_564 = arith.constant 29 : index
    %c0_565 = arith.constant 0 : index
    %c0_566 = arith.constant 0 : index
    %1036 = vector.load %arg26[%c29_564, %c0_565, %c0_566] : memref<32x256x128xbf16, #tpu.memory_space<vmem>>, vector<1x256x128xbf16>
    %1037 = vector.shape_cast %1036 : vector<1x256x128xbf16> to vector<256x128xbf16>
    %cst_567 = arith.constant dense<0.000000e+00> : vector<8x128xf32>
    %1038 = tpu.matmul %1035, %1037, %cst_567 {dimension_numbers = #tpu.dot_dimension_numbers<[1], [0], [0], [1], [0, 0, 1, 1], [], []>} : vector<8x256xbf16>, vector<256x128xbf16>, vector<8x128xf32> -> vector<8x128xf32>
    %1039 = arith.addf %1008, %1038 : vector<8x128xf32>
    %c0_568 = arith.constant 0 : index
    %c30 = arith.constant 30 : index
    %1040 = memref.load %arg9[%c0_568, %c30] : memref<4x32xf32, #tpu.memory_space<smem>>
    %1041 = vector.broadcast %1040 : f32 to vector<8x256xf32>
    %1042 = arith.mulf %1041, %91 : vector<8x256xf32>
    %c1_569 = arith.constant 1 : index
    %c30_570 = arith.constant 30 : index
    %1043 = memref.load %arg9[%c1_569, %c30_570] : memref<4x32xf32, #tpu.memory_space<smem>>
    %1044 = vector.broadcast %1043 : f32 to vector<8x256xf32>
    %1045 = arith.mulf %1044, %20 : vector<8x256xf32>
    %1046 = arith.addf %1042, %1045 : vector<8x256xf32>
    %c2_571 = arith.constant 2 : index
    %c30_572 = arith.constant 30 : index
    %1047 = memref.load %arg9[%c2_571, %c30_572] : memref<4x32xf32, #tpu.memory_space<smem>>
    %1048 = vector.broadcast %1047 : f32 to vector<8x256xf32>
    %1049 = arith.mulf %1048, %92 : vector<8x256xf32>
    %1050 = arith.addf %1046, %1049 : vector<8x256xf32>
    %c3_573 = arith.constant 3 : index
    %c30_574 = arith.constant 30 : index
    %1051 = memref.load %arg9[%c3_573, %c30_574] : memref<4x32xf32, #tpu.memory_space<smem>>
    %1052 = vector.broadcast %1051 : f32 to vector<8x256xf32>
    %1053 = arith.addf %1050, %1052 : vector<8x256xf32>
    %cst_575 = arith.constant 0.000000e+00 : f32
    %1054 = vector.broadcast %cst_575 : f32 to vector<8x256xf32>
    %1055 = arith.minimumf %1053, %1054 : vector<8x256xf32>
    %1056 = math.exp %1055 : vector<8x256xf32>
    %cst_576 = arith.constant 1.000000e+00 : f32
    %1057 = vector.broadcast %cst_576 : f32 to vector<8x256xf32>
    %1058 = arith.subf %1056, %1057 : vector<8x256xf32>
    %cst_577 = arith.constant 1.67326319 : f32
    %1059 = vector.broadcast %cst_577 : f32 to vector<8x256xf32>
    %1060 = arith.mulf %1059, %1058 : vector<8x256xf32>
    %cst_578 = arith.constant 0.000000e+00 : f32
    %1061 = vector.broadcast %cst_578 : f32 to vector<8x256xf32>
    %1062 = arith.cmpf ogt, %1053, %1061 : vector<8x256xf32>
    %1063 = arith.select %1062, %1053, %1060 : vector<8x256xi1>, vector<8x256xf32>
    %cst_579 = arith.constant 1.05070102 : f32
    %1064 = vector.broadcast %cst_579 : f32 to vector<8x256xf32>
    %1065 = arith.mulf %1064, %1063 : vector<8x256xf32>
    %1066 = arith.truncf %1065 : vector<8x256xf32> to vector<8x256xbf16>
    %c30_580 = arith.constant 30 : index
    %c0_581 = arith.constant 0 : index
    %c0_582 = arith.constant 0 : index
    %1067 = vector.load %arg26[%c30_580, %c0_581, %c0_582] : memref<32x256x128xbf16, #tpu.memory_space<vmem>>, vector<1x256x128xbf16>
    %1068 = vector.shape_cast %1067 : vector<1x256x128xbf16> to vector<256x128xbf16>
    %cst_583 = arith.constant dense<0.000000e+00> : vector<8x128xf32>
    %1069 = tpu.matmul %1066, %1068, %cst_583 {dimension_numbers = #tpu.dot_dimension_numbers<[1], [0], [0], [1], [0, 0, 1, 1], [], []>} : vector<8x256xbf16>, vector<256x128xbf16>, vector<8x128xf32> -> vector<8x128xf32>
    %1070 = arith.addf %1039, %1069 : vector<8x128xf32>
    %c0_584 = arith.constant 0 : index
    %c31 = arith.constant 31 : index
    %1071 = memref.load %arg9[%c0_584, %c31] : memref<4x32xf32, #tpu.memory_space<smem>>
    %1072 = vector.broadcast %1071 : f32 to vector<8x256xf32>
    %1073 = arith.mulf %1072, %91 : vector<8x256xf32>
    %c1_585 = arith.constant 1 : index
    %c31_586 = arith.constant 31 : index
    %1074 = memref.load %arg9[%c1_585, %c31_586] : memref<4x32xf32, #tpu.memory_space<smem>>
    %1075 = vector.broadcast %1074 : f32 to vector<8x256xf32>
    %1076 = arith.mulf %1075, %20 : vector<8x256xf32>
    %1077 = arith.addf %1073, %1076 : vector<8x256xf32>
    %c2_587 = arith.constant 2 : index
    %c31_588 = arith.constant 31 : index
    %1078 = memref.load %arg9[%c2_587, %c31_588] : memref<4x32xf32, #tpu.memory_space<smem>>
    %1079 = vector.broadcast %1078 : f32 to vector<8x256xf32>
    %1080 = arith.mulf %1079, %92 : vector<8x256xf32>
    %1081 = arith.addf %1077, %1080 : vector<8x256xf32>
    %c3_589 = arith.constant 3 : index
    %c31_590 = arith.constant 31 : index
    %1082 = memref.load %arg9[%c3_589, %c31_590] : memref<4x32xf32, #tpu.memory_space<smem>>
    %1083 = vector.broadcast %1082 : f32 to vector<8x256xf32>
    %1084 = arith.addf %1081, %1083 : vector<8x256xf32>
    %cst_591 = arith.constant 0.000000e+00 : f32
    %1085 = vector.broadcast %cst_591 : f32 to vector<8x256xf32>
    %1086 = arith.minimumf %1084, %1085 : vector<8x256xf32>
    %1087 = math.exp %1086 : vector<8x256xf32>
    %cst_592 = arith.constant 1.000000e+00 : f32
    %1088 = vector.broadcast %cst_592 : f32 to vector<8x256xf32>
    %1089 = arith.subf %1087, %1088 : vector<8x256xf32>
    %cst_593 = arith.constant 1.67326319 : f32
    %1090 = vector.broadcast %cst_593 : f32 to vector<8x256xf32>
    %1091 = arith.mulf %1090, %1089 : vector<8x256xf32>
    %cst_594 = arith.constant 0.000000e+00 : f32
    %1092 = vector.broadcast %cst_594 : f32 to vector<8x256xf32>
    %1093 = arith.cmpf ogt, %1084, %1092 : vector<8x256xf32>
    %1094 = arith.select %1093, %1084, %1091 : vector<8x256xi1>, vector<8x256xf32>
    %cst_595 = arith.constant 1.05070102 : f32
    %1095 = vector.broadcast %cst_595 : f32 to vector<8x256xf32>
    %1096 = arith.mulf %1095, %1094 : vector<8x256xf32>
    %1097 = arith.truncf %1096 : vector<8x256xf32> to vector<8x256xbf16>
    %c31_596 = arith.constant 31 : index
    %c0_597 = arith.constant 0 : index
    %c0_598 = arith.constant 0 : index
    %1098 = vector.load %arg26[%c31_596, %c0_597, %c0_598] : memref<32x256x128xbf16, #tpu.memory_space<vmem>>, vector<1x256x128xbf16>
    %1099 = vector.shape_cast %1098 : vector<1x256x128xbf16> to vector<256x128xbf16>
    %cst_599 = arith.constant dense<0.000000e+00> : vector<8x128xf32>
    %1100 = tpu.matmul %1097, %1099, %cst_599 {dimension_numbers = #tpu.dot_dimension_numbers<[1], [0], [0], [1], [0, 0, 1, 1], [], []>} : vector<8x256xbf16>, vector<256x128xbf16>, vector<8x128xf32> -> vector<8x128xf32>
    %1101 = arith.addf %1070, %1100 : vector<8x128xf32>
    %c0_600 = arith.constant 0 : index
    %c0_601 = arith.constant 0 : index
    %1102 = vector.load %arg11[%c0_600, %c0_601] : memref<1x128xf32, #tpu.memory_space<vmem>>, vector<1x128xf32>
    %1103 = vector.broadcast %1102 : vector<1x128xf32> to vector<8x128xf32>
    %1104 = arith.addf %1101, %1103 : vector<8x128xf32>
    %cst_602 = arith.constant 0.000000e+00 : f32
    %1105 = vector.broadcast %cst_602 : f32 to vector<8x128xf32>
    %1106 = arith.minimumf %1104, %1105 : vector<8x128xf32>
    %1107 = math.exp %1106 : vector<8x128xf32>
    %cst_603 = arith.constant 1.000000e+00 : f32
    %1108 = vector.broadcast %cst_603 : f32 to vector<8x128xf32>
    %1109 = arith.subf %1107, %1108 : vector<8x128xf32>
    %cst_604 = arith.constant 1.67326319 : f32
    %1110 = vector.broadcast %cst_604 : f32 to vector<8x128xf32>
    %1111 = arith.mulf %1110, %1109 : vector<8x128xf32>
    %cst_605 = arith.constant 0.000000e+00 : f32
    %1112 = vector.broadcast %cst_605 : f32 to vector<8x128xf32>
    %1113 = arith.cmpf ogt, %1104, %1112 : vector<8x128xf32>
    %1114 = arith.select %1113, %1104, %1111 : vector<8x128xi1>, vector<8x128xf32>
    %cst_606 = arith.constant 1.05070102 : f32
    %1115 = vector.broadcast %cst_606 : f32 to vector<8x128xf32>
    %1116 = arith.mulf %1115, %1114 : vector<8x128xf32>
    %1117 = tpu.concatenate %72, %1116, %90 in 1 : vector<8x128xf32>, vector<8x128xf32>, vector<8x128xf32> -> vector<8x384xf32>
    %c4_i32_607 = arith.constant 4 : i32
    %1118 = tpu.memref_slice %arg29[%c4_i32_607] : memref<6x!tpu.dma_semaphore, #tpu.memory_space<semaphore_mem>> -> memref<1x!tpu.dma_semaphore, #tpu.memory_space<semaphore_mem>>
    %1119 = tpu.memref_squeeze %1118 : memref<1x!tpu.dma_semaphore, #tpu.memory_space<semaphore_mem>> -> memref<!tpu.dma_semaphore, #tpu.memory_space<semaphore_mem>>
    tpu.wait_dma2 semaphore(%1119 : memref<!tpu.dma_semaphore, #tpu.memory_space<semaphore_mem>>) src(%arg12 : memref<384x512xbf16, #tpu.memory_space<any>>) dst(%arg27 : memref<384x512xbf16, #tpu.memory_space<vmem>>)
    %1120 = arith.truncf %1117 : vector<8x384xf32> to vector<8x384xbf16>
    %c0_608 = arith.constant 0 : index
    %c0_609 = arith.constant 0 : index
    %1121 = vector.load %arg27[%c0_608, %c0_609] : memref<384x512xbf16, #tpu.memory_space<vmem>>, vector<384x512xbf16>
    %cst_610 = arith.constant dense<0.000000e+00> : vector<8x512xf32>
    %1122 = tpu.matmul %1120, %1121, %cst_610 {dimension_numbers = #tpu.dot_dimension_numbers<[1], [0], [0], [1], [0, 0, 1, 1], [], []>} : vector<8x384xbf16>, vector<384x512xbf16>, vector<8x512xf32> -> vector<8x512xf32>
    %c0_611 = arith.constant 0 : index
    %c0_612 = arith.constant 0 : index
    %1123 = vector.load %arg13[%c0_611, %c0_612] : memref<1x512xf32, #tpu.memory_space<vmem>>, vector<1x512xf32>
    %1124 = vector.broadcast %1123 : vector<1x512xf32> to vector<8x512xf32>
    %1125 = arith.addf %1122, %1124 : vector<8x512xf32>
    %1126 = arith.mulf %1125, %1125 : vector<8x512xf32>
    %1127 = arith.mulf %1125, %1126 : vector<8x512xf32>
    %cst_613 = arith.constant 4.471500e-02 : f32
    %1128 = vector.broadcast %cst_613 : f32 to vector<8x512xf32>
    %1129 = arith.mulf %1128, %1127 : vector<8x512xf32>
    %1130 = arith.addf %1125, %1129 : vector<8x512xf32>
    %cst_614 = arith.constant 0.797884583 : f32
    %1131 = vector.broadcast %cst_614 : f32 to vector<8x512xf32>
    %1132 = arith.mulf %1131, %1130 : vector<8x512xf32>
    %1133 = math.tanh %1132 : vector<8x512xf32>
    %cst_615 = arith.constant 1.000000e+00 : f32
    %1134 = vector.broadcast %cst_615 : f32 to vector<8x512xf32>
    %1135 = arith.addf %1134, %1133 : vector<8x512xf32>
    %cst_616 = arith.constant 5.000000e-01 : f32
    %1136 = vector.broadcast %cst_616 : f32 to vector<8x512xf32>
    %1137 = arith.mulf %1136, %1135 : vector<8x512xf32>
    %1138 = arith.mulf %1125, %1137 : vector<8x512xf32>
    %c5_i32_617 = arith.constant 5 : i32
    %1139 = tpu.memref_slice %arg29[%c5_i32_617] : memref<6x!tpu.dma_semaphore, #tpu.memory_space<semaphore_mem>> -> memref<1x!tpu.dma_semaphore, #tpu.memory_space<semaphore_mem>>
    %1140 = tpu.memref_squeeze %1139 : memref<1x!tpu.dma_semaphore, #tpu.memory_space<semaphore_mem>> -> memref<!tpu.dma_semaphore, #tpu.memory_space<semaphore_mem>>
    tpu.wait_dma2 semaphore(%1140 : memref<!tpu.dma_semaphore, #tpu.memory_space<semaphore_mem>>) src(%arg14 : memref<512x256xbf16, #tpu.memory_space<any>>) dst(%arg28 : memref<512x256xbf16, #tpu.memory_space<vmem>>)
    %1141 = arith.truncf %1138 : vector<8x512xf32> to vector<8x512xbf16>
    %c0_618 = arith.constant 0 : index
    %c0_619 = arith.constant 0 : index
    %1142 = vector.load %arg28[%c0_618, %c0_619] : memref<512x256xbf16, #tpu.memory_space<vmem>>, vector<512x256xbf16>
    %cst_620 = arith.constant dense<0.000000e+00> : vector<8x256xf32>
    %1143 = tpu.matmul %1141, %1142, %cst_620 {dimension_numbers = #tpu.dot_dimension_numbers<[1], [0], [0], [1], [0, 0, 1, 1], [], []>} : vector<8x512xbf16>, vector<512x256xbf16>, vector<8x256xf32> -> vector<8x256xf32>
    %c0_621 = arith.constant 0 : index
    %c0_622 = arith.constant 0 : index
    %1144 = vector.load %arg15[%c0_621, %c0_622] : memref<1x256xf32, #tpu.memory_space<vmem>>, vector<1x256xf32>
    %1145 = vector.broadcast %1144 : vector<1x256xf32> to vector<8x256xf32>
    %1146 = arith.addf %1143, %1145 : vector<8x256xf32>
    %1147 = arith.mulf %1146, %1146 : vector<8x256xf32>
    %1148 = arith.mulf %1146, %1147 : vector<8x256xf32>
    %cst_623 = arith.constant 4.471500e-02 : f32
    %1149 = vector.broadcast %cst_623 : f32 to vector<8x256xf32>
    %1150 = arith.mulf %1149, %1148 : vector<8x256xf32>
    %1151 = arith.addf %1146, %1150 : vector<8x256xf32>
    %cst_624 = arith.constant 0.797884583 : f32
    %1152 = vector.broadcast %cst_624 : f32 to vector<8x256xf32>
    %1153 = arith.mulf %1152, %1151 : vector<8x256xf32>
    %1154 = math.tanh %1153 : vector<8x256xf32>
    %cst_625 = arith.constant 1.000000e+00 : f32
    %1155 = vector.broadcast %cst_625 : f32 to vector<8x256xf32>
    %1156 = arith.addf %1155, %1154 : vector<8x256xf32>
    %cst_626 = arith.constant 5.000000e-01 : f32
    %1157 = vector.broadcast %cst_626 : f32 to vector<8x256xf32>
    %1158 = arith.mulf %1157, %1156 : vector<8x256xf32>
    %1159 = arith.mulf %1146, %1158 : vector<8x256xf32>
    %c0_627 = arith.constant 0 : index
    %c0_628 = arith.constant 0 : index
    %1160 = vector.load %arg16[%c0_627, %c0_628] : memref<1x256xf32, #tpu.memory_space<vmem>>, vector<1x256xf32>
    %1161 = vector.broadcast %1160 : vector<1x256xf32> to vector<8x256xf32>
    %1162 = arith.mulf %1159, %1161 : vector<8x256xf32>
    %c0_629 = arith.constant 0 : index
    %c0_630 = arith.constant 0 : index
    %1163 = vector.load %arg17[%c0_629, %c0_630] : memref<1x256xf32, #tpu.memory_space<vmem>>, vector<1x256xf32>
    %1164 = vector.broadcast %1163 : vector<1x256xf32> to vector<8x256xf32>
    %1165 = arith.addf %1162, %1164 : vector<8x256xf32>
    %1166 = tpu.iota {dimensions = array<i32: 1>} : vector<8x256xi32>
    %c4_i32_631 = arith.constant 4 : i32
    %1167 = vector.broadcast %c4_i32_631 : i32 to vector<8x256xi32>
    %1168 = arith.cmpi slt, %1166, %1167 : vector<8x256xi32>
    %cst_632 = arith.constant -1.000000e+30 : f32
    %1169 = vector.broadcast %cst_632 : f32 to vector<8x256xf32>
    %1170 = arith.select %1168, %1165, %1169 : vector<8x256xi1>, vector<8x256xf32>
    %cst_633 = arith.constant dense<0xFF800000> : vector<8xf32>
    %1171 = vector.multi_reduction <maximumf>, %1170, %cst_633 [1] : vector<8x256xf32> to vector<8xf32>
    %1172 = vector.shape_cast %1171 : vector<8xf32> to vector<8x1xf32>
    %1173 = vector.broadcast %1172 : vector<8x1xf32> to vector<8x256xf32>
    %1174 = arith.subf %1170, %1173 : vector<8x256xf32>
    %1175 = math.exp %1174 : vector<8x256xf32>
    %cst_634 = arith.constant dense<0.000000e+00> : vector<8xf32>
    %1176 = vector.multi_reduction <add>, %1175, %cst_634 [1] : vector<8x256xf32> to vector<8xf32>
    %1177 = vector.shape_cast %1176 : vector<8xf32> to vector<8x1xf32>
    %1178 = vector.broadcast %1177 : vector<8x1xf32> to vector<8x256xf32>
    %1179 = arith.divf %1175, %1178 : vector<8x256xf32>
    %c0_635 = arith.constant 0 : index
    %c0_636 = arith.constant 0 : index
    %1180 = vector.load %arg18[%c0_635, %c0_636] : memref<1x1xf32, #tpu.memory_space<vmem>>, vector<1x1xf32>
    %cst_637 = arith.constant 1.000000e-10 : f32
    %1181 = vector.broadcast %cst_637 : f32 to vector<8x256xf32>
    %1182 = arith.addf %1179, %1181 : vector<8x256xf32>
    %1183 = math.log %1182 : vector<8x256xf32>
    %1184 = arith.mulf %1179, %1183 : vector<8x256xf32>
    %cst_638 = arith.constant dense<0.000000e+00> : vector<8xf32>
    %1185 = vector.multi_reduction <add>, %1184, %cst_638 [1] : vector<8x256xf32> to vector<8xf32>
    %1186 = vector.shape_cast %1185 : vector<8xf32> to vector<8x1xf32>
    %1187 = vector.broadcast %1180 : vector<1x1xf32> to vector<8x1xf32>
    %1188 = arith.mulf %1187, %1186 : vector<8x1xf32>
    %cst_639 = arith.constant 0.000000e+00 : f32
    %1189 = vector.broadcast %cst_639 : f32 to vector<8x1xf32>
    %1190 = arith.subf %1189, %1188 : vector<8x1xf32>
    %c0_640 = arith.constant 0 : index
    %c0_641 = arith.constant 0 : index
    %1191 = vector.load %arg19[%c0_640, %c0_641] : memref<1x256xf32, #tpu.memory_space<vmem>>, vector<1x256xf32>
    %1192 = vector.broadcast %1191 : vector<1x256xf32> to vector<8x256xf32>
    %1193 = arith.mulf %1165, %1192 : vector<8x256xf32>
    %cst_642 = arith.constant dense<0.000000e+00> : vector<8xf32>
    %1194 = vector.multi_reduction <add>, %1193, %cst_642 [1] : vector<8x256xf32> to vector<8xf32>
    %1195 = vector.shape_cast %1194 : vector<8xf32> to vector<8x1xf32>
    %1196 = arith.addf %1190, %1195 : vector<8x1xf32>
    %1197 = arith.truncf %72 : vector<8x128xf32> to vector<8x128xbf16>
    %c0_643 = arith.constant 0 : index
    %c0_644 = arith.constant 0 : index
    %1198 = vector.load %arg21[%c0_643, %c0_644] : memref<128x384xbf16, #tpu.memory_space<vmem>>, vector<128x384xbf16>
    %cst_645 = arith.constant dense<0.000000e+00> : vector<8x384xf32>
    %1199 = tpu.matmul %1197, %1198, %cst_645 {dimension_numbers = #tpu.dot_dimension_numbers<[1], [0], [0], [1], [0, 0, 1, 1], [], []>} : vector<8x128xbf16>, vector<128x384xbf16>, vector<8x384xf32> -> vector<8x384xf32>
    %c0_646 = arith.constant 0 : index
    %c0_647 = arith.constant 0 : index
    %1200 = vector.load %arg20[%c0_646, %c0_647] : memref<1x384xf32, #tpu.memory_space<vmem>>, vector<1x384xf32>
    %1201 = vector.broadcast %1196 : vector<8x1xf32> to vector<8x384xf32>
    %1202 = vector.broadcast %1200 : vector<1x384xf32> to vector<8x384xf32>
    %1203 = arith.mulf %1201, %1202 : vector<8x384xf32>
    %1204 = arith.addf %1199, %1203 : vector<8x384xf32>
    %c0_648 = arith.constant 0 : index
    %c0_649 = arith.constant 0 : index
    %1205 = vector.load %arg22[%c0_648, %c0_649] : memref<1x384xf32, #tpu.memory_space<vmem>>, vector<1x384xf32>
    %1206 = vector.broadcast %1205 : vector<1x384xf32> to vector<8x384xf32>
    %1207 = arith.addf %1204, %1206 : vector<8x384xf32>
    %1208 = arith.negf %1207 : vector<8x384xf32>
    %1209 = math.exp %1208 : vector<8x384xf32>
    %cst_650 = arith.constant 1.000000e+00 : f32
    %1210 = vector.broadcast %cst_650 : f32 to vector<8x384xf32>
    %1211 = arith.addf %1210, %1209 : vector<8x384xf32>
    %1212 = arith.divf %1210, %1211 : vector<8x384xf32>
    %c0_651 = arith.constant 0 : index
    %c0_652 = arith.constant 0 : index
    %1213 = vector.load %arg23[%c0_651, %c0_652] : memref<1x384xf32, #tpu.memory_space<vmem>>, vector<1x384xf32>
    %1214 = vector.broadcast %1213 : vector<1x384xf32> to vector<8x384xf32>
    %1215 = arith.mulf %1212, %1214 : vector<8x384xf32>
    %cst_653 = arith.constant dense<0.000000e+00> : vector<8xf32>
    %1216 = vector.multi_reduction <add>, %1215, %cst_653 [1] : vector<8x384xf32> to vector<8xf32>
    %1217 = vector.shape_cast %1216 : vector<8xf32> to vector<8x1xf32>
    %c0_654 = arith.constant 0 : index
    %c0_655 = arith.constant 0 : index
    %1218 = vector.load %arg24[%c0_654, %c0_655] : memref<1x1xf32, #tpu.memory_space<vmem>>, vector<1x1xf32>
    %1219 = vector.broadcast %1218 : vector<1x1xf32> to vector<8x1xf32>
    %1220 = arith.addf %1217, %1219 : vector<8x1xf32>
    %c0_656 = arith.constant 0 : index
    %c0_657 = arith.constant 0 : index
    %1221 = vector.load %arg25[%c0_656, %c0_657] : memref<8x1xf32, #tpu.memory_space<vmem>>, vector<8x1xf32>
    tpu.vector_store %arg25[%c0_656, %c0_657], %1220 {strides = array<i32>} : memref<8x1xf32, #tpu.memory_space<vmem>>, vector<8x1xf32>,
    return
  }
}

</mosaic_0001>

<llo_original>
// kernel: tpu_custom_call.1
$region0: #{tpu_custom_call.1}
  #allocation0 [shape = 'u32[]', space=smem, size = 0x4, offset = 0x4, fixed_abs, tag = 'smem constant byte address 0x4 - core index']
  #allocation1 [shape = 'u32[144,128]{1,0:T(1,128)}', space=vmem, size = 0x12000, scoped, tag = 'internal scratch']
  #allocation2 [shape = 'bf16[32,256,128]{2,1,0:T(16,128)(2,1)}', space=vmem, size = 0x200000, scoped, tag = 'scratch operand']
  #allocation3 [shape = 'bf16[384,512]{1,0:T(16,128)(2,1)}', space=vmem, size = 0x60000, scoped, tag = 'scratch operand']
  #allocation4 [shape = 'bf16[512,256]{1,0:T(16,128)(2,1)}', space=vmem, size = 0x40000, scoped, tag = 'scratch operand']
  #allocation5 [shape = 's32[6]{0}', space=sflag, size = 0x18, scoped, tag = 'scratch operand']
  #allocation6 [shape = 'f32[1,1]{1,0:T(1,128)S(1)}', space=vmem, size = 0x200, scoped, tag = 'scoped memory for tpu_custom_call.1']
  #allocation7 [shape = 'f32[1,1]{1,0:T(1,128)S(1)}', space=vmem, size = 0x200, scoped, tag = 'scoped memory for tpu_custom_call.1']
  #allocation38 [shape = 's32[]', space=sflag, size = 0x4, offset = 0, fixed_abs, tag = 'sflag constant byte address 0x0 - dummy sync flag']
  #allocation39 [shape = 's32[]', space=sflag, size = 0x4, offset = 0, fixed_abs, tag = 'sflag constant byte address 0x0 - dummy sync flag']
  #allocation40 [shape = 'u32[]', space=smem, size = 0x4, offset = 0x44, fixed_abs, tag = 'smem constant byte address 0x44 - assertion arg 0']
  #allocation41 [shape = 'u32[]', space=smem, size = 0x4, offset = 0x48, fixed_abs, tag = 'smem constant byte address 0x48 - assertion arg 1']
  #allocation42 [shape = 's32[]', space=sflag, size = 0x4, offset = 0, fixed_abs, tag = 'sflag constant byte address 0x0 - dummy sync flag']
  #allocation43 [shape = 's32[]', space=sflag, size = 0x4, offset = 0, fixed_abs, tag = 'sflag constant byte address 0x0 - dummy sync flag']
  #allocation44 [shape = 's32[]', space=sflag, size = 0x4, offset = 0, fixed_abs, tag = 'sflag constant byte address 0x0 - dummy sync flag']
  #allocation45 [shape = 's32[]', space=sflag, size = 0x4, offset = 0, fixed_abs, tag = 'sflag constant byte address 0x0 - dummy sync flag']
  #allocation46 [shape = 's32[]', space=sflag, size = 0x4, offset = 0, fixed_abs, tag = 'sflag constant byte address 0x0 - dummy sync flag']
  #allocation47 [shape = 's32[]', space=sflag, size = 0x4, offset = 0, fixed_abs, tag = 'sflag constant byte address 0x0 - dummy sync flag']
  #allocation48 [shape = 's32[]', space=sflag, size = 0x4, offset = 0, fixed_abs, tag = 'sflag constant byte address 0x0 - dummy sync flag']
  #allocation50 [shape = 's32[]', space=sflag, size = 0x4, offset = 0, fixed_abs, tag = 'sflag constant byte address 0x0 - dummy sync flag']
  %s0 = inlined_call_operand.hbm [shape: f32[8,256], index: 0, kind: input, shape index: {}]
  %s1 = inlined_call_operand.hbm [shape: f32[8,256], index: 1, kind: input, shape index: {}]
  %s2 = inlined_call_operand.hbm [shape: f32[8,256], index: 2, kind: input, shape index: {}]
  %s3 = inlined_call_operand.vmem [shape: bf16[256,448], index: 3, kind: input, shape index: {}]
  %s4 = inlined_call_operand.hbm [shape: f32[1,448], index: 4, kind: input, shape index: {}]
  %s5 = inlined_call_operand.hbm [shape: bf16[256,128], index: 5, kind: input, shape index: {}]
  %s6 = inlined_call_operand.hbm [shape: f32[1,128], index: 6, kind: input, shape index: {}]
  %s7 = inlined_call_operand.hbm [shape: bf16[192,128], index: 7, kind: input, shape index: {}]
  %s8 = inlined_call_operand.hbm [shape: f32[1,128], index: 8, kind: input, shape index: {}]
  %s9 = inlined_call_operand.hbm [shape: f32[4,32], index: 9, kind: input, shape index: {}]
  %s10 = inlined_call_operand.hbm [shape: bf16[32,256,128], index: 10, kind: input, shape index: {}]
  %s11 = inlined_call_operand.hbm [shape: f32[1,128], index: 11, kind: input, shape index: {}]
  %s12 = inlined_call_operand.hbm [shape: bf16[384,512], index: 12, kind: input, shape index: {}]
  %s13 = inlined_call_operand.hbm [shape: f32[1,512], index: 13, kind: input, shape index: {}]
  %s14 = inlined_call_operand.hbm [shape: bf16[512,256], index: 14, kind: input, shape index: {}]
  %s15 = inlined_call_operand.hbm [shape: f32[1,256], index: 15, kind: input, shape index: {}]
  %s16 = inlined_call_operand.hbm [shape: f32[1,256], index: 16, kind: input, shape index: {}]
  %s17 = inlined_call_operand.hbm [shape: f32[1,256], index: 17, kind: input, shape index: {}]
  %s18 = inlined_call_operand.<no memory space> [shape: f32[1,1], index: 18, kind: input, shape index: {}]
  %s19 = inlined_call_operand.hbm [shape: f32[1,256], index: 19, kind: input, shape index: {}]
  %s20 = inlined_call_operand.hbm [shape: f32[1,384], index: 20, kind: input, shape index: {}]
  %s21 = inlined_call_operand.hbm [shape: bf16[128,384], index: 21, kind: input, shape index: {}]
  %s22 = inlined_call_operand.hbm [shape: f32[1,384], index: 22, kind: input, shape index: {}]
  %s23 = inlined_call_operand.hbm [shape: f32[1,384], index: 23, kind: input, shape index: {}]
  %s24 = inlined_call_operand.<no memory space> [shape: f32[1,1], index: 24, kind: input, shape index: {}]
  %s25 = inlined_call_operand.vmem [shape: f32[8,1], index: 25, kind: output, shape index: {}]
  %s26 = sld [smem:[#allocation0]]
  $region190: #{tpu_custom_call.1} parent=0
    _
  %s28 = ssub.s32 1, %s26
  %s29 = scalar_select 0, %s28, %s26
  %v30 = vstv %s18
  %31 = vst [vmem:[#allocation6] sm:$0x1] %v30
  %v32 = vstv %s24
  %33 = vst [vmem:[#allocation7] sm:$0x1] %v32
  $region1: #{tpu_custom_call.1} parent=0
    #allocation8 [shape = 'u8[8192]{0}', space=vmem, size = 0x2000, scoped, tag = 'input window, operand 0, single buffered']
    #allocation9 [shape = 's32[1]{0}', space=sflag, size = 0x4, scoped, tag = 'scoped memory for tpu_custom_call.1']
    #allocation10 [shape = 's32[1]{0}', space=sflag, size = 0x4, scoped, tag = 'scoped memory for tpu_custom_call.1']
    #allocation11 [shape = 'u8[8192]{0}', space=vmem, size = 0x2000, scoped, tag = 'input window, operand 1, single buffered']
    #allocation12 [shape = 's32[1]{0}', space=sflag, size = 0x4, scoped, tag = 'scoped memory for tpu_custom_call.1']
    #allocation13 [shape = 'u8[8192]{0}', space=vmem, size = 0x2000, scoped, tag = 'input window, operand 2, single buffered']
    #allocation14 [shape = 'u8[2048]{0}', space=vmem, size = 0x800, scoped, tag = 'input window, operand 4, single buffered']
    #allocation15 [shape = 's32[1]{0}', space=sflag, size = 0x4, scoped, tag = 'scoped memory for tpu_custom_call.1']
    #allocation16 [shape = 'u8[65536]{0}', space=vmem, size = 0x10000, scoped, tag = 'input window, operand 5, single buffered']
    #allocation17 [shape = 'u8[512]{0}', space=vmem, size = 0x400, scoped, tag = 'input window, operand 6, single buffered']
    #allocation18 [shape = 's32[1]{0}', space=sflag, size = 0x4, scoped, tag = 'scoped memory for tpu_custom_call.1']
    #allocation19 [shape = 'u8[49152]{0}', space=vmem, size = 0xc000, scoped, tag = 'input window, operand 7, single buffered']
    #allocation20 [shape = 'u8[512]{0}', space=vmem, size = 0x400, scoped, tag = 'input window, operand 8, single buffered']
    #allocation21 [shape = 's32[1]{0}', space=sflag, size = 0x4, scoped, tag = 'scoped memory for tpu_custom_call.1']
    #allocation22 [shape = 'u8[2048]{0}', space=smem, size = 0x800, scoped, tag = 'input window, operand 9, single buffered']
    #allocation23 [shape = 'u8[512]{0}', space=vmem, size = 0x400, scoped, tag = 'input window, operand 11, single buffered']
    #allocation24 [shape = 'u8[2048]{0}', space=vmem, size = 0x800, scoped, tag = 'input window, operand 13, single buffered']
    #allocation25 [shape = 's32[1]{0}', space=sflag, size = 0x4, scoped, tag = 'scoped memory for tpu_custom_call.1']
    #allocation26 [shape = 'u8[1024]{0}', space=vmem, size = 0x400, scoped, tag = 'input window, operand 15, single buffered']
    #allocation27 [shape = 'u8[1024]{0}', space=vmem, size = 0x400, scoped, tag = 'input window, operand 16, single buffered']
    #allocation28 [shape = 's32[1]{0}', space=sflag, size = 0x4, scoped, tag = 'scoped memory for tpu_custom_call.1']
    #allocation29 [shape = 'u8[1024]{0}', space=vmem, size = 0x400, scoped, tag = 'input window, operand 17, single buffered']
    #allocation30 [shape = 'u8[1024]{0}', space=vmem, size = 0x400, scoped, tag = 'input window, operand 19, single buffered']
    #allocation31 [shape = 's32[1]{0}', space=sflag, size = 0x4, scoped, tag = 'scoped memory for tpu_custom_call.1']
    #allocation32 [shape = 'u8[1536]{0}', space=vmem, size = 0x800, scoped, tag = 'input window, operand 20, single buffered']
    #allocation33 [shape = 'u8[98304]{0}', space=vmem, size = 0x18000, scoped, tag = 'input window, operand 21, single buffered']
    #allocation34 [shape = 's32[1]{0}', space=sflag, size = 0x4, scoped, tag = 'scoped memory for tpu_custom_call.1']
    #allocation35 [shape = 'u8[1536]{0}', space=vmem, size = 0x800, scoped, tag = 'input window, operand 22, single buffered']
    #allocation36 [shape = 'u8[1536]{0}', space=vmem, size = 0x800, scoped, tag = 'input window, operand 23, single buffered']
    #allocation37 [shape = 's32[1]{0}', space=sflag, size = 0x4, scoped, tag = 'scoped memory for tpu_custom_call.1']
    #allocation49 [shape = 'u32[9]{0}', space=smem, size = 0x24, scoped, tag = 'DMA stride descriptor']
    #allocation51 [shape = 'u32[9]{0}', space=smem, size = 0x24, scoped, tag = 'DMA stride descriptor']
    %34 = vsyncpa [#allocation9], 0
    %35 = vsyncpa [#allocation12], 0
    %36 = vsyncpa [#allocation15], 0
    %37 = vsyncpa [#allocation18], 0
    %38 = vsyncpa [#allocation21], 0
    %39 = vsyncpa [#allocation10], 0
    %40 = vsyncpa [#allocation25], 0
    %41 = vsyncpa [#allocation28], 0
    %42 = vsyncpa [#allocation31], 0
    %43 = vsyncpa [#allocation34], 0
    %44 = vsyncpa [#allocation37], 0
    // Predicated region
    $region2: #{tpu_custom_call.1} parent=1 // pred_check
      _
    $region3: #{tpu_custom_call.1} parent=1 // pred_check_branch
      %46 = sbr.rel (0) target = $region5
    $region4: #{tpu_custom_call.1} parent=1 // pred_region
      %s48 = ssub.s32 256, 256
      %49 = vsyncadd [#allocation9], %s48
      %s51 = sshll.u32 [#allocation8], 4
      %s52 = int_to_ptr.vmem [resolvable:$true] %s51
      %54 = dma.hbm_to_vmem [thread:$0]  %s0, 256, %s52, [#allocation9]
    $region5: #{tpu_custom_call.1} parent=1 // pred_fallthru
      _
    // Predicated region
    $region6: #{tpu_custom_call.1} parent=1 // pred_check
      _
    $region7: #{tpu_custom_call.1} parent=1 // pred_check_branch
      %56 = sbr.rel (0) target = $region9
    $region8: #{tpu_custom_call.1} parent=1 // pred_region
      %s58 = ssub.s32 256, 256
      %59 = vsyncadd [#allocation12], %s58
      %s61 = sshll.u32 [#allocation11], 4
      %s62 = int_to_ptr.vmem [resolvable:$true] %s61
      %64 = dma.hbm_to_vmem [thread:$0]  %s1, 256, %s62, [#allocation12]
    $region9: #{tpu_custom_call.1} parent=1 // pred_fallthru
      _
    // Predicated region
    $region10: #{tpu_custom_call.1} parent=1 // pred_check
      _
    $region11: #{tpu_custom_call.1} parent=1 // pred_check_branch
      %66 = sbr.rel (0) target = $region13
    $region12: #{tpu_custom_call.1} parent=1 // pred_region
      %s68 = ssub.s32 256, 256
      %69 = vsyncadd [#allocation12], %s68
      %s71 = sshll.u32 [#allocation13], 4
      %s72 = int_to_ptr.vmem [resolvable:$true] %s71
      %74 = dma.hbm_to_vmem [thread:$0]  %s2, 256, %s72, [#allocation12]
    $region13: #{tpu_custom_call.1} parent=1 // pred_fallthru
      _
    // Predicated region
    $region14: #{tpu_custom_call.1} parent=1 // pred_check
      _
    $region15: #{tpu_custom_call.1} parent=1 // pred_check_branch
      %76 = sbr.rel (0) target = $region17
    $region16: #{tpu_custom_call.1} parent=1 // pred_region
      _
    $region17: #{tpu_custom_call.1} parent=1 // pred_fallthru
      _
    // Predicated region
    $region18: #{tpu_custom_call.1} parent=1 // pred_check
      _
    $region19: #{tpu_custom_call.1} parent=1 // pred_check_branch
      %78 = sbr.rel (0) target = $region21
    $region20: #{tpu_custom_call.1} parent=1 // pred_region
      %s80 = ssub.s32 64, 64
      %81 = vsyncadd [#allocation15], %s80
      %s83 = sshll.u32 [#allocation14], 4
      %s84 = int_to_ptr.vmem [resolvable:$true] %s83
      %86 = dma.hbm_to_vmem [thread:$0]  %s4, 64, %s84, [#allocation15]
    $region21: #{tpu_custom_call.1} parent=1 // pred_fallthru
      _
    // Predicated region
    $region22: #{tpu_custom_call.1} parent=1 // pred_check
      _
    $region23: #{tpu_custom_call.1} parent=1 // pred_check_branch
      %88 = sbr.rel (0) target = $region25
    $region24: #{tpu_custom_call.1} parent=1 // pred_region
      %s90 = ssub.s32 2048, 2048
      %91 = vsyncadd [#allocation15], %s90
      %s92 = sshll.u32 [#allocation16], 4
      %s93 = int_to_ptr.vmem [resolvable:$true] %s92
      %98 = dma.hbm_to_vmem [thread:$0]  %s5, 2048, %s93, [#allocation15], 64, 64, 4
    $region25: #{tpu_custom_call.1} parent=1 // pred_fallthru
      _
    // Predicated region
    $region26: #{tpu_custom_call.1} parent=1 // pred_check
      _
    $region27: #{tpu_custom_call.1} parent=1 // pred_check_branch
      %100 = sbr.rel (0) target = $region29
    $region28: #{tpu_custom_call.1} parent=1 // pred_region
      %s102 = ssub.s32 16, 16
      %103 = vsyncadd [#allocation18], %s102
      %s105 = sshll.u32 [#allocation17], 4
      %s106 = int_to_ptr.vmem [resolvable:$true] %s105
      %108 = dma.hbm_to_vmem [thread:$0]  %s6, 16, %s106, [#allocation18]
    $region29: #{tpu_custom_call.1} parent=1 // pred_fallthru
      _
    // Predicated region
    $region30: #{tpu_custom_call.1} parent=1 // pred_check
      _
    $region31: #{tpu_custom_call.1} parent=1 // pred_check_branch
      %110 = sbr.rel (0) target = $region33
    $region32: #{tpu_custom_call.1} parent=1 // pred_region
      %s112 = ssub.s32 1536, 1536
      %113 = vsyncadd [#allocation18], %s112
      %s114 = sshll.u32 [#allocation19], 4
      %s115 = int_to_ptr.vmem [resolvable:$true] %s114
      %120 = dma.hbm_to_vmem [thread:$0]  %s7, 1536, %s115, [#allocation18], 64, 64, 4
    $region33: #{tpu_custom_call.1} parent=1 // pred_fallthru
      _
    // Predicated region
    $region34: #{tpu_custom_call.1} parent=1 // pred_check
      _
    $region35: #{tpu_custom_call.1} parent=1 // pred_check_branch
      %122 = sbr.rel (0) target = $region37
    $region36: #{tpu_custom_call.1} parent=1 // pred_region
      %s124 = ssub.s32 16, 16
      %125 = vsyncadd [#allocation21], %s124
      %s127 = sshll.u32 [#allocation20], 4
      %s128 = int_to_ptr.vmem [resolvable:$true] %s127
      %130 = dma.hbm_to_vmem [thread:$0]  %s8, 16, %s128, [#allocation21]
    $region37: #{tpu_custom_call.1} parent=1 // pred_fallthru
      _
    // Predicated region
    $region38: #{tpu_custom_call.1} parent=1 // pred_check
      _
    $region39: #{tpu_custom_call.1} parent=1 // pred_check_branch
      %132 = sbr.rel (0) target = $region41
    $region40: #{tpu_custom_call.1} parent=1 // pred_region
      %s134 = ssub.s32 64, 64
      %135 = vsyncadd [#allocation10], %s134
      %138 = dma.hbm_to_smem %s9, 64, [#allocation22], [#allocation10]
    $region41: #{tpu_custom_call.1} parent=1 // pred_fallthru
      _
    // Predicated region
    $region42: #{tpu_custom_call.1} parent=1 // pred_check
      _
    $region43: #{tpu_custom_call.1} parent=1 // pred_check_branch
      %140 = sbr.rel (0) target = $region45
    $region44: #{tpu_custom_call.1} parent=1 // pred_region
      %s142 = ssub.s32 16, 16
      %143 = vsyncadd [#allocation21], %s142
      %s145 = sshll.u32 [#allocation23], 4
      %s146 = int_to_ptr.vmem [resolvable:$true] %s145
      %148 = dma.hbm_to_vmem [thread:$0]  %s11, 16, %s146, [#allocation21]
    $region45: #{tpu_custom_call.1} parent=1 // pred_fallthru
      _
    // Predicated region
    $region46: #{tpu_custom_call.1} parent=1 // pred_check
      _
    $region47: #{tpu_custom_call.1} parent=1 // pred_check_branch
      %150 = sbr.rel (0) target = $region49
    $region48: #{tpu_custom_call.1} parent=1 // pred_region
      %s152 = ssub.s32 64, 64
      %153 = vsyncadd [#allocation25], %s152
      %s155 = sshll.u32 [#allocation24], 4
      %s156 = int_to_ptr.vmem [resolvable:$true] %s155
      %158 = dma.hbm_to_vmem [thread:$0]  %s13, 64, %s156, [#allocation25]
    $region49: #{tpu_custom_call.1} parent=1 // pred_fallthru
      _
    // Predicated region
    $region50: #{tpu_custom_call.1} parent=1 // pred_check
      _
    $region51: #{tpu_custom_call.1} parent=1 // pred_check_branch
      %160 = sbr.rel (0) target = $region53
    $region52: #{tpu_custom_call.1} parent=1 // pred_region
      %s162 = ssub.s32 32, 32
      %163 = vsyncadd [#allocation25], %s162
      %s165 = sshll.u32 [#allocation26], 4
      %s166 = int_to_ptr.vmem [resolvable:$true] %s165
      %168 = dma.hbm_to_vmem [thread:$0]  %s15, 32, %s166, [#allocation25]
    $region53: #{tpu_custom_call.1} parent=1 // pred_fallthru
      _
    // Predicated region
    $region54: #{tpu_custom_call.1} parent=1 // pred_check
      _
    $region55: #{tpu_custom_call.1} parent=1 // pred_check_branch
      %170 = sbr.rel (0) target = $region57
    $region56: #{tpu_custom_call.1} parent=1 // pred_region
      %s172 = ssub.s32 32, 32
      %173 = vsyncadd [#allocation28], %s172
      %s175 = sshll.u32 [#allocation27], 4
      %s176 = int_to_ptr.vmem [resolvable:$true] %s175
      %178 = dma.hbm_to_vmem [thread:$0]  %s16, 32, %s176, [#allocation28]
    $region57: #{tpu_custom_call.1} parent=1 // pred_fallthru
      _
    // Predicated region
    $region58: #{tpu_custom_call.1} parent=1 // pred_check
      _
    $region59: #{tpu_custom_call.1} parent=1 // pred_check_branch
      %180 = sbr.rel (0) target = $region61
    $region60: #{tpu_custom_call.1} parent=1 // pred_region
      %s182 = ssub.s32 32, 32
      %183 = vsyncadd [#allocation28], %s182
      %s185 = sshll.u32 [#allocation29], 4
      %s186 = int_to_ptr.vmem [resolvable:$true] %s185
      %188 = dma.hbm_to_vmem [thread:$0]  %s17, 32, %s186, [#allocation28]
    $region61: #{tpu_custom_call.1} parent=1 // pred_fallthru
      _
    // Predicated region
    $region62: #{tpu_custom_call.1} parent=1 // pred_check
      _
    $region63: #{tpu_custom_call.1} parent=1 // pred_check_branch
      %190 = sbr.rel (0) target = $region65
    $region64: #{tpu_custom_call.1} parent=1 // pred_region
      _
    $region65: #{tpu_custom_call.1} parent=1 // pred_fallthru
      _
    // Predicated region
    $region66: #{tpu_custom_call.1} parent=1 // pred_check
      _
    $region67: #{tpu_custom_call.1} parent=1 // pred_check_branch
      %192 = sbr.rel (0) target = $region69
    $region68: #{tpu_custom_call.1} parent=1 // pred_region
      %s194 = ssub.s32 32, 32
      %195 = vsyncadd [#allocation31], %s194
      %s197 = sshll.u32 [#allocation30], 4
      %s198 = int_to_ptr.vmem [resolvable:$true] %s197
      %200 = dma.hbm_to_vmem [thread:$0]  %s19, 32, %s198, [#allocation31]
    $region69: #{tpu_custom_call.1} parent=1 // pred_fallthru
      _
    // Predicated region
    $region70: #{tpu_custom_call.1} parent=1 // pred_check
      _
    $region71: #{tpu_custom_call.1} parent=1 // pred_check_branch
      %202 = sbr.rel (0) target = $region73
    $region72: #{tpu_custom_call.1} parent=1 // pred_region
      %s204 = ssub.s32 48, 48
      %205 = vsyncadd [#allocation31], %s204
      %s207 = sshll.u32 [#allocation32], 4
      %s208 = int_to_ptr.vmem [resolvable:$true] %s207
      %210 = dma.hbm_to_vmem [thread:$0]  %s20, 48, %s208, [#allocation31]
    $region73: #{tpu_custom_call.1} parent=1 // pred_fallthru
      _
    // Predicated region
    $region74: #{tpu_custom_call.1} parent=1 // pred_check
      _
    $region75: #{tpu_custom_call.1} parent=1 // pred_check_branch
      %212 = sbr.rel (0) target = $region77
    $region76: #{tpu_custom_call.1} parent=1 // pred_region
      %s214 = ssub.s32 3072, 3072
      %215 = vsyncadd [#allocation34], %s214
      %s216 = sshll.u32 [#allocation33], 4
      %s217 = int_to_ptr.vmem [resolvable:$true] %s216
      %222 = dma.hbm_to_vmem [thread:$0]  %s21, 3072, %s217, [#allocation34], 192, 192, 12
    $region77: #{tpu_custom_call.1} parent=1 // pred_fallthru
      _
    // Predicated region
    $region78: #{tpu_custom_call.1} parent=1 // pred_check
      _
    $region79: #{tpu_custom_call.1} parent=1 // pred_check_branch
      %224 = sbr.rel (0) target = $region81
    $region80: #{tpu_custom_call.1} parent=1 // pred_region
      %s226 = ssub.s32 48, 48
      %227 = vsyncadd [#allocation34], %s226
      %s229 = sshll.u32 [#allocation35], 4
      %s230 = int_to_ptr.vmem [resolvable:$true] %s229
      %232 = dma.hbm_to_vmem [thread:$0]  %s22, 48, %s230, [#allocation34]
    $region81: #{tpu_custom_call.1} parent=1 // pred_fallthru
      _
    // Predicated region
    $region82: #{tpu_custom_call.1} parent=1 // pred_check
      _
    $region83: #{tpu_custom_call.1} parent=1 // pred_check_branch
      %234 = sbr.rel (0) target = $region85
    $region84: #{tpu_custom_call.1} parent=1 // pred_region
      %s236 = ssub.s32 48, 48
      %237 = vsyncadd [#allocation37], %s236
      %s239 = sshll.u32 [#allocation36], 4
      %s240 = int_to_ptr.vmem [resolvable:$true] %s239
      %242 = dma.hbm_to_vmem [thread:$0]  %s23, 48, %s240, [#allocation37]
    $region85: #{tpu_custom_call.1} parent=1 // pred_fallthru
      _
    // Predicated region
    $region86: #{tpu_custom_call.1} parent=1 // pred_check
      _
    $region87: #{tpu_custom_call.1} parent=1 // pred_check_branch
      %244 = sbr.rel (0) target = $region89
    $region88: #{tpu_custom_call.1} parent=1 // pred_region
      _
    $region89: #{tpu_custom_call.1} parent=1 // pred_fallthru
      _
    // Predicated region
    $region90: #{tpu_custom_call.1} parent=1 // pred_check
      _
    $region91: #{tpu_custom_call.1} parent=1 // pred_check_branch
      %246 = sbr.rel (0) target = $region93
    $region92: #{tpu_custom_call.1} parent=1 // pred_region
      %247 = dma.done [#allocation9], 256
    $region93: #{tpu_custom_call.1} parent=1 // pred_fallthru
      _
    // Predicated region
    $region94: #{tpu_custom_call.1} parent=1 // pred_check
      _
    $region95: #{tpu_custom_call.1} parent=1 // pred_check_branch
      %249 = sbr.rel (0) target = $region97
    $region96: #{tpu_custom_call.1} parent=1 // pred_region
      %250 = dma.done [#allocation12], 256
    $region97: #{tpu_custom_call.1} parent=1 // pred_fallthru
      _
    // Predicated region
    $region98: #{tpu_custom_call.1} parent=1 // pred_check
      _
    $region99: #{tpu_custom_call.1} parent=1 // pred_check_branch
      %252 = sbr.rel (0) target = $region101
    $region100: #{tpu_custom_call.1} parent=1 // pred_region
      %253 = dma.done [#allocation12], 256
    $region101: #{tpu_custom_call.1} parent=1 // pred_fallthru
      _
    // Predicated region
    $region102: #{tpu_custom_call.1} parent=1 // pred_check
      _
    $region103: #{tpu_custom_call.1} parent=1 // pred_check_branch
      %255 = sbr.rel (0) target = $region105
    $region104: #{tpu_custom_call.1} parent=1 // pred_region
      %256 = dma.done [#allocation15], 64
    $region105: #{tpu_custom_call.1} parent=1 // pred_fallthru
      _
    // Predicated region
    $region106: #{tpu_custom_call.1} parent=1 // pred_check
      _
    $region107: #{tpu_custom_call.1} parent=1 // pred_check_branch
      %258 = sbr.rel (0) target = $region109
    $region108: #{tpu_custom_call.1} parent=1 // pred_region
      %259 = dma.done [#allocation15], 2048
    $region109: #{tpu_custom_call.1} parent=1 // pred_fallthru
      _
    // Predicated region
    $region110: #{tpu_custom_call.1} parent=1 // pred_check
      _
    $region111: #{tpu_custom_call.1} parent=1 // pred_check_branch
      %261 = sbr.rel (0) target = $region113
    $region112: #{tpu_custom_call.1} parent=1 // pred_region
      %262 = dma.done [#allocation18], 16
    $region113: #{tpu_custom_call.1} parent=1 // pred_fallthru
      _
    // Predicated region
    $region114: #{tpu_custom_call.1} parent=1 // pred_check
      _
    $region115: #{tpu_custom_call.1} parent=1 // pred_check_branch
      %264 = sbr.rel (0) target = $region117
    $region116: #{tpu_custom_call.1} parent=1 // pred_region
      %265 = dma.done [#allocation18], 1536
    $region117: #{tpu_custom_call.1} parent=1 // pred_fallthru
      _
    // Predicated region
    $region118: #{tpu_custom_call.1} parent=1 // pred_check
      _
    $region119: #{tpu_custom_call.1} parent=1 // pred_check_branch
      %267 = sbr.rel (0) target = $region121
    $region120: #{tpu_custom_call.1} parent=1 // pred_region
      %268 = dma.done [#allocation21], 16
    $region121: #{tpu_custom_call.1} parent=1 // pred_fallthru
      _
    // Predicated region
    $region122: #{tpu_custom_call.1} parent=1 // pred_check
      _
    $region123: #{tpu_custom_call.1} parent=1 // pred_check_branch
      %270 = sbr.rel (0) target = $region125
    $region124: #{tpu_custom_call.1} parent=1 // pred_region
      %271 = dma.done [#allocation10], 64
    $region125: #{tpu_custom_call.1} parent=1 // pred_fallthru
      _
    // Predicated region
    $region126: #{tpu_custom_call.1} parent=1 // pred_check
      _
    $region127: #{tpu_custom_call.1} parent=1 // pred_check_branch
      %273 = sbr.rel (0) target = $region129
    $region128: #{tpu_custom_call.1} parent=1 // pred_region
      %274 = dma.done [#allocation21], 16
    $region129: #{tpu_custom_call.1} parent=1 // pred_fallthru
      _
    // Predicated region
    $region130: #{tpu_custom_call.1} parent=1 // pred_check
      _
    $region131: #{tpu_custom_call.1} parent=1 // pred_check_branch
      %276 = sbr.rel (0) target = $region133
    $region132: #{tpu_custom_call.1} parent=1 // pred_region
      %277 = dma.done [#allocation25], 64
    $region133: #{tpu_custom_call.1} parent=1 // pred_fallthru
      _
    // Predicated region
    $region134: #{tpu_custom_call.1} parent=1 // pred_check
      _
    $region135: #{tpu_custom_call.1} parent=1 // pred_check_branch
      %279 = sbr.rel (0) target = $region137
    $region136: #{tpu_custom_call.1} parent=1 // pred_region
      %280 = dma.done [#allocation25], 32
    $region137: #{tpu_custom_call.1} parent=1 // pred_fallthru
      _
    // Predicated region
    $region138: #{tpu_custom_call.1} parent=1 // pred_check
      _
    $region139: #{tpu_custom_call.1} parent=1 // pred_check_branch
      %282 = sbr.rel (0) target = $region141
    $region140: #{tpu_custom_call.1} parent=1 // pred_region
      %283 = dma.done [#allocation28], 32
    $region141: #{tpu_custom_call.1} parent=1 // pred_fallthru
      _
    // Predicated region
    $region142: #{tpu_custom_call.1} parent=1 // pred_check
      _
    $region143: #{tpu_custom_call.1} parent=1 // pred_check_branch
      %285 = sbr.rel (0) target = $region145
    $region144: #{tpu_custom_call.1} parent=1 // pred_region
      %286 = dma.done [#allocation28], 32
    $region145: #{tpu_custom_call.1} parent=1 // pred_fallthru
      _
    // Predicated region
    $region146: #{tpu_custom_call.1} parent=1 // pred_check
      _
    $region147: #{tpu_custom_call.1} parent=1 // pred_check_branch
      %288 = sbr.rel (0) target = $region149
    $region148: #{tpu_custom_call.1} parent=1 // pred_region
      %289 = dma.done [#allocation31], 32
    $region149: #{tpu_custom_call.1} parent=1 // pred_fallthru
      _
    // Predicated region
    $region150: #{tpu_custom_call.1} parent=1 // pred_check
      _
    $region151: #{tpu_custom_call.1} parent=1 // pred_check_branch
      %291 = sbr.rel (0) target = $region153
    $region152: #{tpu_custom_call.1} parent=1 // pred_region
      %292 = dma.done [#allocation31], 48
    $region153: #{tpu_custom_call.1} parent=1 // pred_fallthru
      _
    // Predicated region
    $region154: #{tpu_custom_call.1} parent=1 // pred_check
      _
    $region155: #{tpu_custom_call.1} parent=1 // pred_check_branch
      %294 = sbr.rel (0) target = $region157
    $region156: #{tpu_custom_call.1} parent=1 // pred_region
      %295 = dma.done [#allocation34], 3072
    $region157: #{tpu_custom_call.1} parent=1 // pred_fallthru
      _
    // Predicated region
    $region158: #{tpu_custom_call.1} parent=1 // pred_check
      _
    $region159: #{tpu_custom_call.1} parent=1 // pred_check_branch
      %297 = sbr.rel (0) target = $region161
    $region160: #{tpu_custom_call.1} parent=1 // pred_region
      %298 = dma.done [#allocation34], 48
    $region161: #{tpu_custom_call.1} parent=1 // pred_fallthru
      _
    // Predicated region
    $region162: #{tpu_custom_call.1} parent=1 // pred_check
      _
    $region163: #{tpu_custom_call.1} parent=1 // pred_check_branch
      %300 = sbr.rel (0) target = $region165
    $region164: #{tpu_custom_call.1} parent=1 // pred_region
      %301 = dma.done [#allocation37], 48
    $region165: #{tpu_custom_call.1} parent=1 // pred_fallthru
      _
    %302 = sfence
    // Predicated region
    $region166: #{tpu_custom_call.1} parent=1 // pred_check
      _
    $region167: #{tpu_custom_call.1} parent=1 // pred_check_branch
      %305 = sbr.rel target = $region169
    $region168: #{tpu_custom_call.1} parent=1 // pred_region
      %306 = sst [smem:[#allocation40]] [#allocation39]
      %307 = sst [smem:[#allocation41]] [#allocation38]
    $region169: #{tpu_custom_call.1} parent=1 // pred_fallthru
      _
    %309 = shalt.err (0)
    %s311 = sshll.u32 [#allocation2], 4
    %s312 = int_to_ptr.vmem [resolvable:$true] %s311
    %314 = dma.hbm_to_vmem [thread:$0]  %s10, 16384, %s312, [#allocation5]
    %s315 = scalar_lea.hbm %s10, 16384
    %s316 = scalar_lea.vmem [#allocation2], 1024
    %s317 = scalar_lea.sflag [#allocation5], 1
    // Predicated region
    $region170: #{tpu_custom_call.1} parent=1 // pred_check
      _
    $region171: #{tpu_custom_call.1} parent=1 // pred_check_branch
      %319 = sbr.rel target = $region173
    $region172: #{tpu_custom_call.1} parent=1 // pred_region
      %320 = sst [smem:[#allocation40]] [#allocation43]
      %321 = sst [smem:[#allocation41]] [#allocation42]
    $region173: #{tpu_custom_call.1} parent=1 // pred_fallthru
      _
    %323 = shalt.err (0)
    %s325 = sshll.u32 %s316, 4
    %s326 = int_to_ptr.vmem [resolvable:$true] %s325
    %328 = dma.hbm_to_vmem [thread:$0]  %s315, 16384, %s326, %s317
    %s329 = scalar_lea.hbm %s10, 32768
    %s330 = scalar_lea.vmem [#allocation2], 2048
    %s331 = scalar_lea.sflag [#allocation5], 2
    // Predicated region
    $region174: #{tpu_custom_call.1} parent=1 // pred_check
      _
    $region175: #{tpu_custom_call.1} parent=1 // pred_check_branch
      %333 = sbr.rel target = $region177
    $region176: #{tpu_custom_call.1} parent=1 // pred_region
      %334 = sst [smem:[#allocation40]] [#allocation45]
      %335 = sst [smem:[#allocation41]] [#allocation44]
    $region177: #{tpu_custom_call.1} parent=1 // pred_fallthru
      _
    %337 = shalt.err (0)
    %s339 = sshll.u32 %s330, 4
    %s340 = int_to_ptr.vmem [resolvable:$true] %s339
    %342 = dma.hbm_to_vmem [thread:$0]  %s329, 16384, %s340, %s331
    %s343 = scalar_lea.hbm %s10, 49152
    %s344 = scalar_lea.vmem [#allocation2], 3072
    %s345 = scalar_lea.sflag [#allocation5], 3
    // Predicated region
    $region178: #{tpu_custom_call.1} parent=1 // pred_check
      _
    $region179: #{tpu_custom_call.1} parent=1 // pred_check_branch
      %347 = sbr.rel target = $region181
    $region180: #{tpu_custom_call.1} parent=1 // pred_region
      %348 = sst [smem:[#allocation40]] [#allocation47]
      %349 = sst [smem:[#allocation41]] [#allocation46]
    $region181: #{tpu_custom_call.1} parent=1 // pred_fallthru
      _
    %351 = shalt.err (0)
    %s353 = sshll.u32 %s344, 4
    %s354 = int_to_ptr.vmem [resolvable:$true] %s353
    %356 = dma.hbm_to_vmem [thread:$0]  %s343, 16384, %s354, %s345
    %s357 = scalar_lea.sflag [#allocation5], 4
    %s359 = sshll.u32 1, 14
    %s360 = sxor.u32 4294967295, %s359
    %s362 = sld [smem:[#allocation0]]
    %s363 = sadd.s32 2, %s362
    %s365 = sshll.u32 7, 26
    %s366 = sxor.u32 4294967295, %s365
    %s367 = sand.u32 0, %s366
    %s368 = sshll.u32 %s363, 26
    %s369 = sor.u32 %s367, %s368
    %s370 = sshll.u32 [#allocation3], 4
    %s371 = int_to_ptr.vmem [resolvable:$true] %s370
    %374 = sst [smem:[#allocation49]] 512
    %s375 = scalar_lea.smem [#allocation49], 1
    %376 = sst [smem:[%s375]] 512
    %s377 = scalar_lea.smem [#allocation49], 2
    %378 = sst [smem:[%s377]] 4
    %s379 = scalar_lea.smem [#allocation49], 3
    %380 = sst [smem:[%s379]] 64
    %s381 = scalar_lea.smem [#allocation49], 4
    %382 = sst [smem:[%s381]] 128
    %s383 = scalar_lea.smem [#allocation49], 5
    %384 = sst [smem:[%s383]] 2
    %s385 = scalar_lea.smem [#allocation49], 6
    %386 = sst [smem:[%s385]] 256
    %s387 = scalar_lea.smem [#allocation49], 7
    %388 = sst [smem:[%s387]] 64
    %s389 = scalar_lea.smem [#allocation49], 8
    %390 = sst [smem:[%s389]] 4
    %392 = dma.general %s12, 12288, %s371, %s357, [#allocation48], [#allocation49], %s369, 0
    %s393 = scalar_lea.sflag [#allocation5], 5
    %s395 = sshll.u32 1, 14
    %s396 = sxor.u32 4294967295, %s395
    %s398 = sadd.s32 2, %s362
    %s400 = sshll.u32 7, 26
    %s401 = sxor.u32 4294967295, %s400
    %s402 = sand.u32 0, %s401
    %s403 = sshll.u32 %s398, 26
    %s404 = sor.u32 %s402, %s403
    %s405 = sshll.u32 [#allocation4], 4
    %s406 = int_to_ptr.vmem [resolvable:$true] %s405
    %409 = sst [smem:[#allocation51]] 256
    %s410 = scalar_lea.smem [#allocation51], 1
    %411 = sst [smem:[%s410]] 256
    %s412 = scalar_lea.smem [#allocation51], 2
    %413 = sst [smem:[%s412]] 2
    %s414 = scalar_lea.smem [#allocation51], 3
    %415 = sst [smem:[%s414]] 64
    %s416 = scalar_lea.smem [#allocation51], 4
    %417 = sst [smem:[%s416]] 128
    %s418 = scalar_lea.smem [#allocation51], 5
    %419 = sst [smem:[%s418]] 2
    %s420 = scalar_lea.smem [#allocation51], 6
    %421 = sst [smem:[%s420]] 128
    %s422 = scalar_lea.smem [#allocation51], 7
    %423 = sst [smem:[%s422]] 64
    %s424 = scalar_lea.smem [#allocation51], 8
    %425 = sst [smem:[%s424]] 4
    %427 = dma.general %s14, 8192, %s406, %s393, [#allocation50], [#allocation51], %s404, 0
    %v428 = vld [vmem:[#allocation8] sm:$0xff]
    %v429 = vld [vmem:[#allocation8 + $0x8] sm:$0xff]
    %v430 = vpack.c.bf16 %v428, %v428
    %v431 = vpack.c.bf16 %v429, %v429
    %v432 = vld [vmem:[%s3] sm:$0xff]
    %v433 = vld [vmem:[%s3 + $0x8] sm:$0xff]
    %v434 = vld [vmem:[%s3 + $0x10] sm:$0xff]
    %v435 = vld [vmem:[%s3 + $0x18] sm:$0xff]
    %v436 = vld [vmem:[%s3 + $0x20] sm:$0xff]
    %v437 = vld [vmem:[%s3 + $0x28] sm:$0xff]
    %v438 = vld [vmem:[%s3 + $0x30] sm:$0xff]
    %v439 = vld [vmem:[%s3 + $0x38] sm:$0xff]
    %v440 = vld [vmem:[%s3 + $0x40] sm:$0xff]
    %v441 = vld [vmem:[%s3 + $0x48] sm:$0xff]
    %v442 = vld [vmem:[%s3 + $0x50] sm:$0xff]
    %v443 = vld [vmem:[%s3 + $0x58] sm:$0xff]
    %v444 = vld [vmem:[%s3 + $0x60] sm:$0xff]
    %v445 = vld [vmem:[%s3 + $0x68] sm:$0xff]
    %v446 = vld [vmem:[%s3 + $0x70] sm:$0xff]
    %v447 = vld [vmem:[%s3 + $0x78] sm:$0xff]
    %v448 = vld [vmem:[%s3 + $0x80] sm:$0xff]
    %v449 = vld [vmem:[%s3 + $0x88] sm:$0xff]
    %v450 = vld [vmem:[%s3 + $0x90] sm:$0xff]
    %v451 = vld [vmem:[%s3 + $0x98] sm:$0xff]
    %v452 = vld [vmem:[%s3 + $0xa0] sm:$0xff]
    %v453 = vld [vmem:[%s3 + $0xa8] sm:$0xff]
    %v454 = vld [vmem:[%s3 + $0xb0] sm:$0xff]
    %v455 = vld [vmem:[%s3 + $0xb8] sm:$0xff]
    %v456 = vld [vmem:[%s3 + $0xc0] sm:$0xff]
    %v457 = vld [vmem:[%s3 + $0xc8] sm:$0xff]
    %v458 = vld [vmem:[%s3 + $0xd0] sm:$0xff]
    %v459 = vld [vmem:[%s3 + $0xd8] sm:$0xff]
    %v460 = vld [vmem:[%s3 + $0xe0] sm:$0xff]
    %v461 = vld [vmem:[%s3 + $0xe8] sm:$0xff]
    %v462 = vld [vmem:[%s3 + $0xf0] sm:$0xff]
    %v463 = vld [vmem:[%s3 + $0xf8] sm:$0xff]
    %v464 = vld [vmem:[%s3 + $0x100] sm:$0xff]
    %v465 = vld [vmem:[%s3 + $0x108] sm:$0xff]
    %v466 = vld [vmem:[%s3 + $0x110] sm:$0xff]
    %v467 = vld [vmem:[%s3 + $0x118] sm:$0xff]
    %v468 = vld [vmem:[%s3 + $0x120] sm:$0xff]
    %v469 = vld [vmem:[%s3 + $0x128] sm:$0xff]
    %v470 = vld [vmem:[%s3 + $0x130] sm:$0xff]
    %v471 = vld [vmem:[%s3 + $0x138] sm:$0xff]
    %v472 = vld [vmem:[%s3 + $0x140] sm:$0xff]
    %v473 = vld [vmem:[%s3 + $0x148] sm:$0xff]
    %v474 = vld [vmem:[%s3 + $0x150] sm:$0xff]
    %v475 = vld [vmem:[%s3 + $0x158] sm:$0xff]
    %v476 = vld [vmem:[%s3 + $0x160] sm:$0xff]
    %v477 = vld [vmem:[%s3 + $0x168] sm:$0xff]
    %v478 = vld [vmem:[%s3 + $0x170] sm:$0xff]
    %v479 = vld [vmem:[%s3 + $0x178] sm:$0xff]
    %v480 = vld [vmem:[%s3 + $0x180] sm:$0xff]
    %v481 = vld [vmem:[%s3 + $0x188] sm:$0xff]
    %v482 = vld [vmem:[%s3 + $0x190] sm:$0xff]
    %v483 = vld [vmem:[%s3 + $0x198] sm:$0xff]
    %v484 = vld [vmem:[%s3 + $0x1a0] sm:$0xff]
    %v485 = vld [vmem:[%s3 + $0x1a8] sm:$0xff]
    %v486 = vld [vmem:[%s3 + $0x1b0] sm:$0xff]
    %v487 = vld [vmem:[%s3 + $0x1b8] sm:$0xff]
    %v488 = vld [vmem:[%s3 + $0x1c0] sm:$0xff]
    %v489 = vld [vmem:[%s3 + $0x1c8] sm:$0xff]
    %v490 = vld [vmem:[%s3 + $0x1d0] sm:$0xff]
    %v491 = vld [vmem:[%s3 + $0x1d8] sm:$0xff]
    %v492 = vld [vmem:[%s3 + $0x1e0] sm:$0xff]
    %v493 = vld [vmem:[%s3 + $0x1e8] sm:$0xff]
    %v494 = vld [vmem:[%s3 + $0x1f0] sm:$0xff]
    %v495 = vld [vmem:[%s3 + $0x1f8] sm:$0xff]
    %v496 = vld [vmem:[#allocation14] sm:$0xf]
    %v498 = vlaneseq
    %v499 = vshrl.u32 %v498, 7
    %v500 = vsub.s32 0, %v499
    %v501 = vrot.slane %v496, %v500
    %v502 = vlaneseq
    %v503 = vshrl.u32 %v502, 7
    %v504 = vsub.s32 1, %v503
    %v505 = vrot.slane %v496, %v504
    %v506 = vlaneseq
    %v507 = vshrl.u32 %v506, 7
    %v508 = vsub.s32 2, %v507
    %v509 = vrot.slane %v496, %v508
    %v510 = vlaneseq
    %v511 = vshrl.u32 %v510, 7
    %v512 = vsub.s32 3, %v511
    %v513 = vrot.slane %v496, %v512
    %v582 = vunpack.c.l.b16 %v432
    %v583 = vunpack.c.h.b16 %v432
    %v584 = vunpack.c.l.b16 %v433
    %v585 = vunpack.c.h.b16 %v433
    %v586 = vunpack.c.l.b16 %v434
    %v587 = vunpack.c.h.b16 %v434
    %v588 = vunpack.c.l.b16 %v435
    %v589 = vunpack.c.h.b16 %v435
    %v590 = vunpack.c.l.b16 %v436
    %v591 = vunpack.c.h.b16 %v436
    %v592 = vunpack.c.l.b16 %v437
    %v593 = vunpack.c.h.b16 %v437
    %v594 = vunpack.c.l.b16 %v438
    %v595 = vunpack.c.h.b16 %v438
    %v596 = vunpack.c.l.b16 %v439
    %v597 = vunpack.c.h.b16 %v439
    %v598 = vunpack.c.l.b16 %v440
    %v599 = vunpack.c.h.b16 %v440
    %v600 = vunpack.c.l.b16 %v441
    %v601 = vunpack.c.h.b16 %v441
    %v602 = vunpack.c.l.b16 %v442
    %v603 = vunpack.c.h.b16 %v442
    %v604 = vunpack.c.l.b16 %v443
    %v605 = vunpack.c.h.b16 %v443
    %v606 = vunpack.c.l.b16 %v444
    %v607 = vunpack.c.h.b16 %v444
    %v608 = vunpack.c.l.b16 %v445
    %v609 = vunpack.c.h.b16 %v445
    %v610 = vunpack.c.l.b16 %v446
    %v611 = vunpack.c.h.b16 %v446
    %v612 = vunpack.c.l.b16 %v447
    %v613 = vunpack.c.h.b16 %v447
    %v614 = vunpack.c.l.b16 %v448
    %v615 = vunpack.c.h.b16 %v448
    %v616 = vunpack.c.l.b16 %v449
    %v617 = vunpack.c.h.b16 %v449
    %v618 = vunpack.c.l.b16 %v450
    %v619 = vunpack.c.h.b16 %v450
    %v620 = vunpack.c.l.b16 %v451
    %v621 = vunpack.c.h.b16 %v451
    %v622 = vunpack.c.l.b16 %v452
    %v623 = vunpack.c.h.b16 %v452
    %v624 = vunpack.c.l.b16 %v453
    %v625 = vunpack.c.h.b16 %v453
    %v626 = vunpack.c.l.b16 %v454
    %v627 = vunpack.c.h.b16 %v454
    %v628 = vunpack.c.l.b16 %v455
    %v629 = vunpack.c.h.b16 %v455
    %v630 = vunpack.c.l.b16 %v456
    %v631 = vunpack.c.h.b16 %v456
    %v632 = vunpack.c.l.b16 %v457
    %v633 = vunpack.c.h.b16 %v457
    %v634 = vunpack.c.l.b16 %v458
    %v635 = vunpack.c.h.b16 %v458
    %v636 = vunpack.c.l.b16 %v459
    %v637 = vunpack.c.h.b16 %v459
    %v638 = vunpack.c.l.b16 %v460
    %v639 = vunpack.c.h.b16 %v460
    %v640 = vunpack.c.l.b16 %v461
    %v641 = vunpack.c.h.b16 %v461
    %v642 = vunpack.c.l.b16 %v462
    %v643 = vunpack.c.h.b16 %v462
    %v644 = vunpack.c.l.b16 %v463
    %v645 = vunpack.c.h.b16 %v463
    %v646 = vunpack.c.l.b16 %v464
    %v647 = vunpack.c.h.b16 %v464
    %v648 = vunpack.c.l.b16 %v465
    %v649 = vunpack.c.h.b16 %v465
    %v650 = vunpack.c.l.b16 %v466
    %v651 = vunpack.c.h.b16 %v466
    %v652 = vunpack.c.l.b16 %v467
    %v653 = vunpack.c.h.b16 %v467
    %v654 = vunpack.c.l.b16 %v468
    %v655 = vunpack.c.h.b16 %v468
    %v656 = vunpack.c.l.b16 %v469
    %v657 = vunpack.c.h.b16 %v469
    %v658 = vunpack.c.l.b16 %v470
    %v659 = vunpack.c.h.b16 %v470
    %v660 = vunpack.c.l.b16 %v471
    %v661 = vunpack.c.h.b16 %v471
    %v662 = vunpack.c.l.b16 %v472
    %v663 = vunpack.c.h.b16 %v472
    %v664 = vunpack.c.l.b16 %v473
    %v665 = vunpack.c.h.b16 %v473
    %v666 = vunpack.c.l.b16 %v474
    %v667 = vunpack.c.h.b16 %v474
    %v668 = vunpack.c.l.b16 %v475
    %v669 = vunpack.c.h.b16 %v475
    %v670 = vunpack.c.l.b16 %v476
    %v671 = vunpack.c.h.b16 %v476
    %v672 = vunpack.c.l.b16 %v477
    %v673 = vunpack.c.h.b16 %v477
    %v674 = vunpack.c.l.b16 %v478
    %v675 = vunpack.c.h.b16 %v478
    %v676 = vunpack.c.l.b16 %v479
    %v677 = vunpack.c.h.b16 %v479
    %v678 = vunpack.c.l.b16 %v480
    %v679 = vunpack.c.h.b16 %v480
    %v680 = vunpack.c.l.b16 %v481
    %v681 = vunpack.c.h.b16 %v481
    %v682 = vunpack.c.l.b16 %v482
    %v683 = vunpack.c.h.b16 %v482
    %v684 = vunpack.c.l.b16 %v483
    %v685 = vunpack.c.h.b16 %v483
    %v686 = vunpack.c.l.b16 %v484
    %v687 = vunpack.c.h.b16 %v484
    %v688 = vunpack.c.l.b16 %v485
    %v689 = vunpack.c.h.b16 %v485
    %v690 = vunpack.c.l.b16 %v486
    %v691 = vunpack.c.h.b16 %v486
    %v692 = vunpack.c.l.b16 %v487
    %v693 = vunpack.c.h.b16 %v487
    %v694 = vunpack.c.l.b16 %v488
    %v695 = vunpack.c.h.b16 %v488
    %v696 = vunpack.c.l.b16 %v489
    %v697 = vunpack.c.h.b16 %v489
    %v698 = vunpack.c.l.b16 %v490
    %v699 = vunpack.c.h.b16 %v490
    %v700 = vunpack.c.l.b16 %v491
    %v701 = vunpack.c.h.b16 %v491
    %v702 = vunpack.c.l.b16 %v492
    %v703 = vunpack.c.h.b16 %v492
    %v704 = vunpack.c.l.b16 %v493
    %v705 = vunpack.c.h.b16 %v493
    %v706 = vunpack.c.l.b16 %v494
    %v707 = vunpack.c.h.b16 %v494
    %v708 = vunpack.c.l.b16 %v495
    %v709 = vunpack.c.h.b16 %v495
    %v710 = vpack.c.b16 %v586, %v582
    %v711 = vpack.c.b16 %v587, %v583
    %v712 = vpack.c.b16 %v588, %v584
    %v713 = vpack.c.b16 %v589, %v585
    %v714 = vpack.c.b16 %v594, %v590
    %v715 = vpack.c.b16 %v595, %v591
    %v716 = vpack.c.b16 %v596, %v592
    %v717 = vpack.c.b16 %v597, %v593
    %v718 = vpack.c.b16 %v602, %v598
    %v719 = vpack.c.b16 %v603, %v599
    %v720 = vpack.c.b16 %v604, %v600
    %v721 = vpack.c.b16 %v605, %v601
    %v722 = vpack.c.b16 %v610, %v606
    %v723 = vpack.c.b16 %v611, %v607
    %v724 = vpack.c.b16 %v612, %v608
    %v725 = vpack.c.b16 %v613, %v609
    %v726 = vpack.c.b16 %v618, %v614
    %v727 = vpack.c.b16 %v619, %v615
    %v728 = vpack.c.b16 %v620, %v616
    %v729 = vpack.c.b16 %v621, %v617
    %v730 = vpack.c.b16 %v626, %v622
    %v731 = vpack.c.b16 %v627, %v623
    %v732 = vpack.c.b16 %v628, %v624
    %v733 = vpack.c.b16 %v629, %v625
    %v734 = vpack.c.b16 %v634, %v630
    %v735 = vpack.c.b16 %v635, %v631
    %v736 = vpack.c.b16 %v636, %v632
    %v737 = vpack.c.b16 %v637, %v633
    %v738 = vpack.c.b16 %v642, %v638
    %v739 = vpack.c.b16 %v643, %v639
    %v740 = vpack.c.b16 %v644, %v640
    %v741 = vpack.c.b16 %v645, %v641
    %v742 = vpack.c.b16 %v650, %v646
    %v743 = vpack.c.b16 %v651, %v647
    %v744 = vpack.c.b16 %v652, %v648
    %v745 = vpack.c.b16 %v653, %v649
    %v746 = vpack.c.b16 %v658, %v654
    %v747 = vpack.c.b16 %v659, %v655
    %v748 = vpack.c.b16 %v660, %v656
    %v749 = vpack.c.b16 %v661, %v657
    %v750 = vpack.c.b16 %v666, %v662
    %v751 = vpack.c.b16 %v667, %v663
    %v752 = vpack.c.b16 %v668, %v664
    %v753 = vpack.c.b16 %v669, %v665
    %v754 = vpack.c.b16 %v674, %v670
    %v755 = vpack.c.b16 %v675, %v671
    %v756 = vpack.c.b16 %v676, %v672
    %v757 = vpack.c.b16 %v677, %v673
    %v758 = vpack.c.b16 %v682, %v678
    %v759 = vpack.c.b16 %v683, %v679
    %v760 = vpack.c.b16 %v684, %v680
    %v761 = vpack.c.b16 %v685, %v681
    %v762 = vpack.c.b16 %v690, %v686
    %v763 = vpack.c.b16 %v691, %v687
    %v764 = vpack.c.b16 %v692, %v688
    %v765 = vpack.c.b16 %v693, %v689
    %v766 = vpack.c.b16 %v698, %v694
    %v767 = vpack.c.b16 %v699, %v695
    %v768 = vpack.c.b16 %v700, %v696
    %v769 = vpack.c.b16 %v701, %v697
    %v770 = vpack.c.b16 %v706, %v702
    %v771 = vpack.c.b16 %v707, %v703
    %v772 = vpack.c.b16 %v708, %v704
    %v773 = vpack.c.b16 %v709, %v705
    %838 = vmatprep.subr.bf16.mxu0 %v711
    %839 = vmatpush1.bf16.msra.mxu0 %v710
    %840 = vmatprep.subr.bf16.mxu0 %v715
    %841 = vmatpush1.bf16.msra.mxu0 %v714
    %842 = vmatprep.subr.bf16.mxu0 %v719
    %843 = vmatpush1.bf16.msra.mxu0 %v718
    %844 = vmatprep.subr.bf16.mxu0 %v723
    %845 = vmatpush1.bf16.msra.mxu0 %v722
    %846 = vmatprep.subr.bf16.mxu0 %v727
    %847 = vmatpush1.bf16.msra.mxu0 %v726
    %848 = vmatprep.subr.bf16.mxu0 %v731
    %849 = vmatpush1.bf16.msra.mxu0 %v730
    %850 = vmatprep.subr.bf16.mxu0 %v735
    %851 = vmatpush1.bf16.msra.mxu0 %v734
    %852 = vmatprep.subr.bf16.mxu0 %v739
    %853 = vmatpush1.bf16.msra.mxu0 %v738
    %854 = vmatprep.subr.bf16.mxu0 %v743
    %855 = vmatpush1.bf16.msra.mxu0 %v742
    %856 = vmatprep.subr.bf16.mxu0 %v747
    %857 = vmatpush1.bf16.msra.mxu0 %v746
    %858 = vmatprep.subr.bf16.mxu0 %v751
    %859 = vmatpush1.bf16.msra.mxu0 %v750
    %860 = vmatprep.subr.bf16.mxu0 %v755
    %861 = vmatpush1.bf16.msra.mxu0 %v754
    %862 = vmatprep.subr.bf16.mxu0 %v759
    %863 = vmatpush1.bf16.msra.mxu0 %v758
    %864 = vmatprep.subr.bf16.mxu0 %v763
    %865 = vmatpush1.bf16.msra.mxu0 %v762
    %866 = vmatprep.subr.bf16.mxu0 %v767
    %867 = vmatpush1.bf16.msra.mxu0 %v766
    %868 = vmatprep.subr.bf16.mxu0 %v771
    %869 = vmatpush1.bf16.msra.mxu0 %v770
    %870 = vmatprep.mubr.bf16.mxu0 %v431
    %871 = vmatmul.mubr.bf16.gmra.mrb[0].mxu0 %v430
    %v872 = vpop.f32.mrb[0].mxu0
    %v873 = vadd.f32 %v501, %v872
    %v874 = vpop.f32.mrb[0].mxu0
    %v875 = vadd.f32 %v505, %v874
    %v876 = vpop.f32.mrb[0].mxu0
    %v877 = vpop.f32.mrb[0].mxu0
    %878 = vdwg.mxu0
    %879 = vmatprep.subr.bf16.mxu0 %v713
    %880 = vmatpush1.bf16.msra.mxu0 %v712
    %881 = vmatprep.subr.bf16.mxu0 %v717
    %882 = vmatpush1.bf16.msra.mxu0 %v716
    %883 = vmatprep.subr.bf16.mxu0 %v721
    %884 = vmatpush1.bf16.msra.mxu0 %v720
    %885 = vmatprep.subr.bf16.mxu0 %v725
    %886 = vmatpush1.bf16.msra.mxu0 %v724
    %887 = vmatprep.subr.bf16.mxu0 %v729
    %888 = vmatpush1.bf16.msra.mxu0 %v728
    %889 = vmatprep.subr.bf16.mxu0 %v733
    %890 = vmatpush1.bf16.msra.mxu0 %v732
    %891 = vmatprep.subr.bf16.mxu0 %v737
    %892 = vmatpush1.bf16.msra.mxu0 %v736
    %893 = vmatprep.subr.bf16.mxu0 %v741
    %894 = vmatpush1.bf16.msra.mxu0 %v740
    %895 = vmatprep.subr.bf16.mxu0 %v745
    %896 = vmatpush1.bf16.msra.mxu0 %v744
    %897 = vmatprep.subr.bf16.mxu0 %v749
    %898 = vmatpush1.bf16.msra.mxu0 %v748
    %899 = vmatprep.subr.bf16.mxu0 %v753
    %900 = vmatpush1.bf16.msra.mxu0 %v752
    %901 = vmatprep.subr.bf16.mxu0 %v757
    %902 = vmatpush1.bf16.msra.mxu0 %v756
    %903 = vmatprep.subr.bf16.mxu0 %v761
    %904 = vmatpush1.bf16.msra.mxu0 %v760
    %905 = vmatprep.subr.bf16.mxu0 %v765
    %906 = vmatpush1.bf16.msra.mxu0 %v764
    %907 = vmatprep.subr.bf16.mxu0 %v769
    %908 = vmatpush1.bf16.msra.mxu0 %v768
    %909 = vmatprep.subr.bf16.mxu0 %v773
    %910 = vmatpush1.bf16.msra.mxu0 %v772
    %911 = vmatprep.mubr.bf16.mxu0 %v431
    %912 = vmatmul.mubr.bf16.gmra.mrb[0].mxu0 %v430
    %v913 = vpop.f32.mrb[0].mxu0
    %v914 = vadd.f32 %v509, %v913
    %v915 = vpop.f32.mrb[0].mxu0
    %v916 = vadd.f32 %v513, %v915
    %v917 = vpop.f32.mrb[0].mxu0
    %v918 = vpop.f32.mrb[0].mxu0
    %919 = vdwg.mxu0
    %v920 = vmul.f32 %v873, %v873
    %v921 = vmul.f32 %v875, %v875
    %v922 = vmul.f32 %v873, %v920
    %v923 = vmul.f32 %v875, %v921
    %v924 = vmul.f32 %v922, 0.044715
    %v925 = vmul.f32 %v923, 0.044715
    %v926 = vadd.f32 %v873, %v924
    %v927 = vadd.f32 %v875, %v925
    %v928 = vmul.f32 %v926, 0.7978846
    %v929 = vmul.f32 %v927, 0.7978846
    %v930 = vtanh.pop %v928
    %v931 = vtanh.pop %v929
    %v932 = vadd.f32 %v930, 1.0
    %v933 = vadd.f32 %v931, 1.0
    %v934 = vmul.f32 %v932, 0.5
    %v935 = vmul.f32 %v933, 0.5
    %v936 = vmul.f32 %v873, %v934
    %v937 = vmul.f32 %v875, %v935
    %v938 = vmin.f32 %v914, 0.0
    %v939 = vmin.f32 %v916, 0.0
    %v940 = vmul.f32 %v938, 1.442695
    %v941 = vpow.pop %v940
    %v942 = vmul.f32 %v939, 1.442695
    %v943 = vpow.pop %v942
    %v944 = vsub.f32 %v941, 1.0
    %v945 = vsub.f32 %v943, 1.0
    %v946 = vmul.f32 %v944, 1.6732632
    %v947 = vmul.f32 %v945, 1.6732632
    %vm948 = vcmp.gt.f32.partialorder %v914, 0.0
    %vm949 = vcmp.gt.f32.partialorder %v916, 0.0
    %v950 = vsel %vm948, %v914, %v946
    %v951 = vsel %vm949, %v916, %v947
    %v952 = vmul.f32 %v950, 1.050701
    %v953 = vmul.f32 %v951, 1.050701
    %v954 = vpack.c.bf16 %v936, %v936
    %v955 = vpack.c.bf16 %v937, %v937
    %v956 = vld [vmem:[#allocation16] sm:$0xf]
    %v957 = vld [vmem:[#allocation16 + $0x4] sm:$0xf]
    %v958 = vld [vmem:[#allocation16 + $0x8] sm:$0xf]
    %v959 = vld [vmem:[#allocation16 + $0xc] sm:$0xf]
    %v960 = vld [vmem:[#allocation16 + $0x10] sm:$0xf]
    %v961 = vld [vmem:[#allocation16 + $0x14] sm:$0xf]
    %v962 = vld [vmem:[#allocation16 + $0x18] sm:$0xf]
    %v963 = vld [vmem:[#allocation16 + $0x1c] sm:$0xf]
    %v964 = vld [vmem:[#allocation16 + $0x20] sm:$0xf]
    %v965 = vld [vmem:[#allocation16 + $0x24] sm:$0xf]
    %v966 = vld [vmem:[#allocation16 + $0x28] sm:$0xf]
    %v967 = vld [vmem:[#allocation16 + $0x2c] sm:$0xf]
    %v968 = vld [vmem:[#allocation16 + $0x30] sm:$0xf]
    %v969 = vld [vmem:[#allocation16 + $0x34] sm:$0xf]
    %v970 = vld [vmem:[#allocation16 + $0x38] sm:$0xf]
    %v971 = vld [vmem:[#allocation16 + $0x3c] sm:$0xf]
    %v972 = vld [vmem:[#allocation16 + $0x40] sm:$0xf]
    %v973 = vld [vmem:[#allocation16 + $0x44] sm:$0xf]
    %v974 = vld [vmem:[#allocation16 + $0x48] sm:$0xf]
    %v975 = vld [vmem:[#allocation16 + $0x4c] sm:$0xf]
    %v976 = vld [vmem:[#allocation16 + $0x50] sm:$0xf]
    %v977 = vld [vmem:[#allocation16 + $0x54] sm:$0xf]
    %v978 = vld [vmem:[#allocation16 + $0x58] sm:$0xf]
    %v979 = vld [vmem:[#allocation16 + $0x5c] sm:$0xf]
    %v980 = vld [vmem:[#allocation16 + $0x60] sm:$0xf]
    %v981 = vld [vmem:[#allocation16 + $0x64] sm:$0xf]
    %v982 = vld [vmem:[#allocation16 + $0x68] sm:$0xf]
    %v983 = vld [vmem:[#allocation16 + $0x6c] sm:$0xf]
    %v984 = vld [vmem:[#allocation16 + $0x70] sm:$0xf]
    %v985 = vld [vmem:[#allocation16 + $0x74] sm:$0xf]
    %v986 = vld [vmem:[#allocation16 + $0x78] sm:$0xf]
    %v987 = vld [vmem:[#allocation16 + $0x7c] sm:$0xf]
    %v988 = vld [vmem:[#allocation17] sm:$0x1]
    %v990 = vlaneseq
    %v991 = vshrl.u32 %v990, 7
    %v992 = vsub.s32 0, %v991
    %v993 = vrot.slane %v988, %v992
    %v1027 = vunpack.c.l.b16 %v956
    %v1028 = vunpack.c.l.b16 %v957
    %v1029 = vunpack.c.l.b16 %v958
    %v1030 = vunpack.c.l.b16 %v959
    %v1031 = vunpack.c.l.b16 %v960
    %v1032 = vunpack.c.l.b16 %v961
    %v1033 = vunpack.c.l.b16 %v962
    %v1034 = vunpack.c.l.b16 %v963
    %v1035 = vunpack.c.l.b16 %v964
    %v1036 = vunpack.c.l.b16 %v965
    %v1037 = vunpack.c.l.b16 %v966
    %v1038 = vunpack.c.l.b16 %v967
    %v1039 = vunpack.c.l.b16 %v968
    %v1040 = vunpack.c.l.b16 %v969
    %v1041 = vunpack.c.l.b16 %v970
    %v1042 = vunpack.c.l.b16 %v971
    %v1043 = vunpack.c.l.b16 %v972
    %v1044 = vunpack.c.l.b16 %v973
    %v1045 = vunpack.c.l.b16 %v974
    %v1046 = vunpack.c.l.b16 %v975
    %v1047 = vunpack.c.l.b16 %v976
    %v1048 = vunpack.c.l.b16 %v977
    %v1049 = vunpack.c.l.b16 %v978
    %v1050 = vunpack.c.l.b16 %v979
    %v1051 = vunpack.c.l.b16 %v980
    %v1052 = vunpack.c.l.b16 %v981
    %v1053 = vunpack.c.l.b16 %v982
    %v1054 = vunpack.c.l.b16 %v983
    %v1055 = vunpack.c.l.b16 %v984
    %v1056 = vunpack.c.l.b16 %v985
    %v1057 = vunpack.c.l.b16 %v986
    %v1058 = vunpack.c.l.b16 %v987
    %v1059 = vpack.c.b16 %v1028, %v1027
    %v1060 = vpack.c.b16 %v1030, %v1029
    %v1061 = vpack.c.b16 %v1032, %v1031
    %v1062 = vpack.c.b16 %v1034, %v1033
    %v1063 = vpack.c.b16 %v1036, %v1035
    %v1064 = vpack.c.b16 %v1038, %v1037
    %v1065 = vpack.c.b16 %v1040, %v1039
    %v1066 = vpack.c.b16 %v1042, %v1041
    %v1067 = vpack.c.b16 %v1044, %v1043
    %v1068 = vpack.c.b16 %v1046, %v1045
    %v1069 = vpack.c.b16 %v1048, %v1047
    %v1070 = vpack.c.b16 %v1050, %v1049
    %v1071 = vpack.c.b16 %v1052, %v1051
    %v1072 = vpack.c.b16 %v1054, %v1053
    %v1073 = vpack.c.b16 %v1056, %v1055
    %v1074 = vpack.c.b16 %v1058, %v1057
    %1091 = vmatprep.subr.bf16.mxu0 0
    %1092 = vmatpush1.bf16.msra.mxu0 %v1059
    %1093 = vmatprep.subr.bf16.mxu0 0
    %1094 = vmatpush1.bf16.msra.mxu0 %v1060
    %1095 = vmatprep.subr.bf16.mxu0 0
    %1096 = vmatpush1.bf16.msra.mxu0 %v1061
    %1097 = vmatprep.subr.bf16.mxu0 0
    %1098 = vmatpush1.bf16.msra.mxu0 %v1062
    %1099 = vmatprep.subr.bf16.mxu0 0
    %1100 = vmatpush1.bf16.msra.mxu0 %v1063
    %1101 = vmatprep.subr.bf16.mxu0 0
    %1102 = vmatpush1.bf16.msra.mxu0 %v1064
    %1103 = vmatprep.subr.bf16.mxu0 0
    %1104 = vmatpush1.bf16.msra.mxu0 %v1065
    %1105 = vmatprep.subr.bf16.mxu0 0
    %1106 = vmatpush1.bf16.msra.mxu0 %v1066
    %1107 = vmatprep.subr.bf16.mxu0 0
    %1108 = vmatpush1.bf16.msra.mxu0 %v1067
    %1109 = vmatprep.subr.bf16.mxu0 0
    %1110 = vmatpush1.bf16.msra.mxu0 %v1068
    %1111 = vmatprep.subr.bf16.mxu0 0
    %1112 = vmatpush1.bf16.msra.mxu0 %v1069
    %1113 = vmatprep.subr.bf16.mxu0 0
    %1114 = vmatpush1.bf16.msra.mxu0 %v1070
    %1115 = vmatprep.subr.bf16.mxu0 0
    %1116 = vmatpush1.bf16.msra.mxu0 %v1071
    %1117 = vmatprep.subr.bf16.mxu0 0
    %1118 = vmatpush1.bf16.msra.mxu0 %v1072
    %1119 = vmatprep.subr.bf16.mxu0 0
    %1120 = vmatpush1.bf16.msra.mxu0 %v1073
    %1121 = vmatprep.subr.bf16.mxu0 0
    %1122 = vmatpush1.bf16.msra.mxu0 %v1074
    %1123 = vmatprep.mubr.bf16.mxu0 %v955
    %1124 = vmatmul.mubr.bf16.gmra.mrb[0].mxu0 %v954
    %v1125 = vpop.f32.mrb[0].mxu0
    %v1126 = vadd.f32 %v993, %v1125
    %v1127 = vpop.f32.mrb[0].mxu0
    %v1128 = vpop.f32.mrb[0].mxu0
    %v1129 = vpop.f32.mrb[0].mxu0
    %1130 = vdwg.mxu0
    %v1131 = vmul.f32 %v1126, %v1126
    %v1132 = vmul.f32 %v1126, %v1131
    %v1133 = vmul.f32 %v1132, 0.044715
    %v1134 = vadd.f32 %v1126, %v1133
    %v1135 = vmul.f32 %v1134, 0.7978846
    %v1136 = vtanh.pop %v1135
    %v1137 = vadd.f32 %v1136, 1.0
    %v1138 = vmul.f32 %v1137, 0.5
    %v1139 = vmul.f32 %v1126, %v1138
    %v1140 = vpack.c.bf16 %v952, %v952
    %v1141 = vpack.c.bf16 %v953, %v953
    %v1142 = vld [vmem:[#allocation19] sm:$0xf]
    %v1143 = vld [vmem:[#allocation19 + $0x4] sm:$0xf]
    %v1144 = vld [vmem:[#allocation19 + $0x8] sm:$0xf]
    %v1145 = vld [vmem:[#allocation19 + $0xc] sm:$0xf]
    %v1146 = vld [vmem:[#allocation19 + $0x10] sm:$0xf]
    %v1147 = vld [vmem:[#allocation19 + $0x14] sm:$0xf]
    %v1148 = vld [vmem:[#allocation19 + $0x18] sm:$0xf]
    %v1149 = vld [vmem:[#allocation19 + $0x1c] sm:$0xf]
    %v1150 = vld [vmem:[#allocation19 + $0x20] sm:$0xf]
    %v1151 = vld [vmem:[#allocation19 + $0x24] sm:$0xf]
    %v1152 = vld [vmem:[#allocation19 + $0x28] sm:$0xf]
    %v1153 = vld [vmem:[#allocation19 + $0x2c] sm:$0xf]
    %v1154 = vld [vmem:[#allocation19 + $0x30] sm:$0xf]
    %v1155 = vld [vmem:[#allocation19 + $0x34] sm:$0xf]
    %v1156 = vld [vmem:[#allocation19 + $0x38] sm:$0xf]
    %v1157 = vld [vmem:[#allocation19 + $0x3c] sm:$0xf]
    %v1158 = vld [vmem:[#allocation19 + $0x40] sm:$0xf]
    %v1159 = vld [vmem:[#allocation19 + $0x44] sm:$0xf]
    %v1160 = vld [vmem:[#allocation19 + $0x48] sm:$0xf]
    %v1161 = vld [vmem:[#allocation19 + $0x4c] sm:$0xf]
    %v1162 = vld [vmem:[#allocation19 + $0x50] sm:$0xf]
    %v1163 = vld [vmem:[#allocation19 + $0x54] sm:$0xf]
    %v1164 = vld [vmem:[#allocation19 + $0x58] sm:$0xf]
    %v1165 = vld [vmem:[#allocation19 + $0x5c] sm:$0xf]
    %v1166 = vld [vmem:[#allocation20] sm:$0x1]
    %v1168 = vlaneseq
    %v1169 = vshrl.u32 %v1168, 7
    %v1170 = vsub.s32 0, %v1169
    %v1171 = vrot.slane %v1166, %v1170
    %v1197 = vunpack.c.l.b16 %v1142
    %v1198 = vunpack.c.l.b16 %v1143
    %v1199 = vunpack.c.l.b16 %v1144
    %v1200 = vunpack.c.l.b16 %v1145
    %v1201 = vunpack.c.l.b16 %v1146
    %v1202 = vunpack.c.l.b16 %v1147
    %v1203 = vunpack.c.l.b16 %v1148
    %v1204 = vunpack.c.l.b16 %v1149
    %v1205 = vunpack.c.l.b16 %v1150
    %v1206 = vunpack.c.l.b16 %v1151
    %v1207 = vunpack.c.l.b16 %v1152
    %v1208 = vunpack.c.l.b16 %v1153
    %v1209 = vunpack.c.l.b16 %v1154
    %v1210 = vunpack.c.l.b16 %v1155
    %v1211 = vunpack.c.l.b16 %v1156
    %v1212 = vunpack.c.l.b16 %v1157
    %v1213 = vunpack.c.l.b16 %v1158
    %v1214 = vunpack.c.l.b16 %v1159
    %v1215 = vunpack.c.l.b16 %v1160
    %v1216 = vunpack.c.l.b16 %v1161
    %v1217 = vunpack.c.l.b16 %v1162
    %v1218 = vunpack.c.l.b16 %v1163
    %v1219 = vunpack.c.l.b16 %v1164
    %v1220 = vunpack.c.l.b16 %v1165
    %v1221 = vpack.c.b16 %v1198, %v1197
    %v1222 = vpack.c.b16 %v1200, %v1199
    %v1223 = vpack.c.b16 %v1202, %v1201
    %v1224 = vpack.c.b16 %v1204, %v1203
    %v1225 = vpack.c.b16 %v1206, %v1205
    %v1226 = vpack.c.b16 %v1208, %v1207
    %v1227 = vpack.c.b16 %v1210, %v1209
    %v1228 = vpack.c.b16 %v1212, %v1211
    %v1229 = vpack.c.b16 %v1214, %v1213
    %v1230 = vpack.c.b16 %v1216, %v1215
    %v1231 = vpack.c.b16 %v1218, %v1217
    %v1232 = vpack.c.b16 %v1220, %v1219
    %vm1245 = vcmask 523264
    %v1247 = vsel %vm1245, %v1141, 0
    %1249 = vmatprep.subr.bf16.mxu0 0
    %1250 = vmatpush1.bf16.msra.mxu0 %v1221
    %1251 = vmatprep.subr.bf16.mxu0 0
    %1252 = vmatpush1.bf16.msra.mxu0 %v1222
    %1253 = vmatprep.subr.bf16.mxu0 0
    %1254 = vmatpush1.bf16.msra.mxu0 %v1223
    %1255 = vmatprep.subr.bf16.mxu0 0
    %1256 = vmatpush1.bf16.msra.mxu0 %v1224
    %1257 = vmatprep.subr.bf16.mxu0 0
    %1258 = vmatpush1.bf16.msra.mxu0 %v1225
    %1259 = vmatprep.subr.bf16.mxu0 0
    %1260 = vmatpush1.bf16.msra.mxu0 %v1226
    %1261 = vmatprep.subr.bf16.mxu0 0
    %1262 = vmatpush1.bf16.msra.mxu0 %v1227
    %1263 = vmatprep.subr.bf16.mxu0 0
    %1264 = vmatpush1.bf16.msra.mxu0 %v1228
    %1265 = vmatprep.subr.bf16.mxu0 0
    %1266 = vmatpush1.bf16.msra.mxu0 %v1229
    %1267 = vmatprep.subr.bf16.mxu0 0
    %1268 = vmatpush1.bf16.msra.mxu0 %v1230
    %1269 = vmatprep.subr.bf16.mxu0 0
    %1270 = vmatpush1.bf16.msra.mxu0 %v1231
    %1271 = vmatprep.subr.bf16.mxu0 0
    %1272 = vmatpush1.bf16.msra.mxu0 %v1232
    %1273 = vmatprep.subr.bf16.mxu0 0
    %1274 = vmatpush1.bf16.msra.mxu0 0
    %1275 = vmatprep.subr.bf16.mxu0 0
    %1276 = vmatpush1.bf16.msra.mxu0 0
    %1277 = vmatprep.subr.bf16.mxu0 0
    %1278 = vmatpush1.bf16.msra.mxu0 0
    %1279 = vmatprep.subr.bf16.mxu0 0
    %1280 = vmatpush1.bf16.msra.mxu0 0
    %1281 = vmatprep.mubr.bf16.mxu0 %v1247
    %1282 = vmatmul.mubr.bf16.gmra.mrb[0].mxu0 %v1140
    %v1283 = vpop.f32.mrb[0].mxu0
    %v1284 = vadd.f32 %v1171, %v1283
    %v1285 = vpop.f32.mrb[0].mxu0
    %v1286 = vpop.f32.mrb[0].mxu0
    %v1287 = vpop.f32.mrb[0].mxu0
    %1288 = vdwg.mxu0
    %v1289 = vmin.f32 %v1284, 0.0
    %v1290 = vmul.f32 %v1289, 1.442695
    %v1291 = vpow.pop %v1290
    %v1292 = vsub.f32 %v1291, 1.0
    %v1293 = vmul.f32 %v1292, 1.6732632
    %vm1294 = vcmp.gt.f32.partialorder %v1284, 0.0
    %v1295 = vsel %vm1294, %v1284, %v1293
    %v1296 = vmul.f32 %v1295, 1.050701
    %v1297 = vld [vmem:[#allocation11] sm:$0xff]
    %v1298 = vld [vmem:[#allocation11 + $0x8] sm:$0xff]
    %v1299 = vld [vmem:[#allocation13] sm:$0xff]
    %v1300 = vld [vmem:[#allocation13 + $0x8] sm:$0xff]
    %s1301 = smul.u32 4, 8
    %s1302 = smul.u32 %s1301, 32
    %s1303 = smul.u32 %s1302, 1
    %s1304 = sshll.u32 %s1303, 4
    %1305 = dma.done [#allocation5], %s1304
    %s1306 = sld [smem:[#allocation22]]
    %v1307 = vstv %s1306
    %v1308 = vmul.f32 %v1307, %v1297
    %v1309 = vmul.f32 %v1307, %v1298
    %s1310 = sld [smem:[#allocation22 + $0x80]]
    %v1311 = vstv %s1310
    %v1312 = vmul.f32 %v1311, %v428
    %v1313 = vmul.f32 %v1311, %v429
    %v1314 = vadd.f32 %v1308, %v1312
    %v1315 = vadd.f32 %v1309, %v1313
    %s1316 = sld [smem:[#allocation22 + $0x100]]
    %v1317 = vstv %s1316
    %v1318 = vmul.f32 %v1317, %v1299
    %v1319 = vmul.f32 %v1317, %v1300
    %v1320 = vadd.f32 %v1314, %v1318
    %v1321 = vadd.f32 %v1315, %v1319
    %s1322 = sld [smem:[#allocation22 + $0x180]]
    %v1323 = vstv %s1322
    %v1324 = vadd.f32 %v1320, %v1323
    %v1325 = vadd.f32 %v1321, %v1323
    %v1326 = vmin.f32 %v1324, 0.0
    %v1327 = vmin.f32 %v1325, 0.0
    %v1328 = vmul.f32 %v1326, 1.442695
    %v1329 = vpow.pop %v1328
    %v1330 = vmul.f32 %v1327, 1.442695
    %v1331 = vpow.pop %v1330
    %v1332 = vsub.f32 %v1329, 1.0
    %v1333 = vsub.f32 %v1331, 1.0
    %v1334 = vmul.f32 %v1332, 1.6732632
    %v1335 = vmul.f32 %v1333, 1.6732632
    %vm1336 = vcmp.gt.f32.partialorder %v1324, 0.0
    %vm1337 = vcmp.gt.f32.partialorder %v1325, 0.0
    %v1338 = vsel %vm1336, %v1324, %v1334
    %v1339 = vsel %vm1337, %v1325, %v1335
    %v1340 = vmul.f32 %v1338, 1.050701
    %v1341 = vmul.f32 %v1339, 1.050701
    %v1342 = vpack.c.bf16 %v1340, %v1340
    %v1343 = vpack.c.bf16 %v1341, %v1341
    %v1344 = vld [vmem:[#allocation2] sm:$0xff]
    %v1345 = vld [vmem:[#allocation2 + $0x8] sm:$0xff]
    %v1346 = vld [vmem:[#allocation2 + $0x10] sm:$0xff]
    %v1347 = vld [vmem:[#allocation2 + $0x18] sm:$0xff]
    %v1348 = vld [vmem:[#allocation2 + $0x20] sm:$0xff]
    %v1349 = vld [vmem:[#allocation2 + $0x28] sm:$0xff]
    %v1350 = vld [vmem:[#allocation2 + $0x30] sm:$0xff]
    %v1351 = vld [vmem:[#allocation2 + $0x38] sm:$0xff]
    %v1352 = vld [vmem:[#allocation2 + $0x40] sm:$0xff]
    %v1353 = vld [vmem:[#allocation2 + $0x48] sm:$0xff]
    %v1354 = vld [vmem:[#allocation2 + $0x50] sm:$0xff]
    %v1355 = vld [vmem:[#allocation2 + $0x58] sm:$0xff]
    %v1356 = vld [vmem:[#allocation2 + $0x60] sm:$0xff]
    %v1357 = vld [vmem:[#allocation2 + $0x68] sm:$0xff]
    %v1358 = vld [vmem:[#allocation2 + $0x70] sm:$0xff]
    %v1359 = vld [vmem:[#allocation2 + $0x78] sm:$0xff]
    %s1360 = sld [smem:[#allocation22 + $0x1]]
    %v1361 = vstv %s1360
    %v1362 = vmul.f32 %v1361, %v1297
    %v1363 = vmul.f32 %v1361, %v1298
    %s1364 = sld [smem:[#allocation22 + $0x81]]
    %v1365 = vstv %s1364
    %v1366 = vmul.f32 %v1365, %v428
    %v1367 = vmul.f32 %v1365, %v429
    %v1368 = vadd.f32 %v1362, %v1366
    %v1369 = vadd.f32 %v1363, %v1367
    %s1370 = sld [smem:[#allocation22 + $0x101]]
    %v1371 = vstv %s1370
    %v1372 = vmul.f32 %v1371, %v1299
    %v1373 = vmul.f32 %v1371, %v1300
    %v1374 = vadd.f32 %v1368, %v1372
    %v1375 = vadd.f32 %v1369, %v1373
    %s1376 = sld [smem:[#allocation22 + $0x181]]
    %v1377 = vstv %s1376
    %v1378 = vadd.f32 %v1374, %v1377
    %v1379 = vadd.f32 %v1375, %v1377
    %v1380 = vmin.f32 %v1378, 0.0
    %v1381 = vmin.f32 %v1379, 0.0
    %v1382 = vmul.f32 %v1380, 1.442695
    %v1383 = vpow.pop %v1382
    %v1384 = vmul.f32 %v1381, 1.442695
    %v1385 = vpow.pop %v1384
    %v1386 = vsub.f32 %v1383, 1.0
    %v1387 = vsub.f32 %v1385, 1.0
    %v1388 = vmul.f32 %v1386, 1.6732632
    %v1389 = vmul.f32 %v1387, 1.6732632
    %vm1390 = vcmp.gt.f32.partialorder %v1378, 0.0
    %vm1391 = vcmp.gt.f32.partialorder %v1379, 0.0
    %v1392 = vsel %vm1390, %v1378, %v1388
    %v1393 = vsel %vm1391, %v1379, %v1389
    %v1394 = vmul.f32 %v1392, 1.050701
    %v1395 = vmul.f32 %v1393, 1.050701
    %v1396 = vpack.c.bf16 %v1394, %v1394
    %v1397 = vpack.c.bf16 %v1395, %v1395
    %s1398 = scalar_lea.vmem [#allocation2], 128
    %v1399 = vld [vmem:[%s1398] sm:$0xff]
    %v1400 = vld [vmem:[%s1398 + $0x8] sm:$0xff]
    %v1401 = vld [vmem:[%s1398 + $0x10] sm:$0xff]
    %v1402 = vld [vmem:[%s1398 + $0x18] sm:$0xff]
    %v1403 = vld [vmem:[%s1398 + $0x20] sm:$0xff]
    %v1404 = vld [vmem:[%s1398 + $0x28] sm:$0xff]
    %v1405 = vld [vmem:[%s1398 + $0x30] sm:$0xff]
    %v1406 = vld [vmem:[%s1398 + $0x38] sm:$0xff]
    %v1407 = vld [vmem:[%s1398 + $0x40] sm:$0xff]
    %v1408 = vld [vmem:[%s1398 + $0x48] sm:$0xff]
    %v1409 = vld [vmem:[%s1398 + $0x50] sm:$0xff]
    %v1410 = vld [vmem:[%s1398 + $0x58] sm:$0xff]
    %v1411 = vld [vmem:[%s1398 + $0x60] sm:$0xff]
    %v1412 = vld [vmem:[%s1398 + $0x68] sm:$0xff]
    %v1413 = vld [vmem:[%s1398 + $0x70] sm:$0xff]
    %v1414 = vld [vmem:[%s1398 + $0x78] sm:$0xff]
    %1415 = vmatprep.subr.bf16.mxu0 0
    %1416 = vmatpush1.bf16.msra.mxu0 %v1399
    %1417 = vmatprep.subr.bf16.mxu0 0
    %1418 = vmatpush1.bf16.msra.mxu0 %v1400
    %1419 = vmatprep.subr.bf16.mxu0 0
    %1420 = vmatpush1.bf16.msra.mxu0 %v1401
    %1421 = vmatprep.subr.bf16.mxu0 0
    %1422 = vmatpush1.bf16.msra.mxu0 %v1402
    %1423 = vmatprep.subr.bf16.mxu0 0
    %1424 = vmatpush1.bf16.msra.mxu0 %v1403
    %1425 = vmatprep.subr.bf16.mxu0 0
    %1426 = vmatpush1.bf16.msra.mxu0 %v1404
    %1427 = vmatprep.subr.bf16.mxu0 0
    %1428 = vmatpush1.bf16.msra.mxu0 %v1405
    %1429 = vmatprep.subr.bf16.mxu0 0
    %1430 = vmatpush1.bf16.msra.mxu0 %v1406
    %1431 = vmatprep.subr.bf16.mxu0 0
    %1432 = vmatpush1.bf16.msra.mxu0 %v1407
    %1433 = vmatprep.subr.bf16.mxu0 0
    %1434 = vmatpush1.bf16.msra.mxu0 %v1408
    %1435 = vmatprep.subr.bf16.mxu0 0
    %1436 = vmatpush1.bf16.msra.mxu0 %v1409
    %1437 = vmatprep.subr.bf16.mxu0 0
    %1438 = vmatpush1.bf16.msra.mxu0 %v1410
    %1439 = vmatprep.subr.bf16.mxu0 0
    %1440 = vmatpush1.bf16.msra.mxu0 %v1411
    %1441 = vmatprep.subr.bf16.mxu0 0
    %1442 = vmatpush1.bf16.msra.mxu0 %v1412
    %1443 = vmatprep.subr.bf16.mxu0 0
    %1444 = vmatpush1.bf16.msra.mxu0 %v1413
    %1445 = vmatprep.subr.bf16.mxu0 0
    %1446 = vmatpush1.bf16.msra.mxu0 %v1414
    %1447 = vmatprep.mubr.bf16.mxu0 %v1397
    %1448 = vmatmul.mubr.bf16.gmra.mrb[0].mxu0 %v1396
    %v1449 = vpop.f32.mrb[0].mxu0
    %v1450 = vadd.f32 0.0, %v1449
    %v1451 = vpop.f32.mrb[0].mxu0
    %v1452 = vpop.f32.mrb[0].mxu0
    %v1453 = vpop.f32.mrb[0].mxu0
    %1454 = vdwg.mxu0
    %1455 = vmatprep.subr.bf16.mxu0 0
    %1456 = vmatpush1.bf16.msra.mxu0 %v1344
    %1457 = vmatprep.subr.bf16.mxu0 0
    %1458 = vmatpush1.bf16.msra.mxu0 %v1345
    %1459 = vmatprep.subr.bf16.mxu0 0
    %1460 = vmatpush1.bf16.msra.mxu0 %v1346
    %1461 = vmatprep.subr.bf16.mxu0 0
    %1462 = vmatpush1.bf16.msra.mxu0 %v1347
    %1463 = vmatprep.subr.bf16.mxu0 0
    %1464 = vmatpush1.bf16.msra.mxu0 %v1348
    %1465 = vmatprep.subr.bf16.mxu0 0
    %1466 = vmatpush1.bf16.msra.mxu0 %v1349
    %1467 = vmatprep.subr.bf16.mxu0 0
    %1468 = vmatpush1.bf16.msra.mxu0 %v1350
    %1469 = vmatprep.subr.bf16.mxu0 0
    %1470 = vmatpush1.bf16.msra.mxu0 %v1351
    %1471 = vmatprep.subr.bf16.mxu0 0
    %1472 = vmatpush1.bf16.msra.mxu0 %v1352
    %1473 = vmatprep.subr.bf16.mxu0 0
    %1474 = vmatpush1.bf16.msra.mxu0 %v1353
    %1475 = vmatprep.subr.bf16.mxu0 0
    %1476 = vmatpush1.bf16.msra.mxu0 %v1354
    %1477 = vmatprep.subr.bf16.mxu0 0
    %1478 = vmatpush1.bf16.msra.mxu0 %v1355
    %1479 = vmatprep.subr.bf16.mxu0 0
    %1480 = vmatpush1.bf16.msra.mxu0 %v1356
    %1481 = vmatprep.subr.bf16.mxu0 0
    %1482 = vmatpush1.bf16.msra.mxu0 %v1357
    %1483 = vmatprep.subr.bf16.mxu0 0
    %1484 = vmatpush1.bf16.msra.mxu0 %v1358
    %1485 = vmatprep.subr.bf16.mxu0 0
    %1486 = vmatpush1.bf16.msra.mxu0 %v1359
    %1487 = vmatprep.mubr.bf16.mxu0 %v1343
    %1488 = vmatmul.mubr.bf16.gmra.mrb[0].mxu0 %v1342
    %v1489 = vpop.f32.mrb[0].mxu0
    %v1490 = vadd.f32 %v1450, %v1489
    %v1491 = vpop.f32.mrb[0].mxu0
    %v1492 = vpop.f32.mrb[0].mxu0
    %v1493 = vpop.f32.mrb[0].mxu0
    %1494 = vdwg.mxu0
    %s1495 = sld [smem:[#allocation22 + $0x2]]
    %v1496 = vstv %s1495
    %v1497 = vmul.f32 %v1496, %v1297
    %v1498 = vmul.f32 %v1496, %v1298
    %s1499 = sld [smem:[#allocation22 + $0x82]]
    %v1500 = vstv %s1499
    %v1501 = vmul.f32 %v1500, %v428
    %v1502 = vmul.f32 %v1500, %v429
    %v1503 = vadd.f32 %v1497, %v1501
    %v1504 = vadd.f32 %v1498, %v1502
    %s1505 = sld [smem:[#allocation22 + $0x102]]
    %v1506 = vstv %s1505
    %v1507 = vmul.f32 %v1506, %v1299
    %v1508 = vmul.f32 %v1506, %v1300
    %v1509 = vadd.f32 %v1503, %v1507
    %v1510 = vadd.f32 %v1504, %v1508
    %s1511 = sld [smem:[#allocation22 + $0x182]]
    %v1512 = vstv %s1511
    %v1513 = vadd.f32 %v1509, %v1512
    %v1514 = vadd.f32 %v1510, %v1512
    %v1515 = vmin.f32 %v1513, 0.0
    %v1516 = vmin.f32 %v1514, 0.0
    %v1517 = vmul.f32 %v1515, 1.442695
    %v1518 = vpow.pop %v1517
    %v1519 = vmul.f32 %v1516, 1.442695
    %v1520 = vpow.pop %v1519
    %v1521 = vsub.f32 %v1518, 1.0
    %v1522 = vsub.f32 %v1520, 1.0
    %v1523 = vmul.f32 %v1521, 1.6732632
    %v1524 = vmul.f32 %v1522, 1.6732632
    %vm1525 = vcmp.gt.f32.partialorder %v1513, 0.0
    %vm1526 = vcmp.gt.f32.partialorder %v1514, 0.0
    %v1527 = vsel %vm1525, %v1513, %v1523
    %v1528 = vsel %vm1526, %v1514, %v1524
    %v1529 = vmul.f32 %v1527, 1.050701
    %v1530 = vmul.f32 %v1528, 1.050701
    %v1531 = vpack.c.bf16 %v1529, %v1529
    %v1532 = vpack.c.bf16 %v1530, %v1530
    %s1533 = scalar_lea.vmem [#allocation2], 256
    %v1534 = vld [vmem:[%s1533] sm:$0xff]
    %v1535 = vld [vmem:[%s1533 + $0x8] sm:$0xff]
    %v1536 = vld [vmem:[%s1533 + $0x10] sm:$0xff]
    %v1537 = vld [vmem:[%s1533 + $0x18] sm:$0xff]
    %v1538 = vld [vmem:[%s1533 + $0x20] sm:$0xff]
    %v1539 = vld [vmem:[%s1533 + $0x28] sm:$0xff]
    %v1540 = vld [vmem:[%s1533 + $0x30] sm:$0xff]
    %v1541 = vld [vmem:[%s1533 + $0x38] sm:$0xff]
    %v1542 = vld [vmem:[%s1533 + $0x40] sm:$0xff]
    %v1543 = vld [vmem:[%s1533 + $0x48] sm:$0xff]
    %v1544 = vld [vmem:[%s1533 + $0x50] sm:$0xff]
    %v1545 = vld [vmem:[%s1533 + $0x58] sm:$0xff]
    %v1546 = vld [vmem:[%s1533 + $0x60] sm:$0xff]
    %v1547 = vld [vmem:[%s1533 + $0x68] sm:$0xff]
    %v1548 = vld [vmem:[%s1533 + $0x70] sm:$0xff]
    %v1549 = vld [vmem:[%s1533 + $0x78] sm:$0xff]
    %1550 = vmatprep.subr.bf16.mxu0 0
    %1551 = vmatpush1.bf16.msra.mxu0 %v1534
    %1552 = vmatprep.subr.bf16.mxu0 0
    %1553 = vmatpush1.bf16.msra.mxu0 %v1535
    %1554 = vmatprep.subr.bf16.mxu0 0
    %1555 = vmatpush1.bf16.msra.mxu0 %v1536
    %1556 = vmatprep.subr.bf16.mxu0 0
    %1557 = vmatpush1.bf16.msra.mxu0 %v1537
    %1558 = vmatprep.subr.bf16.mxu0 0
    %1559 = vmatpush1.bf16.msra.mxu0 %v1538
    %1560 = vmatprep.subr.bf16.mxu0 0
    %1561 = vmatpush1.bf16.msra.mxu0 %v1539
    %1562 = vmatprep.subr.bf16.mxu0 0
    %1563 = vmatpush1.bf16.msra.mxu0 %v1540
    %1564 = vmatprep.subr.bf16.mxu0 0
    %1565 = vmatpush1.bf16.msra.mxu0 %v1541
    %1566 = vmatprep.subr.bf16.mxu0 0
    %1567 = vmatpush1.bf16.msra.mxu0 %v1542
    %1568 = vmatprep.subr.bf16.mxu0 0
    %1569 = vmatpush1.bf16.msra.mxu0 %v1543
    %1570 = vmatprep.subr.bf16.mxu0 0
    %1571 = vmatpush1.bf16.msra.mxu0 %v1544
    %1572 = vmatprep.subr.bf16.mxu0 0
    %1573 = vmatpush1.bf16.msra.mxu0 %v1545
    %1574 = vmatprep.subr.bf16.mxu0 0
    %1575 = vmatpush1.bf16.msra.mxu0 %v1546
    %1576 = vmatprep.subr.bf16.mxu0 0
    %1577 = vmatpush1.bf16.msra.mxu0 %v1547
    %1578 = vmatprep.subr.bf16.mxu0 0
    %1579 = vmatpush1.bf16.msra.mxu0 %v1548
    %1580 = vmatprep.subr.bf16.mxu0 0
    %1581 = vmatpush1.bf16.msra.mxu0 %v1549
    %1582 = vmatprep.mubr.bf16.mxu0 %v1532
    %1583 = vmatmul.mubr.bf16.gmra.mrb[0].mxu0 %v1531
    %v1584 = vpop.f32.mrb[0].mxu0
    %v1585 = vadd.f32 0.0, %v1584
    %v1586 = vpop.f32.mrb[0].mxu0
    %v1587 = vpop.f32.mrb[0].mxu0
    %v1588 = vpop.f32.mrb[0].mxu0
    %1589 = vdwg.mxu0
    %v1590 = vadd.f32 %v1490, %v1585
    %s1591 = sld [smem:[#allocation22 + $0x3]]
    %v1592 = vstv %s1591
    %v1593 = vmul.f32 %v1592, %v1297
    %v1594 = vmul.f32 %v1592, %v1298
    %s1595 = sld [smem:[#allocation22 + $0x83]]
    %v1596 = vstv %s1595
    %v1597 = vmul.f32 %v1596, %v428
    %v1598 = vmul.f32 %v1596, %v429
    %v1599 = vadd.f32 %v1593, %v1597
    %v1600 = vadd.f32 %v1594, %v1598
    %s1601 = sld [smem:[#allocation22 + $0x103]]
    %v1602 = vstv %s1601
    %v1603 = vmul.f32 %v1602, %v1299
    %v1604 = vmul.f32 %v1602, %v1300
    %v1605 = vadd.f32 %v1599, %v1603
    %v1606 = vadd.f32 %v1600, %v1604
    %s1607 = sld [smem:[#allocation22 + $0x183]]
    %v1608 = vstv %s1607
    %v1609 = vadd.f32 %v1605, %v1608
    %v1610 = vadd.f32 %v1606, %v1608
    %v1611 = vmin.f32 %v1609, 0.0
    %v1612 = vmin.f32 %v1610, 0.0
    %v1613 = vmul.f32 %v1611, 1.442695
    %v1614 = vpow.pop %v1613
    %v1615 = vmul.f32 %v1612, 1.442695
    %v1616 = vpow.pop %v1615
    %v1617 = vsub.f32 %v1614, 1.0
    %v1618 = vsub.f32 %v1616, 1.0
    %v1619 = vmul.f32 %v1617, 1.6732632
    %v1620 = vmul.f32 %v1618, 1.6732632
    %vm1621 = vcmp.gt.f32.partialorder %v1609, 0.0
    %vm1622 = vcmp.gt.f32.partialorder %v1610, 0.0
    %v1623 = vsel %vm1621, %v1609, %v1619
    %v1624 = vsel %vm1622, %v1610, %v1620
    %v1625 = vmul.f32 %v1623, 1.050701
    %v1626 = vmul.f32 %v1624, 1.050701
    %v1627 = vpack.c.bf16 %v1625, %v1625
    %v1628 = vpack.c.bf16 %v1626, %v1626
    %s1629 = scalar_lea.vmem [#allocation2], 384
    %v1630 = vld [vmem:[%s1629] sm:$0xff]
    %v1631 = vld [vmem:[%s1629 + $0x8] sm:$0xff]
    %v1632 = vld [vmem:[%s1629 + $0x10] sm:$0xff]
    %v1633 = vld [vmem:[%s1629 + $0x18] sm:$0xff]
    %v1634 = vld [vmem:[%s1629 + $0x20] sm:$0xff]
    %v1635 = vld [vmem:[%s1629 + $0x28] sm:$0xff]
    %v1636 = vld [vmem:[%s1629 + $0x30] sm:$0xff]
    %v1637 = vld [vmem:[%s1629 + $0x38] sm:$0xff]
    %v1638 = vld [vmem:[%s1629 + $0x40] sm:$0xff]
    %v1639 = vld [vmem:[%s1629 + $0x48] sm:$0xff]
    %v1640 = vld [vmem:[%s1629 + $0x50] sm:$0xff]
    %v1641 = vld [vmem:[%s1629 + $0x58] sm:$0xff]
    %v1642 = vld [vmem:[%s1629 + $0x60] sm:$0xff]
    %v1643 = vld [vmem:[%s1629 + $0x68] sm:$0xff]
    %v1644 = vld [vmem:[%s1629 + $0x70] sm:$0xff]
    %v1645 = vld [vmem:[%s1629 + $0x78] sm:$0xff]
    %1646 = vmatprep.subr.bf16.mxu0 0
    %1647 = vmatpush1.bf16.msra.mxu0 %v1630
    %1648 = vmatprep.subr.bf16.mxu0 0
    %1649 = vmatpush1.bf16.msra.mxu0 %v1631
    %1650 = vmatprep.subr.bf16.mxu0 0
    %1651 = vmatpush1.bf16.msra.mxu0 %v1632
    %1652 = vmatprep.subr.bf16.mxu0 0
    %1653 = vmatpush1.bf16.msra.mxu0 %v1633
    %1654 = vmatprep.subr.bf16.mxu0 0
    %1655 = vmatpush1.bf16.msra.mxu0 %v1634
    %1656 = vmatprep.subr.bf16.mxu0 0
    %1657 = vmatpush1.bf16.msra.mxu0 %v1635
    %1658 = vmatprep.subr.bf16.mxu0 0
    %1659 = vmatpush1.bf16.msra.mxu0 %v1636
    %1660 = vmatprep.subr.bf16.mxu0 0
    %1661 = vmatpush1.bf16.msra.mxu0 %v1637
    %1662 = vmatprep.subr.bf16.mxu0 0
    %1663 = vmatpush1.bf16.msra.mxu0 %v1638
    %1664 = vmatprep.subr.bf16.mxu0 0
    %1665 = vmatpush1.bf16.msra.mxu0 %v1639
    %1666 = vmatprep.subr.bf16.mxu0 0
    %1667 = vmatpush1.bf16.msra.mxu0 %v1640
    %1668 = vmatprep.subr.bf16.mxu0 0
    %1669 = vmatpush1.bf16.msra.mxu0 %v1641
    %1670 = vmatprep.subr.bf16.mxu0 0
    %1671 = vmatpush1.bf16.msra.mxu0 %v1642
    %1672 = vmatprep.subr.bf16.mxu0 0
    %1673 = vmatpush1.bf16.msra.mxu0 %v1643
    %1674 = vmatprep.subr.bf16.mxu0 0
    %1675 = vmatpush1.bf16.msra.mxu0 %v1644
    %1676 = vmatprep.subr.bf16.mxu0 0
    %1677 = vmatpush1.bf16.msra.mxu0 %v1645
    %1678 = vmatprep.mubr.bf16.mxu0 %v1628
    %1679 = vmatmul.mubr.bf16.gmra.mrb[0].mxu0 %v1627
    %v1680 = vpop.f32.mrb[0].mxu0
    %v1681 = vadd.f32 0.0, %v1680
    %v1682 = vpop.f32.mrb[0].mxu0
    %v1683 = vpop.f32.mrb[0].mxu0
    %v1684 = vpop.f32.mrb[0].mxu0
    %1685 = vdwg.mxu0
    %v1686 = vadd.f32 %v1590, %v1681
    %s1687 = sld [smem:[#allocation22 + $0x4]]
    %v1688 = vstv %s1687
    %v1689 = vmul.f32 %v1688, %v1297
    %v1690 = vmul.f32 %v1688, %v1298
    %s1691 = sld [smem:[#allocation22 + $0x84]]
    %v1692 = vstv %s1691
    %v1693 = vmul.f32 %v1692, %v428
    %v1694 = vmul.f32 %v1692, %v429
    %v1695 = vadd.f32 %v1689, %v1693
    %v1696 = vadd.f32 %v1690, %v1694
    %s1697 = sld [smem:[#allocation22 + $0x104]]
    %v1698 = vstv %s1697
    %v1699 = vmul.f32 %v1698, %v1299
    %v1700 = vmul.f32 %v1698, %v1300
    %v1701 = vadd.f32 %v1695, %v1699
    %v1702 = vadd.f32 %v1696, %v1700
    %s1703 = sld [smem:[#allocation22 + $0x184]]
    %v1704 = vstv %s1703
    %v1705 = vadd.f32 %v1701, %v1704
    %v1706 = vadd.f32 %v1702, %v1704
    %v1707 = vmin.f32 %v1705, 0.0
    %v1708 = vmin.f32 %v1706, 0.0
    %v1709 = vmul.f32 %v1707, 1.442695
    %v1710 = vpow.pop %v1709
    %v1711 = vmul.f32 %v1708, 1.442695
    %v1712 = vpow.pop %v1711
    %v1713 = vsub.f32 %v1710, 1.0
    %v1714 = vsub.f32 %v1712, 1.0
    %v1715 = vmul.f32 %v1713, 1.6732632
    %v1716 = vmul.f32 %v1714, 1.6732632
    %vm1717 = vcmp.gt.f32.partialorder %v1705, 0.0
    %vm1718 = vcmp.gt.f32.partialorder %v1706, 0.0
    %v1719 = vsel %vm1717, %v1705, %v1715
    %v1720 = vsel %vm1718, %v1706, %v1716
    %v1721 = vmul.f32 %v1719, 1.050701
    %v1722 = vmul.f32 %v1720, 1.050701
    %v1723 = vpack.c.bf16 %v1721, %v1721
    %v1724 = vpack.c.bf16 %v1722, %v1722
    %s1725 = scalar_lea.vmem [#allocation2], 512
    %v1726 = vld [vmem:[%s1725] sm:$0xff]
    %v1727 = vld [vmem:[%s1725 + $0x8] sm:$0xff]
    %v1728 = vld [vmem:[%s1725 + $0x10] sm:$0xff]
    %v1729 = vld [vmem:[%s1725 + $0x18] sm:$0xff]
    %v1730 = vld [vmem:[%s1725 + $0x20] sm:$0xff]
    %v1731 = vld [vmem:[%s1725 + $0x28] sm:$0xff]
    %v1732 = vld [vmem:[%s1725 + $0x30] sm:$0xff]
    %v1733 = vld [vmem:[%s1725 + $0x38] sm:$0xff]
    %v1734 = vld [vmem:[%s1725 + $0x40] sm:$0xff]
    %v1735 = vld [vmem:[%s1725 + $0x48] sm:$0xff]
    %v1736 = vld [vmem:[%s1725 + $0x50] sm:$0xff]
    %v1737 = vld [vmem:[%s1725 + $0x58] sm:$0xff]
    %v1738 = vld [vmem:[%s1725 + $0x60] sm:$0xff]
    %v1739 = vld [vmem:[%s1725 + $0x68] sm:$0xff]
    %v1740 = vld [vmem:[%s1725 + $0x70] sm:$0xff]
    %v1741 = vld [vmem:[%s1725 + $0x78] sm:$0xff]
    %1742 = vmatprep.subr.bf16.mxu0 0
    %1743 = vmatpush1.bf16.msra.mxu0 %v1726
    %1744 = vmatprep.subr.bf16.mxu0 0
    %1745 = vmatpush1.bf16.msra.mxu0 %v1727
    %1746 = vmatprep.subr.bf16.mxu0 0
    %1747 = vmatpush1.bf16.msra.mxu0 %v1728
    %1748 = vmatprep.subr.bf16.mxu0 0
    %1749 = vmatpush1.bf16.msra.mxu0 %v1729
    %1750 = vmatprep.subr.bf16.mxu0 0
    %1751 = vmatpush1.bf16.msra.mxu0 %v1730
    %1752 = vmatprep.subr.bf16.mxu0 0
    %1753 = vmatpush1.bf16.msra.mxu0 %v1731
    %1754 = vmatprep.subr.bf16.mxu0 0
    %1755 = vmatpush1.bf16.msra.mxu0 %v1732
    %1756 = vmatprep.subr.bf16.mxu0 0
    %1757 = vmatpush1.bf16.msra.mxu0 %v1733
    %1758 = vmatprep.subr.bf16.mxu0 0
    %1759 = vmatpush1.bf16.msra.mxu0 %v1734
    %1760 = vmatprep.subr.bf16.mxu0 0
    %1761 = vmatpush1.bf16.msra.mxu0 %v1735
    %1762 = vmatprep.subr.bf16.mxu0 0
    %1763 = vmatpush1.bf16.msra.mxu0 %v1736
    %1764 = vmatprep.subr.bf16.mxu0 0
    %1765 = vmatpush1.bf16.msra.mxu0 %v1737
    %1766 = vmatprep.subr.bf16.mxu0 0
    %1767 = vmatpush1.bf16.msra.mxu0 %v1738
    %1768 = vmatprep.subr.bf16.mxu0 0
    %1769 = vmatpush1.bf16.msra.mxu0 %v1739
    %1770 = vmatprep.subr.bf16.mxu0 0
    %1771 = vmatpush1.bf16.msra.mxu0 %v1740
    %1772 = vmatprep.subr.bf16.mxu0 0
    %1773 = vmatpush1.bf16.msra.mxu0 %v1741
    %1774 = vmatprep.mubr.bf16.mxu0 %v1724
    %1775 = vmatmul.mubr.bf16.gmra.mrb[0].mxu0 %v1723
    %v1776 = vpop.f32.mrb[0].mxu0
    %v1777 = vadd.f32 0.0, %v1776
    %v1778 = vpop.f32.mrb[0].mxu0
    %v1779 = vpop.f32.mrb[0].mxu0
    %v1780 = vpop.f32.mrb[0].mxu0
    %1781 = vdwg.mxu0
    %v1782 = vadd.f32 %v1686, %v1777
    %s1783 = sld [smem:[#allocation22 + $0x5]]
    %v1784 = vstv %s1783
    %v1785 = vmul.f32 %v1784, %v1297
    %v1786 = vmul.f32 %v1784, %v1298
    %s1787 = sld [smem:[#allocation22 + $0x85]]
    %v1788 = vstv %s1787
    %v1789 = vmul.f32 %v1788, %v428
    %v1790 = vmul.f32 %v1788, %v429
    %v1791 = vadd.f32 %v1785, %v1789
    %v1792 = vadd.f32 %v1786, %v1790
    %s1793 = sld [smem:[#allocation22 + $0x105]]
    %v1794 = vstv %s1793
    %v1795 = vmul.f32 %v1794, %v1299
    %v1796 = vmul.f32 %v1794, %v1300
    %v1797 = vadd.f32 %v1791, %v1795
    %v1798 = vadd.f32 %v1792, %v1796
    %s1799 = sld [smem:[#allocation22 + $0x185]]
    %v1800 = vstv %s1799
    %v1801 = vadd.f32 %v1797, %v1800
    %v1802 = vadd.f32 %v1798, %v1800
    %v1803 = vmin.f32 %v1801, 0.0
    %v1804 = vmin.f32 %v1802, 0.0
    %v1805 = vmul.f32 %v1803, 1.442695
    %v1806 = vpow.pop %v1805
    %v1807 = vmul.f32 %v1804, 1.442695
    %v1808 = vpow.pop %v1807
    %v1809 = vsub.f32 %v1806, 1.0
    %v1810 = vsub.f32 %v1808, 1.0
    %v1811 = vmul.f32 %v1809, 1.6732632
    %v1812 = vmul.f32 %v1810, 1.6732632
    %vm1813 = vcmp.gt.f32.partialorder %v1801, 0.0
    %vm1814 = vcmp.gt.f32.partialorder %v1802, 0.0
    %v1815 = vsel %vm1813, %v1801, %v1811
    %v1816 = vsel %vm1814, %v1802, %v1812
    %v1817 = vmul.f32 %v1815, 1.050701
    %v1818 = vmul.f32 %v1816, 1.050701
    %v1819 = vpack.c.bf16 %v1817, %v1817
    %v1820 = vpack.c.bf16 %v1818, %v1818
    %s1821 = scalar_lea.vmem [#allocation2], 640
    %v1822 = vld [vmem:[%s1821] sm:$0xff]
    %v1823 = vld [vmem:[%s1821 + $0x8] sm:$0xff]
    %v1824 = vld [vmem:[%s1821 + $0x10] sm:$0xff]
    %v1825 = vld [vmem:[%s1821 + $0x18] sm:$0xff]
    %v1826 = vld [vmem:[%s1821 + $0x20] sm:$0xff]
    %v1827 = vld [vmem:[%s1821 + $0x28] sm:$0xff]
    %v1828 = vld [vmem:[%s1821 + $0x30] sm:$0xff]
    %v1829 = vld [vmem:[%s1821 + $0x38] sm:$0xff]
    %v1830 = vld [vmem:[%s1821 + $0x40] sm:$0xff]
    %v1831 = vld [vmem:[%s1821 + $0x48] sm:$0xff]
    %v1832 = vld [vmem:[%s1821 + $0x50] sm:$0xff]
    %v1833 = vld [vmem:[%s1821 + $0x58] sm:$0xff]
    %v1834 = vld [vmem:[%s1821 + $0x60] sm:$0xff]
    %v1835 = vld [vmem:[%s1821 + $0x68] sm:$0xff]
    %v1836 = vld [vmem:[%s1821 + $0x70] sm:$0xff]
    %v1837 = vld [vmem:[%s1821 + $0x78] sm:$0xff]
    %1838 = vmatprep.subr.bf16.mxu0 0
    %1839 = vmatpush1.bf16.msra.mxu0 %v1822
    %1840 = vmatprep.subr.bf16.mxu0 0
    %1841 = vmatpush1.bf16.msra.mxu0 %v1823
    %1842 = vmatprep.subr.bf16.mxu0 0
    %1843 = vmatpush1.bf16.msra.mxu0 %v1824
    %1844 = vmatprep.subr.bf16.mxu0 0
    %1845 = vmatpush1.bf16.msra.mxu0 %v1825
    %1846 = vmatprep.subr.bf16.mxu0 0
    %1847 = vmatpush1.bf16.msra.mxu0 %v1826
    %1848 = vmatprep.subr.bf16.mxu0 0
    %1849 = vmatpush1.bf16.msra.mxu0 %v1827
    %1850 = vmatprep.subr.bf16.mxu0 0
    %1851 = vmatpush1.bf16.msra.mxu0 %v1828
    %1852 = vmatprep.subr.bf16.mxu0 0
    %1853 = vmatpush1.bf16.msra.mxu0 %v1829
    %1854 = vmatprep.subr.bf16.mxu0 0
    %1855 = vmatpush1.bf16.msra.mxu0 %v1830
    %1856 = vmatprep.subr.bf16.mxu0 0
    %1857 = vmatpush1.bf16.msra.mxu0 %v1831
    %1858 = vmatprep.subr.bf16.mxu0 0
    %1859 = vmatpush1.bf16.msra.mxu0 %v1832
    %1860 = vmatprep.subr.bf16.mxu0 0
    %1861 = vmatpush1.bf16.msra.mxu0 %v1833
    %1862 = vmatprep.subr.bf16.mxu0 0
    %1863 = vmatpush1.bf16.msra.mxu0 %v1834
    %1864 = vmatprep.subr.bf16.mxu0 0
    %1865 = vmatpush1.bf16.msra.mxu0 %v1835
    %1866 = vmatprep.subr.bf16.mxu0 0
    %1867 = vmatpush1.bf16.msra.mxu0 %v1836
    %1868 = vmatprep.subr.bf16.mxu0 0
    %1869 = vmatpush1.bf16.msra.mxu0 %v1837
    %1870 = vmatprep.mubr.bf16.mxu0 %v1820
    %1871 = vmatmul.mubr.bf16.gmra.mrb[0].mxu0 %v1819
    %v1872 = vpop.f32.mrb[0].mxu0
    %v1873 = vadd.f32 0.0, %v1872
    %v1874 = vpop.f32.mrb[0].mxu0
    %v1875 = vpop.f32.mrb[0].mxu0
    %v1876 = vpop.f32.mrb[0].mxu0
    %1877 = vdwg.mxu0
    %v1878 = vadd.f32 %v1782, %v1873
    %s1879 = sld [smem:[#allocation22 + $0x6]]
    %v1880 = vstv %s1879
    %v1881 = vmul.f32 %v1880, %v1297
    %v1882 = vmul.f32 %v1880, %v1298
    %s1883 = sld [smem:[#allocation22 + $0x86]]
    %v1884 = vstv %s1883
    %v1885 = vmul.f32 %v1884, %v428
    %v1886 = vmul.f32 %v1884, %v429
    %v1887 = vadd.f32 %v1881, %v1885
    %v1888 = vadd.f32 %v1882, %v1886
    %s1889 = sld [smem:[#allocation22 + $0x106]]
    %v1890 = vstv %s1889
    %v1891 = vmul.f32 %v1890, %v1299
    %v1892 = vmul.f32 %v1890, %v1300
    %v1893 = vadd.f32 %v1887, %v1891
    %v1894 = vadd.f32 %v1888, %v1892
    %s1895 = sld [smem:[#allocation22 + $0x186]]
    %v1896 = vstv %s1895
    %v1897 = vadd.f32 %v1893, %v1896
    %v1898 = vadd.f32 %v1894, %v1896
    %v1899 = vmin.f32 %v1897, 0.0
    %v1900 = vmin.f32 %v1898, 0.0
    %v1901 = vmul.f32 %v1899, 1.442695
    %v1902 = vpow.pop %v1901
    %v1903 = vmul.f32 %v1900, 1.442695
    %v1904 = vpow.pop %v1903
    %v1905 = vsub.f32 %v1902, 1.0
    %v1906 = vsub.f32 %v1904, 1.0
    %v1907 = vmul.f32 %v1905, 1.6732632
    %v1908 = vmul.f32 %v1906, 1.6732632
    %vm1909 = vcmp.gt.f32.partialorder %v1897, 0.0
    %vm1910 = vcmp.gt.f32.partialorder %v1898, 0.0
    %v1911 = vsel %vm1909, %v1897, %v1907
    %v1912 = vsel %vm1910, %v1898, %v1908
    %v1913 = vmul.f32 %v1911, 1.050701
    %v1914 = vmul.f32 %v1912, 1.050701
    %v1915 = vpack.c.bf16 %v1913, %v1913
    %v1916 = vpack.c.bf16 %v1914, %v1914
    %s1917 = scalar_lea.vmem [#allocation2], 768
    %v1918 = vld [vmem:[%s1917] sm:$0xff]
    %v1919 = vld [vmem:[%s1917 + $0x8] sm:$0xff]
    %v1920 = vld [vmem:[%s1917 + $0x10] sm:$0xff]
    %v1921 = vld [vmem:[%s1917 + $0x18] sm:$0xff]
    %v1922 = vld [vmem:[%s1917 + $0x20] sm:$0xff]
    %v1923 = vld [vmem:[%s1917 + $0x28] sm:$0xff]
    %v1924 = vld [vmem:[%s1917 + $0x30] sm:$0xff]
    %v1925 = vld [vmem:[%s1917 + $0x38] sm:$0xff]
    %v1926 = vld [vmem:[%s1917 + $0x40] sm:$0xff]
    %v1927 = vld [vmem:[%s1917 + $0x48] sm:$0xff]
    %v1928 = vld [vmem:[%s1917 + $0x50] sm:$0xff]
    %v1929 = vld [vmem:[%s1917 + $0x58] sm:$0xff]
    %v1930 = vld [vmem:[%s1917 + $0x60] sm:$0xff]
    %v1931 = vld [vmem:[%s1917 + $0x68] sm:$0xff]
    %v1932 = vld [vmem:[%s1917 + $0x70] sm:$0xff]
    %v1933 = vld [vmem:[%s1917 + $0x78] sm:$0xff]
    %1934 = vmatprep.subr.bf16.mxu0 0
    %1935 = vmatpush1.bf16.msra.mxu0 %v1918
    %1936 = vmatprep.subr.bf16.mxu0 0
    %1937 = vmatpush1.bf16.msra.mxu0 %v1919
    %1938 = vmatprep.subr.bf16.mxu0 0
    %1939 = vmatpush1.bf16.msra.mxu0 %v1920
    %1940 = vmatprep.subr.bf16.mxu0 0
    %1941 = vmatpush1.bf16.msra.mxu0 %v1921
    %1942 = vmatprep.subr.bf16.mxu0 0
    %1943 = vmatpush1.bf16.msra.mxu0 %v1922
    %1944 = vmatprep.subr.bf16.mxu0 0
    %1945 = vmatpush1.bf16.msra.mxu0 %v1923
    %1946 = vmatprep.subr.bf16.mxu0 0
    %1947 = vmatpush1.bf16.msra.mxu0 %v1924
    %1948 = vmatprep.subr.bf16.mxu0 0
    %1949 = vmatpush1.bf16.msra.mxu0 %v1925
    %1950 = vmatprep.subr.bf16.mxu0 0
    %1951 = vmatpush1.bf16.msra.mxu0 %v1926
    %1952 = vmatprep.subr.bf16.mxu0 0
    %1953 = vmatpush1.bf16.msra.mxu0 %v1927
    %1954 = vmatprep.subr.bf16.mxu0 0
    %1955 = vmatpush1.bf16.msra.mxu0 %v1928
    %1956 = vmatprep.subr.bf16.mxu0 0
    %1957 = vmatpush1.bf16.msra.mxu0 %v1929
    %1958 = vmatprep.subr.bf16.mxu0 0
    %1959 = vmatpush1.bf16.msra.mxu0 %v1930
    %1960 = vmatprep.subr.bf16.mxu0 0
    %1961 = vmatpush1.bf16.msra.mxu0 %v1931
    %1962 = vmatprep.subr.bf16.mxu0 0
    %1963 = vmatpush1.bf16.msra.mxu0 %v1932
    %1964 = vmatprep.subr.bf16.mxu0 0
    %1965 = vmatpush1.bf16.msra.mxu0 %v1933
    %1966 = vmatprep.mubr.bf16.mxu0 %v1916
    %1967 = vmatmul.mubr.bf16.gmra.mrb[0].mxu0 %v1915
    %v1968 = vpop.f32.mrb[0].mxu0
    %v1969 = vadd.f32 0.0, %v1968
    %v1970 = vpop.f32.mrb[0].mxu0
    %v1971 = vpop.f32.mrb[0].mxu0
    %v1972 = vpop.f32.mrb[0].mxu0
    %1973 = vdwg.mxu0
    %v1974 = vadd.f32 %v1878, %v1969
    %s1975 = sld [smem:[#allocation22 + $0x7]]
    %v1976 = vstv %s1975
    %v1977 = vmul.f32 %v1976, %v1297
    %v1978 = vmul.f32 %v1976, %v1298
    %s1979 = sld [smem:[#allocation22 + $0x87]]
    %v1980 = vstv %s1979
    %v1981 = vmul.f32 %v1980, %v428
    %v1982 = vmul.f32 %v1980, %v429
    %v1983 = vadd.f32 %v1977, %v1981
    %v1984 = vadd.f32 %v1978, %v1982
    %s1985 = sld [smem:[#allocation22 + $0x107]]
    %v1986 = vstv %s1985
    %v1987 = vmul.f32 %v1986, %v1299
    %v1988 = vmul.f32 %v1986, %v1300
    %v1989 = vadd.f32 %v1983, %v1987
    %v1990 = vadd.f32 %v1984, %v1988
    %s1991 = sld [smem:[#allocation22 + $0x187]]
    %v1992 = vstv %s1991
    %v1993 = vadd.f32 %v1989, %v1992
    %v1994 = vadd.f32 %v1990, %v1992
    %v1995 = vmin.f32 %v1993, 0.0
    %v1996 = vmin.f32 %v1994, 0.0
    %v1997 = vmul.f32 %v1995, 1.442695
    %v1998 = vpow.pop %v1997
    %v1999 = vmul.f32 %v1996, 1.442695
    %v2000 = vpow.pop %v1999
    %v2001 = vsub.f32 %v1998, 1.0
    %v2002 = vsub.f32 %v2000, 1.0
    %v2003 = vmul.f32 %v2001, 1.6732632
    %v2004 = vmul.f32 %v2002, 1.6732632
    %vm2005 = vcmp.gt.f32.partialorder %v1993, 0.0
    %vm2006 = vcmp.gt.f32.partialorder %v1994, 0.0
    %v2007 = vsel %vm2005, %v1993, %v2003
    %v2008 = vsel %vm2006, %v1994, %v2004
    %v2009 = vmul.f32 %v2007, 1.050701
    %v2010 = vmul.f32 %v2008, 1.050701
    %v2011 = vpack.c.bf16 %v2009, %v2009
    %v2012 = vpack.c.bf16 %v2010, %v2010
    %s2013 = scalar_lea.vmem [#allocation2], 896
    %v2014 = vld [vmem:[%s2013] sm:$0xff]
    %v2015 = vld [vmem:[%s2013 + $0x8] sm:$0xff]
    %v2016 = vld [vmem:[%s2013 + $0x10] sm:$0xff]
    %v2017 = vld [vmem:[%s2013 + $0x18] sm:$0xff]
    %v2018 = vld [vmem:[%s2013 + $0x20] sm:$0xff]
    %v2019 = vld [vmem:[%s2013 + $0x28] sm:$0xff]
    %v2020 = vld [vmem:[%s2013 + $0x30] sm:$0xff]
    %v2021 = vld [vmem:[%s2013 + $0x38] sm:$0xff]
    %v2022 = vld [vmem:[%s2013 + $0x40] sm:$0xff]
    %v2023 = vld [vmem:[%s2013 + $0x48] sm:$0xff]
    %v2024 = vld [vmem:[%s2013 + $0x50] sm:$0xff]
    %v2025 = vld [vmem:[%s2013 + $0x58] sm:$0xff]
    %v2026 = vld [vmem:[%s2013 + $0x60] sm:$0xff]
    %v2027 = vld [vmem:[%s2013 + $0x68] sm:$0xff]
    %v2028 = vld [vmem:[%s2013 + $0x70] sm:$0xff]
    %v2029 = vld [vmem:[%s2013 + $0x78] sm:$0xff]
    %2030 = vmatprep.subr.bf16.mxu0 0
    %2031 = vmatpush1.bf16.msra.mxu0 %v2014
    %2032 = vmatprep.subr.bf16.mxu0 0
    %2033 = vmatpush1.bf16.msra.mxu0 %v2015
    %2034 = vmatprep.subr.bf16.mxu0 0
    %2035 = vmatpush1.bf16.msra.mxu0 %v2016
    %2036 = vmatprep.subr.bf16.mxu0 0
    %2037 = vmatpush1.bf16.msra.mxu0 %v2017
    %2038 = vmatprep.subr.bf16.mxu0 0
    %2039 = vmatpush1.bf16.msra.mxu0 %v2018
    %2040 = vmatprep.subr.bf16.mxu0 0
    %2041 = vmatpush1.bf16.msra.mxu0 %v2019
    %2042 = vmatprep.subr.bf16.mxu0 0
    %2043 = vmatpush1.bf16.msra.mxu0 %v2020
    %2044 = vmatprep.subr.bf16.mxu0 0
    %2045 = vmatpush1.bf16.msra.mxu0 %v2021
    %2046 = vmatprep.subr.bf16.mxu0 0
    %2047 = vmatpush1.bf16.msra.mxu0 %v2022
    %2048 = vmatprep.subr.bf16.mxu0 0
    %2049 = vmatpush1.bf16.msra.mxu0 %v2023
    %2050 = vmatprep.subr.bf16.mxu0 0
    %2051 = vmatpush1.bf16.msra.mxu0 %v2024
    %2052 = vmatprep.subr.bf16.mxu0 0
    %2053 = vmatpush1.bf16.msra.mxu0 %v2025
    %2054 = vmatprep.subr.bf16.mxu0 0
    %2055 = vmatpush1.bf16.msra.mxu0 %v2026
    %2056 = vmatprep.subr.bf16.mxu0 0
    %2057 = vmatpush1.bf16.msra.mxu0 %v2027
    %2058 = vmatprep.subr.bf16.mxu0 0
    %2059 = vmatpush1.bf16.msra.mxu0 %v2028
    %2060 = vmatprep.subr.bf16.mxu0 0
    %2061 = vmatpush1.bf16.msra.mxu0 %v2029
    %2062 = vmatprep.mubr.bf16.mxu0 %v2012
    %2063 = vmatmul.mubr.bf16.gmra.mrb[0].mxu0 %v2011
    %v2064 = vpop.f32.mrb[0].mxu0
    %v2065 = vadd.f32 0.0, %v2064
    %v2066 = vpop.f32.mrb[0].mxu0
    %v2067 = vpop.f32.mrb[0].mxu0
    %v2068 = vpop.f32.mrb[0].mxu0
    %2069 = vdwg.mxu0
    %v2070 = vadd.f32 %v1974, %v2065
    %s2071 = sshll.u32 %s1303, 4
    %2072 = dma.done %s317, %s2071
    %s2073 = sld [smem:[#allocation22 + $0x8]]
    %v2074 = vstv %s2073
    %v2075 = vmul.f32 %v2074, %v1297
    %v2076 = vmul.f32 %v2074, %v1298
    %s2077 = sld [smem:[#allocation22 + $0x88]]
    %v2078 = vstv %s2077
    %v2079 = vmul.f32 %v2078, %v428
    %v2080 = vmul.f32 %v2078, %v429
    %v2081 = vadd.f32 %v2075, %v2079
    %v2082 = vadd.f32 %v2076, %v2080
    %s2083 = sld [smem:[#allocation22 + $0x108]]
    %v2084 = vstv %s2083
    %v2085 = vmul.f32 %v2084, %v1299
    %v2086 = vmul.f32 %v2084, %v1300
    %v2087 = vadd.f32 %v2081, %v2085
    %v2088 = vadd.f32 %v2082, %v2086
    %s2089 = sld [smem:[#allocation22 + $0x188]]
    %v2090 = vstv %s2089
    %v2091 = vadd.f32 %v2087, %v2090
    %v2092 = vadd.f32 %v2088, %v2090
    %v2093 = vmin.f32 %v2091, 0.0
    %v2094 = vmin.f32 %v2092, 0.0
    %v2095 = vmul.f32 %v2093, 1.442695
    %v2096 = vpow.pop %v2095
    %v2097 = vmul.f32 %v2094, 1.442695
    %v2098 = vpow.pop %v2097
    %v2099 = vsub.f32 %v2096, 1.0
    %v2100 = vsub.f32 %v2098, 1.0
    %v2101 = vmul.f32 %v2099, 1.6732632
    %v2102 = vmul.f32 %v2100, 1.6732632
    %vm2103 = vcmp.gt.f32.partialorder %v2091, 0.0
    %vm2104 = vcmp.gt.f32.partialorder %v2092, 0.0
    %v2105 = vsel %vm2103, %v2091, %v2101
    %v2106 = vsel %vm2104, %v2092, %v2102
    %v2107 = vmul.f32 %v2105, 1.050701
    %v2108 = vmul.f32 %v2106, 1.050701
    %v2109 = vpack.c.bf16 %v2107, %v2107
    %v2110 = vpack.c.bf16 %v2108, %v2108
    %v2111 = vld [vmem:[%s316] sm:$0xff]
    %v2112 = vld [vmem:[%s316 + $0x8] sm:$0xff]
    %v2113 = vld [vmem:[%s316 + $0x10] sm:$0xff]
    %v2114 = vld [vmem:[%s316 + $0x18] sm:$0xff]
    %v2115 = vld [vmem:[%s316 + $0x20] sm:$0xff]
    %v2116 = vld [vmem:[%s316 + $0x28] sm:$0xff]
    %v2117 = vld [vmem:[%s316 + $0x30] sm:$0xff]
    %v2118 = vld [vmem:[%s316 + $0x38] sm:$0xff]
    %v2119 = vld [vmem:[%s316 + $0x40] sm:$0xff]
    %v2120 = vld [vmem:[%s316 + $0x48] sm:$0xff]
    %v2121 = vld [vmem:[%s316 + $0x50] sm:$0xff]
    %v2122 = vld [vmem:[%s316 + $0x58] sm:$0xff]
    %v2123 = vld [vmem:[%s316 + $0x60] sm:$0xff]
    %v2124 = vld [vmem:[%s316 + $0x68] sm:$0xff]
    %v2125 = vld [vmem:[%s316 + $0x70] sm:$0xff]
    %v2126 = vld [vmem:[%s316 + $0x78] sm:$0xff]
    %2127 = vmatprep.subr.bf16.mxu0 0
    %2128 = vmatpush1.bf16.msra.mxu0 %v2111
    %2129 = vmatprep.subr.bf16.mxu0 0
    %2130 = vmatpush1.bf16.msra.mxu0 %v2112
    %2131 = vmatprep.subr.bf16.mxu0 0
    %2132 = vmatpush1.bf16.msra.mxu0 %v2113
    %2133 = vmatprep.subr.bf16.mxu0 0
    %2134 = vmatpush1.bf16.msra.mxu0 %v2114
    %2135 = vmatprep.subr.bf16.mxu0 0
    %2136 = vmatpush1.bf16.msra.mxu0 %v2115
    %2137 = vmatprep.subr.bf16.mxu0 0
    %2138 = vmatpush1.bf16.msra.mxu0 %v2116
    %2139 = vmatprep.subr.bf16.mxu0 0
    %2140 = vmatpush1.bf16.msra.mxu0 %v2117
    %2141 = vmatprep.subr.bf16.mxu0 0
    %2142 = vmatpush1.bf16.msra.mxu0 %v2118
    %2143 = vmatprep.subr.bf16.mxu0 0
    %2144 = vmatpush1.bf16.msra.mxu0 %v2119
    %2145 = vmatprep.subr.bf16.mxu0 0
    %2146 = vmatpush1.bf16.msra.mxu0 %v2120
    %2147 = vmatprep.subr.bf16.mxu0 0
    %2148 = vmatpush1.bf16.msra.mxu0 %v2121
    %2149 = vmatprep.subr.bf16.mxu0 0
    %2150 = vmatpush1.bf16.msra.mxu0 %v2122
    %2151 = vmatprep.subr.bf16.mxu0 0
    %2152 = vmatpush1.bf16.msra.mxu0 %v2123
    %2153 = vmatprep.subr.bf16.mxu0 0
    %2154 = vmatpush1.bf16.msra.mxu0 %v2124
    %2155 = vmatprep.subr.bf16.mxu0 0
    %2156 = vmatpush1.bf16.msra.mxu0 %v2125
    %2157 = vmatprep.subr.bf16.mxu0 0
    %2158 = vmatpush1.bf16.msra.mxu0 %v2126
    %2159 = vmatprep.mubr.bf16.mxu0 %v2110
    %2160 = vmatmul.mubr.bf16.gmra.mrb[0].mxu0 %v2109
    %v2161 = vpop.f32.mrb[0].mxu0
    %v2162 = vadd.f32 0.0, %v2161
    %v2163 = vpop.f32.mrb[0].mxu0
    %v2164 = vpop.f32.mrb[0].mxu0
    %v2165 = vpop.f32.mrb[0].mxu0
    %2166 = vdwg.mxu0
    %v2167 = vadd.f32 %v2070, %v2162
    %s2168 = sld [smem:[#allocation22 + $0x9]]
    %v2169 = vstv %s2168
    %v2170 = vmul.f32 %v2169, %v1297
    %v2171 = vmul.f32 %v2169, %v1298
    %s2172 = sld [smem:[#allocation22 + $0x89]]
    %v2173 = vstv %s2172
    %v2174 = vmul.f32 %v2173, %v428
    %v2175 = vmul.f32 %v2173, %v429
    %v2176 = vadd.f32 %v2170, %v2174
    %v2177 = vadd.f32 %v2171, %v2175
    %s2178 = sld [smem:[#allocation22 + $0x109]]
    %v2179 = vstv %s2178
    %v2180 = vmul.f32 %v2179, %v1299
    %v2181 = vmul.f32 %v2179, %v1300
    %v2182 = vadd.f32 %v2176, %v2180
    %v2183 = vadd.f32 %v2177, %v2181
    %s2184 = sld [smem:[#allocation22 + $0x189]]
    %v2185 = vstv %s2184
    %v2186 = vadd.f32 %v2182, %v2185
    %v2187 = vadd.f32 %v2183, %v2185
    %v2188 = vmin.f32 %v2186, 0.0
    %v2189 = vmin.f32 %v2187, 0.0
    %v2190 = vmul.f32 %v2188, 1.442695
    %v2191 = vpow.pop %v2190
    %v2192 = vmul.f32 %v2189, 1.442695
    %v2193 = vpow.pop %v2192
    %v2194 = vsub.f32 %v2191, 1.0
    %v2195 = vsub.f32 %v2193, 1.0
    %v2196 = vmul.f32 %v2194, 1.6732632
    %v2197 = vmul.f32 %v2195, 1.6732632
    %vm2198 = vcmp.gt.f32.partialorder %v2186, 0.0
    %vm2199 = vcmp.gt.f32.partialorder %v2187, 0.0
    %v2200 = vsel %vm2198, %v2186, %v2196
    %v2201 = vsel %vm2199, %v2187, %v2197
    %v2202 = vmul.f32 %v2200, 1.050701
    %v2203 = vmul.f32 %v2201, 1.050701
    %v2204 = vpack.c.bf16 %v2202, %v2202
    %v2205 = vpack.c.bf16 %v2203, %v2203
    %s2206 = scalar_lea.vmem [#allocation2], 1152
    %v2207 = vld [vmem:[%s2206] sm:$0xff]
    %v2208 = vld [vmem:[%s2206 + $0x8] sm:$0xff]
    %v2209 = vld [vmem:[%s2206 + $0x10] sm:$0xff]
    %v2210 = vld [vmem:[%s2206 + $0x18] sm:$0xff]
    %v2211 = vld [vmem:[%s2206 + $0x20] sm:$0xff]
    %v2212 = vld [vmem:[%s2206 + $0x28] sm:$0xff]
    %v2213 = vld [vmem:[%s2206 + $0x30] sm:$0xff]
    %v2214 = vld [vmem:[%s2206 + $0x38] sm:$0xff]
    %v2215 = vld [vmem:[%s2206 + $0x40] sm:$0xff]
    %v2216 = vld [vmem:[%s2206 + $0x48] sm:$0xff]
    %v2217 = vld [vmem:[%s2206 + $0x50] sm:$0xff]
    %v2218 = vld [vmem:[%s2206 + $0x58] sm:$0xff]
    %v2219 = vld [vmem:[%s2206 + $0x60] sm:$0xff]
    %v2220 = vld [vmem:[%s2206 + $0x68] sm:$0xff]
    %v2221 = vld [vmem:[%s2206 + $0x70] sm:$0xff]
    %v2222 = vld [vmem:[%s2206 + $0x78] sm:$0xff]
    %2223 = vmatprep.subr.bf16.mxu0 0
    %2224 = vmatpush1.bf16.msra.mxu0 %v2207
    %2225 = vmatprep.subr.bf16.mxu0 0
    %2226 = vmatpush1.bf16.msra.mxu0 %v2208
    %2227 = vmatprep.subr.bf16.mxu0 0
    %2228 = vmatpush1.bf16.msra.mxu0 %v2209
    %2229 = vmatprep.subr.bf16.mxu0 0
    %2230 = vmatpush1.bf16.msra.mxu0 %v2210
    %2231 = vmatprep.subr.bf16.mxu0 0
    %2232 = vmatpush1.bf16.msra.mxu0 %v2211
    %2233 = vmatprep.subr.bf16.mxu0 0
    %2234 = vmatpush1.bf16.msra.mxu0 %v2212
    %2235 = vmatprep.subr.bf16.mxu0 0
    %2236 = vmatpush1.bf16.msra.mxu0 %v2213
    %2237 = vmatprep.subr.bf16.mxu0 0
    %2238 = vmatpush1.bf16.msra.mxu0 %v2214
    %2239 = vmatprep.subr.bf16.mxu0 0
    %2240 = vmatpush1.bf16.msra.mxu0 %v2215
    %2241 = vmatprep.subr.bf16.mxu0 0
    %2242 = vmatpush1.bf16.msra.mxu0 %v2216
    %2243 = vmatprep.subr.bf16.mxu0 0
    %2244 = vmatpush1.bf16.msra.mxu0 %v2217
    %2245 = vmatprep.subr.bf16.mxu0 0
    %2246 = vmatpush1.bf16.msra.mxu0 %v2218
    %2247 = vmatprep.subr.bf16.mxu0 0
    %2248 = vmatpush1.bf16.msra.mxu0 %v2219
    %2249 = vmatprep.subr.bf16.mxu0 0
    %2250 = vmatpush1.bf16.msra.mxu0 %v2220
    %2251 = vmatprep.subr.bf16.mxu0 0
    %2252 = vmatpush1.bf16.msra.mxu0 %v2221
    %2253 = vmatprep.subr.bf16.mxu0 0
    %2254 = vmatpush1.bf16.msra.mxu0 %v2222
    %2255 = vmatprep.mubr.bf16.mxu0 %v2205
    %2256 = vmatmul.mubr.bf16.gmra.mrb[0].mxu0 %v2204
    %v2257 = vpop.f32.mrb[0].mxu0
    %v2258 = vadd.f32 0.0, %v2257
    %v2259 = vpop.f32.mrb[0].mxu0
    %v2260 = vpop.f32.mrb[0].mxu0
    %v2261 = vpop.f32.mrb[0].mxu0
    %2262 = vdwg.mxu0
    %v2263 = vadd.f32 %v2167, %v2258
    %s2264 = sld [smem:[#allocation22 + $0xa]]
    %v2265 = vstv %s2264
    %v2266 = vmul.f32 %v2265, %v1297
    %v2267 = vmul.f32 %v2265, %v1298
    %s2268 = sld [smem:[#allocation22 + $0x8a]]
    %v2269 = vstv %s2268
    %v2270 = vmul.f32 %v2269, %v428
    %v2271 = vmul.f32 %v2269, %v429
    %v2272 = vadd.f32 %v2266, %v2270
    %v2273 = vadd.f32 %v2267, %v2271
    %s2274 = sld [smem:[#allocation22 + $0x10a]]
    %v2275 = vstv %s2274
    %v2276 = vmul.f32 %v2275, %v1299
    %v2277 = vmul.f32 %v2275, %v1300
    %v2278 = vadd.f32 %v2272, %v2276
    %v2279 = vadd.f32 %v2273, %v2277
    %s2280 = sld [smem:[#allocation22 + $0x18a]]
    %v2281 = vstv %s2280
    %v2282 = vadd.f32 %v2278, %v2281
    %v2283 = vadd.f32 %v2279, %v2281
    %v2284 = vmin.f32 %v2282, 0.0
    %v2285 = vmin.f32 %v2283, 0.0
    %v2286 = vmul.f32 %v2284, 1.442695
    %v2287 = vpow.pop %v2286
    %v2288 = vmul.f32 %v2285, 1.442695
    %v2289 = vpow.pop %v2288
    %v2290 = vsub.f32 %v2287, 1.0
    %v2291 = vsub.f32 %v2289, 1.0
    %v2292 = vmul.f32 %v2290, 1.6732632
    %v2293 = vmul.f32 %v2291, 1.6732632
    %vm2294 = vcmp.gt.f32.partialorder %v2282, 0.0
    %vm2295 = vcmp.gt.f32.partialorder %v2283, 0.0
    %v2296 = vsel %vm2294, %v2282, %v2292
    %v2297 = vsel %vm2295, %v2283, %v2293
    %v2298 = vmul.f32 %v2296, 1.050701
    %v2299 = vmul.f32 %v2297, 1.050701
    %v2300 = vpack.c.bf16 %v2298, %v2298
    %v2301 = vpack.c.bf16 %v2299, %v2299
    %s2302 = scalar_lea.vmem [#allocation2], 1280
    %v2303 = vld [vmem:[%s2302] sm:$0xff]
    %v2304 = vld [vmem:[%s2302 + $0x8] sm:$0xff]
    %v2305 = vld [vmem:[%s2302 + $0x10] sm:$0xff]
    %v2306 = vld [vmem:[%s2302 + $0x18] sm:$0xff]
    %v2307 = vld [vmem:[%s2302 + $0x20] sm:$0xff]
    %v2308 = vld [vmem:[%s2302 + $0x28] sm:$0xff]
    %v2309 = vld [vmem:[%s2302 + $0x30] sm:$0xff]
    %v2310 = vld [vmem:[%s2302 + $0x38] sm:$0xff]
    %v2311 = vld [vmem:[%s2302 + $0x40] sm:$0xff]
    %v2312 = vld [vmem:[%s2302 + $0x48] sm:$0xff]
    %v2313 = vld [vmem:[%s2302 + $0x50] sm:$0xff]
    %v2314 = vld [vmem:[%s2302 + $0x58] sm:$0xff]
    %v2315 = vld [vmem:[%s2302 + $0x60] sm:$0xff]
    %v2316 = vld [vmem:[%s2302 + $0x68] sm:$0xff]
    %v2317 = vld [vmem:[%s2302 + $0x70] sm:$0xff]
    %v2318 = vld [vmem:[%s2302 + $0x78] sm:$0xff]
    %2319 = vmatprep.subr.bf16.mxu0 0
    %2320 = vmatpush1.bf16.msra.mxu0 %v2303
    %2321 = vmatprep.subr.bf16.mxu0 0
    %2322 = vmatpush1.bf16.msra.mxu0 %v2304
    %2323 = vmatprep.subr.bf16.mxu0 0
    %2324 = vmatpush1.bf16.msra.mxu0 %v2305
    %2325 = vmatprep.subr.bf16.mxu0 0
    %2326 = vmatpush1.bf16.msra.mxu0 %v2306
    %2327 = vmatprep.subr.bf16.mxu0 0
    %2328 = vmatpush1.bf16.msra.mxu0 %v2307
    %2329 = vmatprep.subr.bf16.mxu0 0
    %2330 = vmatpush1.bf16.msra.mxu0 %v2308
    %2331 = vmatprep.subr.bf16.mxu0 0
    %2332 = vmatpush1.bf16.msra.mxu0 %v2309
    %2333 = vmatprep.subr.bf16.mxu0 0
    %2334 = vmatpush1.bf16.msra.mxu0 %v2310
    %2335 = vmatprep.subr.bf16.mxu0 0
    %2336 = vmatpush1.bf16.msra.mxu0 %v2311
    %2337 = vmatprep.subr.bf16.mxu0 0
    %2338 = vmatpush1.bf16.msra.mxu0 %v2312
    %2339 = vmatprep.subr.bf16.mxu0 0
    %2340 = vmatpush1.bf16.msra.mxu0 %v2313
    %2341 = vmatprep.subr.bf16.mxu0 0
    %2342 = vmatpush1.bf16.msra.mxu0 %v2314
    %2343 = vmatprep.subr.bf16.mxu0 0
    %2344 = vmatpush1.bf16.msra.mxu0 %v2315
    %2345 = vmatprep.subr.bf16.mxu0 0
    %2346 = vmatpush1.bf16.msra.mxu0 %v2316
    %2347 = vmatprep.subr.bf16.mxu0 0
    %2348 = vmatpush1.bf16.msra.mxu0 %v2317
    %2349 = vmatprep.subr.bf16.mxu0 0
    %2350 = vmatpush1.bf16.msra.mxu0 %v2318
    %2351 = vmatprep.mubr.bf16.mxu0 %v2301
    %2352 = vmatmul.mubr.bf16.gmra.mrb[0].mxu0 %v2300
    %v2353 = vpop.f32.mrb[0].mxu0
    %v2354 = vadd.f32 0.0, %v2353
    %v2355 = vpop.f32.mrb[0].mxu0
    %v2356 = vpop.f32.mrb[0].mxu0
    %v2357 = vpop.f32.mrb[0].mxu0
    %2358 = vdwg.mxu0
    %v2359 = vadd.f32 %v2263, %v2354
    %s2360 = sld [smem:[#allocation22 + $0xb]]
    %v2361 = vstv %s2360
    %v2362 = vmul.f32 %v2361, %v1297
    %v2363 = vmul.f32 %v2361, %v1298
    %s2364 = sld [smem:[#allocation22 + $0x8b]]
    %v2365 = vstv %s2364
    %v2366 = vmul.f32 %v2365, %v428
    %v2367 = vmul.f32 %v2365, %v429
    %v2368 = vadd.f32 %v2362, %v2366
    %v2369 = vadd.f32 %v2363, %v2367
    %s2370 = sld [smem:[#allocation22 + $0x10b]]
    %v2371 = vstv %s2370
    %v2372 = vmul.f32 %v2371, %v1299
    %v2373 = vmul.f32 %v2371, %v1300
    %v2374 = vadd.f32 %v2368, %v2372
    %v2375 = vadd.f32 %v2369, %v2373
    %s2376 = sld [smem:[#allocation22 + $0x18b]]
    %v2377 = vstv %s2376
    %v2378 = vadd.f32 %v2374, %v2377
    %v2379 = vadd.f32 %v2375, %v2377
    %v2380 = vmin.f32 %v2378, 0.0
    %v2381 = vmin.f32 %v2379, 0.0
    %v2382 = vmul.f32 %v2380, 1.442695
    %v2383 = vpow.pop %v2382
    %v2384 = vmul.f32 %v2381, 1.442695
    %v2385 = vpow.pop %v2384
    %v2386 = vsub.f32 %v2383, 1.0
    %v2387 = vsub.f32 %v2385, 1.0
    %v2388 = vmul.f32 %v2386, 1.6732632
    %v2389 = vmul.f32 %v2387, 1.6732632
    %vm2390 = vcmp.gt.f32.partialorder %v2378, 0.0
    %vm2391 = vcmp.gt.f32.partialorder %v2379, 0.0
    %v2392 = vsel %vm2390, %v2378, %v2388
    %v2393 = vsel %vm2391, %v2379, %v2389
    %v2394 = vmul.f32 %v2392, 1.050701
    %v2395 = vmul.f32 %v2393, 1.050701
    %v2396 = vpack.c.bf16 %v2394, %v2394
    %v2397 = vpack.c.bf16 %v2395, %v2395
    %s2398 = scalar_lea.vmem [#allocation2], 1408
    %v2399 = vld [vmem:[%s2398] sm:$0xff]
    %v2400 = vld [vmem:[%s2398 + $0x8] sm:$0xff]
    %v2401 = vld [vmem:[%s2398 + $0x10] sm:$0xff]
    %v2402 = vld [vmem:[%s2398 + $0x18] sm:$0xff]
    %v2403 = vld [vmem:[%s2398 + $0x20] sm:$0xff]
    %v2404 = vld [vmem:[%s2398 + $0x28] sm:$0xff]
    %v2405 = vld [vmem:[%s2398 + $0x30] sm:$0xff]
    %v2406 = vld [vmem:[%s2398 + $0x38] sm:$0xff]
    %v2407 = vld [vmem:[%s2398 + $0x40] sm:$0xff]
    %v2408 = vld [vmem:[%s2398 + $0x48] sm:$0xff]
    %v2409 = vld [vmem:[%s2398 + $0x50] sm:$0xff]
    %v2410 = vld [vmem:[%s2398 + $0x58] sm:$0xff]
    %v2411 = vld [vmem:[%s2398 + $0x60] sm:$0xff]
    %v2412 = vld [vmem:[%s2398 + $0x68] sm:$0xff]
    %v2413 = vld [vmem:[%s2398 + $0x70] sm:$0xff]
    %v2414 = vld [vmem:[%s2398 + $0x78] sm:$0xff]
    %2415 = vmatprep.subr.bf16.mxu0 0
    %2416 = vmatpush1.bf16.msra.mxu0 %v2399
    %2417 = vmatprep.subr.bf16.mxu0 0
    %2418 = vmatpush1.bf16.msra.mxu0 %v2400
    %2419 = vmatprep.subr.bf16.mxu0 0
    %2420 = vmatpush1.bf16.msra.mxu0 %v2401
    %2421 = vmatprep.subr.bf16.mxu0 0
    %2422 = vmatpush1.bf16.msra.mxu0 %v2402
    %2423 = vmatprep.subr.bf16.mxu0 0
    %2424 = vmatpush1.bf16.msra.mxu0 %v2403
    %2425 = vmatprep.subr.bf16.mxu0 0
    %2426 = vmatpush1.bf16.msra.mxu0 %v2404
    %2427 = vmatprep.subr.bf16.mxu0 0
    %2428 = vmatpush1.bf16.msra.mxu0 %v2405
    %2429 = vmatprep.subr.bf16.mxu0 0
    %2430 = vmatpush1.bf16.msra.mxu0 %v2406
    %2431 = vmatprep.subr.bf16.mxu0 0
    %2432 = vmatpush1.bf16.msra.mxu0 %v2407
    %2433 = vmatprep.subr.bf16.mxu0 0
    %2434 = vmatpush1.bf16.msra.mxu0 %v2408
    %2435 = vmatprep.subr.bf16.mxu0 0
    %2436 = vmatpush1.bf16.msra.mxu0 %v2409
    %2437 = vmatprep.subr.bf16.mxu0 0
    %2438 = vmatpush1.bf16.msra.mxu0 %v2410
    %2439 = vmatprep.subr.bf16.mxu0 0
    %2440 = vmatpush1.bf16.msra.mxu0 %v2411
    %2441 = vmatprep.subr.bf16.mxu0 0
    %2442 = vmatpush1.bf16.msra.mxu0 %v2412
    %2443 = vmatprep.subr.bf16.mxu0 0
    %2444 = vmatpush1.bf16.msra.mxu0 %v2413
    %2445 = vmatprep.subr.bf16.mxu0 0
    %2446 = vmatpush1.bf16.msra.mxu0 %v2414
    %2447 = vmatprep.mubr.bf16.mxu0 %v2397
    %2448 = vmatmul.mubr.bf16.gmra.mrb[0].mxu0 %v2396
    %v2449 = vpop.f32.mrb[0].mxu0
    %v2450 = vadd.f32 0.0, %v2449
    %v2451 = vpop.f32.mrb[0].mxu0
    %v2452 = vpop.f32.mrb[0].mxu0
    %v2453 = vpop.f32.mrb[0].mxu0
    %2454 = vdwg.mxu0
    %v2455 = vadd.f32 %v2359, %v2450
    %s2456 = sld [smem:[#allocation22 + $0xc]]
    %v2457 = vstv %s2456
    %v2458 = vmul.f32 %v2457, %v1297
    %v2459 = vmul.f32 %v2457, %v1298
    %s2460 = sld [smem:[#allocation22 + $0x8c]]
    %v2461 = vstv %s2460
    %v2462 = vmul.f32 %v2461, %v428
    %v2463 = vmul.f32 %v2461, %v429
    %v2464 = vadd.f32 %v2458, %v2462
    %v2465 = vadd.f32 %v2459, %v2463
    %s2466 = sld [smem:[#allocation22 + $0x10c]]
    %v2467 = vstv %s2466
    %v2468 = vmul.f32 %v2467, %v1299
    %v2469 = vmul.f32 %v2467, %v1300
    %v2470 = vadd.f32 %v2464, %v2468
    %v2471 = vadd.f32 %v2465, %v2469
    %s2472 = sld [smem:[#allocation22 + $0x18c]]
    %v2473 = vstv %s2472
    %v2474 = vadd.f32 %v2470, %v2473
    %v2475 = vadd.f32 %v2471, %v2473
    %v2476 = vmin.f32 %v2474, 0.0
    %v2477 = vmin.f32 %v2475, 0.0
    %v2478 = vmul.f32 %v2476, 1.442695
    %v2479 = vpow.pop %v2478
    %v2480 = vmul.f32 %v2477, 1.442695
    %v2481 = vpow.pop %v2480
    %v2482 = vsub.f32 %v2479, 1.0
    %v2483 = vsub.f32 %v2481, 1.0
    %v2484 = vmul.f32 %v2482, 1.6732632
    %v2485 = vmul.f32 %v2483, 1.6732632
    %vm2486 = vcmp.gt.f32.partialorder %v2474, 0.0
    %vm2487 = vcmp.gt.f32.partialorder %v2475, 0.0
    %v2488 = vsel %vm2486, %v2474, %v2484
    %v2489 = vsel %vm2487, %v2475, %v2485
    %v2490 = vmul.f32 %v2488, 1.050701
    %v2491 = vmul.f32 %v2489, 1.050701
    %v2492 = vpack.c.bf16 %v2490, %v2490
    %v2493 = vpack.c.bf16 %v2491, %v2491
    %s2494 = scalar_lea.vmem [#allocation2], 1536
    %v2495 = vld [vmem:[%s2494] sm:$0xff]
    %v2496 = vld [vmem:[%s2494 + $0x8] sm:$0xff]
    %v2497 = vld [vmem:[%s2494 + $0x10] sm:$0xff]
    %v2498 = vld [vmem:[%s2494 + $0x18] sm:$0xff]
    %v2499 = vld [vmem:[%s2494 + $0x20] sm:$0xff]
    %v2500 = vld [vmem:[%s2494 + $0x28] sm:$0xff]
    %v2501 = vld [vmem:[%s2494 + $0x30] sm:$0xff]
    %v2502 = vld [vmem:[%s2494 + $0x38] sm:$0xff]
    %v2503 = vld [vmem:[%s2494 + $0x40] sm:$0xff]
    %v2504 = vld [vmem:[%s2494 + $0x48] sm:$0xff]
    %v2505 = vld [vmem:[%s2494 + $0x50] sm:$0xff]
    %v2506 = vld [vmem:[%s2494 + $0x58] sm:$0xff]
    %v2507 = vld [vmem:[%s2494 + $0x60] sm:$0xff]
    %v2508 = vld [vmem:[%s2494 + $0x68] sm:$0xff]
    %v2509 = vld [vmem:[%s2494 + $0x70] sm:$0xff]
    %v2510 = vld [vmem:[%s2494 + $0x78] sm:$0xff]
    %2511 = vmatprep.subr.bf16.mxu0 0
    %2512 = vmatpush1.bf16.msra.mxu0 %v2495
    %2513 = vmatprep.subr.bf16.mxu0 0
    %2514 = vmatpush1.bf16.msra.mxu0 %v2496
    %2515 = vmatprep.subr.bf16.mxu0 0
    %2516 = vmatpush1.bf16.msra.mxu0 %v2497
    %2517 = vmatprep.subr.bf16.mxu0 0
    %2518 = vmatpush1.bf16.msra.mxu0 %v2498
    %2519 = vmatprep.subr.bf16.mxu0 0
    %2520 = vmatpush1.bf16.msra.mxu0 %v2499
    %2521 = vmatprep.subr.bf16.mxu0 0
    %2522 = vmatpush1.bf16.msra.mxu0 %v2500
    %2523 = vmatprep.subr.bf16.mxu0 0
    %2524 = vmatpush1.bf16.msra.mxu0 %v2501
    %2525 = vmatprep.subr.bf16.mxu0 0
    %2526 = vmatpush1.bf16.msra.mxu0 %v2502
    %2527 = vmatprep.subr.bf16.mxu0 0
    %2528 = vmatpush1.bf16.msra.mxu0 %v2503
    %2529 = vmatprep.subr.bf16.mxu0 0
    %2530 = vmatpush1.bf16.msra.mxu0 %v2504
    %2531 = vmatprep.subr.bf16.mxu0 0
    %2532 = vmatpush1.bf16.msra.mxu0 %v2505
    %2533 = vmatprep.subr.bf16.mxu0 0
    %2534 = vmatpush1.bf16.msra.mxu0 %v2506
    %2535 = vmatprep.subr.bf16.mxu0 0
    %2536 = vmatpush1.bf16.msra.mxu0 %v2507
    %2537 = vmatprep.subr.bf16.mxu0 0
    %2538 = vmatpush1.bf16.msra.mxu0 %v2508
    %2539 = vmatprep.subr.bf16.mxu0 0
    %2540 = vmatpush1.bf16.msra.mxu0 %v2509
    %2541 = vmatprep.subr.bf16.mxu0 0
    %2542 = vmatpush1.bf16.msra.mxu0 %v2510
    %2543 = vmatprep.mubr.bf16.mxu0 %v2493
    %2544 = vmatmul.mubr.bf16.gmra.mrb[0].mxu0 %v2492
    %v2545 = vpop.f32.mrb[0].mxu0
    %v2546 = vadd.f32 0.0, %v2545
    %v2547 = vpop.f32.mrb[0].mxu0
    %v2548 = vpop.f32.mrb[0].mxu0
    %v2549 = vpop.f32.mrb[0].mxu0
    %2550 = vdwg.mxu0
    %v2551 = vadd.f32 %v2455, %v2546
    %s2552 = sld [smem:[#allocation22 + $0xd]]
    %v2553 = vstv %s2552
    %v2554 = vmul.f32 %v2553, %v1297
    %v2555 = vmul.f32 %v2553, %v1298
    %s2556 = sld [smem:[#allocation22 + $0x8d]]
    %v2557 = vstv %s2556
    %v2558 = vmul.f32 %v2557, %v428
    %v2559 = vmul.f32 %v2557, %v429
    %v2560 = vadd.f32 %v2554, %v2558
    %v2561 = vadd.f32 %v2555, %v2559
    %s2562 = sld [smem:[#allocation22 + $0x10d]]
    %v2563 = vstv %s2562
    %v2564 = vmul.f32 %v2563, %v1299
    %v2565 = vmul.f32 %v2563, %v1300
    %v2566 = vadd.f32 %v2560, %v2564
    %v2567 = vadd.f32 %v2561, %v2565
    %s2568 = sld [smem:[#allocation22 + $0x18d]]
    %v2569 = vstv %s2568
    %v2570 = vadd.f32 %v2566, %v2569
    %v2571 = vadd.f32 %v2567, %v2569
    %v2572 = vmin.f32 %v2570, 0.0
    %v2573 = vmin.f32 %v2571, 0.0
    %v2574 = vmul.f32 %v2572, 1.442695
    %v2575 = vpow.pop %v2574
    %v2576 = vmul.f32 %v2573, 1.442695
    %v2577 = vpow.pop %v2576
    %v2578 = vsub.f32 %v2575, 1.0
    %v2579 = vsub.f32 %v2577, 1.0
    %v2580 = vmul.f32 %v2578, 1.6732632
    %v2581 = vmul.f32 %v2579, 1.6732632
    %vm2582 = vcmp.gt.f32.partialorder %v2570, 0.0
    %vm2583 = vcmp.gt.f32.partialorder %v2571, 0.0
    %v2584 = vsel %vm2582, %v2570, %v2580
    %v2585 = vsel %vm2583, %v2571, %v2581
    %v2586 = vmul.f32 %v2584, 1.050701
    %v2587 = vmul.f32 %v2585, 1.050701
    %v2588 = vpack.c.bf16 %v2586, %v2586
    %v2589 = vpack.c.bf16 %v2587, %v2587
    %s2590 = scalar_lea.vmem [#allocation2], 1664
    %v2591 = vld [vmem:[%s2590] sm:$0xff]
    %v2592 = vld [vmem:[%s2590 + $0x8] sm:$0xff]
    %v2593 = vld [vmem:[%s2590 + $0x10] sm:$0xff]
    %v2594 = vld [vmem:[%s2590 + $0x18] sm:$0xff]
    %v2595 = vld [vmem:[%s2590 + $0x20] sm:$0xff]
    %v2596 = vld [vmem:[%s2590 + $0x28] sm:$0xff]
    %v2597 = vld [vmem:[%s2590 + $0x30] sm:$0xff]
    %v2598 = vld [vmem:[%s2590 + $0x38] sm:$0xff]
    %v2599 = vld [vmem:[%s2590 + $0x40] sm:$0xff]
    %v2600 = vld [vmem:[%s2590 + $0x48] sm:$0xff]
    %v2601 = vld [vmem:[%s2590 + $0x50] sm:$0xff]
    %v2602 = vld [vmem:[%s2590 + $0x58] sm:$0xff]
    %v2603 = vld [vmem:[%s2590 + $0x60] sm:$0xff]
    %v2604 = vld [vmem:[%s2590 + $0x68] sm:$0xff]
    %v2605 = vld [vmem:[%s2590 + $0x70] sm:$0xff]
    %v2606 = vld [vmem:[%s2590 + $0x78] sm:$0xff]
    %2607 = vmatprep.subr.bf16.mxu0 0
    %2608 = vmatpush1.bf16.msra.mxu0 %v2591
    %2609 = vmatprep.subr.bf16.mxu0 0
    %2610 = vmatpush1.bf16.msra.mxu0 %v2592
    %2611 = vmatprep.subr.bf16.mxu0 0
    %2612 = vmatpush1.bf16.msra.mxu0 %v2593
    %2613 = vmatprep.subr.bf16.mxu0 0
    %2614 = vmatpush1.bf16.msra.mxu0 %v2594
    %2615 = vmatprep.subr.bf16.mxu0 0
    %2616 = vmatpush1.bf16.msra.mxu0 %v2595
    %2617 = vmatprep.subr.bf16.mxu0 0
    %2618 = vmatpush1.bf16.msra.mxu0 %v2596
    %2619 = vmatprep.subr.bf16.mxu0 0
    %2620 = vmatpush1.bf16.msra.mxu0 %v2597
    %2621 = vmatprep.subr.bf16.mxu0 0
    %2622 = vmatpush1.bf16.msra.mxu0 %v2598
    %2623 = vmatprep.subr.bf16.mxu0 0
    %2624 = vmatpush1.bf16.msra.mxu0 %v2599
    %2625 = vmatprep.subr.bf16.mxu0 0
    %2626 = vmatpush1.bf16.msra.mxu0 %v2600
    %2627 = vmatprep.subr.bf16.mxu0 0
    %2628 = vmatpush1.bf16.msra.mxu0 %v2601
    %2629 = vmatprep.subr.bf16.mxu0 0
    %2630 = vmatpush1.bf16.msra.mxu0 %v2602
    %2631 = vmatprep.subr.bf16.mxu0 0
    %2632 = vmatpush1.bf16.msra.mxu0 %v2603
    %2633 = vmatprep.subr.bf16.mxu0 0
    %2634 = vmatpush1.bf16.msra.mxu0 %v2604
    %2635 = vmatprep.subr.bf16.mxu0 0
    %2636 = vmatpush1.bf16.msra.mxu0 %v2605
    %2637 = vmatprep.subr.bf16.mxu0 0
    %2638 = vmatpush1.bf16.msra.mxu0 %v2606
    %2639 = vmatprep.mubr.bf16.mxu0 %v2589
    %2640 = vmatmul.mubr.bf16.gmra.mrb[0].mxu0 %v2588
    %v2641 = vpop.f32.mrb[0].mxu0
    %v2642 = vadd.f32 0.0, %v2641
    %v2643 = vpop.f32.mrb[0].mxu0
    %v2644 = vpop.f32.mrb[0].mxu0
    %v2645 = vpop.f32.mrb[0].mxu0
    %2646 = vdwg.mxu0
    %v2647 = vadd.f32 %v2551, %v2642
    %s2648 = sld [smem:[#allocation22 + $0xe]]
    %v2649 = vstv %s2648
    %v2650 = vmul.f32 %v2649, %v1297
    %v2651 = vmul.f32 %v2649, %v1298
    %s2652 = sld [smem:[#allocation22 + $0x8e]]
    %v2653 = vstv %s2652
    %v2654 = vmul.f32 %v2653, %v428
    %v2655 = vmul.f32 %v2653, %v429
    %v2656 = vadd.f32 %v2650, %v2654
    %v2657 = vadd.f32 %v2651, %v2655
    %s2658 = sld [smem:[#allocation22 + $0x10e]]
    %v2659 = vstv %s2658
    %v2660 = vmul.f32 %v2659, %v1299
    %v2661 = vmul.f32 %v2659, %v1300
    %v2662 = vadd.f32 %v2656, %v2660
    %v2663 = vadd.f32 %v2657, %v2661
    %s2664 = sld [smem:[#allocation22 + $0x18e]]
    %v2665 = vstv %s2664
    %v2666 = vadd.f32 %v2662, %v2665
    %v2667 = vadd.f32 %v2663, %v2665
    %v2668 = vmin.f32 %v2666, 0.0
    %v2669 = vmin.f32 %v2667, 0.0
    %v2670 = vmul.f32 %v2668, 1.442695
    %v2671 = vpow.pop %v2670
    %v2672 = vmul.f32 %v2669, 1.442695
    %v2673 = vpow.pop %v2672
    %v2674 = vsub.f32 %v2671, 1.0
    %v2675 = vsub.f32 %v2673, 1.0
    %v2676 = vmul.f32 %v2674, 1.6732632
    %v2677 = vmul.f32 %v2675, 1.6732632
    %vm2678 = vcmp.gt.f32.partialorder %v2666, 0.0
    %vm2679 = vcmp.gt.f32.partialorder %v2667, 0.0
    %v2680 = vsel %vm2678, %v2666, %v2676
    %v2681 = vsel %vm2679, %v2667, %v2677
    %v2682 = vmul.f32 %v2680, 1.050701
    %v2683 = vmul.f32 %v2681, 1.050701
    %v2684 = vpack.c.bf16 %v2682, %v2682
    %v2685 = vpack.c.bf16 %v2683, %v2683
    %s2686 = scalar_lea.vmem [#allocation2], 1792
    %v2687 = vld [vmem:[%s2686] sm:$0xff]
    %v2688 = vld [vmem:[%s2686 + $0x8] sm:$0xff]
    %v2689 = vld [vmem:[%s2686 + $0x10] sm:$0xff]
    %v2690 = vld [vmem:[%s2686 + $0x18] sm:$0xff]
    %v2691 = vld [vmem:[%s2686 + $0x20] sm:$0xff]
    %v2692 = vld [vmem:[%s2686 + $0x28] sm:$0xff]
    %v2693 = vld [vmem:[%s2686 + $0x30] sm:$0xff]
    %v2694 = vld [vmem:[%s2686 + $0x38] sm:$0xff]
    %v2695 = vld [vmem:[%s2686 + $0x40] sm:$0xff]
    %v2696 = vld [vmem:[%s2686 + $0x48] sm:$0xff]
    %v2697 = vld [vmem:[%s2686 + $0x50] sm:$0xff]
    %v2698 = vld [vmem:[%s2686 + $0x58] sm:$0xff]
    %v2699 = vld [vmem:[%s2686 + $0x60] sm:$0xff]
    %v2700 = vld [vmem:[%s2686 + $0x68] sm:$0xff]
    %v2701 = vld [vmem:[%s2686 + $0x70] sm:$0xff]
    %v2702 = vld [vmem:[%s2686 + $0x78] sm:$0xff]
    %2703 = vmatprep.subr.bf16.mxu0 0
    %2704 = vmatpush1.bf16.msra.mxu0 %v2687
    %2705 = vmatprep.subr.bf16.mxu0 0
    %2706 = vmatpush1.bf16.msra.mxu0 %v2688
    %2707 = vmatprep.subr.bf16.mxu0 0
    %2708 = vmatpush1.bf16.msra.mxu0 %v2689
    %2709 = vmatprep.subr.bf16.mxu0 0
    %2710 = vmatpush1.bf16.msra.mxu0 %v2690
    %2711 = vmatprep.subr.bf16.mxu0 0
    %2712 = vmatpush1.bf16.msra.mxu0 %v2691
    %2713 = vmatprep.subr.bf16.mxu0 0
    %2714 = vmatpush1.bf16.msra.mxu0 %v2692
    %2715 = vmatprep.subr.bf16.mxu0 0
    %2716 = vmatpush1.bf16.msra.mxu0 %v2693
    %2717 = vmatprep.subr.bf16.mxu0 0
    %2718 = vmatpush1.bf16.msra.mxu0 %v2694
    %2719 = vmatprep.subr.bf16.mxu0 0
    %2720 = vmatpush1.bf16.msra.mxu0 %v2695
    %2721 = vmatprep.subr.bf16.mxu0 0
    %2722 = vmatpush1.bf16.msra.mxu0 %v2696
    %2723 = vmatprep.subr.bf16.mxu0 0
    %2724 = vmatpush1.bf16.msra.mxu0 %v2697
    %2725 = vmatprep.subr.bf16.mxu0 0
    %2726 = vmatpush1.bf16.msra.mxu0 %v2698
    %2727 = vmatprep.subr.bf16.mxu0 0
    %2728 = vmatpush1.bf16.msra.mxu0 %v2699
    %2729 = vmatprep.subr.bf16.mxu0 0
    %2730 = vmatpush1.bf16.msra.mxu0 %v2700
    %2731 = vmatprep.subr.bf16.mxu0 0
    %2732 = vmatpush1.bf16.msra.mxu0 %v2701
    %2733 = vmatprep.subr.bf16.mxu0 0
    %2734 = vmatpush1.bf16.msra.mxu0 %v2702
    %2735 = vmatprep.mubr.bf16.mxu0 %v2685
    %2736 = vmatmul.mubr.bf16.gmra.mrb[0].mxu0 %v2684
    %v2737 = vpop.f32.mrb[0].mxu0
    %v2738 = vadd.f32 0.0, %v2737
    %v2739 = vpop.f32.mrb[0].mxu0
    %v2740 = vpop.f32.mrb[0].mxu0
    %v2741 = vpop.f32.mrb[0].mxu0
    %2742 = vdwg.mxu0
    %v2743 = vadd.f32 %v2647, %v2738
    %s2744 = sld [smem:[#allocation22 + $0xf]]
    %v2745 = vstv %s2744
    %v2746 = vmul.f32 %v2745, %v1297
    %v2747 = vmul.f32 %v2745, %v1298
    %s2748 = sld [smem:[#allocation22 + $0x8f]]
    %v2749 = vstv %s2748
    %v2750 = vmul.f32 %v2749, %v428
    %v2751 = vmul.f32 %v2749, %v429
    %v2752 = vadd.f32 %v2746, %v2750
    %v2753 = vadd.f32 %v2747, %v2751
    %s2754 = sld [smem:[#allocation22 + $0x10f]]
    %v2755 = vstv %s2754
    %v2756 = vmul.f32 %v2755, %v1299
    %v2757 = vmul.f32 %v2755, %v1300
    %v2758 = vadd.f32 %v2752, %v2756
    %v2759 = vadd.f32 %v2753, %v2757
    %s2760 = sld [smem:[#allocation22 + $0x18f]]
    %v2761 = vstv %s2760
    %v2762 = vadd.f32 %v2758, %v2761
    %v2763 = vadd.f32 %v2759, %v2761
    %v2764 = vmin.f32 %v2762, 0.0
    %v2765 = vmin.f32 %v2763, 0.0
    %v2766 = vmul.f32 %v2764, 1.442695
    %v2767 = vpow.pop %v2766
    %v2768 = vmul.f32 %v2765, 1.442695
    %v2769 = vpow.pop %v2768
    %v2770 = vsub.f32 %v2767, 1.0
    %v2771 = vsub.f32 %v2769, 1.0
    %v2772 = vmul.f32 %v2770, 1.6732632
    %v2773 = vmul.f32 %v2771, 1.6732632
    %vm2774 = vcmp.gt.f32.partialorder %v2762, 0.0
    %vm2775 = vcmp.gt.f32.partialorder %v2763, 0.0
    %v2776 = vsel %vm2774, %v2762, %v2772
    %v2777 = vsel %vm2775, %v2763, %v2773
    %v2778 = vmul.f32 %v2776, 1.050701
    %v2779 = vmul.f32 %v2777, 1.050701
    %v2780 = vpack.c.bf16 %v2778, %v2778
    %v2781 = vpack.c.bf16 %v2779, %v2779
    %s2782 = scalar_lea.vmem [#allocation2], 1920
    %v2783 = vld [vmem:[%s2782] sm:$0xff]
    %v2784 = vld [vmem:[%s2782 + $0x8] sm:$0xff]
    %v2785 = vld [vmem:[%s2782 + $0x10] sm:$0xff]
    %v2786 = vld [vmem:[%s2782 + $0x18] sm:$0xff]
    %v2787 = vld [vmem:[%s2782 + $0x20] sm:$0xff]
    %v2788 = vld [vmem:[%s2782 + $0x28] sm:$0xff]
    %v2789 = vld [vmem:[%s2782 + $0x30] sm:$0xff]
    %v2790 = vld [vmem:[%s2782 + $0x38] sm:$0xff]
    %v2791 = vld [vmem:[%s2782 + $0x40] sm:$0xff]
    %v2792 = vld [vmem:[%s2782 + $0x48] sm:$0xff]
    %v2793 = vld [vmem:[%s2782 + $0x50] sm:$0xff]
    %v2794 = vld [vmem:[%s2782 + $0x58] sm:$0xff]
    %v2795 = vld [vmem:[%s2782 + $0x60] sm:$0xff]
    %v2796 = vld [vmem:[%s2782 + $0x68] sm:$0xff]
    %v2797 = vld [vmem:[%s2782 + $0x70] sm:$0xff]
    %v2798 = vld [vmem:[%s2782 + $0x78] sm:$0xff]
    %2799 = vmatprep.subr.bf16.mxu0 0
    %2800 = vmatpush1.bf16.msra.mxu0 %v2783
    %2801 = vmatprep.subr.bf16.mxu0 0
    %2802 = vmatpush1.bf16.msra.mxu0 %v2784
    %2803 = vmatprep.subr.bf16.mxu0 0
    %2804 = vmatpush1.bf16.msra.mxu0 %v2785
    %2805 = vmatprep.subr.bf16.mxu0 0
    %2806 = vmatpush1.bf16.msra.mxu0 %v2786
    %2807 = vmatprep.subr.bf16.mxu0 0
    %2808 = vmatpush1.bf16.msra.mxu0 %v2787
    %2809 = vmatprep.subr.bf16.mxu0 0
    %2810 = vmatpush1.bf16.msra.mxu0 %v2788
    %2811 = vmatprep.subr.bf16.mxu0 0
    %2812 = vmatpush1.bf16.msra.mxu0 %v2789
    %2813 = vmatprep.subr.bf16.mxu0 0
    %2814 = vmatpush1.bf16.msra.mxu0 %v2790
    %2815 = vmatprep.subr.bf16.mxu0 0
    %2816 = vmatpush1.bf16.msra.mxu0 %v2791
    %2817 = vmatprep.subr.bf16.mxu0 0
    %2818 = vmatpush1.bf16.msra.mxu0 %v2792
    %2819 = vmatprep.subr.bf16.mxu0 0
    %2820 = vmatpush1.bf16.msra.mxu0 %v2793
    %2821 = vmatprep.subr.bf16.mxu0 0
    %2822 = vmatpush1.bf16.msra.mxu0 %v2794
    %2823 = vmatprep.subr.bf16.mxu0 0
    %2824 = vmatpush1.bf16.msra.mxu0 %v2795
    %2825 = vmatprep.subr.bf16.mxu0 0
    %2826 = vmatpush1.bf16.msra.mxu0 %v2796
    %2827 = vmatprep.subr.bf16.mxu0 0
    %2828 = vmatpush1.bf16.msra.mxu0 %v2797
    %2829 = vmatprep.subr.bf16.mxu0 0
    %2830 = vmatpush1.bf16.msra.mxu0 %v2798
    %2831 = vmatprep.mubr.bf16.mxu0 %v2781
    %2832 = vmatmul.mubr.bf16.gmra.mrb[0].mxu0 %v2780
    %v2833 = vpop.f32.mrb[0].mxu0
    %v2834 = vadd.f32 0.0, %v2833
    %v2835 = vpop.f32.mrb[0].mxu0
    %v2836 = vpop.f32.mrb[0].mxu0
    %v2837 = vpop.f32.mrb[0].mxu0
    %2838 = vdwg.mxu0
    %v2839 = vadd.f32 %v2743, %v2834
    %s2840 = sshll.u32 %s1303, 4
    %2841 = dma.done %s331, %s2840
    %s2842 = sld [smem:[#allocation22 + $0x10]]
    %v2843 = vstv %s2842
    %v2844 = vmul.f32 %v2843, %v1297
    %v2845 = vmul.f32 %v2843, %v1298
    %s2846 = sld [smem:[#allocation22 + $0x90]]
    %v2847 = vstv %s2846
    %v2848 = vmul.f32 %v2847, %v428
    %v2849 = vmul.f32 %v2847, %v429
    %v2850 = vadd.f32 %v2844, %v2848
    %v2851 = vadd.f32 %v2845, %v2849
    %s2852 = sld [smem:[#allocation22 + $0x110]]
    %v2853 = vstv %s2852
    %v2854 = vmul.f32 %v2853, %v1299
    %v2855 = vmul.f32 %v2853, %v1300
    %v2856 = vadd.f32 %v2850, %v2854
    %v2857 = vadd.f32 %v2851, %v2855
    %s2858 = sld [smem:[#allocation22 + $0x190]]
    %v2859 = vstv %s2858
    %v2860 = vadd.f32 %v2856, %v2859
    %v2861 = vadd.f32 %v2857, %v2859
    %v2862 = vmin.f32 %v2860, 0.0
    %v2863 = vmin.f32 %v2861, 0.0
    %v2864 = vmul.f32 %v2862, 1.442695
    %v2865 = vpow.pop %v2864
    %v2866 = vmul.f32 %v2863, 1.442695
    %v2867 = vpow.pop %v2866
    %v2868 = vsub.f32 %v2865, 1.0
    %v2869 = vsub.f32 %v2867, 1.0
    %v2870 = vmul.f32 %v2868, 1.6732632
    %v2871 = vmul.f32 %v2869, 1.6732632
    %vm2872 = vcmp.gt.f32.partialorder %v2860, 0.0
    %vm2873 = vcmp.gt.f32.partialorder %v2861, 0.0
    %v2874 = vsel %vm2872, %v2860, %v2870
    %v2875 = vsel %vm2873, %v2861, %v2871
    %v2876 = vmul.f32 %v2874, 1.050701
    %v2877 = vmul.f32 %v2875, 1.050701
    %v2878 = vpack.c.bf16 %v2876, %v2876
    %v2879 = vpack.c.bf16 %v2877, %v2877
    %v2880 = vld [vmem:[%s330] sm:$0xff]
    %v2881 = vld [vmem:[%s330 + $0x8] sm:$0xff]
    %v2882 = vld [vmem:[%s330 + $0x10] sm:$0xff]
    %v2883 = vld [vmem:[%s330 + $0x18] sm:$0xff]
    %v2884 = vld [vmem:[%s330 + $0x20] sm:$0xff]
    %v2885 = vld [vmem:[%s330 + $0x28] sm:$0xff]
    %v2886 = vld [vmem:[%s330 + $0x30] sm:$0xff]
    %v2887 = vld [vmem:[%s330 + $0x38] sm:$0xff]
    %v2888 = vld [vmem:[%s330 + $0x40] sm:$0xff]
    %v2889 = vld [vmem:[%s330 + $0x48] sm:$0xff]
    %v2890 = vld [vmem:[%s330 + $0x50] sm:$0xff]
    %v2891 = vld [vmem:[%s330 + $0x58] sm:$0xff]
    %v2892 = vld [vmem:[%s330 + $0x60] sm:$0xff]
    %v2893 = vld [vmem:[%s330 + $0x68] sm:$0xff]
    %v2894 = vld [vmem:[%s330 + $0x70] sm:$0xff]
    %v2895 = vld [vmem:[%s330 + $0x78] sm:$0xff]
    %2896 = vmatprep.subr.bf16.mxu0 0
    %2897 = vmatpush1.bf16.msra.mxu0 %v2880
    %2898 = vmatprep.subr.bf16.mxu0 0
    %2899 = vmatpush1.bf16.msra.mxu0 %v2881
    %2900 = vmatprep.subr.bf16.mxu0 0
    %2901 = vmatpush1.bf16.msra.mxu0 %v2882
    %2902 = vmatprep.subr.bf16.mxu0 0
    %2903 = vmatpush1.bf16.msra.mxu0 %v2883
    %2904 = vmatprep.subr.bf16.mxu0 0
    %2905 = vmatpush1.bf16.msra.mxu0 %v2884
    %2906 = vmatprep.subr.bf16.mxu0 0
    %2907 = vmatpush1.bf16.msra.mxu0 %v2885
    %2908 = vmatprep.subr.bf16.mxu0 0
    %2909 = vmatpush1.bf16.msra.mxu0 %v2886
    %2910 = vmatprep.subr.bf16.mxu0 0
    %2911 = vmatpush1.bf16.msra.mxu0 %v2887
    %2912 = vmatprep.subr.bf16.mxu0 0
    %2913 = vmatpush1.bf16.msra.mxu0 %v2888
    %2914 = vmatprep.subr.bf16.mxu0 0
    %2915 = vmatpush1.bf16.msra.mxu0 %v2889
    %2916 = vmatprep.subr.bf16.mxu0 0
    %2917 = vmatpush1.bf16.msra.mxu0 %v2890
    %2918 = vmatprep.subr.bf16.mxu0 0
    %2919 = vmatpush1.bf16.msra.mxu0 %v2891
    %2920 = vmatprep.subr.bf16.mxu0 0
    %2921 = vmatpush1.bf16.msra.mxu0 %v2892
    %2922 = vmatprep.subr.bf16.mxu0 0
    %2923 = vmatpush1.bf16.msra.mxu0 %v2893
    %2924 = vmatprep.subr.bf16.mxu0 0
    %2925 = vmatpush1.bf16.msra.mxu0 %v2894
    %2926 = vmatprep.subr.bf16.mxu0 0
    %2927 = vmatpush1.bf16.msra.mxu0 %v2895
    %2928 = vmatprep.mubr.bf16.mxu0 %v2879
    %2929 = vmatmul.mubr.bf16.gmra.mrb[0].mxu0 %v2878
    %v2930 = vpop.f32.mrb[0].mxu0
    %v2931 = vadd.f32 0.0, %v2930
    %v2932 = vpop.f32.mrb[0].mxu0
    %v2933 = vpop.f32.mrb[0].mxu0
    %v2934 = vpop.f32.mrb[0].mxu0
    %2935 = vdwg.mxu0
    %v2936 = vadd.f32 %v2839, %v2931
    %s2937 = sld [smem:[#allocation22 + $0x11]]
    %v2938 = vstv %s2937
    %v2939 = vmul.f32 %v2938, %v1297
    %v2940 = vmul.f32 %v2938, %v1298
    %s2941 = sld [smem:[#allocation22 + $0x91]]
    %v2942 = vstv %s2941
    %v2943 = vmul.f32 %v2942, %v428
    %v2944 = vmul.f32 %v2942, %v429
    %v2945 = vadd.f32 %v2939, %v2943
    %v2946 = vadd.f32 %v2940, %v2944
    %s2947 = sld [smem:[#allocation22 + $0x111]]
    %v2948 = vstv %s2947
    %v2949 = vmul.f32 %v2948, %v1299
    %v2950 = vmul.f32 %v2948, %v1300
    %v2951 = vadd.f32 %v2945, %v2949
    %v2952 = vadd.f32 %v2946, %v2950
    %s2953 = sld [smem:[#allocation22 + $0x191]]
    %v2954 = vstv %s2953
    %v2955 = vadd.f32 %v2951, %v2954
    %v2956 = vadd.f32 %v2952, %v2954
    %v2957 = vmin.f32 %v2955, 0.0
    %v2958 = vmin.f32 %v2956, 0.0
    %v2959 = vmul.f32 %v2957, 1.442695
    %v2960 = vpow.pop %v2959
    %v2961 = vmul.f32 %v2958, 1.442695
    %v2962 = vpow.pop %v2961
    %v2963 = vsub.f32 %v2960, 1.0
    %v2964 = vsub.f32 %v2962, 1.0
    %v2965 = vmul.f32 %v2963, 1.6732632
    %v2966 = vmul.f32 %v2964, 1.6732632
    %vm2967 = vcmp.gt.f32.partialorder %v2955, 0.0
    %vm2968 = vcmp.gt.f32.partialorder %v2956, 0.0
    %v2969 = vsel %vm2967, %v2955, %v2965
    %v2970 = vsel %vm2968, %v2956, %v2966
    %v2971 = vmul.f32 %v2969, 1.050701
    %v2972 = vmul.f32 %v2970, 1.050701
    %v2973 = vpack.c.bf16 %v2971, %v2971
    %v2974 = vpack.c.bf16 %v2972, %v2972
    %s2975 = scalar_lea.vmem [#allocation2], 2176
    %v2976 = vld [vmem:[%s2975] sm:$0xff]
    %v2977 = vld [vmem:[%s2975 + $0x8] sm:$0xff]
    %v2978 = vld [vmem:[%s2975 + $0x10] sm:$0xff]
    %v2979 = vld [vmem:[%s2975 + $0x18] sm:$0xff]
    %v2980 = vld [vmem:[%s2975 + $0x20] sm:$0xff]
    %v2981 = vld [vmem:[%s2975 + $0x28] sm:$0xff]
    %v2982 = vld [vmem:[%s2975 + $0x30] sm:$0xff]
    %v2983 = vld [vmem:[%s2975 + $0x38] sm:$0xff]
    %v2984 = vld [vmem:[%s2975 + $0x40] sm:$0xff]
    %v2985 = vld [vmem:[%s2975 + $0x48] sm:$0xff]
    %v2986 = vld [vmem:[%s2975 + $0x50] sm:$0xff]
    %v2987 = vld [vmem:[%s2975 + $0x58] sm:$0xff]
    %v2988 = vld [vmem:[%s2975 + $0x60] sm:$0xff]
    %v2989 = vld [vmem:[%s2975 + $0x68] sm:$0xff]
    %v2990 = vld [vmem:[%s2975 + $0x70] sm:$0xff]
    %v2991 = vld [vmem:[%s2975 + $0x78] sm:$0xff]
    %2992 = vmatprep.subr.bf16.mxu0 0
    %2993 = vmatpush1.bf16.msra.mxu0 %v2976
    %2994 = vmatprep.subr.bf16.mxu0 0
    %2995 = vmatpush1.bf16.msra.mxu0 %v2977
    %2996 = vmatprep.subr.bf16.mxu0 0
    %2997 = vmatpush1.bf16.msra.mxu0 %v2978
    %2998 = vmatprep.subr.bf16.mxu0 0
    %2999 = vmatpush1.bf16.msra.mxu0 %v2979
    %3000 = vmatprep.subr.bf16.mxu0 0
    %3001 = vmatpush1.bf16.msra.mxu0 %v2980
    %3002 = vmatprep.subr.bf16.mxu0 0
    %3003 = vmatpush1.bf16.msra.mxu0 %v2981
    %3004 = vmatprep.subr.bf16.mxu0 0
    %3005 = vmatpush1.bf16.msra.mxu0 %v2982
    %3006 = vmatprep.subr.bf16.mxu0 0
    %3007 = vmatpush1.bf16.msra.mxu0 %v2983
    %3008 = vmatprep.subr.bf16.mxu0 0
    %3009 = vmatpush1.bf16.msra.mxu0 %v2984
    %3010 = vmatprep.subr.bf16.mxu0 0
    %3011 = vmatpush1.bf16.msra.mxu0 %v2985
    %3012 = vmatprep.subr.bf16.mxu0 0
    %3013 = vmatpush1.bf16.msra.mxu0 %v2986
    %3014 = vmatprep.subr.bf16.mxu0 0
    %3015 = vmatpush1.bf16.msra.mxu0 %v2987
    %3016 = vmatprep.subr.bf16.mxu0 0
    %3017 = vmatpush1.bf16.msra.mxu0 %v2988
    %3018 = vmatprep.subr.bf16.mxu0 0
    %3019 = vmatpush1.bf16.msra.mxu0 %v2989
    %3020 = vmatprep.subr.bf16.mxu0 0
    %3021 = vmatpush1.bf16.msra.mxu0 %v2990
    %3022 = vmatprep.subr.bf16.mxu0 0
    %3023 = vmatpush1.bf16.msra.mxu0 %v2991
    %3024 = vmatprep.mubr.bf16.mxu0 %v2974
    %3025 = vmatmul.mubr.bf16.gmra.mrb[0].mxu0 %v2973
    %v3026 = vpop.f32.mrb[0].mxu0
    %v3027 = vadd.f32 0.0, %v3026
    %v3028 = vpop.f32.mrb[0].mxu0
    %v3029 = vpop.f32.mrb[0].mxu0
    %v3030 = vpop.f32.mrb[0].mxu0
    %3031 = vdwg.mxu0
    %v3032 = vadd.f32 %v2936, %v3027
    %s3033 = sld [smem:[#allocation22 + $0x12]]
    %v3034 = vstv %s3033
    %v3035 = vmul.f32 %v3034, %v1297
    %v3036 = vmul.f32 %v3034, %v1298
    %s3037 = sld [smem:[#allocation22 + $0x92]]
    %v3038 = vstv %s3037
    %v3039 = vmul.f32 %v3038, %v428
    %v3040 = vmul.f32 %v3038, %v429
    %v3041 = vadd.f32 %v3035, %v3039
    %v3042 = vadd.f32 %v3036, %v3040
    %s3043 = sld [smem:[#allocation22 + $0x112]]
    %v3044 = vstv %s3043
    %v3045 = vmul.f32 %v3044, %v1299
    %v3046 = vmul.f32 %v3044, %v1300
    %v3047 = vadd.f32 %v3041, %v3045
    %v3048 = vadd.f32 %v3042, %v3046
    %s3049 = sld [smem:[#allocation22 + $0x192]]
    %v3050 = vstv %s3049
    %v3051 = vadd.f32 %v3047, %v3050
    %v3052 = vadd.f32 %v3048, %v3050
    %v3053 = vmin.f32 %v3051, 0.0
    %v3054 = vmin.f32 %v3052, 0.0
    %v3055 = vmul.f32 %v3053, 1.442695
    %v3056 = vpow.pop %v3055
    %v3057 = vmul.f32 %v3054, 1.442695
    %v3058 = vpow.pop %v3057
    %v3059 = vsub.f32 %v3056, 1.0
    %v3060 = vsub.f32 %v3058, 1.0
    %v3061 = vmul.f32 %v3059, 1.6732632
    %v3062 = vmul.f32 %v3060, 1.6732632
    %vm3063 = vcmp.gt.f32.partialorder %v3051, 0.0
    %vm3064 = vcmp.gt.f32.partialorder %v3052, 0.0
    %v3065 = vsel %vm3063, %v3051, %v3061
    %v3066 = vsel %vm3064, %v3052, %v3062
    %v3067 = vmul.f32 %v3065, 1.050701
    %v3068 = vmul.f32 %v3066, 1.050701
    %v3069 = vpack.c.bf16 %v3067, %v3067
    %v3070 = vpack.c.bf16 %v3068, %v3068
    %s3071 = scalar_lea.vmem [#allocation2], 2304
    %v3072 = vld [vmem:[%s3071] sm:$0xff]
    %v3073 = vld [vmem:[%s3071 + $0x8] sm:$0xff]
    %v3074 = vld [vmem:[%s3071 + $0x10] sm:$0xff]
    %v3075 = vld [vmem:[%s3071 + $0x18] sm:$0xff]
    %v3076 = vld [vmem:[%s3071 + $0x20] sm:$0xff]
    %v3077 = vld [vmem:[%s3071 + $0x28] sm:$0xff]
    %v3078 = vld [vmem:[%s3071 + $0x30] sm:$0xff]
    %v3079 = vld [vmem:[%s3071 + $0x38] sm:$0xff]
    %v3080 = vld [vmem:[%s3071 + $0x40] sm:$0xff]
    %v3081 = vld [vmem:[%s3071 + $0x48] sm:$0xff]
    %v3082 = vld [vmem:[%s3071 + $0x50] sm:$0xff]
    %v3083 = vld [vmem:[%s3071 + $0x58] sm:$0xff]
    %v3084 = vld [vmem:[%s3071 + $0x60] sm:$0xff]
    %v3085 = vld [vmem:[%s3071 + $0x68] sm:$0xff]
    %v3086 = vld [vmem:[%s3071 + $0x70] sm:$0xff]
    %v3087 = vld [vmem:[%s3071 + $0x78] sm:$0xff]
    %3088 = vmatprep.subr.bf16.mxu0 0
    %3089 = vmatpush1.bf16.msra.mxu0 %v3072
    %3090 = vmatprep.subr.bf16.mxu0 0
    %3091 = vmatpush1.bf16.msra.mxu0 %v3073
    %3092 = vmatprep.subr.bf16.mxu0 0
    %3093 = vmatpush1.bf16.msra.mxu0 %v3074
    %3094 = vmatprep.subr.bf16.mxu0 0
    %3095 = vmatpush1.bf16.msra.mxu0 %v3075
    %3096 = vmatprep.subr.bf16.mxu0 0
    %3097 = vmatpush1.bf16.msra.mxu0 %v3076
    %3098 = vmatprep.subr.bf16.mxu0 0
    %3099 = vmatpush1.bf16.msra.mxu0 %v3077
    %3100 = vmatprep.subr.bf16.mxu0 0
    %3101 = vmatpush1.bf16.msra.mxu0 %v3078
    %3102 = vmatprep.subr.bf16.mxu0 0
    %3103 = vmatpush1.bf16.msra.mxu0 %v3079
    %3104 = vmatprep.subr.bf16.mxu0 0
    %3105 = vmatpush1.bf16.msra.mxu0 %v3080
    %3106 = vmatprep.subr.bf16.mxu0 0
    %3107 = vmatpush1.bf16.msra.mxu0 %v3081
    %3108 = vmatprep.subr.bf16.mxu0 0
    %3109 = vmatpush1.bf16.msra.mxu0 %v3082
    %3110 = vmatprep.subr.bf16.mxu0 0
    %3111 = vmatpush1.bf16.msra.mxu0 %v3083
    %3112 = vmatprep.subr.bf16.mxu0 0
    %3113 = vmatpush1.bf16.msra.mxu0 %v3084
    %3114 = vmatprep.subr.bf16.mxu0 0
    %3115 = vmatpush1.bf16.msra.mxu0 %v3085
    %3116 = vmatprep.subr.bf16.mxu0 0
    %3117 = vmatpush1.bf16.msra.mxu0 %v3086
    %3118 = vmatprep.subr.bf16.mxu0 0
    %3119 = vmatpush1.bf16.msra.mxu0 %v3087
    %3120 = vmatprep.mubr.bf16.mxu0 %v3070
    %3121 = vmatmul.mubr.bf16.gmra.mrb[0].mxu0 %v3069
    %v3122 = vpop.f32.mrb[0].mxu0
    %v3123 = vadd.f32 0.0, %v3122
    %v3124 = vpop.f32.mrb[0].mxu0
    %v3125 = vpop.f32.mrb[0].mxu0
    %v3126 = vpop.f32.mrb[0].mxu0
    %3127 = vdwg.mxu0
    %v3128 = vadd.f32 %v3032, %v3123
    %s3129 = sld [smem:[#allocation22 + $0x13]]
    %v3130 = vstv %s3129
    %v3131 = vmul.f32 %v3130, %v1297
    %v3132 = vmul.f32 %v3130, %v1298
    %s3133 = sld [smem:[#allocation22 + $0x93]]
    %v3134 = vstv %s3133
    %v3135 = vmul.f32 %v3134, %v428
    %v3136 = vmul.f32 %v3134, %v429
    %v3137 = vadd.f32 %v3131, %v3135
    %v3138 = vadd.f32 %v3132, %v3136
    %s3139 = sld [smem:[#allocation22 + $0x113]]
    %v3140 = vstv %s3139
    %v3141 = vmul.f32 %v3140, %v1299
    %v3142 = vmul.f32 %v3140, %v1300
    %v3143 = vadd.f32 %v3137, %v3141
    %v3144 = vadd.f32 %v3138, %v3142
    %s3145 = sld [smem:[#allocation22 + $0x193]]
    %v3146 = vstv %s3145
    %v3147 = vadd.f32 %v3143, %v3146
    %v3148 = vadd.f32 %v3144, %v3146
    %v3149 = vmin.f32 %v3147, 0.0
    %v3150 = vmin.f32 %v3148, 0.0
    %v3151 = vmul.f32 %v3149, 1.442695
    %v3152 = vpow.pop %v3151
    %v3153 = vmul.f32 %v3150, 1.442695
    %v3154 = vpow.pop %v3153
    %v3155 = vsub.f32 %v3152, 1.0
    %v3156 = vsub.f32 %v3154, 1.0
    %v3157 = vmul.f32 %v3155, 1.6732632
    %v3158 = vmul.f32 %v3156, 1.6732632
    %vm3159 = vcmp.gt.f32.partialorder %v3147, 0.0
    %vm3160 = vcmp.gt.f32.partialorder %v3148, 0.0
    %v3161 = vsel %vm3159, %v3147, %v3157
    %v3162 = vsel %vm3160, %v3148, %v3158
    %v3163 = vmul.f32 %v3161, 1.050701
    %v3164 = vmul.f32 %v3162, 1.050701
    %v3165 = vpack.c.bf16 %v3163, %v3163
    %v3166 = vpack.c.bf16 %v3164, %v3164
    %s3167 = scalar_lea.vmem [#allocation2], 2432
    %v3168 = vld [vmem:[%s3167] sm:$0xff]
    %v3169 = vld [vmem:[%s3167 + $0x8] sm:$0xff]
    %v3170 = vld [vmem:[%s3167 + $0x10] sm:$0xff]
    %v3171 = vld [vmem:[%s3167 + $0x18] sm:$0xff]
    %v3172 = vld [vmem:[%s3167 + $0x20] sm:$0xff]
    %v3173 = vld [vmem:[%s3167 + $0x28] sm:$0xff]
    %v3174 = vld [vmem:[%s3167 + $0x30] sm:$0xff]
    %v3175 = vld [vmem:[%s3167 + $0x38] sm:$0xff]
    %v3176 = vld [vmem:[%s3167 + $0x40] sm:$0xff]
    %v3177 = vld [vmem:[%s3167 + $0x48] sm:$0xff]
    %v3178 = vld [vmem:[%s3167 + $0x50] sm:$0xff]
    %v3179 = vld [vmem:[%s3167 + $0x58] sm:$0xff]
    %v3180 = vld [vmem:[%s3167 + $0x60] sm:$0xff]
    %v3181 = vld [vmem:[%s3167 + $0x68] sm:$0xff]
    %v3182 = vld [vmem:[%s3167 + $0x70] sm:$0xff]
    %v3183 = vld [vmem:[%s3167 + $0x78] sm:$0xff]
    %3184 = vmatprep.subr.bf16.mxu0 0
    %3185 = vmatpush1.bf16.msra.mxu0 %v3168
    %3186 = vmatprep.subr.bf16.mxu0 0
    %3187 = vmatpush1.bf16.msra.mxu0 %v3169
    %3188 = vmatprep.subr.bf16.mxu0 0
    %3189 = vmatpush1.bf16.msra.mxu0 %v3170
    %3190 = vmatprep.subr.bf16.mxu0 0
    %3191 = vmatpush1.bf16.msra.mxu0 %v3171
    %3192 = vmatprep.subr.bf16.mxu0 0
    %3193 = vmatpush1.bf16.msra.mxu0 %v3172
    %3194 = vmatprep.subr.bf16.mxu0 0
    %3195 = vmatpush1.bf16.msra.mxu0 %v3173
    %3196 = vmatprep.subr.bf16.mxu0 0
    %3197 = vmatpush1.bf16.msra.mxu0 %v3174
    %3198 = vmatprep.subr.bf16.mxu0 0
    %3199 = vmatpush1.bf16.msra.mxu0 %v3175
    %3200 = vmatprep.subr.bf16.mxu0 0
    %3201 = vmatpush1.bf16.msra.mxu0 %v3176
    %3202 = vmatprep.subr.bf16.mxu0 0
    %3203 = vmatpush1.bf16.msra.mxu0 %v3177
    %3204 = vmatprep.subr.bf16.mxu0 0
    %3205 = vmatpush1.bf16.msra.mxu0 %v3178
    %3206 = vmatprep.subr.bf16.mxu0 0
    %3207 = vmatpush1.bf16.msra.mxu0 %v3179
    %3208 = vmatprep.subr.bf16.mxu0 0
    %3209 = vmatpush1.bf16.msra.mxu0 %v3180
    %3210 = vmatprep.subr.bf16.mxu0 0
    %3211 = vmatpush1.bf16.msra.mxu0 %v3181
    %3212 = vmatprep.subr.bf16.mxu0 0
    %3213 = vmatpush1.bf16.msra.mxu0 %v3182
    %3214 = vmatprep.subr.bf16.mxu0 0
    %3215 = vmatpush1.bf16.msra.mxu0 %v3183
    %3216 = vmatprep.mubr.bf16.mxu0 %v3166
    %3217 = vmatmul.mubr.bf16.gmra.mrb[0].mxu0 %v3165
    %v3218 = vpop.f32.mrb[0].mxu0
    %v3219 = vadd.f32 0.0, %v3218
    %v3220 = vpop.f32.mrb[0].mxu0
    %v3221 = vpop.f32.mrb[0].mxu0
    %v3222 = vpop.f32.mrb[0].mxu0
    %3223 = vdwg.mxu0
    %v3224 = vadd.f32 %v3128, %v3219
    %s3225 = sld [smem:[#allocation22 + $0x14]]
    %v3226 = vstv %s3225
    %v3227 = vmul.f32 %v3226, %v1297
    %v3228 = vmul.f32 %v3226, %v1298
    %s3229 = sld [smem:[#allocation22 + $0x94]]
    %v3230 = vstv %s3229
    %v3231 = vmul.f32 %v3230, %v428
    %v3232 = vmul.f32 %v3230, %v429
    %v3233 = vadd.f32 %v3227, %v3231
    %v3234 = vadd.f32 %v3228, %v3232
    %s3235 = sld [smem:[#allocation22 + $0x114]]
    %v3236 = vstv %s3235
    %v3237 = vmul.f32 %v3236, %v1299
    %v3238 = vmul.f32 %v3236, %v1300
    %v3239 = vadd.f32 %v3233, %v3237
    %v3240 = vadd.f32 %v3234, %v3238
    %s3241 = sld [smem:[#allocation22 + $0x194]]
    %v3242 = vstv %s3241
    %v3243 = vadd.f32 %v3239, %v3242
    %v3244 = vadd.f32 %v3240, %v3242
    %v3245 = vmin.f32 %v3243, 0.0
    %v3246 = vmin.f32 %v3244, 0.0
    %v3247 = vmul.f32 %v3245, 1.442695
    %v3248 = vpow.pop %v3247
    %v3249 = vmul.f32 %v3246, 1.442695
    %v3250 = vpow.pop %v3249
    %v3251 = vsub.f32 %v3248, 1.0
    %v3252 = vsub.f32 %v3250, 1.0
    %v3253 = vmul.f32 %v3251, 1.6732632
    %v3254 = vmul.f32 %v3252, 1.6732632
    %vm3255 = vcmp.gt.f32.partialorder %v3243, 0.0
    %vm3256 = vcmp.gt.f32.partialorder %v3244, 0.0
    %v3257 = vsel %vm3255, %v3243, %v3253
    %v3258 = vsel %vm3256, %v3244, %v3254
    %v3259 = vmul.f32 %v3257, 1.050701
    %v3260 = vmul.f32 %v3258, 1.050701
    %v3261 = vpack.c.bf16 %v3259, %v3259
    %v3262 = vpack.c.bf16 %v3260, %v3260
    %s3263 = scalar_lea.vmem [#allocation2], 2560
    %v3264 = vld [vmem:[%s3263] sm:$0xff]
    %v3265 = vld [vmem:[%s3263 + $0x8] sm:$0xff]
    %v3266 = vld [vmem:[%s3263 + $0x10] sm:$0xff]
    %v3267 = vld [vmem:[%s3263 + $0x18] sm:$0xff]
    %v3268 = vld [vmem:[%s3263 + $0x20] sm:$0xff]
    %v3269 = vld [vmem:[%s3263 + $0x28] sm:$0xff]
    %v3270 = vld [vmem:[%s3263 + $0x30] sm:$0xff]
    %v3271 = vld [vmem:[%s3263 + $0x38] sm:$0xff]
    %v3272 = vld [vmem:[%s3263 + $0x40] sm:$0xff]
    %v3273 = vld [vmem:[%s3263 + $0x48] sm:$0xff]
    %v3274 = vld [vmem:[%s3263 + $0x50] sm:$0xff]
    %v3275 = vld [vmem:[%s3263 + $0x58] sm:$0xff]
    %v3276 = vld [vmem:[%s3263 + $0x60] sm:$0xff]
    %v3277 = vld [vmem:[%s3263 + $0x68] sm:$0xff]
    %v3278 = vld [vmem:[%s3263 + $0x70] sm:$0xff]
    %v3279 = vld [vmem:[%s3263 + $0x78] sm:$0xff]
    %3280 = vmatprep.subr.bf16.mxu0 0
    %3281 = vmatpush1.bf16.msra.mxu0 %v3264
    %3282 = vmatprep.subr.bf16.mxu0 0
    %3283 = vmatpush1.bf16.msra.mxu0 %v3265
    %3284 = vmatprep.subr.bf16.mxu0 0
    %3285 = vmatpush1.bf16.msra.mxu0 %v3266
    %3286 = vmatprep.subr.bf16.mxu0 0
    %3287 = vmatpush1.bf16.msra.mxu0 %v3267
    %3288 = vmatprep.subr.bf16.mxu0 0
    %3289 = vmatpush1.bf16.msra.mxu0 %v3268
    %3290 = vmatprep.subr.bf16.mxu0 0
    %3291 = vmatpush1.bf16.msra.mxu0 %v3269
    %3292 = vmatprep.subr.bf16.mxu0 0
    %3293 = vmatpush1.bf16.msra.mxu0 %v3270
    %3294 = vmatprep.subr.bf16.mxu0 0
    %3295 = vmatpush1.bf16.msra.mxu0 %v3271
    %3296 = vmatprep.subr.bf16.mxu0 0
    %3297 = vmatpush1.bf16.msra.mxu0 %v3272
    %3298 = vmatprep.subr.bf16.mxu0 0
    %3299 = vmatpush1.bf16.msra.mxu0 %v3273
    %3300 = vmatprep.subr.bf16.mxu0 0
    %3301 = vmatpush1.bf16.msra.mxu0 %v3274
    %3302 = vmatprep.subr.bf16.mxu0 0
    %3303 = vmatpush1.bf16.msra.mxu0 %v3275
    %3304 = vmatprep.subr.bf16.mxu0 0
    %3305 = vmatpush1.bf16.msra.mxu0 %v3276
    %3306 = vmatprep.subr.bf16.mxu0 0
    %3307 = vmatpush1.bf16.msra.mxu0 %v3277
    %3308 = vmatprep.subr.bf16.mxu0 0
    %3309 = vmatpush1.bf16.msra.mxu0 %v3278
    %3310 = vmatprep.subr.bf16.mxu0 0
    %3311 = vmatpush1.bf16.msra.mxu0 %v3279
    %3312 = vmatprep.mubr.bf16.mxu0 %v3262
    %3313 = vmatmul.mubr.bf16.gmra.mrb[0].mxu0 %v3261
    %v3314 = vpop.f32.mrb[0].mxu0
    %v3315 = vadd.f32 0.0, %v3314
    %v3316 = vpop.f32.mrb[0].mxu0
    %v3317 = vpop.f32.mrb[0].mxu0
    %v3318 = vpop.f32.mrb[0].mxu0
    %3319 = vdwg.mxu0
    %v3320 = vadd.f32 %v3224, %v3315
    %s3321 = sld [smem:[#allocation22 + $0x15]]
    %v3322 = vstv %s3321
    %v3323 = vmul.f32 %v3322, %v1297
    %v3324 = vmul.f32 %v3322, %v1298
    %s3325 = sld [smem:[#allocation22 + $0x95]]
    %v3326 = vstv %s3325
    %v3327 = vmul.f32 %v3326, %v428
    %v3328 = vmul.f32 %v3326, %v429
    %v3329 = vadd.f32 %v3323, %v3327
    %v3330 = vadd.f32 %v3324, %v3328
    %s3331 = sld [smem:[#allocation22 + $0x115]]
    %v3332 = vstv %s3331
    %v3333 = vmul.f32 %v3332, %v1299
    %v3334 = vmul.f32 %v3332, %v1300
    %v3335 = vadd.f32 %v3329, %v3333
    %v3336 = vadd.f32 %v3330, %v3334
    %s3337 = sld [smem:[#allocation22 + $0x195]]
    %v3338 = vstv %s3337
    %v3339 = vadd.f32 %v3335, %v3338
    %v3340 = vadd.f32 %v3336, %v3338
    %v3341 = vmin.f32 %v3339, 0.0
    %v3342 = vmin.f32 %v3340, 0.0
    %v3343 = vmul.f32 %v3341, 1.442695
    %v3344 = vpow.pop %v3343
    %v3345 = vmul.f32 %v3342, 1.442695
    %v3346 = vpow.pop %v3345
    %v3347 = vsub.f32 %v3344, 1.0
    %v3348 = vsub.f32 %v3346, 1.0
    %v3349 = vmul.f32 %v3347, 1.6732632
    %v3350 = vmul.f32 %v3348, 1.6732632
    %vm3351 = vcmp.gt.f32.partialorder %v3339, 0.0
    %vm3352 = vcmp.gt.f32.partialorder %v3340, 0.0
    %v3353 = vsel %vm3351, %v3339, %v3349
    %v3354 = vsel %vm3352, %v3340, %v3350
    %v3355 = vmul.f32 %v3353, 1.050701
    %v3356 = vmul.f32 %v3354, 1.050701
    %v3357 = vpack.c.bf16 %v3355, %v3355
    %v3358 = vpack.c.bf16 %v3356, %v3356
    %s3359 = scalar_lea.vmem [#allocation2], 2688
    %v3360 = vld [vmem:[%s3359] sm:$0xff]
    %v3361 = vld [vmem:[%s3359 + $0x8] sm:$0xff]
    %v3362 = vld [vmem:[%s3359 + $0x10] sm:$0xff]
    %v3363 = vld [vmem:[%s3359 + $0x18] sm:$0xff]
    %v3364 = vld [vmem:[%s3359 + $0x20] sm:$0xff]
    %v3365 = vld [vmem:[%s3359 + $0x28] sm:$0xff]
    %v3366 = vld [vmem:[%s3359 + $0x30] sm:$0xff]
    %v3367 = vld [vmem:[%s3359 + $0x38] sm:$0xff]
    %v3368 = vld [vmem:[%s3359 + $0x40] sm:$0xff]
    %v3369 = vld [vmem:[%s3359 + $0x48] sm:$0xff]
    %v3370 = vld [vmem:[%s3359 + $0x50] sm:$0xff]
    %v3371 = vld [vmem:[%s3359 + $0x58] sm:$0xff]
    %v3372 = vld [vmem:[%s3359 + $0x60] sm:$0xff]
    %v3373 = vld [vmem:[%s3359 + $0x68] sm:$0xff]
    %v3374 = vld [vmem:[%s3359 + $0x70] sm:$0xff]
    %v3375 = vld [vmem:[%s3359 + $0x78] sm:$0xff]
    %3376 = vmatprep.subr.bf16.mxu0 0
    %3377 = vmatpush1.bf16.msra.mxu0 %v3360
    %3378 = vmatprep.subr.bf16.mxu0 0
    %3379 = vmatpush1.bf16.msra.mxu0 %v3361
    %3380 = vmatprep.subr.bf16.mxu0 0
    %3381 = vmatpush1.bf16.msra.mxu0 %v3362
    %3382 = vmatprep.subr.bf16.mxu0 0
    %3383 = vmatpush1.bf16.msra.mxu0 %v3363
    %3384 = vmatprep.subr.bf16.mxu0 0
    %3385 = vmatpush1.bf16.msra.mxu0 %v3364
    %3386 = vmatprep.subr.bf16.mxu0 0
    %3387 = vmatpush1.bf16.msra.mxu0 %v3365
    %3388 = vmatprep.subr.bf16.mxu0 0
    %3389 = vmatpush1.bf16.msra.mxu0 %v3366
    %3390 = vmatprep.subr.bf16.mxu0 0
    %3391 = vmatpush1.bf16.msra.mxu0 %v3367
    %3392 = vmatprep.subr.bf16.mxu0 0
    %3393 = vmatpush1.bf16.msra.mxu0 %v3368
    %3394 = vmatprep.subr.bf16.mxu0 0
    %3395 = vmatpush1.bf16.msra.mxu0 %v3369
    %3396 = vmatprep.subr.bf16.mxu0 0
    %3397 = vmatpush1.bf16.msra.mxu0 %v3370
    %3398 = vmatprep.subr.bf16.mxu0 0
    %3399 = vmatpush1.bf16.msra.mxu0 %v3371
    %3400 = vmatprep.subr.bf16.mxu0 0
    %3401 = vmatpush1.bf16.msra.mxu0 %v3372
    %3402 = vmatprep.subr.bf16.mxu0 0
    %3403 = vmatpush1.bf16.msra.mxu0 %v3373
    %3404 = vmatprep.subr.bf16.mxu0 0
    %3405 = vmatpush1.bf16.msra.mxu0 %v3374
    %3406 = vmatprep.subr.bf16.mxu0 0
    %3407 = vmatpush1.bf16.msra.mxu0 %v3375
    %3408 = vmatprep.mubr.bf16.mxu0 %v3358
    %3409 = vmatmul.mubr.bf16.gmra.mrb[0].mxu0 %v3357
    %v3410 = vpop.f32.mrb[0].mxu0
    %v3411 = vadd.f32 0.0, %v3410
    %v3412 = vpop.f32.mrb[0].mxu0
    %v3413 = vpop.f32.mrb[0].mxu0
    %v3414 = vpop.f32.mrb[0].mxu0
    %3415 = vdwg.mxu0
    %v3416 = vadd.f32 %v3320, %v3411
    %s3417 = sld [smem:[#allocation22 + $0x16]]
    %v3418 = vstv %s3417
    %v3419 = vmul.f32 %v3418, %v1297
    %v3420 = vmul.f32 %v3418, %v1298
    %s3421 = sld [smem:[#allocation22 + $0x96]]
    %v3422 = vstv %s3421
    %v3423 = vmul.f32 %v3422, %v428
    %v3424 = vmul.f32 %v3422, %v429
    %v3425 = vadd.f32 %v3419, %v3423
    %v3426 = vadd.f32 %v3420, %v3424
    %s3427 = sld [smem:[#allocation22 + $0x116]]
    %v3428 = vstv %s3427
    %v3429 = vmul.f32 %v3428, %v1299
    %v3430 = vmul.f32 %v3428, %v1300
    %v3431 = vadd.f32 %v3425, %v3429
    %v3432 = vadd.f32 %v3426, %v3430
    %s3433 = sld [smem:[#allocation22 + $0x196]]
    %v3434 = vstv %s3433
    %v3435 = vadd.f32 %v3431, %v3434
    %v3436 = vadd.f32 %v3432, %v3434
    %v3437 = vmin.f32 %v3435, 0.0
    %v3438 = vmin.f32 %v3436, 0.0
    %v3439 = vmul.f32 %v3437, 1.442695
    %v3440 = vpow.pop %v3439
    %v3441 = vmul.f32 %v3438, 1.442695
    %v3442 = vpow.pop %v3441
    %v3443 = vsub.f32 %v3440, 1.0
    %v3444 = vsub.f32 %v3442, 1.0
    %v3445 = vmul.f32 %v3443, 1.6732632
    %v3446 = vmul.f32 %v3444, 1.6732632
    %vm3447 = vcmp.gt.f32.partialorder %v3435, 0.0
    %vm3448 = vcmp.gt.f32.partialorder %v3436, 0.0
    %v3449 = vsel %vm3447, %v3435, %v3445
    %v3450 = vsel %vm3448, %v3436, %v3446
    %v3451 = vmul.f32 %v3449, 1.050701
    %v3452 = vmul.f32 %v3450, 1.050701
    %v3453 = vpack.c.bf16 %v3451, %v3451
    %v3454 = vpack.c.bf16 %v3452, %v3452
    %s3455 = scalar_lea.vmem [#allocation2], 2816
    %v3456 = vld [vmem:[%s3455] sm:$0xff]
    %v3457 = vld [vmem:[%s3455 + $0x8] sm:$0xff]
    %v3458 = vld [vmem:[%s3455 + $0x10] sm:$0xff]
    %v3459 = vld [vmem:[%s3455 + $0x18] sm:$0xff]
    %v3460 = vld [vmem:[%s3455 + $0x20] sm:$0xff]
    %v3461 = vld [vmem:[%s3455 + $0x28] sm:$0xff]
    %v3462 = vld [vmem:[%s3455 + $0x30] sm:$0xff]
    %v3463 = vld [vmem:[%s3455 + $0x38] sm:$0xff]
    %v3464 = vld [vmem:[%s3455 + $0x40] sm:$0xff]
    %v3465 = vld [vmem:[%s3455 + $0x48] sm:$0xff]
    %v3466 = vld [vmem:[%s3455 + $0x50] sm:$0xff]
    %v3467 = vld [vmem:[%s3455 + $0x58] sm:$0xff]
    %v3468 = vld [vmem:[%s3455 + $0x60] sm:$0xff]
    %v3469 = vld [vmem:[%s3455 + $0x68] sm:$0xff]
    %v3470 = vld [vmem:[%s3455 + $0x70] sm:$0xff]
    %v3471 = vld [vmem:[%s3455 + $0x78] sm:$0xff]
    %3472 = vmatprep.subr.bf16.mxu0 0
    %3473 = vmatpush1.bf16.msra.mxu0 %v3456
    %3474 = vmatprep.subr.bf16.mxu0 0
    %3475 = vmatpush1.bf16.msra.mxu0 %v3457
    %3476 = vmatprep.subr.bf16.mxu0 0
    %3477 = vmatpush1.bf16.msra.mxu0 %v3458
    %3478 = vmatprep.subr.bf16.mxu0 0
    %3479 = vmatpush1.bf16.msra.mxu0 %v3459
    %3480 = vmatprep.subr.bf16.mxu0 0
    %3481 = vmatpush1.bf16.msra.mxu0 %v3460
    %3482 = vmatprep.subr.bf16.mxu0 0
    %3483 = vmatpush1.bf16.msra.mxu0 %v3461
    %3484 = vmatprep.subr.bf16.mxu0 0
    %3485 = vmatpush1.bf16.msra.mxu0 %v3462
    %3486 = vmatprep.subr.bf16.mxu0 0
    %3487 = vmatpush1.bf16.msra.mxu0 %v3463
    %3488 = vmatprep.subr.bf16.mxu0 0
    %3489 = vmatpush1.bf16.msra.mxu0 %v3464
    %3490 = vmatprep.subr.bf16.mxu0 0
    %3491 = vmatpush1.bf16.msra.mxu0 %v3465
    %3492 = vmatprep.subr.bf16.mxu0 0
    %3493 = vmatpush1.bf16.msra.mxu0 %v3466
    %3494 = vmatprep.subr.bf16.mxu0 0
    %3495 = vmatpush1.bf16.msra.mxu0 %v3467
    %3496 = vmatprep.subr.bf16.mxu0 0
    %3497 = vmatpush1.bf16.msra.mxu0 %v3468
    %3498 = vmatprep.subr.bf16.mxu0 0
    %3499 = vmatpush1.bf16.msra.mxu0 %v3469
    %3500 = vmatprep.subr.bf16.mxu0 0
    %3501 = vmatpush1.bf16.msra.mxu0 %v3470
    %3502 = vmatprep.subr.bf16.mxu0 0
    %3503 = vmatpush1.bf16.msra.mxu0 %v3471
    %3504 = vmatprep.mubr.bf16.mxu0 %v3454
    %3505 = vmatmul.mubr.bf16.gmra.mrb[0].mxu0 %v3453
    %v3506 = vpop.f32.mrb[0].mxu0
    %v3507 = vadd.f32 0.0, %v3506
    %v3508 = vpop.f32.mrb[0].mxu0
    %v3509 = vpop.f32.mrb[0].mxu0
    %v3510 = vpop.f32.mrb[0].mxu0
    %3511 = vdwg.mxu0
    %v3512 = vadd.f32 %v3416, %v3507
    %s3513 = sld [smem:[#allocation22 + $0x17]]
    %v3514 = vstv %s3513
    %v3515 = vmul.f32 %v3514, %v1297
    %v3516 = vmul.f32 %v3514, %v1298
    %s3517 = sld [smem:[#allocation22 + $0x97]]
    %v3518 = vstv %s3517
    %v3519 = vmul.f32 %v3518, %v428
    %v3520 = vmul.f32 %v3518, %v429
    %v3521 = vadd.f32 %v3515, %v3519
    %v3522 = vadd.f32 %v3516, %v3520
    %s3523 = sld [smem:[#allocation22 + $0x117]]
    %v3524 = vstv %s3523
    %v3525 = vmul.f32 %v3524, %v1299
    %v3526 = vmul.f32 %v3524, %v1300
    %v3527 = vadd.f32 %v3521, %v3525
    %v3528 = vadd.f32 %v3522, %v3526
    %s3529 = sld [smem:[#allocation22 + $0x197]]
    %v3530 = vstv %s3529
    %v3531 = vadd.f32 %v3527, %v3530
    %v3532 = vadd.f32 %v3528, %v3530
    %v3533 = vmin.f32 %v3531, 0.0
    %v3534 = vmin.f32 %v3532, 0.0
    %v3535 = vmul.f32 %v3533, 1.442695
    %v3536 = vpow.pop %v3535
    %v3537 = vmul.f32 %v3534, 1.442695
    %v3538 = vpow.pop %v3537
    %v3539 = vsub.f32 %v3536, 1.0
    %v3540 = vsub.f32 %v3538, 1.0
    %v3541 = vmul.f32 %v3539, 1.6732632
    %v3542 = vmul.f32 %v3540, 1.6732632
    %vm3543 = vcmp.gt.f32.partialorder %v3531, 0.0
    %vm3544 = vcmp.gt.f32.partialorder %v3532, 0.0
    %v3545 = vsel %vm3543, %v3531, %v3541
    %v3546 = vsel %vm3544, %v3532, %v3542
    %v3547 = vmul.f32 %v3545, 1.050701
    %v3548 = vmul.f32 %v3546, 1.050701
    %v3549 = vpack.c.bf16 %v3547, %v3547
    %v3550 = vpack.c.bf16 %v3548, %v3548
    %s3551 = scalar_lea.vmem [#allocation2], 2944
    %v3552 = vld [vmem:[%s3551] sm:$0xff]
    %v3553 = vld [vmem:[%s3551 + $0x8] sm:$0xff]
    %v3554 = vld [vmem:[%s3551 + $0x10] sm:$0xff]
    %v3555 = vld [vmem:[%s3551 + $0x18] sm:$0xff]
    %v3556 = vld [vmem:[%s3551 + $0x20] sm:$0xff]
    %v3557 = vld [vmem:[%s3551 + $0x28] sm:$0xff]
    %v3558 = vld [vmem:[%s3551 + $0x30] sm:$0xff]
    %v3559 = vld [vmem:[%s3551 + $0x38] sm:$0xff]
    %v3560 = vld [vmem:[%s3551 + $0x40] sm:$0xff]
    %v3561 = vld [vmem:[%s3551 + $0x48] sm:$0xff]
    %v3562 = vld [vmem:[%s3551 + $0x50] sm:$0xff]
    %v3563 = vld [vmem:[%s3551 + $0x58] sm:$0xff]
    %v3564 = vld [vmem:[%s3551 + $0x60] sm:$0xff]
    %v3565 = vld [vmem:[%s3551 + $0x68] sm:$0xff]
    %v3566 = vld [vmem:[%s3551 + $0x70] sm:$0xff]
    %v3567 = vld [vmem:[%s3551 + $0x78] sm:$0xff]
    %3568 = vmatprep.subr.bf16.mxu0 0
    %3569 = vmatpush1.bf16.msra.mxu0 %v3552
    %3570 = vmatprep.subr.bf16.mxu0 0
    %3571 = vmatpush1.bf16.msra.mxu0 %v3553
    %3572 = vmatprep.subr.bf16.mxu0 0
    %3573 = vmatpush1.bf16.msra.mxu0 %v3554
    %3574 = vmatprep.subr.bf16.mxu0 0
    %3575 = vmatpush1.bf16.msra.mxu0 %v3555
    %3576 = vmatprep.subr.bf16.mxu0 0
    %3577 = vmatpush1.bf16.msra.mxu0 %v3556
    %3578 = vmatprep.subr.bf16.mxu0 0
    %3579 = vmatpush1.bf16.msra.mxu0 %v3557
    %3580 = vmatprep.subr.bf16.mxu0 0
    %3581 = vmatpush1.bf16.msra.mxu0 %v3558
    %3582 = vmatprep.subr.bf16.mxu0 0
    %3583 = vmatpush1.bf16.msra.mxu0 %v3559
    %3584 = vmatprep.subr.bf16.mxu0 0
    %3585 = vmatpush1.bf16.msra.mxu0 %v3560
    %3586 = vmatprep.subr.bf16.mxu0 0
    %3587 = vmatpush1.bf16.msra.mxu0 %v3561
    %3588 = vmatprep.subr.bf16.mxu0 0
    %3589 = vmatpush1.bf16.msra.mxu0 %v3562
    %3590 = vmatprep.subr.bf16.mxu0 0
    %3591 = vmatpush1.bf16.msra.mxu0 %v3563
    %3592 = vmatprep.subr.bf16.mxu0 0
    %3593 = vmatpush1.bf16.msra.mxu0 %v3564
    %3594 = vmatprep.subr.bf16.mxu0 0
    %3595 = vmatpush1.bf16.msra.mxu0 %v3565
    %3596 = vmatprep.subr.bf16.mxu0 0
    %3597 = vmatpush1.bf16.msra.mxu0 %v3566
    %3598 = vmatprep.subr.bf16.mxu0 0
    %3599 = vmatpush1.bf16.msra.mxu0 %v3567
    %3600 = vmatprep.mubr.bf16.mxu0 %v3550
    %3601 = vmatmul.mubr.bf16.gmra.mrb[0].mxu0 %v3549
    %v3602 = vpop.f32.mrb[0].mxu0
    %v3603 = vadd.f32 0.0, %v3602
    %v3604 = vpop.f32.mrb[0].mxu0
    %v3605 = vpop.f32.mrb[0].mxu0
    %v3606 = vpop.f32.mrb[0].mxu0
    %3607 = vdwg.mxu0
    %v3608 = vadd.f32 %v3512, %v3603
    %s3609 = sshll.u32 %s1303, 4
    %3610 = dma.done %s345, %s3609
    %s3611 = sld [smem:[#allocation22 + $0x18]]
    %v3612 = vstv %s3611
    %v3613 = vmul.f32 %v3612, %v1297
    %v3614 = vmul.f32 %v3612, %v1298
    %s3615 = sld [smem:[#allocation22 + $0x98]]
    %v3616 = vstv %s3615
    %v3617 = vmul.f32 %v3616, %v428
    %v3618 = vmul.f32 %v3616, %v429
    %v3619 = vadd.f32 %v3613, %v3617
    %v3620 = vadd.f32 %v3614, %v3618
    %s3621 = sld [smem:[#allocation22 + $0x118]]
    %v3622 = vstv %s3621
    %v3623 = vmul.f32 %v3622, %v1299
    %v3624 = vmul.f32 %v3622, %v1300
    %v3625 = vadd.f32 %v3619, %v3623
    %v3626 = vadd.f32 %v3620, %v3624
    %s3627 = sld [smem:[#allocation22 + $0x198]]
    %v3628 = vstv %s3627
    %v3629 = vadd.f32 %v3625, %v3628
    %v3630 = vadd.f32 %v3626, %v3628
    %v3631 = vmin.f32 %v3629, 0.0
    %v3632 = vmin.f32 %v3630, 0.0
    %v3633 = vmul.f32 %v3631, 1.442695
    %v3634 = vpow.pop %v3633
    %v3635 = vmul.f32 %v3632, 1.442695
    %v3636 = vpow.pop %v3635
    %v3637 = vsub.f32 %v3634, 1.0
    %v3638 = vsub.f32 %v3636, 1.0
    %v3639 = vmul.f32 %v3637, 1.6732632
    %v3640 = vmul.f32 %v3638, 1.6732632
    %vm3641 = vcmp.gt.f32.partialorder %v3629, 0.0
    %vm3642 = vcmp.gt.f32.partialorder %v3630, 0.0
    %v3643 = vsel %vm3641, %v3629, %v3639
    %v3644 = vsel %vm3642, %v3630, %v3640
    %v3645 = vmul.f32 %v3643, 1.050701
    %v3646 = vmul.f32 %v3644, 1.050701
    %v3647 = vpack.c.bf16 %v3645, %v3645
    %v3648 = vpack.c.bf16 %v3646, %v3646
    %v3649 = vld [vmem:[%s344] sm:$0xff]
    %v3650 = vld [vmem:[%s344 + $0x8] sm:$0xff]
    %v3651 = vld [vmem:[%s344 + $0x10] sm:$0xff]
    %v3652 = vld [vmem:[%s344 + $0x18] sm:$0xff]
    %v3653 = vld [vmem:[%s344 + $0x20] sm:$0xff]
    %v3654 = vld [vmem:[%s344 + $0x28] sm:$0xff]
    %v3655 = vld [vmem:[%s344 + $0x30] sm:$0xff]
    %v3656 = vld [vmem:[%s344 + $0x38] sm:$0xff]
    %v3657 = vld [vmem:[%s344 + $0x40] sm:$0xff]
    %v3658 = vld [vmem:[%s344 + $0x48] sm:$0xff]
    %v3659 = vld [vmem:[%s344 + $0x50] sm:$0xff]
    %v3660 = vld [vmem:[%s344 + $0x58] sm:$0xff]
    %v3661 = vld [vmem:[%s344 + $0x60] sm:$0xff]
    %v3662 = vld [vmem:[%s344 + $0x68] sm:$0xff]
    %v3663 = vld [vmem:[%s344 + $0x70] sm:$0xff]
    %v3664 = vld [vmem:[%s344 + $0x78] sm:$0xff]
    %3665 = vmatprep.subr.bf16.mxu0 0
    %3666 = vmatpush1.bf16.msra.mxu0 %v3649
    %3667 = vmatprep.subr.bf16.mxu0 0
    %3668 = vmatpush1.bf16.msra.mxu0 %v3650
    %3669 = vmatprep.subr.bf16.mxu0 0
    %3670 = vmatpush1.bf16.msra.mxu0 %v3651
    %3671 = vmatprep.subr.bf16.mxu0 0
    %3672 = vmatpush1.bf16.msra.mxu0 %v3652
    %3673 = vmatprep.subr.bf16.mxu0 0
    %3674 = vmatpush1.bf16.msra.mxu0 %v3653
    %3675 = vmatprep.subr.bf16.mxu0 0
    %3676 = vmatpush1.bf16.msra.mxu0 %v3654
    %3677 = vmatprep.subr.bf16.mxu0 0
    %3678 = vmatpush1.bf16.msra.mxu0 %v3655
    %3679 = vmatprep.subr.bf16.mxu0 0
    %3680 = vmatpush1.bf16.msra.mxu0 %v3656
    %3681 = vmatprep.subr.bf16.mxu0 0
    %3682 = vmatpush1.bf16.msra.mxu0 %v3657
    %3683 = vmatprep.subr.bf16.mxu0 0
    %3684 = vmatpush1.bf16.msra.mxu0 %v3658
    %3685 = vmatprep.subr.bf16.mxu0 0
    %3686 = vmatpush1.bf16.msra.mxu0 %v3659
    %3687 = vmatprep.subr.bf16.mxu0 0
    %3688 = vmatpush1.bf16.msra.mxu0 %v3660
    %3689 = vmatprep.subr.bf16.mxu0 0
    %3690 = vmatpush1.bf16.msra.mxu0 %v3661
    %3691 = vmatprep.subr.bf16.mxu0 0
    %3692 = vmatpush1.bf16.msra.mxu0 %v3662
    %3693 = vmatprep.subr.bf16.mxu0 0
    %3694 = vmatpush1.bf16.msra.mxu0 %v3663
    %3695 = vmatprep.subr.bf16.mxu0 0
    %3696 = vmatpush1.bf16.msra.mxu0 %v3664
    %3697 = vmatprep.mubr.bf16.mxu0 %v3648
    %3698 = vmatmul.mubr.bf16.gmra.mrb[0].mxu0 %v3647
    %v3699 = vpop.f32.mrb[0].mxu0
    %v3700 = vadd.f32 0.0, %v3699
    %v3701 = vpop.f32.mrb[0].mxu0
    %v3702 = vpop.f32.mrb[0].mxu0
    %v3703 = vpop.f32.mrb[0].mxu0
    %3704 = vdwg.mxu0
    %v3705 = vadd.f32 %v3608, %v3700
    %s3706 = sld [smem:[#allocation22 + $0x19]]
    %v3707 = vstv %s3706
    %v3708 = vmul.f32 %v3707, %v1297
    %v3709 = vmul.f32 %v3707, %v1298
    %s3710 = sld [smem:[#allocation22 + $0x99]]
    %v3711 = vstv %s3710
    %v3712 = vmul.f32 %v3711, %v428
    %v3713 = vmul.f32 %v3711, %v429
    %v3714 = vadd.f32 %v3708, %v3712
    %v3715 = vadd.f32 %v3709, %v3713
    %s3716 = sld [smem:[#allocation22 + $0x119]]
    %v3717 = vstv %s3716
    %v3718 = vmul.f32 %v3717, %v1299
    %v3719 = vmul.f32 %v3717, %v1300
    %v3720 = vadd.f32 %v3714, %v3718
    %v3721 = vadd.f32 %v3715, %v3719
    %s3722 = sld [smem:[#allocation22 + $0x199]]
    %v3723 = vstv %s3722
    %v3724 = vadd.f32 %v3720, %v3723
    %v3725 = vadd.f32 %v3721, %v3723
    %v3726 = vmin.f32 %v3724, 0.0
    %v3727 = vmin.f32 %v3725, 0.0
    %v3728 = vmul.f32 %v3726, 1.442695
    %v3729 = vpow.pop %v3728
    %v3730 = vmul.f32 %v3727, 1.442695
    %v3731 = vpow.pop %v3730
    %v3732 = vsub.f32 %v3729, 1.0
    %v3733 = vsub.f32 %v3731, 1.0
    %v3734 = vmul.f32 %v3732, 1.6732632
    %v3735 = vmul.f32 %v3733, 1.6732632
    %vm3736 = vcmp.gt.f32.partialorder %v3724, 0.0
    %vm3737 = vcmp.gt.f32.partialorder %v3725, 0.0
    %v3738 = vsel %vm3736, %v3724, %v3734
    %v3739 = vsel %vm3737, %v3725, %v3735
    %v3740 = vmul.f32 %v3738, 1.050701
    %v3741 = vmul.f32 %v3739, 1.050701
    %v3742 = vpack.c.bf16 %v3740, %v3740
    %v3743 = vpack.c.bf16 %v3741, %v3741
    %s3744 = scalar_lea.vmem [#allocation2], 3200
    %v3745 = vld [vmem:[%s3744] sm:$0xff]
    %v3746 = vld [vmem:[%s3744 + $0x8] sm:$0xff]
    %v3747 = vld [vmem:[%s3744 + $0x10] sm:$0xff]
    %v3748 = vld [vmem:[%s3744 + $0x18] sm:$0xff]
    %v3749 = vld [vmem:[%s3744 + $0x20] sm:$0xff]
    %v3750 = vld [vmem:[%s3744 + $0x28] sm:$0xff]
    %v3751 = vld [vmem:[%s3744 + $0x30] sm:$0xff]
    %v3752 = vld [vmem:[%s3744 + $0x38] sm:$0xff]
    %v3753 = vld [vmem:[%s3744 + $0x40] sm:$0xff]
    %v3754 = vld [vmem:[%s3744 + $0x48] sm:$0xff]
    %v3755 = vld [vmem:[%s3744 + $0x50] sm:$0xff]
    %v3756 = vld [vmem:[%s3744 + $0x58] sm:$0xff]
    %v3757 = vld [vmem:[%s3744 + $0x60] sm:$0xff]
    %v3758 = vld [vmem:[%s3744 + $0x68] sm:$0xff]
    %v3759 = vld [vmem:[%s3744 + $0x70] sm:$0xff]
    %v3760 = vld [vmem:[%s3744 + $0x78] sm:$0xff]
    %3761 = vmatprep.subr.bf16.mxu0 0
    %3762 = vmatpush1.bf16.msra.mxu0 %v3745
    %3763 = vmatprep.subr.bf16.mxu0 0
    %3764 = vmatpush1.bf16.msra.mxu0 %v3746
    %3765 = vmatprep.subr.bf16.mxu0 0
    %3766 = vmatpush1.bf16.msra.mxu0 %v3747
    %3767 = vmatprep.subr.bf16.mxu0 0
    %3768 = vmatpush1.bf16.msra.mxu0 %v3748
    %3769 = vmatprep.subr.bf16.mxu0 0
    %3770 = vmatpush1.bf16.msra.mxu0 %v3749
    %3771 = vmatprep.subr.bf16.mxu0 0
    %3772 = vmatpush1.bf16.msra.mxu0 %v3750
    %3773 = vmatprep.subr.bf16.mxu0 0
    %3774 = vmatpush1.bf16.msra.mxu0 %v3751
    %3775 = vmatprep.subr.bf16.mxu0 0
    %3776 = vmatpush1.bf16.msra.mxu0 %v3752
    %3777 = vmatprep.subr.bf16.mxu0 0
    %3778 = vmatpush1.bf16.msra.mxu0 %v3753
    %3779 = vmatprep.subr.bf16.mxu0 0
    %3780 = vmatpush1.bf16.msra.mxu0 %v3754
    %3781 = vmatprep.subr.bf16.mxu0 0
    %3782 = vmatpush1.bf16.msra.mxu0 %v3755
    %3783 = vmatprep.subr.bf16.mxu0 0
    %3784 = vmatpush1.bf16.msra.mxu0 %v3756
    %3785 = vmatprep.subr.bf16.mxu0 0
    %3786 = vmatpush1.bf16.msra.mxu0 %v3757
    %3787 = vmatprep.subr.bf16.mxu0 0
    %3788 = vmatpush1.bf16.msra.mxu0 %v3758
    %3789 = vmatprep.subr.bf16.mxu0 0
    %3790 = vmatpush1.bf16.msra.mxu0 %v3759
    %3791 = vmatprep.subr.bf16.mxu0 0
    %3792 = vmatpush1.bf16.msra.mxu0 %v3760
    %3793 = vmatprep.mubr.bf16.mxu0 %v3743
    %3794 = vmatmul.mubr.bf16.gmra.mrb[0].mxu0 %v3742
    %v3795 = vpop.f32.mrb[0].mxu0
    %v3796 = vadd.f32 0.0, %v3795
    %v3797 = vpop.f32.mrb[0].mxu0
    %v3798 = vpop.f32.mrb[0].mxu0
    %v3799 = vpop.f32.mrb[0].mxu0
    %3800 = vdwg.mxu0
    %v3801 = vadd.f32 %v3705, %v3796
    %s3802 = sld [smem:[#allocation22 + $0x1a]]
    %v3803 = vstv %s3802
    %v3804 = vmul.f32 %v3803, %v1297
    %v3805 = vmul.f32 %v3803, %v1298
    %s3806 = sld [smem:[#allocation22 + $0x9a]]
    %v3807 = vstv %s3806
    %v3808 = vmul.f32 %v3807, %v428
    %v3809 = vmul.f32 %v3807, %v429
    %v3810 = vadd.f32 %v3804, %v3808
    %v3811 = vadd.f32 %v3805, %v3809
    %s3812 = sld [smem:[#allocation22 + $0x11a]]
    %v3813 = vstv %s3812
    %v3814 = vmul.f32 %v3813, %v1299
    %v3815 = vmul.f32 %v3813, %v1300
    %v3816 = vadd.f32 %v3810, %v3814
    %v3817 = vadd.f32 %v3811, %v3815
    %s3818 = sld [smem:[#allocation22 + $0x19a]]
    %v3819 = vstv %s3818
    %v3820 = vadd.f32 %v3816, %v3819
    %v3821 = vadd.f32 %v3817, %v3819
    %v3822 = vmin.f32 %v3820, 0.0
    %v3823 = vmin.f32 %v3821, 0.0
    %v3824 = vmul.f32 %v3822, 1.442695
    %v3825 = vpow.pop %v3824
    %v3826 = vmul.f32 %v3823, 1.442695
    %v3827 = vpow.pop %v3826
    %v3828 = vsub.f32 %v3825, 1.0
    %v3829 = vsub.f32 %v3827, 1.0
    %v3830 = vmul.f32 %v3828, 1.6732632
    %v3831 = vmul.f32 %v3829, 1.6732632
    %vm3832 = vcmp.gt.f32.partialorder %v3820, 0.0
    %vm3833 = vcmp.gt.f32.partialorder %v3821, 0.0
    %v3834 = vsel %vm3832, %v3820, %v3830
    %v3835 = vsel %vm3833, %v3821, %v3831
    %v3836 = vmul.f32 %v3834, 1.050701
    %v3837 = vmul.f32 %v3835, 1.050701
    %v3838 = vpack.c.bf16 %v3836, %v3836
    %v3839 = vpack.c.bf16 %v3837, %v3837
    %s3840 = scalar_lea.vmem [#allocation2], 3328
    %v3841 = vld [vmem:[%s3840] sm:$0xff]
    %v3842 = vld [vmem:[%s3840 + $0x8] sm:$0xff]
    %v3843 = vld [vmem:[%s3840 + $0x10] sm:$0xff]
    %v3844 = vld [vmem:[%s3840 + $0x18] sm:$0xff]
    %v3845 = vld [vmem:[%s3840 + $0x20] sm:$0xff]
    %v3846 = vld [vmem:[%s3840 + $0x28] sm:$0xff]
    %v3847 = vld [vmem:[%s3840 + $0x30] sm:$0xff]
    %v3848 = vld [vmem:[%s3840 + $0x38] sm:$0xff]
    %v3849 = vld [vmem:[%s3840 + $0x40] sm:$0xff]
    %v3850 = vld [vmem:[%s3840 + $0x48] sm:$0xff]
    %v3851 = vld [vmem:[%s3840 + $0x50] sm:$0xff]
    %v3852 = vld [vmem:[%s3840 + $0x58] sm:$0xff]
    %v3853 = vld [vmem:[%s3840 + $0x60] sm:$0xff]
    %v3854 = vld [vmem:[%s3840 + $0x68] sm:$0xff]
    %v3855 = vld [vmem:[%s3840 + $0x70] sm:$0xff]
    %v3856 = vld [vmem:[%s3840 + $0x78] sm:$0xff]
    %3857 = vmatprep.subr.bf16.mxu0 0
    %3858 = vmatpush1.bf16.msra.mxu0 %v3841
    %3859 = vmatprep.subr.bf16.mxu0 0
    %3860 = vmatpush1.bf16.msra.mxu0 %v3842
    %3861 = vmatprep.subr.bf16.mxu0 0
    %3862 = vmatpush1.bf16.msra.mxu0 %v3843
    %3863 = vmatprep.subr.bf16.mxu0 0
    %3864 = vmatpush1.bf16.msra.mxu0 %v3844
    %3865 = vmatprep.subr.bf16.mxu0 0
    %3866 = vmatpush1.bf16.msra.mxu0 %v3845
    %3867 = vmatprep.subr.bf16.mxu0 0
    %3868 = vmatpush1.bf16.msra.mxu0 %v3846
    %3869 = vmatprep.subr.bf16.mxu0 0
    %3870 = vmatpush1.bf16.msra.mxu0 %v3847
    %3871 = vmatprep.subr.bf16.mxu0 0
    %3872 = vmatpush1.bf16.msra.mxu0 %v3848
    %3873 = vmatprep.subr.bf16.mxu0 0
    %3874 = vmatpush1.bf16.msra.mxu0 %v3849
    %3875 = vmatprep.subr.bf16.mxu0 0
    %3876 = vmatpush1.bf16.msra.mxu0 %v3850
    %3877 = vmatprep.subr.bf16.mxu0 0
    %3878 = vmatpush1.bf16.msra.mxu0 %v3851
    %3879 = vmatprep.subr.bf16.mxu0 0
    %3880 = vmatpush1.bf16.msra.mxu0 %v3852
    %3881 = vmatprep.subr.bf16.mxu0 0
    %3882 = vmatpush1.bf16.msra.mxu0 %v3853
    %3883 = vmatprep.subr.bf16.mxu0 0
    %3884 = vmatpush1.bf16.msra.mxu0 %v3854
    %3885 = vmatprep.subr.bf16.mxu0 0
    %3886 = vmatpush1.bf16.msra.mxu0 %v3855
    %3887 = vmatprep.subr.bf16.mxu0 0
    %3888 = vmatpush1.bf16.msra.mxu0 %v3856
    %3889 = vmatprep.mubr.bf16.mxu0 %v3839
    %3890 = vmatmul.mubr.bf16.gmra.mrb[0].mxu0 %v3838
    %v3891 = vpop.f32.mrb[0].mxu0
    %v3892 = vadd.f32 0.0, %v3891
    %v3893 = vpop.f32.mrb[0].mxu0
    %v3894 = vpop.f32.mrb[0].mxu0
    %v3895 = vpop.f32.mrb[0].mxu0
    %3896 = vdwg.mxu0
    %v3897 = vadd.f32 %v3801, %v3892
    %s3898 = sld [smem:[#allocation22 + $0x1b]]
    %v3899 = vstv %s3898
    %v3900 = vmul.f32 %v3899, %v1297
    %v3901 = vmul.f32 %v3899, %v1298
    %s3902 = sld [smem:[#allocation22 + $0x9b]]
    %v3903 = vstv %s3902
    %v3904 = vmul.f32 %v3903, %v428
    %v3905 = vmul.f32 %v3903, %v429
    %v3906 = vadd.f32 %v3900, %v3904
    %v3907 = vadd.f32 %v3901, %v3905
    %s3908 = sld [smem:[#allocation22 + $0x11b]]
    %v3909 = vstv %s3908
    %v3910 = vmul.f32 %v3909, %v1299
    %v3911 = vmul.f32 %v3909, %v1300
    %v3912 = vadd.f32 %v3906, %v3910
    %v3913 = vadd.f32 %v3907, %v3911
    %s3914 = sld [smem:[#allocation22 + $0x19b]]
    %v3915 = vstv %s3914
    %v3916 = vadd.f32 %v3912, %v3915
    %v3917 = vadd.f32 %v3913, %v3915
    %v3918 = vmin.f32 %v3916, 0.0
    %v3919 = vmin.f32 %v3917, 0.0
    %v3920 = vmul.f32 %v3918, 1.442695
    %v3921 = vpow.pop %v3920
    %v3922 = vmul.f32 %v3919, 1.442695
    %v3923 = vpow.pop %v3922
    %v3924 = vsub.f32 %v3921, 1.0
    %v3925 = vsub.f32 %v3923, 1.0
    %v3926 = vmul.f32 %v3924, 1.6732632
    %v3927 = vmul.f32 %v3925, 1.6732632
    %vm3928 = vcmp.gt.f32.partialorder %v3916, 0.0
    %vm3929 = vcmp.gt.f32.partialorder %v3917, 0.0
    %v3930 = vsel %vm3928, %v3916, %v3926
    %v3931 = vsel %vm3929, %v3917, %v3927
    %v3932 = vmul.f32 %v3930, 1.050701
    %v3933 = vmul.f32 %v3931, 1.050701
    %v3934 = vpack.c.bf16 %v3932, %v3932
    %v3935 = vpack.c.bf16 %v3933, %v3933
    %s3936 = scalar_lea.vmem [#allocation2], 3456
    %v3937 = vld [vmem:[%s3936] sm:$0xff]
    %v3938 = vld [vmem:[%s3936 + $0x8] sm:$0xff]
    %v3939 = vld [vmem:[%s3936 + $0x10] sm:$0xff]
    %v3940 = vld [vmem:[%s3936 + $0x18] sm:$0xff]
    %v3941 = vld [vmem:[%s3936 + $0x20] sm:$0xff]
    %v3942 = vld [vmem:[%s3936 + $0x28] sm:$0xff]
    %v3943 = vld [vmem:[%s3936 + $0x30] sm:$0xff]
    %v3944 = vld [vmem:[%s3936 + $0x38] sm:$0xff]
    %v3945 = vld [vmem:[%s3936 + $0x40] sm:$0xff]
    %v3946 = vld [vmem:[%s3936 + $0x48] sm:$0xff]
    %v3947 = vld [vmem:[%s3936 + $0x50] sm:$0xff]
    %v3948 = vld [vmem:[%s3936 + $0x58] sm:$0xff]
    %v3949 = vld [vmem:[%s3936 + $0x60] sm:$0xff]
    %v3950 = vld [vmem:[%s3936 + $0x68] sm:$0xff]
    %v3951 = vld [vmem:[%s3936 + $0x70] sm:$0xff]
    %v3952 = vld [vmem:[%s3936 + $0x78] sm:$0xff]
    %3953 = vmatprep.subr.bf16.mxu0 0
    %3954 = vmatpush1.bf16.msra.mxu0 %v3937
    %3955 = vmatprep.subr.bf16.mxu0 0
    %3956 = vmatpush1.bf16.msra.mxu0 %v3938
    %3957 = vmatprep.subr.bf16.mxu0 0
    %3958 = vmatpush1.bf16.msra.mxu0 %v3939
    %3959 = vmatprep.subr.bf16.mxu0 0
    %3960 = vmatpush1.bf16.msra.mxu0 %v3940
    %3961 = vmatprep.subr.bf16.mxu0 0
    %3962 = vmatpush1.bf16.msra.mxu0 %v3941
    %3963 = vmatprep.subr.bf16.mxu0 0
    %3964 = vmatpush1.bf16.msra.mxu0 %v3942
    %3965 = vmatprep.subr.bf16.mxu0 0
    %3966 = vmatpush1.bf16.msra.mxu0 %v3943
    %3967 = vmatprep.subr.bf16.mxu0 0
    %3968 = vmatpush1.bf16.msra.mxu0 %v3944
    %3969 = vmatprep.subr.bf16.mxu0 0
    %3970 = vmatpush1.bf16.msra.mxu0 %v3945
    %3971 = vmatprep.subr.bf16.mxu0 0
    %3972 = vmatpush1.bf16.msra.mxu0 %v3946
    %3973 = vmatprep.subr.bf16.mxu0 0
    %3974 = vmatpush1.bf16.msra.mxu0 %v3947
    %3975 = vmatprep.subr.bf16.mxu0 0
    %3976 = vmatpush1.bf16.msra.mxu0 %v3948
    %3977 = vmatprep.subr.bf16.mxu0 0
    %3978 = vmatpush1.bf16.msra.mxu0 %v3949
    %3979 = vmatprep.subr.bf16.mxu0 0
    %3980 = vmatpush1.bf16.msra.mxu0 %v3950
    %3981 = vmatprep.subr.bf16.mxu0 0
    %3982 = vmatpush1.bf16.msra.mxu0 %v3951
    %3983 = vmatprep.subr.bf16.mxu0 0
    %3984 = vmatpush1.bf16.msra.mxu0 %v3952
    %3985 = vmatprep.mubr.bf16.mxu0 %v3935
    %3986 = vmatmul.mubr.bf16.gmra.mrb[0].mxu0 %v3934
    %v3987 = vpop.f32.mrb[0].mxu0
    %v3988 = vadd.f32 0.0, %v3987
    %v3989 = vpop.f32.mrb[0].mxu0
    %v3990 = vpop.f32.mrb[0].mxu0
    %v3991 = vpop.f32.mrb[0].mxu0
    %3992 = vdwg.mxu0
    %v3993 = vadd.f32 %v3897, %v3988
    %s3994 = sld [smem:[#allocation22 + $0x1c]]
    %v3995 = vstv %s3994
    %v3996 = vmul.f32 %v3995, %v1297
    %v3997 = vmul.f32 %v3995, %v1298
    %s3998 = sld [smem:[#allocation22 + $0x9c]]
    %v3999 = vstv %s3998
    %v4000 = vmul.f32 %v3999, %v428
    %v4001 = vmul.f32 %v3999, %v429
    %v4002 = vadd.f32 %v3996, %v4000
    %v4003 = vadd.f32 %v3997, %v4001
    %s4004 = sld [smem:[#allocation22 + $0x11c]]
    %v4005 = vstv %s4004
    %v4006 = vmul.f32 %v4005, %v1299
    %v4007 = vmul.f32 %v4005, %v1300
    %v4008 = vadd.f32 %v4002, %v4006
    %v4009 = vadd.f32 %v4003, %v4007
    %s4010 = sld [smem:[#allocation22 + $0x19c]]
    %v4011 = vstv %s4010
    %v4012 = vadd.f32 %v4008, %v4011
    %v4013 = vadd.f32 %v4009, %v4011
    %v4014 = vmin.f32 %v4012, 0.0
    %v4015 = vmin.f32 %v4013, 0.0
    %v4016 = vmul.f32 %v4014, 1.442695
    %v4017 = vpow.pop %v4016
    %v4018 = vmul.f32 %v4015, 1.442695
    %v4019 = vpow.pop %v4018
    %v4020 = vsub.f32 %v4017, 1.0
    %v4021 = vsub.f32 %v4019, 1.0
    %v4022 = vmul.f32 %v4020, 1.6732632
    %v4023 = vmul.f32 %v4021, 1.6732632
    %vm4024 = vcmp.gt.f32.partialorder %v4012, 0.0
    %vm4025 = vcmp.gt.f32.partialorder %v4013, 0.0
    %v4026 = vsel %vm4024, %v4012, %v4022
    %v4027 = vsel %vm4025, %v4013, %v4023
    %v4028 = vmul.f32 %v4026, 1.050701
    %v4029 = vmul.f32 %v4027, 1.050701
    %v4030 = vpack.c.bf16 %v4028, %v4028
    %v4031 = vpack.c.bf16 %v4029, %v4029
    %s4032 = scalar_lea.vmem [#allocation2], 3584
    %v4033 = vld [vmem:[%s4032] sm:$0xff]
    %v4034 = vld [vmem:[%s4032 + $0x8] sm:$0xff]
    %v4035 = vld [vmem:[%s4032 + $0x10] sm:$0xff]
    %v4036 = vld [vmem:[%s4032 + $0x18] sm:$0xff]
    %v4037 = vld [vmem:[%s4032 + $0x20] sm:$0xff]
    %v4038 = vld [vmem:[%s4032 + $0x28] sm:$0xff]
    %v4039 = vld [vmem:[%s4032 + $0x30] sm:$0xff]
    %v4040 = vld [vmem:[%s4032 + $0x38] sm:$0xff]
    %v4041 = vld [vmem:[%s4032 + $0x40] sm:$0xff]
    %v4042 = vld [vmem:[%s4032 + $0x48] sm:$0xff]
    %v4043 = vld [vmem:[%s4032 + $0x50] sm:$0xff]
    %v4044 = vld [vmem:[%s4032 + $0x58] sm:$0xff]
    %v4045 = vld [vmem:[%s4032 + $0x60] sm:$0xff]
    %v4046 = vld [vmem:[%s4032 + $0x68] sm:$0xff]
    %v4047 = vld [vmem:[%s4032 + $0x70] sm:$0xff]
    %v4048 = vld [vmem:[%s4032 + $0x78] sm:$0xff]
    %4049 = vmatprep.subr.bf16.mxu0 0
    %4050 = vmatpush1.bf16.msra.mxu0 %v4033
    %4051 = vmatprep.subr.bf16.mxu0 0
    %4052 = vmatpush1.bf16.msra.mxu0 %v4034
    %4053 = vmatprep.subr.bf16.mxu0 0
    %4054 = vmatpush1.bf16.msra.mxu0 %v4035
    %4055 = vmatprep.subr.bf16.mxu0 0
    %4056 = vmatpush1.bf16.msra.mxu0 %v4036
    %4057 = vmatprep.subr.bf16.mxu0 0
    %4058 = vmatpush1.bf16.msra.mxu0 %v4037
    %4059 = vmatprep.subr.bf16.mxu0 0
    %4060 = vmatpush1.bf16.msra.mxu0 %v4038
    %4061 = vmatprep.subr.bf16.mxu0 0
    %4062 = vmatpush1.bf16.msra.mxu0 %v4039
    %4063 = vmatprep.subr.bf16.mxu0 0
    %4064 = vmatpush1.bf16.msra.mxu0 %v4040
    %4065 = vmatprep.subr.bf16.mxu0 0
    %4066 = vmatpush1.bf16.msra.mxu0 %v4041
    %4067 = vmatprep.subr.bf16.mxu0 0
    %4068 = vmatpush1.bf16.msra.mxu0 %v4042
    %4069 = vmatprep.subr.bf16.mxu0 0
    %4070 = vmatpush1.bf16.msra.mxu0 %v4043
    %4071 = vmatprep.subr.bf16.mxu0 0
    %4072 = vmatpush1.bf16.msra.mxu0 %v4044
    %4073 = vmatprep.subr.bf16.mxu0 0
    %4074 = vmatpush1.bf16.msra.mxu0 %v4045
    %4075 = vmatprep.subr.bf16.mxu0 0
    %4076 = vmatpush1.bf16.msra.mxu0 %v4046
    %4077 = vmatprep.subr.bf16.mxu0 0
    %4078 = vmatpush1.bf16.msra.mxu0 %v4047
    %4079 = vmatprep.subr.bf16.mxu0 0
    %4080 = vmatpush1.bf16.msra.mxu0 %v4048
    %4081 = vmatprep.mubr.bf16.mxu0 %v4031
    %4082 = vmatmul.mubr.bf16.gmra.mrb[0].mxu0 %v4030
    %v4083 = vpop.f32.mrb[0].mxu0
    %v4084 = vadd.f32 0.0, %v4083
    %v4085 = vpop.f32.mrb[0].mxu0
    %v4086 = vpop.f32.mrb[0].mxu0
    %v4087 = vpop.f32.mrb[0].mxu0
    %4088 = vdwg.mxu0
    %v4089 = vadd.f32 %v3993, %v4084
    %s4090 = sld [smem:[#allocation22 + $0x1d]]
    %v4091 = vstv %s4090
    %v4092 = vmul.f32 %v4091, %v1297
    %v4093 = vmul.f32 %v4091, %v1298
    %s4094 = sld [smem:[#allocation22 + $0x9d]]
    %v4095 = vstv %s4094
    %v4096 = vmul.f32 %v4095, %v428
    %v4097 = vmul.f32 %v4095, %v429
    %v4098 = vadd.f32 %v4092, %v4096
    %v4099 = vadd.f32 %v4093, %v4097
    %s4100 = sld [smem:[#allocation22 + $0x11d]]
    %v4101 = vstv %s4100
    %v4102 = vmul.f32 %v4101, %v1299
    %v4103 = vmul.f32 %v4101, %v1300
    %v4104 = vadd.f32 %v4098, %v4102
    %v4105 = vadd.f32 %v4099, %v4103
    %s4106 = sld [smem:[#allocation22 + $0x19d]]
    %v4107 = vstv %s4106
    %v4108 = vadd.f32 %v4104, %v4107
    %v4109 = vadd.f32 %v4105, %v4107
    %v4110 = vmin.f32 %v4108, 0.0
    %v4111 = vmin.f32 %v4109, 0.0
    %v4112 = vmul.f32 %v4110, 1.442695
    %v4113 = vpow.pop %v4112
    %v4114 = vmul.f32 %v4111, 1.442695
    %v4115 = vpow.pop %v4114
    %v4116 = vsub.f32 %v4113, 1.0
    %v4117 = vsub.f32 %v4115, 1.0
    %v4118 = vmul.f32 %v4116, 1.6732632
    %v4119 = vmul.f32 %v4117, 1.6732632
    %vm4120 = vcmp.gt.f32.partialorder %v4108, 0.0
    %vm4121 = vcmp.gt.f32.partialorder %v4109, 0.0
    %v4122 = vsel %vm4120, %v4108, %v4118
    %v4123 = vsel %vm4121, %v4109, %v4119
    %v4124 = vmul.f32 %v4122, 1.050701
    %v4125 = vmul.f32 %v4123, 1.050701
    %v4126 = vpack.c.bf16 %v4124, %v4124
    %v4127 = vpack.c.bf16 %v4125, %v4125
    %s4128 = scalar_lea.vmem [#allocation2], 3712
    %v4129 = vld [vmem:[%s4128] sm:$0xff]
    %v4130 = vld [vmem:[%s4128 + $0x8] sm:$0xff]
    %v4131 = vld [vmem:[%s4128 + $0x10] sm:$0xff]
    %v4132 = vld [vmem:[%s4128 + $0x18] sm:$0xff]
    %v4133 = vld [vmem:[%s4128 + $0x20] sm:$0xff]
    %v4134 = vld [vmem:[%s4128 + $0x28] sm:$0xff]
    %v4135 = vld [vmem:[%s4128 + $0x30] sm:$0xff]
    %v4136 = vld [vmem:[%s4128 + $0x38] sm:$0xff]
    %v4137 = vld [vmem:[%s4128 + $0x40] sm:$0xff]
    %v4138 = vld [vmem:[%s4128 + $0x48] sm:$0xff]
    %v4139 = vld [vmem:[%s4128 + $0x50] sm:$0xff]
    %v4140 = vld [vmem:[%s4128 + $0x58] sm:$0xff]
    %v4141 = vld [vmem:[%s4128 + $0x60] sm:$0xff]
    %v4142 = vld [vmem:[%s4128 + $0x68] sm:$0xff]
    %v4143 = vld [vmem:[%s4128 + $0x70] sm:$0xff]
    %v4144 = vld [vmem:[%s4128 + $0x78] sm:$0xff]
    %4145 = vmatprep.subr.bf16.mxu0 0
    %4146 = vmatpush1.bf16.msra.mxu0 %v4129
    %4147 = vmatprep.subr.bf16.mxu0 0
    %4148 = vmatpush1.bf16.msra.mxu0 %v4130
    %4149 = vmatprep.subr.bf16.mxu0 0
    %4150 = vmatpush1.bf16.msra.mxu0 %v4131
    %4151 = vmatprep.subr.bf16.mxu0 0
    %4152 = vmatpush1.bf16.msra.mxu0 %v4132
    %4153 = vmatprep.subr.bf16.mxu0 0
    %4154 = vmatpush1.bf16.msra.mxu0 %v4133
    %4155 = vmatprep.subr.bf16.mxu0 0
    %4156 = vmatpush1.bf16.msra.mxu0 %v4134
    %4157 = vmatprep.subr.bf16.mxu0 0
    %4158 = vmatpush1.bf16.msra.mxu0 %v4135
    %4159 = vmatprep.subr.bf16.mxu0 0
    %4160 = vmatpush1.bf16.msra.mxu0 %v4136
    %4161 = vmatprep.subr.bf16.mxu0 0
    %4162 = vmatpush1.bf16.msra.mxu0 %v4137
    %4163 = vmatprep.subr.bf16.mxu0 0
    %4164 = vmatpush1.bf16.msra.mxu0 %v4138
    %4165 = vmatprep.subr.bf16.mxu0 0
    %4166 = vmatpush1.bf16.msra.mxu0 %v4139
    %4167 = vmatprep.subr.bf16.mxu0 0
    %4168 = vmatpush1.bf16.msra.mxu0 %v4140
    %4169 = vmatprep.subr.bf16.mxu0 0
    %4170 = vmatpush1.bf16.msra.mxu0 %v4141
    %4171 = vmatprep.subr.bf16.mxu0 0
    %4172 = vmatpush1.bf16.msra.mxu0 %v4142
    %4173 = vmatprep.subr.bf16.mxu0 0
    %4174 = vmatpush1.bf16.msra.mxu0 %v4143
    %4175 = vmatprep.subr.bf16.mxu0 0
    %4176 = vmatpush1.bf16.msra.mxu0 %v4144
    %4177 = vmatprep.mubr.bf16.mxu0 %v4127
    %4178 = vmatmul.mubr.bf16.gmra.mrb[0].mxu0 %v4126
    %v4179 = vpop.f32.mrb[0].mxu0
    %v4180 = vadd.f32 0.0, %v4179
    %v4181 = vpop.f32.mrb[0].mxu0
    %v4182 = vpop.f32.mrb[0].mxu0
    %v4183 = vpop.f32.mrb[0].mxu0
    %4184 = vdwg.mxu0
    %v4185 = vadd.f32 %v4089, %v4180
    %s4186 = sld [smem:[#allocation22 + $0x1e]]
    %v4187 = vstv %s4186
    %v4188 = vmul.f32 %v4187, %v1297
    %v4189 = vmul.f32 %v4187, %v1298
    %s4190 = sld [smem:[#allocation22 + $0x9e]]
    %v4191 = vstv %s4190
    %v4192 = vmul.f32 %v4191, %v428
    %v4193 = vmul.f32 %v4191, %v429
    %v4194 = vadd.f32 %v4188, %v4192
    %v4195 = vadd.f32 %v4189, %v4193
    %s4196 = sld [smem:[#allocation22 + $0x11e]]
    %v4197 = vstv %s4196
    %v4198 = vmul.f32 %v4197, %v1299
    %v4199 = vmul.f32 %v4197, %v1300
    %v4200 = vadd.f32 %v4194, %v4198
    %v4201 = vadd.f32 %v4195, %v4199
    %s4202 = sld [smem:[#allocation22 + $0x19e]]
    %v4203 = vstv %s4202
    %v4204 = vadd.f32 %v4200, %v4203
    %v4205 = vadd.f32 %v4201, %v4203
    %v4206 = vmin.f32 %v4204, 0.0
    %v4207 = vmin.f32 %v4205, 0.0
    %v4208 = vmul.f32 %v4206, 1.442695
    %v4209 = vpow.pop %v4208
    %v4210 = vmul.f32 %v4207, 1.442695
    %v4211 = vpow.pop %v4210
    %v4212 = vsub.f32 %v4209, 1.0
    %v4213 = vsub.f32 %v4211, 1.0
    %v4214 = vmul.f32 %v4212, 1.6732632
    %v4215 = vmul.f32 %v4213, 1.6732632
    %vm4216 = vcmp.gt.f32.partialorder %v4204, 0.0
    %vm4217 = vcmp.gt.f32.partialorder %v4205, 0.0
    %v4218 = vsel %vm4216, %v4204, %v4214
    %v4219 = vsel %vm4217, %v4205, %v4215
    %v4220 = vmul.f32 %v4218, 1.050701
    %v4221 = vmul.f32 %v4219, 1.050701
    %v4222 = vpack.c.bf16 %v4220, %v4220
    %v4223 = vpack.c.bf16 %v4221, %v4221
    %s4224 = scalar_lea.vmem [#allocation2], 3840
    %v4225 = vld [vmem:[%s4224] sm:$0xff]
    %v4226 = vld [vmem:[%s4224 + $0x8] sm:$0xff]
    %v4227 = vld [vmem:[%s4224 + $0x10] sm:$0xff]
    %v4228 = vld [vmem:[%s4224 + $0x18] sm:$0xff]
    %v4229 = vld [vmem:[%s4224 + $0x20] sm:$0xff]
    %v4230 = vld [vmem:[%s4224 + $0x28] sm:$0xff]
    %v4231 = vld [vmem:[%s4224 + $0x30] sm:$0xff]
    %v4232 = vld [vmem:[%s4224 + $0x38] sm:$0xff]
    %v4233 = vld [vmem:[%s4224 + $0x40] sm:$0xff]
    %v4234 = vld [vmem:[%s4224 + $0x48] sm:$0xff]
    %v4235 = vld [vmem:[%s4224 + $0x50] sm:$0xff]
    %v4236 = vld [vmem:[%s4224 + $0x58] sm:$0xff]
    %v4237 = vld [vmem:[%s4224 + $0x60] sm:$0xff]
    %v4238 = vld [vmem:[%s4224 + $0x68] sm:$0xff]
    %v4239 = vld [vmem:[%s4224 + $0x70] sm:$0xff]
    %v4240 = vld [vmem:[%s4224 + $0x78] sm:$0xff]
    %4241 = vmatprep.subr.bf16.mxu0 0
    %4242 = vmatpush1.bf16.msra.mxu0 %v4225
    %4243 = vmatprep.subr.bf16.mxu0 0
    %4244 = vmatpush1.bf16.msra.mxu0 %v4226
    %4245 = vmatprep.subr.bf16.mxu0 0
    %4246 = vmatpush1.bf16.msra.mxu0 %v4227
    %4247 = vmatprep.subr.bf16.mxu0 0
    %4248 = vmatpush1.bf16.msra.mxu0 %v4228
    %4249 = vmatprep.subr.bf16.mxu0 0
    %4250 = vmatpush1.bf16.msra.mxu0 %v4229
    %4251 = vmatprep.subr.bf16.mxu0 0
    %4252 = vmatpush1.bf16.msra.mxu0 %v4230
    %4253 = vmatprep.subr.bf16.mxu0 0
    %4254 = vmatpush1.bf16.msra.mxu0 %v4231
    %4255 = vmatprep.subr.bf16.mxu0 0
    %4256 = vmatpush1.bf16.msra.mxu0 %v4232
    %4257 = vmatprep.subr.bf16.mxu0 0
    %4258 = vmatpush1.bf16.msra.mxu0 %v4233
    %4259 = vmatprep.subr.bf16.mxu0 0
    %4260 = vmatpush1.bf16.msra.mxu0 %v4234
    %4261 = vmatprep.subr.bf16.mxu0 0
    %4262 = vmatpush1.bf16.msra.mxu0 %v4235
    %4263 = vmatprep.subr.bf16.mxu0 0
    %4264 = vmatpush1.bf16.msra.mxu0 %v4236
    %4265 = vmatprep.subr.bf16.mxu0 0
    %4266 = vmatpush1.bf16.msra.mxu0 %v4237
    %4267 = vmatprep.subr.bf16.mxu0 0
    %4268 = vmatpush1.bf16.msra.mxu0 %v4238
    %4269 = vmatprep.subr.bf16.mxu0 0
    %4270 = vmatpush1.bf16.msra.mxu0 %v4239
    %4271 = vmatprep.subr.bf16.mxu0 0
    %4272 = vmatpush1.bf16.msra.mxu0 %v4240
    %4273 = vmatprep.mubr.bf16.mxu0 %v4223
    %4274 = vmatmul.mubr.bf16.gmra.mrb[0].mxu0 %v4222
    %v4275 = vpop.f32.mrb[0].mxu0
    %v4276 = vadd.f32 0.0, %v4275
    %v4277 = vpop.f32.mrb[0].mxu0
    %v4278 = vpop.f32.mrb[0].mxu0
    %v4279 = vpop.f32.mrb[0].mxu0
    %4280 = vdwg.mxu0
    %v4281 = vadd.f32 %v4185, %v4276
    %s4282 = sld [smem:[#allocation22 + $0x1f]]
    %v4283 = vstv %s4282
    %v4284 = vmul.f32 %v4283, %v1297
    %v4285 = vmul.f32 %v4283, %v1298
    %s4286 = sld [smem:[#allocation22 + $0x9f]]
    %v4287 = vstv %s4286
    %v4288 = vmul.f32 %v4287, %v428
    %v4289 = vmul.f32 %v4287, %v429
    %v4290 = vadd.f32 %v4284, %v4288
    %v4291 = vadd.f32 %v4285, %v4289
    %s4292 = sld [smem:[#allocation22 + $0x11f]]
    %v4293 = vstv %s4292
    %v4294 = vmul.f32 %v4293, %v1299
    %v4295 = vmul.f32 %v4293, %v1300
    %v4296 = vadd.f32 %v4290, %v4294
    %v4297 = vadd.f32 %v4291, %v4295
    %s4298 = sld [smem:[#allocation22 + $0x19f]]
    %v4299 = vstv %s4298
    %v4300 = vadd.f32 %v4296, %v4299
    %v4301 = vadd.f32 %v4297, %v4299
    %v4302 = vmin.f32 %v4300, 0.0
    %v4303 = vmin.f32 %v4301, 0.0
    %v4304 = vmul.f32 %v4302, 1.442695
    %v4305 = vpow.pop %v4304
    %v4306 = vmul.f32 %v4303, 1.442695
    %v4307 = vpow.pop %v4306
    %v4308 = vsub.f32 %v4305, 1.0
    %v4309 = vsub.f32 %v4307, 1.0
    %v4310 = vmul.f32 %v4308, 1.6732632
    %v4311 = vmul.f32 %v4309, 1.6732632
    %vm4312 = vcmp.gt.f32.partialorder %v4300, 0.0
    %vm4313 = vcmp.gt.f32.partialorder %v4301, 0.0
    %v4314 = vsel %vm4312, %v4300, %v4310
    %v4315 = vsel %vm4313, %v4301, %v4311
    %v4316 = vmul.f32 %v4314, 1.050701
    %v4317 = vmul.f32 %v4315, 1.050701
    %v4318 = vpack.c.bf16 %v4316, %v4316
    %v4319 = vpack.c.bf16 %v4317, %v4317
    %s4320 = scalar_lea.vmem [#allocation2], 3968
    %v4321 = vld [vmem:[%s4320] sm:$0xff]
    %v4322 = vld [vmem:[%s4320 + $0x8] sm:$0xff]
    %v4323 = vld [vmem:[%s4320 + $0x10] sm:$0xff]
    %v4324 = vld [vmem:[%s4320 + $0x18] sm:$0xff]
    %v4325 = vld [vmem:[%s4320 + $0x20] sm:$0xff]
    %v4326 = vld [vmem:[%s4320 + $0x28] sm:$0xff]
    %v4327 = vld [vmem:[%s4320 + $0x30] sm:$0xff]
    %v4328 = vld [vmem:[%s4320 + $0x38] sm:$0xff]
    %v4329 = vld [vmem:[%s4320 + $0x40] sm:$0xff]
    %v4330 = vld [vmem:[%s4320 + $0x48] sm:$0xff]
    %v4331 = vld [vmem:[%s4320 + $0x50] sm:$0xff]
    %v4332 = vld [vmem:[%s4320 + $0x58] sm:$0xff]
    %v4333 = vld [vmem:[%s4320 + $0x60] sm:$0xff]
    %v4334 = vld [vmem:[%s4320 + $0x68] sm:$0xff]
    %v4335 = vld [vmem:[%s4320 + $0x70] sm:$0xff]
    %v4336 = vld [vmem:[%s4320 + $0x78] sm:$0xff]
    %4337 = vmatprep.subr.bf16.mxu0 0
    %4338 = vmatpush1.bf16.msra.mxu0 %v4321
    %4339 = vmatprep.subr.bf16.mxu0 0
    %4340 = vmatpush1.bf16.msra.mxu0 %v4322
    %4341 = vmatprep.subr.bf16.mxu0 0
    %4342 = vmatpush1.bf16.msra.mxu0 %v4323
    %4343 = vmatprep.subr.bf16.mxu0 0
    %4344 = vmatpush1.bf16.msra.mxu0 %v4324
    %4345 = vmatprep.subr.bf16.mxu0 0
    %4346 = vmatpush1.bf16.msra.mxu0 %v4325
    %4347 = vmatprep.subr.bf16.mxu0 0
    %4348 = vmatpush1.bf16.msra.mxu0 %v4326
    %4349 = vmatprep.subr.bf16.mxu0 0
    %4350 = vmatpush1.bf16.msra.mxu0 %v4327
    %4351 = vmatprep.subr.bf16.mxu0 0
    %4352 = vmatpush1.bf16.msra.mxu0 %v4328
    %4353 = vmatprep.subr.bf16.mxu0 0
    %4354 = vmatpush1.bf16.msra.mxu0 %v4329
    %4355 = vmatprep.subr.bf16.mxu0 0
    %4356 = vmatpush1.bf16.msra.mxu0 %v4330
    %4357 = vmatprep.subr.bf16.mxu0 0
    %4358 = vmatpush1.bf16.msra.mxu0 %v4331
    %4359 = vmatprep.subr.bf16.mxu0 0
    %4360 = vmatpush1.bf16.msra.mxu0 %v4332
    %4361 = vmatprep.subr.bf16.mxu0 0
    %4362 = vmatpush1.bf16.msra.mxu0 %v4333
    %4363 = vmatprep.subr.bf16.mxu0 0
    %4364 = vmatpush1.bf16.msra.mxu0 %v4334
    %4365 = vmatprep.subr.bf16.mxu0 0
    %4366 = vmatpush1.bf16.msra.mxu0 %v4335
    %4367 = vmatprep.subr.bf16.mxu0 0
    %4368 = vmatpush1.bf16.msra.mxu0 %v4336
    %4369 = vmatprep.mubr.bf16.mxu0 %v4319
    %4370 = vmatmul.mubr.bf16.gmra.mrb[0].mxu0 %v4318
    %v4371 = vpop.f32.mrb[0].mxu0
    %v4372 = vadd.f32 0.0, %v4371
    %v4373 = vpop.f32.mrb[0].mxu0
    %v4374 = vpop.f32.mrb[0].mxu0
    %v4375 = vpop.f32.mrb[0].mxu0
    %4376 = vdwg.mxu0
    %v4377 = vadd.f32 %v4281, %v4372
    %v4378 = vld [vmem:[#allocation23] sm:$0x1]
    %v4380 = vlaneseq
    %v4381 = vshrl.u32 %v4380, 7
    %v4382 = vsub.s32 0, %v4381
    %v4383 = vrot.slane %v4378, %v4382
    %v4385 = vadd.f32 %v4377, %v4383
    %v4386 = vmin.f32 %v4385, 0.0
    %v4387 = vmul.f32 %v4386, 1.442695
    %v4388 = vpow.pop %v4387
    %v4389 = vsub.f32 %v4388, 1.0
    %v4390 = vmul.f32 %v4389, 1.6732632
    %vm4391 = vcmp.gt.f32.partialorder %v4385, 0.0
    %v4392 = vsel %vm4391, %v4385, %v4390
    %v4393 = vmul.f32 %v4392, 1.050701
    %s4394 = smul.u32 4, 48
    %s4395 = smul.u32 %s4394, 4
    %s4396 = sshll.u32 %s4395, 4
    %4397 = dma.done %s357, %s4396
    %v4398 = vpack.c.bf16 %v1139, %v1139
    %v4399 = vpack.c.bf16 %v4393, %v4393
    %v4400 = vpack.c.bf16 %v1296, %v1296
    %v4401 = vld [vmem:[#allocation3] sm:$0xff]
    %v4402 = vld [vmem:[#allocation3 + $0x8] sm:$0xff]
    %v4403 = vld [vmem:[#allocation3 + $0x10] sm:$0xff]
    %v4404 = vld [vmem:[#allocation3 + $0x18] sm:$0xff]
    %v4405 = vld [vmem:[#allocation3 + $0x20] sm:$0xff]
    %v4406 = vld [vmem:[#allocation3 + $0x28] sm:$0xff]
    %v4407 = vld [vmem:[#allocation3 + $0x30] sm:$0xff]
    %v4408 = vld [vmem:[#allocation3 + $0x38] sm:$0xff]
    %v4409 = vld [vmem:[#allocation3 + $0x40] sm:$0xff]
    %v4410 = vld [vmem:[#allocation3 + $0x48] sm:$0xff]
    %v4411 = vld [vmem:[#allocation3 + $0x50] sm:$0xff]
    %v4412 = vld [vmem:[#allocation3 + $0x58] sm:$0xff]
    %v4413 = vld [vmem:[#allocation3 + $0x60] sm:$0xff]
    %v4414 = vld [vmem:[#allocation3 + $0x68] sm:$0xff]
    %v4415 = vld [vmem:[#allocation3 + $0x70] sm:$0xff]
    %v4416 = vld [vmem:[#allocation3 + $0x78] sm:$0xff]
    %v4417 = vld [vmem:[#allocation3 + $0x80] sm:$0xff]
    %v4418 = vld [vmem:[#allocation3 + $0x88] sm:$0xff]
    %v4419 = vld [vmem:[#allocation3 + $0x90] sm:$0xff]
    %v4420 = vld [vmem:[#allocation3 + $0x98] sm:$0xff]
    %v4421 = vld [vmem:[#allocation3 + $0xa0] sm:$0xff]
    %v4422 = vld [vmem:[#allocation3 + $0xa8] sm:$0xff]
    %v4423 = vld [vmem:[#allocation3 + $0xb0] sm:$0xff]
    %v4424 = vld [vmem:[#allocation3 + $0xb8] sm:$0xff]
    %v4425 = vld [vmem:[#allocation3 + $0xc0] sm:$0xff]
    %v4426 = vld [vmem:[#allocation3 + $0xc8] sm:$0xff]
    %v4427 = vld [vmem:[#allocation3 + $0xd0] sm:$0xff]
    %v4428 = vld [vmem:[#allocation3 + $0xd8] sm:$0xff]
    %v4429 = vld [vmem:[#allocation3 + $0xe0] sm:$0xff]
    %v4430 = vld [vmem:[#allocation3 + $0xe8] sm:$0xff]
    %v4431 = vld [vmem:[#allocation3 + $0xf0] sm:$0xff]
    %v4432 = vld [vmem:[#allocation3 + $0xf8] sm:$0xff]
    %v4433 = vld [vmem:[#allocation3 + $0x100] sm:$0xff]
    %v4434 = vld [vmem:[#allocation3 + $0x108] sm:$0xff]
    %v4435 = vld [vmem:[#allocation3 + $0x110] sm:$0xff]
    %v4436 = vld [vmem:[#allocation3 + $0x118] sm:$0xff]
    %v4437 = vld [vmem:[#allocation3 + $0x120] sm:$0xff]
    %v4438 = vld [vmem:[#allocation3 + $0x128] sm:$0xff]
    %v4439 = vld [vmem:[#allocation3 + $0x130] sm:$0xff]
    %v4440 = vld [vmem:[#allocation3 + $0x138] sm:$0xff]
    %v4441 = vld [vmem:[#allocation3 + $0x140] sm:$0xff]
    %v4442 = vld [vmem:[#allocation3 + $0x148] sm:$0xff]
    %v4443 = vld [vmem:[#allocation3 + $0x150] sm:$0xff]
    %v4444 = vld [vmem:[#allocation3 + $0x158] sm:$0xff]
    %v4445 = vld [vmem:[#allocation3 + $0x160] sm:$0xff]
    %v4446 = vld [vmem:[#allocation3 + $0x168] sm:$0xff]
    %v4447 = vld [vmem:[#allocation3 + $0x170] sm:$0xff]
    %v4448 = vld [vmem:[#allocation3 + $0x178] sm:$0xff]
    %v4449 = vld [vmem:[#allocation3 + $0x180] sm:$0xff]
    %v4450 = vld [vmem:[#allocation3 + $0x188] sm:$0xff]
    %v4451 = vld [vmem:[#allocation3 + $0x190] sm:$0xff]
    %v4452 = vld [vmem:[#allocation3 + $0x198] sm:$0xff]
    %v4453 = vld [vmem:[#allocation3 + $0x1a0] sm:$0xff]
    %v4454 = vld [vmem:[#allocation3 + $0x1a8] sm:$0xff]
    %v4455 = vld [vmem:[#allocation3 + $0x1b0] sm:$0xff]
    %v4456 = vld [vmem:[#allocation3 + $0x1b8] sm:$0xff]
    %v4457 = vld [vmem:[#allocation3 + $0x1c0] sm:$0xff]
    %v4458 = vld [vmem:[#allocation3 + $0x1c8] sm:$0xff]
    %v4459 = vld [vmem:[#allocation3 + $0x1d0] sm:$0xff]
    %v4460 = vld [vmem:[#allocation3 + $0x1d8] sm:$0xff]
    %v4461 = vld [vmem:[#allocation3 + $0x1e0] sm:$0xff]
    %v4462 = vld [vmem:[#allocation3 + $0x1e8] sm:$0xff]
    %v4463 = vld [vmem:[#allocation3 + $0x1f0] sm:$0xff]
    %v4464 = vld [vmem:[#allocation3 + $0x1f8] sm:$0xff]
    %v4465 = vld [vmem:[#allocation3 + $0x200] sm:$0xff]
    %v4466 = vld [vmem:[#allocation3 + $0x208] sm:$0xff]
    %v4467 = vld [vmem:[#allocation3 + $0x210] sm:$0xff]
    %v4468 = vld [vmem:[#allocation3 + $0x218] sm:$0xff]
    %v4469 = vld [vmem:[#allocation3 + $0x220] sm:$0xff]
    %v4470 = vld [vmem:[#allocation3 + $0x228] sm:$0xff]
    %v4471 = vld [vmem:[#allocation3 + $0x230] sm:$0xff]
    %v4472 = vld [vmem:[#allocation3 + $0x238] sm:$0xff]
    %v4473 = vld [vmem:[#allocation3 + $0x240] sm:$0xff]
    %v4474 = vld [vmem:[#allocation3 + $0x248] sm:$0xff]
    %v4475 = vld [vmem:[#allocation3 + $0x250] sm:$0xff]
    %v4476 = vld [vmem:[#allocation3 + $0x258] sm:$0xff]
    %v4477 = vld [vmem:[#allocation3 + $0x260] sm:$0xff]
    %v4478 = vld [vmem:[#allocation3 + $0x268] sm:$0xff]
    %v4479 = vld [vmem:[#allocation3 + $0x270] sm:$0xff]
    %v4480 = vld [vmem:[#allocation3 + $0x278] sm:$0xff]
    %v4481 = vld [vmem:[#allocation3 + $0x280] sm:$0xff]
    %v4482 = vld [vmem:[#allocation3 + $0x288] sm:$0xff]
    %v4483 = vld [vmem:[#allocation3 + $0x290] sm:$0xff]
    %v4484 = vld [vmem:[#allocation3 + $0x298] sm:$0xff]
    %v4485 = vld [vmem:[#allocation3 + $0x2a0] sm:$0xff]
    %v4486 = vld [vmem:[#allocation3 + $0x2a8] sm:$0xff]
    %v4487 = vld [vmem:[#allocation3 + $0x2b0] sm:$0xff]
    %v4488 = vld [vmem:[#allocation3 + $0x2b8] sm:$0xff]
    %v4489 = vld [vmem:[#allocation3 + $0x2c0] sm:$0xff]
    %v4490 = vld [vmem:[#allocation3 + $0x2c8] sm:$0xff]
    %v4491 = vld [vmem:[#allocation3 + $0x2d0] sm:$0xff]
    %v4492 = vld [vmem:[#allocation3 + $0x2d8] sm:$0xff]
    %v4493 = vld [vmem:[#allocation3 + $0x2e0] sm:$0xff]
    %v4494 = vld [vmem:[#allocation3 + $0x2e8] sm:$0xff]
    %v4495 = vld [vmem:[#allocation3 + $0x2f0] sm:$0xff]
    %v4496 = vld [vmem:[#allocation3 + $0x2f8] sm:$0xff]
    %v4497 = vld [vmem:[#allocation24] sm:$0xf]
    %v4499 = vlaneseq
    %v4500 = vshrl.u32 %v4499, 7
    %v4501 = vsub.s32 0, %v4500
    %v4502 = vrot.slane %v4497, %v4501
    %v4503 = vlaneseq
    %v4504 = vshrl.u32 %v4503, 7
    %v4505 = vsub.s32 1, %v4504
    %v4506 = vrot.slane %v4497, %v4505
    %v4507 = vlaneseq
    %v4508 = vshrl.u32 %v4507, 7
    %v4509 = vsub.s32 2, %v4508
    %v4510 = vrot.slane %v4497, %v4509
    %v4511 = vlaneseq
    %v4512 = vshrl.u32 %v4511, 7
    %v4513 = vsub.s32 3, %v4512
    %v4514 = vrot.slane %v4497, %v4513
    %4519 = vmatprep.subr.bf16.mxu0 %v4402
    %4520 = vmatpush1.bf16.msra.mxu0 %v4401
    %4521 = vmatprep.subr.bf16.mxu0 %v4406
    %4522 = vmatpush1.bf16.msra.mxu0 %v4405
    %4523 = vmatprep.subr.bf16.mxu0 %v4410
    %4524 = vmatpush1.bf16.msra.mxu0 %v4409
    %4525 = vmatprep.subr.bf16.mxu0 %v4414
    %4526 = vmatpush1.bf16.msra.mxu0 %v4413
    %4527 = vmatprep.subr.bf16.mxu0 %v4418
    %4528 = vmatpush1.bf16.msra.mxu0 %v4417
    %4529 = vmatprep.subr.bf16.mxu0 %v4422
    %4530 = vmatpush1.bf16.msra.mxu0 %v4421
    %4531 = vmatprep.subr.bf16.mxu0 %v4426
    %4532 = vmatpush1.bf16.msra.mxu0 %v4425
    %4533 = vmatprep.subr.bf16.mxu0 %v4430
    %4534 = vmatpush1.bf16.msra.mxu0 %v4429
    %4535 = vmatprep.subr.bf16.mxu0 %v4434
    %4536 = vmatpush1.bf16.msra.mxu0 %v4433
    %4537 = vmatprep.subr.bf16.mxu0 %v4438
    %4538 = vmatpush1.bf16.msra.mxu0 %v4437
    %4539 = vmatprep.subr.bf16.mxu0 %v4442
    %4540 = vmatpush1.bf16.msra.mxu0 %v4441
    %4541 = vmatprep.subr.bf16.mxu0 %v4446
    %4542 = vmatpush1.bf16.msra.mxu0 %v4445
    %4543 = vmatprep.subr.bf16.mxu0 %v4450
    %4544 = vmatpush1.bf16.msra.mxu0 %v4449
    %4545 = vmatprep.subr.bf16.mxu0 %v4454
    %4546 = vmatpush1.bf16.msra.mxu0 %v4453
    %4547 = vmatprep.subr.bf16.mxu0 %v4458
    %4548 = vmatpush1.bf16.msra.mxu0 %v4457
    %4549 = vmatprep.subr.bf16.mxu0 %v4462
    %4550 = vmatpush1.bf16.msra.mxu0 %v4461
    %4551 = vmatprep.mubr.bf16.mxu0 %v4399
    %4552 = vmatmul.mubr.bf16.gmra.mrb[0].mxu0 %v4398
    %v4553 = vpop.f32.mrb[0].mxu0
    %v4554 = vadd.f32 %v4502, %v4553
    %v4555 = vpop.f32.mrb[0].mxu0
    %v4556 = vadd.f32 %v4506, %v4555
    %v4557 = vpop.f32.mrb[0].mxu0
    %v4558 = vpop.f32.mrb[0].mxu0
    %4559 = vdwg.mxu0
    %4560 = vmatprep.subr.bf16.mxu0 %v4466
    %4561 = vmatpush1.bf16.msra.mxu0 %v4465
    %4562 = vmatprep.subr.bf16.mxu0 %v4470
    %4563 = vmatpush1.bf16.msra.mxu0 %v4469
    %4564 = vmatprep.subr.bf16.mxu0 %v4474
    %4565 = vmatpush1.bf16.msra.mxu0 %v4473
    %4566 = vmatprep.subr.bf16.mxu0 %v4478
    %4567 = vmatpush1.bf16.msra.mxu0 %v4477
    %4568 = vmatprep.subr.bf16.mxu0 %v4482
    %4569 = vmatpush1.bf16.msra.mxu0 %v4481
    %4570 = vmatprep.subr.bf16.mxu0 %v4486
    %4571 = vmatpush1.bf16.msra.mxu0 %v4485
    %4572 = vmatprep.subr.bf16.mxu0 %v4490
    %4573 = vmatpush1.bf16.msra.mxu0 %v4489
    %4574 = vmatprep.subr.bf16.mxu0 %v4494
    %4575 = vmatpush1.bf16.msra.mxu0 %v4493
    %4576 = vmatprep.subr.bf16.mxu0 0
    %4577 = vmatpush1.bf16.msra.mxu0 0
    %4578 = vmatprep.subr.bf16.mxu0 0
    %4579 = vmatpush1.bf16.msra.mxu0 0
    %4580 = vmatprep.subr.bf16.mxu0 0
    %4581 = vmatpush1.bf16.msra.mxu0 0
    %4582 = vmatprep.subr.bf16.mxu0 0
    %4583 = vmatpush1.bf16.msra.mxu0 0
    %4584 = vmatprep.subr.bf16.mxu0 0
    %4585 = vmatpush1.bf16.msra.mxu0 0
    %4586 = vmatprep.subr.bf16.mxu0 0
    %4587 = vmatpush1.bf16.msra.mxu0 0
    %4588 = vmatprep.subr.bf16.mxu0 0
    %4589 = vmatpush1.bf16.msra.mxu0 0
    %4590 = vmatprep.subr.bf16.mxu0 0
    %4591 = vmatpush1.bf16.msra.mxu0 0
    %4592 = vmatprep.mubr.bf16.mxu0 0
    %4593 = vmatmul.mubr.bf16.gmra.mrb[0].mxu0 %v4400
    %v4594 = vpop.f32.mrb[0].mxu0
    %v4595 = vadd.f32 %v4554, %v4594
    %v4596 = vpop.f32.mrb[0].mxu0
    %v4597 = vadd.f32 %v4556, %v4596
    %v4598 = vpop.f32.mrb[0].mxu0
    %v4599 = vpop.f32.mrb[0].mxu0
    %4600 = vdwg.mxu0
    %4601 = vmatprep.subr.bf16.mxu0 %v4404
    %4602 = vmatpush1.bf16.msra.mxu0 %v4403
    %4603 = vmatprep.subr.bf16.mxu0 %v4408
    %4604 = vmatpush1.bf16.msra.mxu0 %v4407
    %4605 = vmatprep.subr.bf16.mxu0 %v4412
    %4606 = vmatpush1.bf16.msra.mxu0 %v4411
    %4607 = vmatprep.subr.bf16.mxu0 %v4416
    %4608 = vmatpush1.bf16.msra.mxu0 %v4415
    %4609 = vmatprep.subr.bf16.mxu0 %v4420
    %4610 = vmatpush1.bf16.msra.mxu0 %v4419
    %4611 = vmatprep.subr.bf16.mxu0 %v4424
    %4612 = vmatpush1.bf16.msra.mxu0 %v4423
    %4613 = vmatprep.subr.bf16.mxu0 %v4428
    %4614 = vmatpush1.bf16.msra.mxu0 %v4427
    %4615 = vmatprep.subr.bf16.mxu0 %v4432
    %4616 = vmatpush1.bf16.msra.mxu0 %v4431
    %4617 = vmatprep.subr.bf16.mxu0 %v4436
    %4618 = vmatpush1.bf16.msra.mxu0 %v4435
    %4619 = vmatprep.subr.bf16.mxu0 %v4440
    %4620 = vmatpush1.bf16.msra.mxu0 %v4439
    %4621 = vmatprep.subr.bf16.mxu0 %v4444
    %4622 = vmatpush1.bf16.msra.mxu0 %v4443
    %4623 = vmatprep.subr.bf16.mxu0 %v4448
    %4624 = vmatpush1.bf16.msra.mxu0 %v4447
    %4625 = vmatprep.subr.bf16.mxu0 %v4452
    %4626 = vmatpush1.bf16.msra.mxu0 %v4451
    %4627 = vmatprep.subr.bf16.mxu0 %v4456
    %4628 = vmatpush1.bf16.msra.mxu0 %v4455
    %4629 = vmatprep.subr.bf16.mxu0 %v4460
    %4630 = vmatpush1.bf16.msra.mxu0 %v4459
    %4631 = vmatprep.subr.bf16.mxu0 %v4464
    %4632 = vmatpush1.bf16.msra.mxu0 %v4463
    %4633 = vmatprep.mubr.bf16.mxu0 %v4399
    %4634 = vmatmul.mubr.bf16.gmra.mrb[0].mxu0 %v4398
    %v4635 = vpop.f32.mrb[0].mxu0
    %v4636 = vadd.f32 %v4510, %v4635
    %v4637 = vpop.f32.mrb[0].mxu0
    %v4638 = vadd.f32 %v4514, %v4637
    %v4639 = vpop.f32.mrb[0].mxu0
    %v4640 = vpop.f32.mrb[0].mxu0
    %4641 = vdwg.mxu0
    %4642 = vmatprep.subr.bf16.mxu0 %v4468
    %4643 = vmatpush1.bf16.msra.mxu0 %v4467
    %4644 = vmatprep.subr.bf16.mxu0 %v4472
    %4645 = vmatpush1.bf16.msra.mxu0 %v4471
    %4646 = vmatprep.subr.bf16.mxu0 %v4476
    %4647 = vmatpush1.bf16.msra.mxu0 %v4475
    %4648 = vmatprep.subr.bf16.mxu0 %v4480
    %4649 = vmatpush1.bf16.msra.mxu0 %v4479
    %4650 = vmatprep.subr.bf16.mxu0 %v4484
    %4651 = vmatpush1.bf16.msra.mxu0 %v4483
    %4652 = vmatprep.subr.bf16.mxu0 %v4488
    %4653 = vmatpush1.bf16.msra.mxu0 %v4487
    %4654 = vmatprep.subr.bf16.mxu0 %v4492
    %4655 = vmatpush1.bf16.msra.mxu0 %v4491
    %4656 = vmatprep.subr.bf16.mxu0 %v4496
    %4657 = vmatpush1.bf16.msra.mxu0 %v4495
    %4658 = vmatprep.subr.bf16.mxu0 0
    %4659 = vmatpush1.bf16.msra.mxu0 0
    %4660 = vmatprep.subr.bf16.mxu0 0
    %4661 = vmatpush1.bf16.msra.mxu0 0
    %4662 = vmatprep.subr.bf16.mxu0 0
    %4663 = vmatpush1.bf16.msra.mxu0 0
    %4664 = vmatprep.subr.bf16.mxu0 0
    %4665 = vmatpush1.bf16.msra.mxu0 0
    %4666 = vmatprep.subr.bf16.mxu0 0
    %4667 = vmatpush1.bf16.msra.mxu0 0
    %4668 = vmatprep.subr.bf16.mxu0 0
    %4669 = vmatpush1.bf16.msra.mxu0 0
    %4670 = vmatprep.subr.bf16.mxu0 0
    %4671 = vmatpush1.bf16.msra.mxu0 0
    %4672 = vmatprep.subr.bf16.mxu0 0
    %4673 = vmatpush1.bf16.msra.mxu0 0
    %4674 = vmatprep.mubr.bf16.mxu0 0
    %4675 = vmatmul.mubr.bf16.gmra.mrb[0].mxu0 %v4400
    %v4676 = vpop.f32.mrb[0].mxu0
    %v4677 = vadd.f32 %v4636, %v4676
    %v4678 = vpop.f32.mrb[0].mxu0
    %v4679 = vadd.f32 %v4638, %v4678
    %v4680 = vpop.f32.mrb[0].mxu0
    %v4681 = vpop.f32.mrb[0].mxu0
    %4682 = vdwg.mxu0
    %v4683 = vmul.f32 %v4595, %v4595
    %v4684 = vmul.f32 %v4597, %v4597
    %v4685 = vmul.f32 %v4677, %v4677
    %v4686 = vmul.f32 %v4679, %v4679
    %v4687 = vmul.f32 %v4595, %v4683
    %v4688 = vmul.f32 %v4597, %v4684
    %v4689 = vmul.f32 %v4677, %v4685
    %v4690 = vmul.f32 %v4679, %v4686
    %v4691 = vmul.f32 %v4687, 0.044715
    %v4692 = vmul.f32 %v4688, 0.044715
    %v4693 = vmul.f32 %v4689, 0.044715
    %v4694 = vmul.f32 %v4690, 0.044715
    %v4695 = vadd.f32 %v4595, %v4691
    %v4696 = vadd.f32 %v4597, %v4692
    %v4697 = vadd.f32 %v4677, %v4693
    %v4698 = vadd.f32 %v4679, %v4694
    %v4699 = vmul.f32 %v4695, 0.7978846
    %v4700 = vmul.f32 %v4696, 0.7978846
    %v4701 = vmul.f32 %v4697, 0.7978846
    %v4702 = vmul.f32 %v4698, 0.7978846
    %v4703 = vtanh.pop %v4699
    %v4704 = vtanh.pop %v4700
    %v4705 = vtanh.pop %v4701
    %v4706 = vtanh.pop %v4702
    %v4707 = vadd.f32 %v4703, 1.0
    %v4708 = vadd.f32 %v4704, 1.0
    %v4709 = vadd.f32 %v4705, 1.0
    %v4710 = vadd.f32 %v4706, 1.0
    %v4711 = vmul.f32 %v4707, 0.5
    %v4712 = vmul.f32 %v4708, 0.5
    %v4713 = vmul.f32 %v4709, 0.5
    %v4714 = vmul.f32 %v4710, 0.5
    %v4715 = vmul.f32 %v4595, %v4711
    %v4716 = vmul.f32 %v4597, %v4712
    %v4717 = vmul.f32 %v4677, %v4713
    %v4718 = vmul.f32 %v4679, %v4714
    %s4719 = smul.u32 4, 64
    %s4720 = smul.u32 %s4719, 2
    %s4721 = sshll.u32 %s4720, 4
    %4722 = dma.done %s393, %s4721
    %v4723 = vpack.c.bf16 %v4715, %v4715
    %v4724 = vpack.c.bf16 %v4716, %v4716
    %v4725 = vpack.c.bf16 %v4717, %v4717
    %v4726 = vpack.c.bf16 %v4718, %v4718
    %v4727 = vld [vmem:[#allocation4] sm:$0xff]
    %v4728 = vld [vmem:[#allocation4 + $0x8] sm:$0xff]
    %v4729 = vld [vmem:[#allocation4 + $0x10] sm:$0xff]
    %v4730 = vld [vmem:[#allocation4 + $0x18] sm:$0xff]
    %v4731 = vld [vmem:[#allocation4 + $0x20] sm:$0xff]
    %v4732 = vld [vmem:[#allocation4 + $0x28] sm:$0xff]
    %v4733 = vld [vmem:[#allocation4 + $0x30] sm:$0xff]
    %v4734 = vld [vmem:[#allocation4 + $0x38] sm:$0xff]
    %v4735 = vld [vmem:[#allocation4 + $0x40] sm:$0xff]
    %v4736 = vld [vmem:[#allocation4 + $0x48] sm:$0xff]
    %v4737 = vld [vmem:[#allocation4 + $0x50] sm:$0xff]
    %v4738 = vld [vmem:[#allocation4 + $0x58] sm:$0xff]
    %v4739 = vld [vmem:[#allocation4 + $0x60] sm:$0xff]
    %v4740 = vld [vmem:[#allocation4 + $0x68] sm:$0xff]
    %v4741 = vld [vmem:[#allocation4 + $0x70] sm:$0xff]
    %v4742 = vld [vmem:[#allocation4 + $0x78] sm:$0xff]
    %v4743 = vld [vmem:[#allocation4 + $0x80] sm:$0xff]
    %v4744 = vld [vmem:[#allocation4 + $0x88] sm:$0xff]
    %v4745 = vld [vmem:[#allocation4 + $0x90] sm:$0xff]
    %v4746 = vld [vmem:[#allocation4 + $0x98] sm:$0xff]
    %v4747 = vld [vmem:[#allocation4 + $0xa0] sm:$0xff]
    %v4748 = vld [vmem:[#allocation4 + $0xa8] sm:$0xff]
    %v4749 = vld [vmem:[#allocation4 + $0xb0] sm:$0xff]
    %v4750 = vld [vmem:[#allocation4 + $0xb8] sm:$0xff]
    %v4751 = vld [vmem:[#allocation4 + $0xc0] sm:$0xff]
    %v4752 = vld [vmem:[#allocation4 + $0xc8] sm:$0xff]
    %v4753 = vld [vmem:[#allocation4 + $0xd0] sm:$0xff]
    %v4754 = vld [vmem:[#allocation4 + $0xd8] sm:$0xff]
    %v4755 = vld [vmem:[#allocation4 + $0xe0] sm:$0xff]
    %v4756 = vld [vmem:[#allocation4 + $0xe8] sm:$0xff]
    %v4757 = vld [vmem:[#allocation4 + $0xf0] sm:$0xff]
    %v4758 = vld [vmem:[#allocation4 + $0xf8] sm:$0xff]
    %v4759 = vld [vmem:[#allocation4 + $0x100] sm:$0xff]
    %v4760 = vld [vmem:[#allocation4 + $0x108] sm:$0xff]
    %v4761 = vld [vmem:[#allocation4 + $0x110] sm:$0xff]
    %v4762 = vld [vmem:[#allocation4 + $0x118] sm:$0xff]
    %v4763 = vld [vmem:[#allocation4 + $0x120] sm:$0xff]
    %v4764 = vld [vmem:[#allocation4 + $0x128] sm:$0xff]
    %v4765 = vld [vmem:[#allocation4 + $0x130] sm:$0xff]
    %v4766 = vld [vmem:[#allocation4 + $0x138] sm:$0xff]
    %v4767 = vld [vmem:[#allocation4 + $0x140] sm:$0xff]
    %v4768 = vld [vmem:[#allocation4 + $0x148] sm:$0xff]
    %v4769 = vld [vmem:[#allocation4 + $0x150] sm:$0xff]
    %v4770 = vld [vmem:[#allocation4 + $0x158] sm:$0xff]
    %v4771 = vld [vmem:[#allocation4 + $0x160] sm:$0xff]
    %v4772 = vld [vmem:[#allocation4 + $0x168] sm:$0xff]
    %v4773 = vld [vmem:[#allocation4 + $0x170] sm:$0xff]
    %v4774 = vld [vmem:[#allocation4 + $0x178] sm:$0xff]
    %v4775 = vld [vmem:[#allocation4 + $0x180] sm:$0xff]
    %v4776 = vld [vmem:[#allocation4 + $0x188] sm:$0xff]
    %v4777 = vld [vmem:[#allocation4 + $0x190] sm:$0xff]
    %v4778 = vld [vmem:[#allocation4 + $0x198] sm:$0xff]
    %v4779 = vld [vmem:[#allocation4 + $0x1a0] sm:$0xff]
    %v4780 = vld [vmem:[#allocation4 + $0x1a8] sm:$0xff]
    %v4781 = vld [vmem:[#allocation4 + $0x1b0] sm:$0xff]
    %v4782 = vld [vmem:[#allocation4 + $0x1b8] sm:$0xff]
    %v4783 = vld [vmem:[#allocation4 + $0x1c0] sm:$0xff]
    %v4784 = vld [vmem:[#allocation4 + $0x1c8] sm:$0xff]
    %v4785 = vld [vmem:[#allocation4 + $0x1d0] sm:$0xff]
    %v4786 = vld [vmem:[#allocation4 + $0x1d8] sm:$0xff]
    %v4787 = vld [vmem:[#allocation4 + $0x1e0] sm:$0xff]
    %v4788 = vld [vmem:[#allocation4 + $0x1e8] sm:$0xff]
    %v4789 = vld [vmem:[#allocation4 + $0x1f0] sm:$0xff]
    %v4790 = vld [vmem:[#allocation4 + $0x1f8] sm:$0xff]
    %v4791 = vld [vmem:[#allocation26] sm:$0x3]
    %v4793 = vlaneseq
    %v4794 = vshrl.u32 %v4793, 7
    %v4795 = vsub.s32 0, %v4794
    %v4796 = vrot.slane %v4791, %v4795
    %v4797 = vlaneseq
    %v4798 = vshrl.u32 %v4797, 7
    %v4799 = vsub.s32 1, %v4798
    %v4800 = vrot.slane %v4791, %v4799
    %4803 = vmatprep.subr.bf16.mxu0 %v4728
    %4804 = vmatpush1.bf16.msra.mxu0 %v4727
    %4805 = vmatprep.subr.bf16.mxu0 %v4730
    %4806 = vmatpush1.bf16.msra.mxu0 %v4729
    %4807 = vmatprep.subr.bf16.mxu0 %v4732
    %4808 = vmatpush1.bf16.msra.mxu0 %v4731
    %4809 = vmatprep.subr.bf16.mxu0 %v4734
    %4810 = vmatpush1.bf16.msra.mxu0 %v4733
    %4811 = vmatprep.subr.bf16.mxu0 %v4736
    %4812 = vmatpush1.bf16.msra.mxu0 %v4735
    %4813 = vmatprep.subr.bf16.mxu0 %v4738
    %4814 = vmatpush1.bf16.msra.mxu0 %v4737
    %4815 = vmatprep.subr.bf16.mxu0 %v4740
    %4816 = vmatpush1.bf16.msra.mxu0 %v4739
    %4817 = vmatprep.subr.bf16.mxu0 %v4742
    %4818 = vmatpush1.bf16.msra.mxu0 %v4741
    %4819 = vmatprep.subr.bf16.mxu0 %v4744
    %4820 = vmatpush1.bf16.msra.mxu0 %v4743
    %4821 = vmatprep.subr.bf16.mxu0 %v4746
    %4822 = vmatpush1.bf16.msra.mxu0 %v4745
    %4823 = vmatprep.subr.bf16.mxu0 %v4748
    %4824 = vmatpush1.bf16.msra.mxu0 %v4747
    %4825 = vmatprep.subr.bf16.mxu0 %v4750
    %4826 = vmatpush1.bf16.msra.mxu0 %v4749
    %4827 = vmatprep.subr.bf16.mxu0 %v4752
    %4828 = vmatpush1.bf16.msra.mxu0 %v4751
    %4829 = vmatprep.subr.bf16.mxu0 %v4754
    %4830 = vmatpush1.bf16.msra.mxu0 %v4753
    %4831 = vmatprep.subr.bf16.mxu0 %v4756
    %4832 = vmatpush1.bf16.msra.mxu0 %v4755
    %4833 = vmatprep.subr.bf16.mxu0 %v4758
    %4834 = vmatpush1.bf16.msra.mxu0 %v4757
    %4835 = vmatprep.mubr.bf16.mxu0 %v4724
    %4836 = vmatmul.mubr.bf16.gmra.mrb[0].mxu0 %v4723
    %v4837 = vpop.f32.mrb[0].mxu0
    %v4838 = vadd.f32 %v4796, %v4837
    %v4839 = vpop.f32.mrb[0].mxu0
    %v4840 = vadd.f32 %v4800, %v4839
    %v4841 = vpop.f32.mrb[0].mxu0
    %v4842 = vpop.f32.mrb[0].mxu0
    %4843 = vdwg.mxu0
    %4844 = vmatprep.subr.bf16.mxu0 %v4760
    %4845 = vmatpush1.bf16.msra.mxu0 %v4759
    %4846 = vmatprep.subr.bf16.mxu0 %v4762
    %4847 = vmatpush1.bf16.msra.mxu0 %v4761
    %4848 = vmatprep.subr.bf16.mxu0 %v4764
    %4849 = vmatpush1.bf16.msra.mxu0 %v4763
    %4850 = vmatprep.subr.bf16.mxu0 %v4766
    %4851 = vmatpush1.bf16.msra.mxu0 %v4765
    %4852 = vmatprep.subr.bf16.mxu0 %v4768
    %4853 = vmatpush1.bf16.msra.mxu0 %v4767
    %4854 = vmatprep.subr.bf16.mxu0 %v4770
    %4855 = vmatpush1.bf16.msra.mxu0 %v4769
    %4856 = vmatprep.subr.bf16.mxu0 %v4772
    %4857 = vmatpush1.bf16.msra.mxu0 %v4771
    %4858 = vmatprep.subr.bf16.mxu0 %v4774
    %4859 = vmatpush1.bf16.msra.mxu0 %v4773
    %4860 = vmatprep.subr.bf16.mxu0 %v4776
    %4861 = vmatpush1.bf16.msra.mxu0 %v4775
    %4862 = vmatprep.subr.bf16.mxu0 %v4778
    %4863 = vmatpush1.bf16.msra.mxu0 %v4777
    %4864 = vmatprep.subr.bf16.mxu0 %v4780
    %4865 = vmatpush1.bf16.msra.mxu0 %v4779
    %4866 = vmatprep.subr.bf16.mxu0 %v4782
    %4867 = vmatpush1.bf16.msra.mxu0 %v4781
    %4868 = vmatprep.subr.bf16.mxu0 %v4784
    %4869 = vmatpush1.bf16.msra.mxu0 %v4783
    %4870 = vmatprep.subr.bf16.mxu0 %v4786
    %4871 = vmatpush1.bf16.msra.mxu0 %v4785
    %4872 = vmatprep.subr.bf16.mxu0 %v4788
    %4873 = vmatpush1.bf16.msra.mxu0 %v4787
    %4874 = vmatprep.subr.bf16.mxu0 %v4790
    %4875 = vmatpush1.bf16.msra.mxu0 %v4789
    %4876 = vmatprep.mubr.bf16.mxu0 %v4726
    %4877 = vmatmul.mubr.bf16.gmra.mrb[0].mxu0 %v4725
    %v4878 = vpop.f32.mrb[0].mxu0
    %v4879 = vadd.f32 %v4838, %v4878
    %v4880 = vpop.f32.mrb[0].mxu0
    %v4881 = vadd.f32 %v4840, %v4880
    %v4882 = vpop.f32.mrb[0].mxu0
    %v4883 = vpop.f32.mrb[0].mxu0
    %4884 = vdwg.mxu0
    %v4885 = vmul.f32 %v4879, %v4879
    %v4886 = vmul.f32 %v4881, %v4881
    %v4887 = vmul.f32 %v4879, %v4885
    %v4888 = vmul.f32 %v4881, %v4886
    %v4889 = vmul.f32 %v4887, 0.044715
    %v4890 = vmul.f32 %v4888, 0.044715
    %v4891 = vadd.f32 %v4879, %v4889
    %v4892 = vadd.f32 %v4881, %v4890
    %v4893 = vmul.f32 %v4891, 0.7978846
    %v4894 = vmul.f32 %v4892, 0.7978846
    %v4895 = vtanh.pop %v4893
    %v4896 = vtanh.pop %v4894
    %v4897 = vadd.f32 %v4895, 1.0
    %v4898 = vadd.f32 %v4896, 1.0
    %v4899 = vmul.f32 %v4897, 0.5
    %v4900 = vmul.f32 %v4898, 0.5
    %v4901 = vmul.f32 %v4879, %v4899
    %v4902 = vmul.f32 %v4881, %v4900
    %v4903 = vld [vmem:[#allocation27] sm:$0x3]
    %v4905 = vlaneseq
    %v4906 = vshrl.u32 %v4905, 7
    %v4907 = vsub.s32 0, %v4906
    %v4908 = vrot.slane %v4903, %v4907
    %v4909 = vlaneseq
    %v4910 = vshrl.u32 %v4909, 7
    %v4911 = vsub.s32 1, %v4910
    %v4912 = vrot.slane %v4903, %v4911
    %v4915 = vmul.f32 %v4901, %v4908
    %v4916 = vmul.f32 %v4902, %v4912
    %v4917 = vld [vmem:[#allocation29] sm:$0x3]
    %v4919 = vlaneseq
    %v4920 = vshrl.u32 %v4919, 7
    %v4921 = vsub.s32 0, %v4920
    %v4922 = vrot.slane %v4917, %v4921
    %v4923 = vlaneseq
    %v4924 = vshrl.u32 %v4923, 7
    %v4925 = vsub.s32 1, %v4924
    %v4926 = vrot.slane %v4917, %v4925
    %v4929 = vadd.f32 %v4915, %v4922
    %v4930 = vadd.f32 %v4916, %v4926
    %v4931 = vlaneseq
    %v4932 = vand.u32 %v4931, 127
    %v4933 = vadd.s32 %v4932, 128
    %vm4934 = vcmp.lt.s32.totalorder %v4932, 4
    %vm4935 = vcmp.lt.s32.totalorder %v4933, 4
    %v4936 = vsel %vm4934, %v4929, -1e+30
    %v4937 = vsel %vm4935, %v4930, -1e+30
    %v4938 = vmax.f32 %v4936, %v4937
    %4939 = vmax.xlane.f32.xlu0 %v4938
    %v4940 = vpop.xlane.xlu0 %4939
    %v4941 = vsub.f32 %v4936, %v4940
    %v4942 = vsub.f32 %v4937, %v4940
    %v4943 = vmul.f32 %v4941, 1.442695
    %v4944 = vpow.pop %v4943
    %v4945 = vmul.f32 %v4942, 1.442695
    %v4946 = vpow.pop %v4945
    %v4947 = vadd.f32 %v4944, %v4946
    %4948 = vadd.xlane.f32.xlu0 %v4947
    %v4949 = vpop.xlane.xlu0 %4948
    %v4950 = vrcp.pop %v4949
    %v4951 = vmul.f32 %v4944, %v4950
    %v4952 = vmul.f32 %v4946, %v4950
    %v4953 = vld [vmem:[#allocation6] sm:$0x1]
    %v4954 = vadd.f32 %v4951, 1e-10
    %v4955 = vadd.f32 %v4952, 1e-10
    %v4956 = vlog2.pop %v4954
    %v4957 = vmul.f32 %v4956, 0.6931472
    %v4958 = vlog2.pop %v4955
    %v4959 = vmul.f32 %v4958, 0.6931472
    %v4960 = vmul.f32 %v4951, %v4957
    %v4961 = vmul.f32 %v4952, %v4959
    %v4962 = vadd.f32 %v4960, %v4961
    %4963 = vadd.xlane.f32.xlu0 %v4962
    %v4964 = vpop.xlane.xlu0 %4963
    %v4966 = vlaneseq
    %v4967 = vshrl.u32 %v4966, 7
    %v4968 = vsub.s32 0, %v4967
    %v4969 = vrot.slane %v4953, %v4968
    %v4971 = vmul.f32 %v4969, %v4964
    %v4972 = vsub.f32 0.0, %v4971
    %v4973 = vld [vmem:[#allocation30] sm:$0x3]
    %v4975 = vlaneseq
    %v4976 = vshrl.u32 %v4975, 7
    %v4977 = vsub.s32 0, %v4976
    %v4978 = vrot.slane %v4973, %v4977
    %v4979 = vlaneseq
    %v4980 = vshrl.u32 %v4979, 7
    %v4981 = vsub.s32 1, %v4980
    %v4982 = vrot.slane %v4973, %v4981
    %v4985 = vmul.f32 %v4929, %v4978
    %v4986 = vmul.f32 %v4930, %v4982
    %v4987 = vadd.f32 %v4985, %v4986
    %4988 = vadd.xlane.f32.xlu0 %v4987
    %v4989 = vpop.xlane.xlu0 %4988
    %v4990 = vadd.f32 %v4972, %v4989
    %v4991 = vld [vmem:[#allocation33] sm:$0xff]
    %v4992 = vld [vmem:[#allocation33 + $0x8] sm:$0xf]
    %v4993 = vld [vmem:[#allocation33 + $0xc] sm:$0xff]
    %v4994 = vld [vmem:[#allocation33 + $0x14] sm:$0xf]
    %v4995 = vld [vmem:[#allocation33 + $0x18] sm:$0xff]
    %v4996 = vld [vmem:[#allocation33 + $0x20] sm:$0xf]
    %v4997 = vld [vmem:[#allocation33 + $0x24] sm:$0xff]
    %v4998 = vld [vmem:[#allocation33 + $0x2c] sm:$0xf]
    %v4999 = vld [vmem:[#allocation33 + $0x30] sm:$0xff]
    %v5000 = vld [vmem:[#allocation33 + $0x38] sm:$0xf]
    %v5001 = vld [vmem:[#allocation33 + $0x3c] sm:$0xff]
    %v5002 = vld [vmem:[#allocation33 + $0x44] sm:$0xf]
    %v5003 = vld [vmem:[#allocation33 + $0x48] sm:$0xff]
    %v5004 = vld [vmem:[#allocation33 + $0x50] sm:$0xf]
    %v5005 = vld [vmem:[#allocation33 + $0x54] sm:$0xff]
    %v5006 = vld [vmem:[#allocation33 + $0x5c] sm:$0xf]
    %v5007 = vld [vmem:[#allocation33 + $0x60] sm:$0xff]
    %v5008 = vld [vmem:[#allocation33 + $0x68] sm:$0xf]
    %v5009 = vld [vmem:[#allocation33 + $0x6c] sm:$0xff]
    %v5010 = vld [vmem:[#allocation33 + $0x74] sm:$0xf]
    %v5011 = vld [vmem:[#allocation33 + $0x78] sm:$0xff]
    %v5012 = vld [vmem:[#allocation33 + $0x80] sm:$0xf]
    %v5013 = vld [vmem:[#allocation33 + $0x84] sm:$0xff]
    %v5014 = vld [vmem:[#allocation33 + $0x8c] sm:$0xf]
    %v5015 = vld [vmem:[#allocation33 + $0x90] sm:$0xff]
    %v5016 = vld [vmem:[#allocation33 + $0x98] sm:$0xf]
    %v5017 = vld [vmem:[#allocation33 + $0x9c] sm:$0xff]
    %v5018 = vld [vmem:[#allocation33 + $0xa4] sm:$0xf]
    %v5019 = vld [vmem:[#allocation33 + $0xa8] sm:$0xff]
    %v5020 = vld [vmem:[#allocation33 + $0xb0] sm:$0xf]
    %v5021 = vld [vmem:[#allocation33 + $0xb4] sm:$0xff]
    %v5022 = vld [vmem:[#allocation33 + $0xbc] sm:$0xf]
    %v5023 = vld [vmem:[#allocation32] sm:$0x7]
    %5025 = vset.pattern.permute.xlu0 0
    %5026 = vperm.xlu0 %5025, %v4990
    %v5027 = vpop.permute.xlu0 %5026
    %v5030 = vlaneseq
    %v5031 = vshrl.u32 %v5030, 7
    %v5032 = vsub.s32 0, %v5031
    %v5033 = vrot.slane %v5023, %v5032
    %v5034 = vlaneseq
    %v5035 = vshrl.u32 %v5034, 7
    %v5036 = vsub.s32 1, %v5035
    %v5037 = vrot.slane %v5023, %v5036
    %v5038 = vlaneseq
    %v5039 = vshrl.u32 %v5038, 7
    %v5040 = vsub.s32 2, %v5039
    %v5041 = vrot.slane %v5023, %v5040
    %v5045 = vmul.f32 %v5027, %v5033
    %v5046 = vmul.f32 %v5027, %v5037
    %v5047 = vmul.f32 %v5027, %v5041
    %v5080 = vunpack.c.l.b16 %v4991
    %v5081 = vunpack.c.h.b16 %v4991
    %v5082 = vunpack.c.l.b16 %v4992
    %v5083 = vunpack.c.l.b16 %v4993
    %v5084 = vunpack.c.h.b16 %v4993
    %v5085 = vunpack.c.l.b16 %v4994
    %v5086 = vunpack.c.l.b16 %v4995
    %v5087 = vunpack.c.h.b16 %v4995
    %v5088 = vunpack.c.l.b16 %v4996
    %v5089 = vunpack.c.l.b16 %v4997
    %v5090 = vunpack.c.h.b16 %v4997
    %v5091 = vunpack.c.l.b16 %v4998
    %v5092 = vunpack.c.l.b16 %v4999
    %v5093 = vunpack.c.h.b16 %v4999
    %v5094 = vunpack.c.l.b16 %v5000
    %v5095 = vunpack.c.l.b16 %v5001
    %v5096 = vunpack.c.h.b16 %v5001
    %v5097 = vunpack.c.l.b16 %v5002
    %v5098 = vunpack.c.l.b16 %v5003
    %v5099 = vunpack.c.h.b16 %v5003
    %v5100 = vunpack.c.l.b16 %v5004
    %v5101 = vunpack.c.l.b16 %v5005
    %v5102 = vunpack.c.h.b16 %v5005
    %v5103 = vunpack.c.l.b16 %v5006
    %v5104 = vunpack.c.l.b16 %v5007
    %v5105 = vunpack.c.h.b16 %v5007
    %v5106 = vunpack.c.l.b16 %v5008
    %v5107 = vunpack.c.l.b16 %v5009
    %v5108 = vunpack.c.h.b16 %v5009
    %v5109 = vunpack.c.l.b16 %v5010
    %v5110 = vunpack.c.l.b16 %v5011
    %v5111 = vunpack.c.h.b16 %v5011
    %v5112 = vunpack.c.l.b16 %v5012
    %v5113 = vunpack.c.l.b16 %v5013
    %v5114 = vunpack.c.h.b16 %v5013
    %v5115 = vunpack.c.l.b16 %v5014
    %v5116 = vunpack.c.l.b16 %v5015
    %v5117 = vunpack.c.h.b16 %v5015
    %v5118 = vunpack.c.l.b16 %v5016
    %v5119 = vunpack.c.l.b16 %v5017
    %v5120 = vunpack.c.h.b16 %v5017
    %v5121 = vunpack.c.l.b16 %v5018
    %v5122 = vunpack.c.l.b16 %v5019
    %v5123 = vunpack.c.h.b16 %v5019
    %v5124 = vunpack.c.l.b16 %v5020
    %v5125 = vunpack.c.l.b16 %v5021
    %v5126 = vunpack.c.h.b16 %v5021
    %v5127 = vunpack.c.l.b16 %v5022
    %v5128 = vpack.c.b16 %v5083, %v5080
    %v5129 = vpack.c.b16 %v5084, %v5081
    %v5130 = vpack.c.b16 %v5085, %v5082
    %v5131 = vpack.c.b16 %v5089, %v5086
    %v5132 = vpack.c.b16 %v5090, %v5087
    %v5133 = vpack.c.b16 %v5091, %v5088
    %v5134 = vpack.c.b16 %v5095, %v5092
    %v5135 = vpack.c.b16 %v5096, %v5093
    %v5136 = vpack.c.b16 %v5097, %v5094
    %v5137 = vpack.c.b16 %v5101, %v5098
    %v5138 = vpack.c.b16 %v5102, %v5099
    %v5139 = vpack.c.b16 %v5103, %v5100
    %v5140 = vpack.c.b16 %v5107, %v5104
    %v5141 = vpack.c.b16 %v5108, %v5105
    %v5142 = vpack.c.b16 %v5109, %v5106
    %v5143 = vpack.c.b16 %v5113, %v5110
    %v5144 = vpack.c.b16 %v5114, %v5111
    %v5145 = vpack.c.b16 %v5115, %v5112
    %v5146 = vpack.c.b16 %v5119, %v5116
    %v5147 = vpack.c.b16 %v5120, %v5117
    %v5148 = vpack.c.b16 %v5121, %v5118
    %v5149 = vpack.c.b16 %v5125, %v5122
    %v5150 = vpack.c.b16 %v5126, %v5123
    %v5151 = vpack.c.b16 %v5127, %v5124
    %5176 = vmatprep.subr.bf16.mxu0 %v5129
    %5177 = vmatpush1.bf16.msra.mxu0 %v5128
    %5178 = vmatprep.subr.bf16.mxu0 %v5132
    %5179 = vmatpush1.bf16.msra.mxu0 %v5131
    %5180 = vmatprep.subr.bf16.mxu0 %v5135
    %5181 = vmatpush1.bf16.msra.mxu0 %v5134
    %5182 = vmatprep.subr.bf16.mxu0 %v5138
    %5183 = vmatpush1.bf16.msra.mxu0 %v5137
    %5184 = vmatprep.subr.bf16.mxu0 %v5141
    %5185 = vmatpush1.bf16.msra.mxu0 %v5140
    %5186 = vmatprep.subr.bf16.mxu0 %v5144
    %5187 = vmatpush1.bf16.msra.mxu0 %v5143
    %5188 = vmatprep.subr.bf16.mxu0 %v5147
    %5189 = vmatpush1.bf16.msra.mxu0 %v5146
    %5190 = vmatprep.subr.bf16.mxu0 %v5150
    %5191 = vmatpush1.bf16.msra.mxu0 %v5149
    %5192 = vmatprep.subr.bf16.mxu0 0
    %5193 = vmatpush1.bf16.msra.mxu0 0
    %5194 = vmatprep.subr.bf16.mxu0 0
    %5195 = vmatpush1.bf16.msra.mxu0 0
    %5196 = vmatprep.subr.bf16.mxu0 0
    %5197 = vmatpush1.bf16.msra.mxu0 0
    %5198 = vmatprep.subr.bf16.mxu0 0
    %5199 = vmatpush1.bf16.msra.mxu0 0
    %5200 = vmatprep.subr.bf16.mxu0 0
    %5201 = vmatpush1.bf16.msra.mxu0 0
    %5202 = vmatprep.subr.bf16.mxu0 0
    %5203 = vmatpush1.bf16.msra.mxu0 0
    %5204 = vmatprep.subr.bf16.mxu0 0
    %5205 = vmatpush1.bf16.msra.mxu0 0
    %5206 = vmatprep.subr.bf16.mxu0 0
    %5207 = vmatpush1.bf16.msra.mxu0 0
    %5208 = vmatprep.mubr.bf16.mxu0 0
    %5209 = vmatmul.mubr.bf16.gmra.mrb[0].mxu0 %v4398
    %v5210 = vpop.f32.mrb[0].mxu0
    %v5211 = vadd.f32 %v5045, %v5210
    %v5212 = vpop.f32.mrb[0].mxu0
    %v5213 = vadd.f32 %v5046, %v5212
    %v5214 = vpop.f32.mrb[0].mxu0
    %v5215 = vpop.f32.mrb[0].mxu0
    %5216 = vdwg.mxu0
    %5217 = vmatprep.subr.bf16.mxu0 0
    %5218 = vmatpush1.bf16.msra.mxu0 %v5130
    %5219 = vmatprep.subr.bf16.mxu0 0
    %5220 = vmatpush1.bf16.msra.mxu0 %v5133
    %5221 = vmatprep.subr.bf16.mxu0 0
    %5222 = vmatpush1.bf16.msra.mxu0 %v5136
    %5223 = vmatprep.subr.bf16.mxu0 0
    %5224 = vmatpush1.bf16.msra.mxu0 %v5139
    %5225 = vmatprep.subr.bf16.mxu0 0
    %5226 = vmatpush1.bf16.msra.mxu0 %v5142
    %5227 = vmatprep.subr.bf16.mxu0 0
    %5228 = vmatpush1.bf16.msra.mxu0 %v5145
    %5229 = vmatprep.subr.bf16.mxu0 0
    %5230 = vmatpush1.bf16.msra.mxu0 %v5148
    %5231 = vmatprep.subr.bf16.mxu0 0
    %5232 = vmatpush1.bf16.msra.mxu0 %v5151
    %5233 = vmatprep.subr.bf16.mxu0 0
    %5234 = vmatpush1.bf16.msra.mxu0 0
    %5235 = vmatprep.subr.bf16.mxu0 0
    %5236 = vmatpush1.bf16.msra.mxu0 0
    %5237 = vmatprep.subr.bf16.mxu0 0
    %5238 = vmatpush1.bf16.msra.mxu0 0
    %5239 = vmatprep.subr.bf16.mxu0 0
    %5240 = vmatpush1.bf16.msra.mxu0 0
    %5241 = vmatprep.subr.bf16.mxu0 0
    %5242 = vmatpush1.bf16.msra.mxu0 0
    %5243 = vmatprep.subr.bf16.mxu0 0
    %5244 = vmatpush1.bf16.msra.mxu0 0
    %5245 = vmatprep.subr.bf16.mxu0 0
    %5246 = vmatpush1.bf16.msra.mxu0 0
    %5247 = vmatprep.subr.bf16.mxu0 0
    %5248 = vmatpush1.bf16.msra.mxu0 0
    %5249 = vmatprep.mubr.bf16.mxu0 0
    %5250 = vmatmul.mubr.bf16.gmra.mrb[0].mxu0 %v4398
    %v5251 = vpop.f32.mrb[0].mxu0
    %v5252 = vadd.f32 %v5047, %v5251
    %v5253 = vpop.f32.mrb[0].mxu0
    %v5254 = vpop.f32.mrb[0].mxu0
    %v5255 = vpop.f32.mrb[0].mxu0
    %5256 = vdwg.mxu0
    %v5257 = vld [vmem:[#allocation35] sm:$0x7]
    %v5259 = vlaneseq
    %v5260 = vshrl.u32 %v5259, 7
    %v5261 = vsub.s32 0, %v5260
    %v5262 = vrot.slane %v5257, %v5261
    %v5263 = vlaneseq
    %v5264 = vshrl.u32 %v5263, 7
    %v5265 = vsub.s32 1, %v5264
    %v5266 = vrot.slane %v5257, %v5265
    %v5267 = vlaneseq
    %v5268 = vshrl.u32 %v5267, 7
    %v5269 = vsub.s32 2, %v5268
    %v5270 = vrot.slane %v5257, %v5269
    %v5274 = vadd.f32 %v5211, %v5262
    %v5275 = vadd.f32 %v5213, %v5266
    %v5276 = vadd.f32 %v5252, %v5270
    %v5277 = vxor.u32 %v5274, 2147483648
    %v5278 = vxor.u32 %v5275, 2147483648
    %v5279 = vxor.u32 %v5276, 2147483648
    %v5280 = vmul.f32 %v5277, 1.442695
    %v5281 = vpow.pop %v5280
    %v5282 = vmul.f32 %v5278, 1.442695
    %v5283 = vpow.pop %v5282
    %v5284 = vmul.f32 %v5279, 1.442695
    %v5285 = vpow.pop %v5284
    %v5286 = vadd.f32 %v5281, 1.0
    %v5287 = vadd.f32 %v5283, 1.0
    %v5288 = vadd.f32 %v5285, 1.0
    %v5289 = vrcp.pop %v5286
    %v5290 = vmul.f32 1.0, %v5289
    %v5291 = vrcp.pop %v5287
    %v5292 = vmul.f32 1.0, %v5291
    %v5293 = vrcp.pop %v5288
    %v5294 = vmul.f32 1.0, %v5293
    %v5295 = vld [vmem:[#allocation36] sm:$0x7]
    %v5297 = vlaneseq
    %v5298 = vshrl.u32 %v5297, 7
    %v5299 = vsub.s32 0, %v5298
    %v5300 = vrot.slane %v5295, %v5299
    %v5301 = vlaneseq
    %v5302 = vshrl.u32 %v5301, 7
    %v5303 = vsub.s32 1, %v5302
    %v5304 = vrot.slane %v5295, %v5303
    %v5305 = vlaneseq
    %v5306 = vshrl.u32 %v5305, 7
    %v5307 = vsub.s32 2, %v5306
    %v5308 = vrot.slane %v5295, %v5307
    %v5312 = vmul.f32 %v5290, %v5300
    %v5313 = vmul.f32 %v5292, %v5304
    %v5314 = vmul.f32 %v5294, %v5308
    %v5315 = vadd.f32 %v5312, %v5313
    %v5316 = vadd.f32 %v5315, %v5314
    %5317 = vadd.xlane.f32.xlu0 %v5316
    %v5318 = vpop.xlane.xlu0 %5317
    %v5319 = vld [vmem:[#allocation7] sm:$0x1]
    %v5321 = vlaneseq
    %v5322 = vshrl.u32 %v5321, 7
    %v5323 = vsub.s32 0, %v5322
    %v5324 = vrot.slane %v5319, %v5323
    %v5326 = vadd.f32 %v5318, %v5324
    %vm5327 = vcmask 7168
    %5328 = vst.msk [vmem:[%s25] sm:$0xff] %vm5327, %v5326
    // Predicated region
    $region182: #{tpu_custom_call.1} parent=1 // pred_check
      _
    $region183: #{tpu_custom_call.1} parent=1 // pred_check_branch
      %5330 = sbr.rel (0) target = $region185
    $region184: #{tpu_custom_call.1} parent=1 // pred_region
      _
    $region185: #{tpu_custom_call.1} parent=1 // pred_fallthru
      _
    // Predicated region
    $region186: #{tpu_custom_call.1} parent=1 // pred_check
      _
    $region187: #{tpu_custom_call.1} parent=1 // pred_check_branch
      %5332 = sbr.rel (0) target = $region189
    $region188: #{tpu_custom_call.1} parent=1 // pred_region
      _
    $region189: #{tpu_custom_call.1} parent=1 // pred_fallthru
      _
    %5333 = vsyncpa [#allocation9], 1
    %5334 = vsyncpa [#allocation12], 1
    %5335 = vsyncpa [#allocation15], 1
    %5336 = vsyncpa [#allocation18], 1
    %5337 = vsyncpa [#allocation21], 1
    %5338 = vsyncpa [#allocation25], 1
    %5339 = vsyncpa [#allocation28], 1
    %5340 = vsyncpa [#allocation31], 1
    %5341 = vsyncpa [#allocation34], 1
    %5342 = vsyncpa [#allocation37], 1
    %5343 = vsyncpa [#allocation10], 1
  %5344 = vsyncmov [#allocation5]
  %s5345 = vpop.sfrf %5344
  %p5346 = scmp.eq.s32.totalorder %s5345, 0
  %p5347 = pneg %p5346
  %5349 = shalt.err (%p5347)
  %s5350 = scalar_lea.sflag [#allocation5], 1
  %5351 = vsyncmov %s5350
  %s5352 = vpop.sfrf %5351
  %p5353 = scmp.eq.s32.totalorder %s5352, 0
  %p5354 = pneg %p5353
  %5356 = shalt.err (%p5354)
  %s5357 = scalar_lea.sflag [#allocation5], 2
  %5358 = vsyncmov %s5357
  %s5359 = vpop.sfrf %5358
  %p5360 = scmp.eq.s32.totalorder %s5359, 0
  %p5361 = pneg %p5360
  %5363 = shalt.err (%p5361)
  %s5364 = scalar_lea.sflag [#allocation5], 3
  %5365 = vsyncmov %s5364
  %s5366 = vpop.sfrf %5365
  %p5367 = scmp.eq.s32.totalorder %s5366, 0
  %p5368 = pneg %p5367
  %5370 = shalt.err (%p5368)
  %s5371 = scalar_lea.sflag [#allocation5], 4
  %5372 = vsyncmov %s5371
  %s5373 = vpop.sfrf %5372
  %p5374 = scmp.eq.s32.totalorder %s5373, 0
  %p5375 = pneg %p5374
  %5377 = shalt.err (%p5375)
  %s5378 = scalar_lea.sflag [#allocation5], 5
  %5379 = vsyncmov %s5378
  %s5380 = vpop.sfrf %5379
  %p5381 = scmp.eq.s32.totalorder %s5380, 0
  %p5382 = pneg %p5381
  %5384 = shalt.err (%p5382)

</llo_original>
